<compile_context>
chip_gen: v7x
topology: tpu7x:2x2x1
jax: 0.10.0
libtpu: 0.0.40
codegen_flags: <defaults>
</compile_context>

<pallas_src>
import jax
import jax.numpy as jnp
from jax import lax
from jax.experimental import pallas as pl
from jax.experimental.pallas import tpu as pltpu


CNN_DIM = 2048
TEXT_DIM = 64
EMBED = CNN_DIM + TEXT_DIM        # 2112
HEADS = 8                         # irrelevant at seq_len == 1 (softmax == 1)
FC1 = 512
FC2 = 256

TILE_N = 352                      # 2112 / 352 = 6 grid steps, mult. of 16 (bf16 sublane)
assert EMBED % TILE_N == 0

_VMEM_LIMIT = 32 << 20            # safe raise over v5e's 16 MiB scoped default

# transposed-LHS contraction: out[m, n] = sum_k lhs[k, m] * rhs[k, n]
_TRANS_LHS = (((0,), (0,)), ((), ()))


# --------------------------------------------------------------------------------------
# Fused kernel: front-end  +  folded attention (w_ov stream)  +  fc1 accumulate  +  head
# --------------------------------------------------------------------------------------
def _fused_kernel(imgT_ref, metaT_ref, wcnn_ref, wmeta_ref,          # front-end
                  wov_ref, wfc1t_ref,                                 # streamed tiles
                  b1_ref, wfc2_ref, b2_ref, wfc3t_ref, b3_ref,        # head (resident)
                  o_ref,                                              # (B, nc)
                  x_ref, acc_ref):                                    # VMEM scratch
    j = pl.program_id(0)

    # ---- step 0: front-end (pool + CNN stand-in linear + metadata linear + concat) ----
    @pl.when(j == 0)
    def _frontend():
        # imgT_aug: (C+1, B, HW); the extra all-ones channel turns b_cnn (last column of
        # wcnn_aug) into a plain weight column.  Mean over spatial = lane reduction.
        pooled = jnp.mean(imgT_ref[...], axis=-1)                       # (C+1, B), last row == 1
        # TODO(synk): pretrained ResNet-50 backbone is not reproducible without a
        # checkpoint; replaced by a deterministic global-avg-pool + Linear(C->2048)+ReLU.
        img_f = jnp.dot(wcnn_ref[...], pooled,
                        preferred_element_type=jnp.float32)             # (2048, B)
        meta_f = jnp.dot(wmeta_ref[...], metaT_ref[...],
                         preferred_element_type=jnp.float32)            # (64, B)
        # torch.cat((image_features, metadata_features), dim=1), kept in VMEM as bf16
        x_ref[0:CNN_DIM, :] = jnp.maximum(img_f, 0.0).astype(jnp.bfloat16)
        x_ref[CNN_DIM:EMBED, :] = jnp.maximum(meta_f, 0.0).astype(jnp.bfloat16)
        acc_ref[...] = jnp.zeros_like(acc_ref)

    # ---- every step: stream TILE_N rows of the folded attention projection ----
    # attn rows [j*TILE_N, (j+1)*TILE_N)  =  w_ov_tile @ x          (bf16 x bf16 -> f32)
    attn_tile = jnp.dot(wov_ref[...], x_ref[...],
                        preferred_element_type=jnp.float32)              # (TILE_N, B)
    # fc1 partial: acc(512, B) += W_fc1[:, tile] @ attn_tile, with W_fc1 stored
    # transposed (TILE_N, 512) so the streamed block stays (mult-of-16, mult-of-128).
    acc_ref[...] += lax.dot_general(
        wfc1t_ref[...], attn_tile.astype(jnp.bfloat16),
        dimension_numbers=_TRANS_LHS, preferred_element_type=jnp.float32)

    # ---- last step: finish the classifier head and store (B, nc) logits ----
    @pl.when(j == pl.num_programs(0) - 1)
    def _head():
        # b1_ref already contains W_fc1 @ b_ov + b_fc1 (b_ov folded at prepare time).
        h1 = jnp.maximum(acc_ref[...] + b1_ref[...], 0.0)                # (512, B)
        h2 = jnp.dot(wfc2_ref[...], h1.astype(jnp.bfloat16),
                     preferred_element_type=jnp.float32) + b2_ref[...]   # (256, B)
        h2 = jnp.maximum(h2, 0.0)
        logits = lax.dot_general(h2, wfc3t_ref[...],                     # (B, nc)
                                 dimension_numbers=_TRANS_LHS,
                                 preferred_element_type=jnp.float32)
        o_ref[...] = logits + b3_ref[...]


def multimodal_forward(prepared, image, metadata):
    B, C, H, W = image.shape
    V = metadata.shape[1]
    HW = H * W
    nc = prepared["w_fc3t"].shape[1]

    # Layout plumbing (tiny): (C, B, HW) image slab + appended all-ones channel / row so
    # the cnn / metadata biases are ordinary weight columns inside the kernel.
    imgT = jnp.transpose(image.reshape(B, C, HW), (1, 0, 2))
    imgT_aug = jnp.concatenate([imgT, jnp.ones((1, B, HW), imgT.dtype)], axis=0)
    metaT_aug = jnp.concatenate([metadata.T, jnp.ones((1, B), metadata.dtype)], axis=0)

    n_tiles = EMBED // TILE_N
    return pl.pallas_call(
        _fused_kernel,
        out_shape=jax.ShapeDtypeStruct((B, nc), jnp.float32),
        grid_spec=pltpu.PrefetchScalarGridSpec(
            num_scalar_prefetch=0,
            grid=(n_tiles,),
            in_specs=[
                pl.BlockSpec((C + 1, B, HW), lambda j: (0, 0, 0)),      # imgT_aug (resident)
                pl.BlockSpec((V + 1, B), lambda j: (0, 0)),             # metaT_aug
                pl.BlockSpec((CNN_DIM, C + 1), lambda j: (0, 0)),       # w_cnn_aug (f32, tiny)
                pl.BlockSpec((TEXT_DIM, V + 1), lambda j: (0, 0)),      # w_meta_aug
                pl.BlockSpec((TILE_N, EMBED), lambda j: (j, 0)),        # w_ov row tile (bf16)
                pl.BlockSpec((TILE_N, FC1), lambda j: (j, 0)),          # w_fc1^T co-tile (bf16)
                pl.BlockSpec((FC1, 1), lambda j: (0, 0)),               # b_fc1_eff (resident)
                pl.BlockSpec((FC2, FC1), lambda j: (0, 0)),             # w_fc2 (bf16, resident)
                pl.BlockSpec((FC2, 1), lambda j: (0, 0)),               # b_fc2
                pl.BlockSpec((FC2, nc), lambda j: (0, 0)),              # w_fc3^T (f32, tiny)
                pl.BlockSpec((1, nc), lambda j: (0, 0)),                # b_fc3 row
            ],
            out_specs=pl.BlockSpec((B, nc), lambda j: (0, 0)),
            scratch_shapes=[
                pltpu.VMEM((EMBED, B), jnp.bfloat16),                   # x (concat features)
                pltpu.VMEM((FC1, B), jnp.float32),                      # fc1 accumulator
            ],
        ),
        # The streamed axis carries the fc1 reduction -> "arbitrary".  (A v7x dual-core
        # split would need per-core accumulators + handoff; fusion wins more here.)
        compiler_params=pltpu.CompilerParams(
            dimension_semantics=("arbitrary",), vmem_limit_bytes=_VMEM_LIMIT),
    )(imgT_aug, metaT_aug,
      prepared["w_cnn_aug"], prepared["w_meta_aug"],
      prepared["w_ov"], prepared["w_fc1t"],
      prepared["b_fc1_eff"], prepared["w_fc2"], prepared["b_fc2"],
      prepared["w_fc3t"], prepared["b_fc3"])


# --------------------------------------------------------------------------------------
# Parameter init (faithful module parameter set, f32) + deployment preparation
# --------------------------------------------------------------------------------------
def _init_linear(key, n_out, n_in):
    kw, kb = jax.random.split(key)
    bound = 1.0 / jnp.sqrt(jnp.float32(n_in))
    w = jax.random.uniform(kw, (n_out, n_in), jnp.float32, -bound, bound)
    b = jax.random.uniform(kb, (n_out, 1), jnp.float32, -bound, bound)
    return w, b


def init_params(key, num_classes=10, vocab_size=76, in_ch=3):
    keys = jax.random.split(key, 10)
    p = {}
    p["w_cnn"], p["b_cnn"] = _init_linear(keys[0], CNN_DIM, in_ch)
    p["w_meta"], p["b_meta"] = _init_linear(keys[1], TEXT_DIM, vocab_size)
    p["w_q"], p["b_q"] = _init_linear(keys[2], EMBED, EMBED)
    p["w_k"], p["b_k"] = _init_linear(keys[3], EMBED, EMBED)
    p["w_v"], p["b_v"] = _init_linear(keys[4], EMBED, EMBED)
    p["w_o"], p["b_o"] = _init_linear(keys[5], EMBED, EMBED)
    p["w_fc1"], p["b_fc1"] = _init_linear(keys[6], FC1, EMBED)
    p["w_fc2"], p["b_fc2"] = _init_linear(keys[7], FC2, FC1)
    p["w_fc3"], p["b_fc3"] = _init_linear(keys[8], num_classes, FC2)
    return p


def prepare_params(p):
    """One-time folds: drop dead Q/K, fold W_o@W_v, fold b_ov through fc1, fold b_cnn /
    b_meta in as weight columns, transpose fc1/fc3, cast big weights to bf16."""
    w_ov = p["w_o"] @ p["w_v"]                               # (E, E) f32 fold
    b_ov = p["w_o"] @ p["b_v"] + p["b_o"]                    # (E, 1)
    b_fc1_eff = p["w_fc1"] @ b_ov + p["b_fc1"]               # (512, 1) — b_ov folded forward
    return {
        "w_cnn_aug": jnp.concatenate([p["w_cnn"], p["b_cnn"]], axis=1),    # (2048, C+1)
        "w_meta_aug": jnp.concatenate([p["w_meta"], p["b_meta"]], axis=1), # (64, V+1)
        "w_ov": w_ov.astype(jnp.bfloat16),                                 # (E, E)
        "w_fc1t": p["w_fc1"].T.astype(jnp.bfloat16),                       # (E, 512)
        "b_fc1_eff": b_fc1_eff,                                            # (512, 1) f32
        "w_fc2": p["w_fc2"].astype(jnp.bfloat16),                          # (256, 512)
        "b_fc2": p["b_fc2"],                                               # (256, 1) f32
        "w_fc3t": p["w_fc3"].T,                                            # (256, nc) f32
        "b_fc3": p["b_fc3"].T,                                             # (1, nc) f32
    }


# --------------------------------------------------------------------------------------
# Pure-JAX references
# --------------------------------------------------------------------------------------
def reference_prepared(p, image, metadata):
    """Same math as the Pallas kernel (same prepared params, same bf16 casts)."""
    relu = lambda t: jnp.maximum(t, 0.0)
    B, C, H, W = image.shape
    pooled = jnp.mean(image.reshape(B, C, H * W), axis=-1)                      # (B, C)
    pooled_aug = jnp.concatenate([pooled, jnp.ones((B, 1), pooled.dtype)], 1)
    img_f = relu(pooled_aug @ p["w_cnn_aug"].T)
    meta_aug = jnp.concatenate([metadata, jnp.ones((B, 1), metadata.dtype)], 1)
    meta_f = relu(meta_aug @ p["w_meta_aug"].T)
    x = jnp.concatenate([img_f, meta_f], axis=1).astype(jnp.bfloat16)           # (B, E)
    attn = jnp.dot(x, p["w_ov"].T, preferred_element_type=jnp.float32)          # (B, E)
    h = jnp.dot(attn.astype(jnp.bfloat16), p["w_fc1t"],
                preferred_element_type=jnp.float32) + p["b_fc1_eff"][:, 0]
    h = relu(h)
    h = jnp.dot(h.astype(jnp.bfloat16), p["w_fc2"].T,
                preferred_element_type=jnp.float32) + p["b_fc2"][:, 0]
    h = relu(h)
    return jnp.dot(h, p["w_fc3t"]) + p["b_fc3"][0]


def reference_full(params, image, metadata):
    """Faithful f32 math of the original module (full MHA path incl. Q/K, unfolded)."""
    relu = lambda t: jnp.maximum(t, 0.0)
    B, C, H, W = image.shape
    pooled = jnp.mean(image.reshape(B, C, H * W), axis=-1)
    img_feat = relu(pooled @ params["w_cnn"].T + params["b_cnn"][:, 0])
    meta = relu(metadata @ params["w_meta"].T + params["b_meta"][:, 0])
    x = jnp.concatenate([img_feat, meta], axis=1)
    q = x @ params["w_q"].T + params["b_q"][:, 0]
    k = x @ params["w_k"].T + params["b_k"][:, 0]
    v = x @ params["w_v"].T + params["b_v"][:, 0]
    dh = EMBED // HEADS
    s = jnp.sum(q.reshape(B, HEADS, dh) / jnp.sqrt(jnp.float32(dh))
                * k.reshape(B, HEADS, dh), axis=-1, keepdims=True)
    pw = jax.nn.softmax(s, axis=-1)      # softmax over the single key -> exactly 1
    attn = (pw * v.reshape(B, HEADS, dh)).reshape(B, EMBED)
    out = attn @ params["w_o"].T + params["b_o"][:, 0]
    h = relu(out @ params["w_fc1"].T + params["b_fc1"][:, 0])
    h = relu(h @ params["w_fc2"].T + params["b_fc2"][:, 0])
    return h @ params["w_fc3"].T + params["b_fc3"][:, 0]


# --------------------------------------------------------------------------------------
if __name__ == "__main__":
    B, C, S = 2, 3, 16
    VOCAB, NUM_CLASSES = 76, 10

    key = jax.random.PRNGKey(0)
    k_img, k_meta, k_param = jax.random.split(key, 3)
    image = jax.random.normal(k_img, (B, C, S, S), jnp.float32)        # NCHW
    metadata = jax.random.normal(k_meta, (B, VOCAB), jnp.float32)
    params = init_params(k_param, num_classes=NUM_CLASSES, vocab_size=VOCAB, in_ch=C)
    prepared = prepare_params(params)

    out = jax.jit(multimodal_forward)(prepared, image, metadata)
    out = jax.block_until_ready(out)
    assert out.shape == (B, NUM_CLASSES), out.shape

    # Tight check: fused Pallas kernel vs plain-XLA math with identical prepared params
    # (same bf16 weight/activation casts).
    ref_p = reference_prepared(prepared, image, metadata)
    assert bool(jnp.allclose(out, ref_p, rtol=2e-3, atol=2e-3)), "mismatch vs prepared reference"

    # Loose check: Q/K drop + W_o@W_v / bias folds + bf16 weights & activations vs the
    # faithful f32 MHA path.
    ref_f = reference_full(params, image, metadata)
    assert bool(jnp.allclose(out, ref_f, rtol=5e-2, atol=1e-2)), "mismatch vs full f32 reference"

    print("KERNEL_OK")
</pallas_src>

<mosaic_0001>
module attributes {stable_mosaic.version = 11 : i64} {
  func.func @_fused_kernel(%arg0: i32, %arg1: memref<4x2x256xf32, #tpu.memory_space<vmem>>, %arg2: memref<77x2xf32, #tpu.memory_space<vmem>>, %arg3: memref<2048x4xf32, #tpu.memory_space<vmem>>, %arg4: memref<64x77xf32, #tpu.memory_space<vmem>>, %arg5: memref<352x2112xbf16, #tpu.memory_space<vmem>>, %arg6: memref<352x512xbf16, #tpu.memory_space<vmem>>, %arg7: memref<512x1xf32, #tpu.memory_space<vmem>>, %arg8: memref<256x512xbf16, #tpu.memory_space<vmem>>, %arg9: memref<256x1xf32, #tpu.memory_space<vmem>>, %arg10: memref<256x10xf32, #tpu.memory_space<vmem>>, %arg11: memref<1x10xf32, #tpu.memory_space<vmem>>, %arg12: memref<2x10xf32, #tpu.memory_space<vmem>>, %arg13: memref<2112x2xbf16, #tpu.memory_space<vmem>>, %arg14: memref<512x2xf32, #tpu.memory_space<vmem>>) attributes {dimension_semantics = [#tpu.dimension_semantics<arbitrary>], iteration_bounds = array<i64: 6>, scalar_prefetch = 0 : i64, scratch_operands = 2 : i64, tpu.core_type = #tpu.core_type<tc>, window_params = [{pipeline_mode = #tpu.pipeline_mode<synchronous>, transform_indices = @transform_0, window_bounds = array<i64: 4, 2, 256>}, {pipeline_mode = #tpu.pipeline_mode<synchronous>, transform_indices = @transform_1, window_bounds = array<i64: 77, 2>}, {pipeline_mode = #tpu.pipeline_mode<synchronous>, transform_indices = @transform_2, window_bounds = array<i64: 2048, 4>}, {pipeline_mode = #tpu.pipeline_mode<synchronous>, transform_indices = @transform_3, window_bounds = array<i64: 64, 77>}, {transform_indices = @transform_4, window_bounds = array<i64: 352, 2112>}, {transform_indices = @transform_5, window_bounds = array<i64: 352, 512>}, {pipeline_mode = #tpu.pipeline_mode<synchronous>, transform_indices = @transform_6, window_bounds = array<i64: 512, 1>}, {pipeline_mode = #tpu.pipeline_mode<synchronous>, transform_indices = @transform_7, window_bounds = array<i64: 256, 512>}, {pipeline_mode = #tpu.pipeline_mode<synchronous>, transform_indices = @transform_8, window_bounds = array<i64: 256, 1>}, {pipeline_mode = #tpu.pipeline_mode<synchronous>, transform_indices = @transform_9, window_bounds = array<i64: 256, 10>}, {pipeline_mode = #tpu.pipeline_mode<synchronous>, transform_indices = @transform_10, window_bounds = array<i64: 1, 10>}, {pipeline_mode = #tpu.pipeline_mode<synchronous>, transform_indices = @transform_11, window_bounds = array<i64: 2, 10>}]} {
    %c0_i32 = arith.constant 0 : i32
    %0 = arith.cmpi eq, %arg0, %c0_i32 : i32
    %1 = arith.extui %0 : i1 to i32
    %c0_i32_0 = arith.constant 0 : i32
    %2 = arith.cmpi ne, %1, %c0_i32_0 : i32
    scf.if %2 {
      %c0_12 = arith.constant 0 : index
      %c0_13 = arith.constant 0 : index
      %c0_14 = arith.constant 0 : index
      %15 = vector.load %arg1[%c0_12, %c0_13, %c0_14] : memref<4x2x256xf32, #tpu.memory_space<vmem>>, vector<4x2x256xf32>
      %cst_15 = arith.constant dense<0.000000e+00> : vector<4x2xf32>
      %16 = vector.multi_reduction <add>, %15, %cst_15 [2] : vector<4x2x256xf32> to vector<4x2xf32>
      %cst_16 = arith.constant 2.560000e+02 : f32
      %17 = vector.broadcast %cst_16 : f32 to vector<4x2xf32>
      %18 = arith.divf %16, %17 : vector<4x2xf32>
      %c0_17 = arith.constant 0 : index
      %c0_18 = arith.constant 0 : index
      %19 = vector.load %arg3[%c0_17, %c0_18] : memref<2048x4xf32, #tpu.memory_space<vmem>>, vector<2048x4xf32>
      %cst_19 = arith.constant dense<0.000000e+00> : vector<2048x2xf32>
      %20 = tpu.matmul %19, %18, %cst_19 {dimension_numbers = #tpu.dot_dimension_numbers<[1], [0], [0], [1], [0, 0, 1, 1], [], []>} : vector<2048x4xf32>, vector<4x2xf32>, vector<2048x2xf32> -> vector<2048x2xf32>
      %c0_20 = arith.constant 0 : index
      %c0_21 = arith.constant 0 : index
      %21 = vector.load %arg4[%c0_20, %c0_21] : memref<64x77xf32, #tpu.memory_space<vmem>>, vector<64x77xf32>
      %c0_22 = arith.constant 0 : index
      %c0_23 = arith.constant 0 : index
      %22 = vector.load %arg2[%c0_22, %c0_23] : memref<77x2xf32, #tpu.memory_space<vmem>>, vector<77x2xf32>
      %cst_24 = arith.constant dense<0.000000e+00> : vector<64x2xf32>
      %23 = tpu.matmul %21, %22, %cst_24 {dimension_numbers = #tpu.dot_dimension_numbers<[1], [0], [0], [1], [0, 0, 1, 1], [], []>} : vector<64x77xf32>, vector<77x2xf32>, vector<64x2xf32> -> vector<64x2xf32>
      %cst_25 = arith.constant 0.000000e+00 : f32
      %24 = vector.broadcast %cst_25 : f32 to vector<2048x2xf32>
      %25 = arith.maximumf %20, %24 : vector<2048x2xf32>
      %26 = arith.truncf %25 : vector<2048x2xf32> to vector<2048x2xbf16>
      %c0_26 = arith.constant 0 : index
      %c0_27 = arith.constant 0 : index
      %27 = vector.load %arg13[%c0_26, %c0_27] : memref<2112x2xbf16, #tpu.memory_space<vmem>>, vector<2048x2xbf16>
      tpu.vector_store %arg13[%c0_26, %c0_27], %26 {strides = array<i32>} : memref<2112x2xbf16, #tpu.memory_space<vmem>>, vector<2048x2xbf16>,
      %cst_28 = arith.constant 0.000000e+00 : f32
      %28 = vector.broadcast %cst_28 : f32 to vector<64x2xf32>
      %29 = arith.maximumf %23, %28 : vector<64x2xf32>
      %30 = arith.truncf %29 : vector<64x2xf32> to vector<64x2xbf16>
      %c2048 = arith.constant 2048 : index
      %c0_29 = arith.constant 0 : index
      %31 = vector.load %arg13[%c2048, %c0_29] : memref<2112x2xbf16, #tpu.memory_space<vmem>>, vector<64x2xbf16>
      tpu.vector_store %arg13[%c2048, %c0_29], %30 {strides = array<i32>} : memref<2112x2xbf16, #tpu.memory_space<vmem>>, vector<64x2xbf16>,
      %cst_30 = arith.constant 0.000000e+00 : f32
      %32 = vector.broadcast %cst_30 : f32 to vector<512x2xf32>
      %c0_31 = arith.constant 0 : index
      %c0_32 = arith.constant 0 : index
      %33 = vector.load %arg14[%c0_31, %c0_32] : memref<512x2xf32, #tpu.memory_space<vmem>>, vector<512x2xf32>
      tpu.vector_store %arg14[%c0_31, %c0_32], %32 {strides = array<i32>} : memref<512x2xf32, #tpu.memory_space<vmem>>, vector<512x2xf32>,
    } else {
    }
    %c0 = arith.constant 0 : index
    %c0_1 = arith.constant 0 : index
    %3 = vector.load %arg5[%c0, %c0_1] : memref<352x2112xbf16, #tpu.memory_space<vmem>>, vector<352x2112xbf16>
    %c0_2 = arith.constant 0 : index
    %c0_3 = arith.constant 0 : index
    %4 = vector.load %arg13[%c0_2, %c0_3] : memref<2112x2xbf16, #tpu.memory_space<vmem>>, vector<2112x2xbf16>
    %cst = arith.constant dense<0.000000e+00> : vector<352x2xf32>
    %5 = tpu.matmul %3, %4, %cst {dimension_numbers = #tpu.dot_dimension_numbers<[1], [0], [0], [1], [0, 0, 1, 1], [], []>} : vector<352x2112xbf16>, vector<2112x2xbf16>, vector<352x2xf32> -> vector<352x2xf32>
    %c0_4 = arith.constant 0 : index
    %c0_5 = arith.constant 0 : index
    %6 = vector.load %arg14[%c0_4, %c0_5] : memref<512x2xf32, #tpu.memory_space<vmem>>, vector<512x2xf32>
    %c0_6 = arith.constant 0 : index
    %c0_7 = arith.constant 0 : index
    %7 = vector.load %arg6[%c0_6, %c0_7] : memref<352x512xbf16, #tpu.memory_space<vmem>>, vector<352x512xbf16>
    %8 = arith.truncf %5 : vector<352x2xf32> to vector<352x2xbf16>
    %cst_8 = arith.constant dense<0.000000e+00> : vector<512x2xf32>
    %9 = tpu.matmul %7, %8, %cst_8 {dimension_numbers = #tpu.dot_dimension_numbers<[0], [0], [1], [1], [0, 1, 1, 1], [], []>} : vector<352x512xbf16>, vector<352x2xbf16>, vector<512x2xf32> -> vector<512x2xf32>
    %10 = arith.addf %6, %9 : vector<512x2xf32>
    %c0_9 = arith.constant 0 : index
    %c0_10 = arith.constant 0 : index
    %11 = vector.load %arg14[%c0_9, %c0_10] : memref<512x2xf32, #tpu.memory_space<vmem>>, vector<512x2xf32>
    tpu.vector_store %arg14[%c0_9, %c0_10], %10 {strides = array<i32>} : memref<512x2xf32, #tpu.memory_space<vmem>>, vector<512x2xf32>,
    %c5_i32 = arith.constant 5 : i32
    %12 = arith.cmpi eq, %arg0, %c5_i32 : i32
    %13 = arith.extui %12 : i1 to i32
    %c0_i32_11 = arith.constant 0 : i32
    %14 = arith.cmpi ne, %13, %c0_i32_11 : i32
    scf.if %14 {
      %c0_12 = arith.constant 0 : index
      %c0_13 = arith.constant 0 : index
      %15 = vector.load %arg14[%c0_12, %c0_13] : memref<512x2xf32, #tpu.memory_space<vmem>>, vector<512x2xf32>
      %c0_14 = arith.constant 0 : index
      %c0_15 = arith.constant 0 : index
      %16 = vector.load %arg7[%c0_14, %c0_15] : memref<512x1xf32, #tpu.memory_space<vmem>>, vector<512x1xf32>
      %17 = vector.broadcast %16 : vector<512x1xf32> to vector<512x2xf32>
      %18 = arith.addf %15, %17 : vector<512x2xf32>
      %cst_16 = arith.constant 0.000000e+00 : f32
      %19 = vector.broadcast %cst_16 : f32 to vector<512x2xf32>
      %20 = arith.maximumf %18, %19 : vector<512x2xf32>
      %c0_17 = arith.constant 0 : index
      %c0_18 = arith.constant 0 : index
      %21 = vector.load %arg8[%c0_17, %c0_18] : memref<256x512xbf16, #tpu.memory_space<vmem>>, vector<256x512xbf16>
      %22 = arith.truncf %20 : vector<512x2xf32> to vector<512x2xbf16>
      %cst_19 = arith.constant dense<0.000000e+00> : vector<256x2xf32>
      %23 = tpu.matmul %21, %22, %cst_19 {dimension_numbers = #tpu.dot_dimension_numbers<[1], [0], [0], [1], [0, 0, 1, 1], [], []>} : vector<256x512xbf16>, vector<512x2xbf16>, vector<256x2xf32> -> vector<256x2xf32>
      %c0_20 = arith.constant 0 : index
      %c0_21 = arith.constant 0 : index
      %24 = vector.load %arg9[%c0_20, %c0_21] : memref<256x1xf32, #tpu.memory_space<vmem>>, vector<256x1xf32>
      %25 = vector.broadcast %24 : vector<256x1xf32> to vector<256x2xf32>
      %26 = arith.addf %23, %25 : vector<256x2xf32>
      %cst_22 = arith.constant 0.000000e+00 : f32
      %27 = vector.broadcast %cst_22 : f32 to vector<256x2xf32>
      %28 = arith.maximumf %26, %27 : vector<256x2xf32>
      %c0_23 = arith.constant 0 : index
      %c0_24 = arith.constant 0 : index
      %29 = vector.load %arg10[%c0_23, %c0_24] : memref<256x10xf32, #tpu.memory_space<vmem>>, vector<256x10xf32>
      %cst_25 = arith.constant dense<0.000000e+00> : vector<2x10xf32>
      %30 = tpu.matmul %28, %29, %cst_25 {dimension_numbers = #tpu.dot_dimension_numbers<[0], [0], [1], [1], [0, 1, 1, 1], [], []>} : vector<256x2xf32>, vector<256x10xf32>, vector<2x10xf32> -> vector<2x10xf32>
      %c0_26 = arith.constant 0 : index
      %c0_27 = arith.constant 0 : index
      %31 = vector.load %arg11[%c0_26, %c0_27] : memref<1x10xf32, #tpu.memory_space<vmem>>, vector<1x10xf32>
      %32 = vector.broadcast %31 : vector<1x10xf32> to vector<2x10xf32>
      %33 = arith.addf %30, %32 : vector<2x10xf32>
      %c0_28 = arith.constant 0 : index
      %c0_29 = arith.constant 0 : index
      %34 = vector.load %arg12[%c0_28, %c0_29] : memref<2x10xf32, #tpu.memory_space<vmem>>, vector<2x10xf32>
      tpu.vector_store %arg12[%c0_28, %c0_29], %33 {strides = array<i32>} : memref<2x10xf32, #tpu.memory_space<vmem>>, vector<2x10xf32>,
    } else {
    }
    return
  }
  func.func @transform_0(%arg0: i32) -> (i32, i32, i32) {
    %c0_i32 = arith.constant 0 : i32
    %c0_i32_0 = arith.constant 0 : i32
    %c0_i32_1 = arith.constant 0 : i32
    %c0_i32_2 = arith.constant 0 : i32
    return %c0_i32, %c0_i32_0, %c0_i32_1 : i32, i32, i32
  }
  func.func @transform_1(%arg0: i32) -> (i32, i32) {
    %c0_i32 = arith.constant 0 : i32
    %c0_i32_0 = arith.constant 0 : i32
    %c0_i32_1 = arith.constant 0 : i32
    return %c0_i32, %c0_i32_0 : i32, i32
  }
  func.func @transform_2(%arg0: i32) -> (i32, i32) {
    %c0_i32 = arith.constant 0 : i32
    %c0_i32_0 = arith.constant 0 : i32
    %c0_i32_1 = arith.constant 0 : i32
    return %c0_i32, %c0_i32_0 : i32, i32
  }
  func.func @transform_3(%arg0: i32) -> (i32, i32) {
    %c0_i32 = arith.constant 0 : i32
    %c0_i32_0 = arith.constant 0 : i32
    %c0_i32_1 = arith.constant 0 : i32
    return %c0_i32, %c0_i32_0 : i32, i32
  }
  func.func @transform_4(%arg0: i32) -> (i32, i32) {
    %c0_i32 = arith.constant 0 : i32
    %c0_i32_0 = arith.constant 0 : i32
    return %arg0, %c0_i32 : i32, i32
  }
  func.func @transform_5(%arg0: i32) -> (i32, i32) {
    %c0_i32 = arith.constant 0 : i32
    %c0_i32_0 = arith.constant 0 : i32
    return %arg0, %c0_i32 : i32, i32
  }
  func.func @transform_6(%arg0: i32) -> (i32, i32) {
    %c0_i32 = arith.constant 0 : i32
    %c0_i32_0 = arith.constant 0 : i32
    %c0_i32_1 = arith.constant 0 : i32
    return %c0_i32, %c0_i32_0 : i32, i32
  }
  func.func @transform_7(%arg0: i32) -> (i32, i32) {
    %c0_i32 = arith.constant 0 : i32
    %c0_i32_0 = arith.constant 0 : i32
    %c0_i32_1 = arith.constant 0 : i32
    return %c0_i32, %c0_i32_0 : i32, i32
  }
  func.func @transform_8(%arg0: i32) -> (i32, i32) {
    %c0_i32 = arith.constant 0 : i32
    %c0_i32_0 = arith.constant 0 : i32
    %c0_i32_1 = arith.constant 0 : i32
    return %c0_i32, %c0_i32_0 : i32, i32
  }
  func.func @transform_9(%arg0: i32) -> (i32, i32) {
    %c0_i32 = arith.constant 0 : i32
    %c0_i32_0 = arith.constant 0 : i32
    %c0_i32_1 = arith.constant 0 : i32
    return %c0_i32, %c0_i32_0 : i32, i32
  }
  func.func @transform_10(%arg0: i32) -> (i32, i32) {
    %c0_i32 = arith.constant 0 : i32
    %c0_i32_0 = arith.constant 0 : i32
    %c0_i32_1 = arith.constant 0 : i32
    return %c0_i32, %c0_i32_0 : i32, i32
  }
  func.func @transform_11(%arg0: i32) -> (i32, i32) {
    %c0_i32 = arith.constant 0 : i32
    %c0_i32_0 = arith.constant 0 : i32
    %c0_i32_1 = arith.constant 0 : i32
    return %c0_i32, %c0_i32_0 : i32, i32
  }
}

</mosaic_0001>

<llo_original>
// kernel: multimodal_forward.1
$region0: #{multimodal_forward.1}
  #allocation0 [shape = 'u32[]', space=smem, size = 0x4, offset = 0x4, fixed_abs, tag = 'smem constant byte address 0x4 - core index']
  #allocation1 [shape = 'u32[144,128]{1,0:T(1,128)}', space=vmem, size = 0x12000, scoped, tag = 'internal scratch']
  #allocation2 [shape = 'bf16[2112,2]{1,0:T(16,128)(2,1)}', space=vmem, size = 0x84000, scoped, tag = 'scratch operand']
  #allocation3 [shape = 'f32[512,2]{1,0:T(8,128)}', space=vmem, size = 0x40000, scoped, tag = 'scratch operand']
  %s0 = inlined_call_operand.vmem [shape: f32[4,2,256], index: 0, kind: input, shape index: {}]
  %s1 = inlined_call_operand.vmem [shape: f32[77,2], index: 1, kind: input, shape index: {}]
  %s2 = inlined_call_operand.vmem [shape: f32[2048,4], index: 2, kind: input, shape index: {}]
  %s3 = inlined_call_operand.hbm [shape: f32[64,77], index: 3, kind: input, shape index: {}]
  %s4 = inlined_call_operand.hbm [shape: bf16[2112,2112], index: 4, kind: input, shape index: {}]
  %s5 = inlined_call_operand.hbm [shape: bf16[2112,512], index: 5, kind: input, shape index: {}]
  %s6 = inlined_call_operand.vmem [shape: f32[512,1], index: 6, kind: input, shape index: {}]
  %s7 = inlined_call_operand.hbm [shape: bf16[256,512], index: 7, kind: input, shape index: {}]
  %s8 = inlined_call_operand.vmem [shape: f32[256,1], index: 8, kind: input, shape index: {}]
  %s9 = inlined_call_operand.vmem [shape: f32[256,10], index: 9, kind: input, shape index: {}]
  %s10 = inlined_call_operand.hbm [shape: f32[1,10], index: 10, kind: input, shape index: {}]
  %s11 = inlined_call_operand.hbm [shape: f32[2,10], index: 11, kind: output, shape index: {}]
  %s12 = sld [smem:[#allocation0]]
  $region105: #{multimodal_forward.1} parent=0
    _
  %s14 = ssub.s32 1, %s12
  %s15 = scalar_select 0, %s14, %s12
  $region1: #{multimodal_forward.1} parent=0
    #allocation4 [shape = 'u8[32768]{0}', space=vmem, size = 0x8000, scoped, tag = 'input window, operand 3, single buffered']
    #allocation5 [shape = 's32[2]{0}', space=sflag, size = 0x8, scoped, tag = 'scoped memory for multimodal_forward.1']
    #allocation6 [shape = 's32[2]{0}', space=sflag, size = 0x8, scoped, tag = 'scoped memory for multimodal_forward.1']
    #allocation7 [shape = 'u8[3063808]{0}', space=vmem, size = 0x2ec000, scoped, tag = 'input window, operand 4']
    #allocation8 [shape = 's32[2]{0}', space=sflag, size = 0x8, scoped, tag = 'scoped memory for multimodal_forward.1']
    #allocation9 [shape = 'u8[720896]{0}', space=vmem, size = 0xb0000, scoped, tag = 'input window, operand 5']
    #allocation10 [shape = 'u8[262144]{0}', space=vmem, size = 0x40000, scoped, tag = 'input window, operand 7, single buffered']
    #allocation11 [shape = 's32[1]{0}', space=sflag, size = 0x4, scoped, tag = 'scoped memory for multimodal_forward.1']
    #allocation12 [shape = 'u8[512]{0}', space=vmem, size = 0x400, scoped, tag = 'input window, operand 10, single buffered']
    #allocation13 [shape = 'u8[1024]{0}', space=vmem, size = 0x400, scoped, tag = 'output window, operand 0, single buffered']
    %16 = vsyncpa [#allocation5], 0
    %17 = vsyncpa [#allocation8], 0
    %s18 = scalar_lea.sflag [#allocation8], 1
    %19 = vsyncpa %s18, 0
    %20 = vsyncpa [#allocation11], 0
    %21 = vsyncpa [#allocation6], 0
    loop: start=0, step=1, limit=8
    $region2: #{multimodal_forward.1} parent=1 // loop_pre_header
      _
    $region3: #{multimodal_forward.1} parent=1 // loop_header
      %s23 = sphi 0, %s27
      %p24 = scmp.ge.s32.totalorder %s23, 8
      %s31 = sphi 0, %s31
      %s33 = sphi 0, %s31
      %s34 = sphi 0, %s33
      %s48 = sphi 0, %s34
      %s52 = sphi 0, %s52
      %s54 = sphi 0, %s52
      %s55 = sphi 0, %s54
      %s69 = sphi 0, %s55
      %s73 = sphi 0, %s73
      %s75 = sphi 0, %s73
      %s76 = sphi 0, %s75
      %s90 = sphi 0, %s76
      %s94 = sphi 0, %s94
      %s96 = sphi 0, %s94
      %s97 = sphi 0, %s96
      %s111 = sphi 0, %s97
      %s117 = sphi 0, %s119
      %s120 = sphi 0, %s117
      %s121 = sphi 0, %s120
      %s137 = sphi 0, %s121
      %s143 = sphi 0, %s145
      %s146 = sphi 0, %s143
      %s147 = sphi 0, %s146
      %s163 = sphi 0, %s147
      %s167 = sphi 0, %s167
      %s169 = sphi 0, %s167
      %s170 = sphi 0, %s169
      %s184 = sphi 0, %s170
      %s188 = sphi 0, %s188
      %s190 = sphi 0, %s188
      %s191 = sphi 0, %s190
      %s205 = sphi 0, %s191
      %s209 = sphi 0, %s209
      %s211 = sphi 0, %s209
      %s212 = sphi 0, %s211
      %s226 = sphi 0, %s212
      %s230 = sphi 0, %s230
      %s232 = sphi 0, %s230
      %s233 = sphi 0, %s232
      %s247 = sphi 0, %s233
      %s251 = sphi 0, %s251
      %s253 = sphi 0, %s251
      %s254 = sphi 0, %s253
      %s268 = sphi 0, %s254
      %s272 = sphi 0, %s272
      %s274 = sphi 0, %s272
      %s275 = sphi 0, %s274
      %s289 = sphi 0, %s275
    $region4: #{multimodal_forward.1} parent=1 // loop_header_branch
      %26 = sbr.rel (%p24) target = $region8
    $region5: #{multimodal_forward.1} parent=1 // loop_body
      %s28 = ssub.s32 %s23, 1
      %s29 = ssub.s32 %s23, 2
      %s30 = sadd.s32 %s23, 1
      %s32 = sadd.s32 %s31, 1
      %p35 = scmp.eq.s32.totalorder %s23, 5
      %p36 = scmp.ne.s32.totalorder %s31, %s33
      %p37 = scmp.eq.s32.totalorder %s23, 0
      %p38 = por %p36, %p37
      %p39 = scmp.ne.s32.totalorder %s31, %s33
      %p40 = scmp.eq.s32.totalorder %s28, 5
      %p41 = por %p39, %p40
      %p42 = scmp.ne.s32.totalorder %s33, %s34
      %p43 = scmp.eq.s32.totalorder %s28, 0
      %p44 = por %p42, %p43
      %p45 = scmp.ne.s32.totalorder %s33, %s34
      %p46 = scmp.eq.s32.totalorder %s29, 5
      %p47 = por %p45, %p46
      %p49 = scmp.ne.s32.totalorder %s34, %s48
      %p50 = scmp.eq.s32.totalorder %s29, 0
      %p51 = por %p49, %p50
      %s53 = sadd.s32 %s52, 1
      %p56 = scmp.eq.s32.totalorder %s23, 5
      %p57 = scmp.ne.s32.totalorder %s52, %s54
      %p58 = scmp.eq.s32.totalorder %s23, 0
      %p59 = por %p57, %p58
      %p60 = scmp.ne.s32.totalorder %s52, %s54
      %p61 = scmp.eq.s32.totalorder %s28, 5
      %p62 = por %p60, %p61
      %p63 = scmp.ne.s32.totalorder %s54, %s55
      %p64 = scmp.eq.s32.totalorder %s28, 0
      %p65 = por %p63, %p64
      %p66 = scmp.ne.s32.totalorder %s54, %s55
      %p67 = scmp.eq.s32.totalorder %s29, 5
      %p68 = por %p66, %p67
      %p70 = scmp.ne.s32.totalorder %s55, %s69
      %p71 = scmp.eq.s32.totalorder %s29, 0
      %p72 = por %p70, %p71
      %s74 = sadd.s32 %s73, 1
      %p77 = scmp.eq.s32.totalorder %s23, 5
      %p78 = scmp.ne.s32.totalorder %s73, %s75
      %p79 = scmp.eq.s32.totalorder %s23, 0
      %p80 = por %p78, %p79
      %p81 = scmp.ne.s32.totalorder %s73, %s75
      %p82 = scmp.eq.s32.totalorder %s28, 5
      %p83 = por %p81, %p82
      %p84 = scmp.ne.s32.totalorder %s75, %s76
      %p85 = scmp.eq.s32.totalorder %s28, 0
      %p86 = por %p84, %p85
      %p87 = scmp.ne.s32.totalorder %s75, %s76
      %p88 = scmp.eq.s32.totalorder %s29, 5
      %p89 = por %p87, %p88
      %p91 = scmp.ne.s32.totalorder %s76, %s90
      %p92 = scmp.eq.s32.totalorder %s29, 0
      %p93 = por %p91, %p92
      %s95 = sadd.s32 %s94, 1
      %p98 = scmp.eq.s32.totalorder %s23, 5
      %p99 = scmp.ne.s32.totalorder %s94, %s96
      %p100 = scmp.eq.s32.totalorder %s23, 0
      %p101 = por %p99, %p100
      %p102 = scmp.ne.s32.totalorder %s94, %s96
      %p103 = scmp.eq.s32.totalorder %s28, 5
      %p104 = por %p102, %p103
      %p105 = scmp.ne.s32.totalorder %s96, %s97
      %p106 = scmp.eq.s32.totalorder %s28, 0
      %p107 = por %p105, %p106
      %p108 = scmp.ne.s32.totalorder %s96, %s97
      %p109 = scmp.eq.s32.totalorder %s29, 5
      %p110 = por %p108, %p109
      %p112 = scmp.ne.s32.totalorder %s97, %s111
      %p113 = scmp.eq.s32.totalorder %s29, 0
      %p114 = por %p112, %p113
      %s115 = ssub.s32 %s23, %s30
      %p116 = scmp.eq.s32.totalorder %s115, 0
      %s118 = sadd.s32 %s117, 1
      %s119 = scalar_select %p116, %s117, %s118
      %p122 = pneg %p116
      %p123 = scmp.eq.s32.totalorder %s23, 5
      %p124 = por %p122, %p123
      %p125 = scmp.ne.s32.totalorder %s117, %s120
      %p126 = scmp.eq.s32.totalorder %s23, 0
      %p127 = por %p125, %p126
      %p128 = scmp.ne.s32.totalorder %s117, %s120
      %p129 = scmp.eq.s32.totalorder %s28, 5
      %p130 = por %p128, %p129
      %p131 = scmp.ne.s32.totalorder %s120, %s121
      %p132 = scmp.eq.s32.totalorder %s28, 0
      %p133 = por %p131, %p132
      %p134 = scmp.ne.s32.totalorder %s120, %s121
      %p135 = scmp.eq.s32.totalorder %s29, 5
      %p136 = por %p134, %p135
      %p138 = scmp.ne.s32.totalorder %s121, %s137
      %p139 = scmp.eq.s32.totalorder %s29, 0
      %p140 = por %p138, %p139
      %s141 = ssub.s32 %s23, %s30
      %p142 = scmp.eq.s32.totalorder %s141, 0
      %s144 = sadd.s32 %s143, 1
      %s145 = scalar_select %p142, %s143, %s144
      %p148 = pneg %p142
      %p149 = scmp.eq.s32.totalorder %s23, 5
      %p150 = por %p148, %p149
      %p151 = scmp.ne.s32.totalorder %s143, %s146
      %p152 = scmp.eq.s32.totalorder %s23, 0
      %p153 = por %p151, %p152
      %p154 = scmp.ne.s32.totalorder %s143, %s146
      %p155 = scmp.eq.s32.totalorder %s28, 5
      %p156 = por %p154, %p155
      %p157 = scmp.ne.s32.totalorder %s146, %s147
      %p158 = scmp.eq.s32.totalorder %s28, 0
      %p159 = por %p157, %p158
      %p160 = scmp.ne.s32.totalorder %s146, %s147
      %p161 = scmp.eq.s32.totalorder %s29, 5
      %p162 = por %p160, %p161
      %p164 = scmp.ne.s32.totalorder %s147, %s163
      %p165 = scmp.eq.s32.totalorder %s29, 0
      %p166 = por %p164, %p165
      %s168 = sadd.s32 %s167, 1
      %p171 = scmp.eq.s32.totalorder %s23, 5
      %p172 = scmp.ne.s32.totalorder %s167, %s169
      %p173 = scmp.eq.s32.totalorder %s23, 0
      %p174 = por %p172, %p173
      %p175 = scmp.ne.s32.totalorder %s167, %s169
      %p176 = scmp.eq.s32.totalorder %s28, 5
      %p177 = por %p175, %p176
      %p178 = scmp.ne.s32.totalorder %s169, %s170
      %p179 = scmp.eq.s32.totalorder %s28, 0
      %p180 = por %p178, %p179
      %p181 = scmp.ne.s32.totalorder %s169, %s170
      %p182 = scmp.eq.s32.totalorder %s29, 5
      %p183 = por %p181, %p182
      %p185 = scmp.ne.s32.totalorder %s170, %s184
      %p186 = scmp.eq.s32.totalorder %s29, 0
      %p187 = por %p185, %p186
      %s189 = sadd.s32 %s188, 1
      %p192 = scmp.eq.s32.totalorder %s23, 5
      %p193 = scmp.ne.s32.totalorder %s188, %s190
      %p194 = scmp.eq.s32.totalorder %s23, 0
      %p195 = por %p193, %p194
      %p196 = scmp.ne.s32.totalorder %s188, %s190
      %p197 = scmp.eq.s32.totalorder %s28, 5
      %p198 = por %p196, %p197
      %p199 = scmp.ne.s32.totalorder %s190, %s191
      %p200 = scmp.eq.s32.totalorder %s28, 0
      %p201 = por %p199, %p200
      %p202 = scmp.ne.s32.totalorder %s190, %s191
      %p203 = scmp.eq.s32.totalorder %s29, 5
      %p204 = por %p202, %p203
      %p206 = scmp.ne.s32.totalorder %s191, %s205
      %p207 = scmp.eq.s32.totalorder %s29, 0
      %p208 = por %p206, %p207
      %s210 = sadd.s32 %s209, 1
      %p213 = scmp.eq.s32.totalorder %s23, 5
      %p214 = scmp.ne.s32.totalorder %s209, %s211
      %p215 = scmp.eq.s32.totalorder %s23, 0
      %p216 = por %p214, %p215
      %p217 = scmp.ne.s32.totalorder %s209, %s211
      %p218 = scmp.eq.s32.totalorder %s28, 5
      %p219 = por %p217, %p218
      %p220 = scmp.ne.s32.totalorder %s211, %s212
      %p221 = scmp.eq.s32.totalorder %s28, 0
      %p222 = por %p220, %p221
      %p223 = scmp.ne.s32.totalorder %s211, %s212
      %p224 = scmp.eq.s32.totalorder %s29, 5
      %p225 = por %p223, %p224
      %p227 = scmp.ne.s32.totalorder %s212, %s226
      %p228 = scmp.eq.s32.totalorder %s29, 0
      %p229 = por %p227, %p228
      %s231 = sadd.s32 %s230, 1
      %p234 = scmp.eq.s32.totalorder %s23, 5
      %p235 = scmp.ne.s32.totalorder %s230, %s232
      %p236 = scmp.eq.s32.totalorder %s23, 0
      %p237 = por %p235, %p236
      %p238 = scmp.ne.s32.totalorder %s230, %s232
      %p239 = scmp.eq.s32.totalorder %s28, 5
      %p240 = por %p238, %p239
      %p241 = scmp.ne.s32.totalorder %s232, %s233
      %p242 = scmp.eq.s32.totalorder %s28, 0
      %p243 = por %p241, %p242
      %p244 = scmp.ne.s32.totalorder %s232, %s233
      %p245 = scmp.eq.s32.totalorder %s29, 5
      %p246 = por %p244, %p245
      %p248 = scmp.ne.s32.totalorder %s233, %s247
      %p249 = scmp.eq.s32.totalorder %s29, 0
      %p250 = por %p248, %p249
      %s252 = sadd.s32 %s251, 1
      %p255 = scmp.eq.s32.totalorder %s23, 5
      %p256 = scmp.ne.s32.totalorder %s251, %s253
      %p257 = scmp.eq.s32.totalorder %s23, 0
      %p258 = por %p256, %p257
      %p259 = scmp.ne.s32.totalorder %s251, %s253
      %p260 = scmp.eq.s32.totalorder %s28, 5
      %p261 = por %p259, %p260
      %p262 = scmp.ne.s32.totalorder %s253, %s254
      %p263 = scmp.eq.s32.totalorder %s28, 0
      %p264 = por %p262, %p263
      %p265 = scmp.ne.s32.totalorder %s253, %s254
      %p266 = scmp.eq.s32.totalorder %s29, 5
      %p267 = por %p265, %p266
      %p269 = scmp.ne.s32.totalorder %s254, %s268
      %p270 = scmp.eq.s32.totalorder %s29, 0
      %p271 = por %p269, %p270
      %s273 = sadd.s32 %s272, 1
      %p276 = scmp.eq.s32.totalorder %s23, 5
      %p277 = scmp.ne.s32.totalorder %s272, %s274
      %p278 = scmp.eq.s32.totalorder %s23, 0
      %p279 = por %p277, %p278
      %p280 = scmp.ne.s32.totalorder %s272, %s274
      %p281 = scmp.eq.s32.totalorder %s28, 5
      %p282 = por %p280, %p281
      %p283 = scmp.ne.s32.totalorder %s274, %s275
      %p284 = scmp.eq.s32.totalorder %s28, 0
      %p285 = por %p283, %p284
      %p286 = scmp.ne.s32.totalorder %s274, %s275
      %p287 = scmp.eq.s32.totalorder %s29, 5
      %p288 = por %p286, %p287
      %p290 = scmp.ne.s32.totalorder %s275, %s289
      %p291 = scmp.eq.s32.totalorder %s29, 0
      %p292 = por %p290, %p291
      %p293 = scmp.le.s32.totalorder 1, %s23
      %p294 = scmp.lt.s32.totalorder %s23, 7
      %p295 = pnand %p293, %p294
      %p296 = pneg %p295
      // Predicated region
      $region9: #{multimodal_forward.1} parent=5 // pred_check
        _
      $region10: #{multimodal_forward.1} parent=5 // pred_check_branch
        %298 = sbr.rel (%p295) target = $region12
      $region11: #{multimodal_forward.1} parent=5 // pred_region
        %s299 = ssub.s32 %s23, 1
        // Predicated region
        $region13: #{multimodal_forward.1} parent=11 // pred_check
          %p300 = pneg %p44
        $region14: #{multimodal_forward.1} parent=11 // pred_check_branch
          %302 = sbr.rel (%p300) target = $region16
        $region15: #{multimodal_forward.1} parent=11 // pred_region
          _
        $region16: #{multimodal_forward.1} parent=11 // pred_fallthru
          _
        // Predicated region
        $region17: #{multimodal_forward.1} parent=11 // pred_check
          %p303 = pneg %p65
        $region18: #{multimodal_forward.1} parent=11 // pred_check_branch
          %305 = sbr.rel (%p303) target = $region20
        $region19: #{multimodal_forward.1} parent=11 // pred_region
          _
        $region20: #{multimodal_forward.1} parent=11 // pred_fallthru
          _
        // Predicated region
        $region21: #{multimodal_forward.1} parent=11 // pred_check
          %p306 = pneg %p86
        $region22: #{multimodal_forward.1} parent=11 // pred_check_branch
          %308 = sbr.rel (%p306) target = $region24
        $region23: #{multimodal_forward.1} parent=11 // pred_region
          _
        $region24: #{multimodal_forward.1} parent=11 // pred_fallthru
          _
        // Predicated region
        $region25: #{multimodal_forward.1} parent=11 // pred_check
          %p309 = pneg %p107
        $region26: #{multimodal_forward.1} parent=11 // pred_check_branch
          %311 = sbr.rel (%p309) target = $region28
        $region27: #{multimodal_forward.1} parent=11 // pred_region
          %s313 = ssub.s32 1024, 1024
          %314 = vsyncadd [#allocation5], %s313
          %s315 = sshll.u32 [#allocation4], 4
          %s316 = int_to_ptr.vmem [resolvable:$true] %s315
          %321 = dma.hbm_to_vmem [thread:$0]  %s3, 1024, %s316, [#allocation5], 128, 128, 8
        $region28: #{multimodal_forward.1} parent=11 // pred_fallthru
          _
        // Predicated region
        $region29: #{multimodal_forward.1} parent=11 // pred_check
          %p322 = pneg %p180
        $region30: #{multimodal_forward.1} parent=11 // pred_check_branch
          %324 = sbr.rel (%p322) target = $region32
        $region31: #{multimodal_forward.1} parent=11 // pred_region
          _
        $region32: #{multimodal_forward.1} parent=11 // pred_fallthru
          _
        // Predicated region
        $region33: #{multimodal_forward.1} parent=11 // pred_check
          %p325 = pneg %p201
        $region34: #{multimodal_forward.1} parent=11 // pred_check_branch
          %327 = sbr.rel (%p325) target = $region36
        $region35: #{multimodal_forward.1} parent=11 // pred_region
          %s329 = ssub.s32 8192, 8192
          %330 = vsyncadd [#allocation11], %s329
          %s331 = sshll.u32 [#allocation10], 4
          %s332 = int_to_ptr.vmem [resolvable:$true] %s331
          %337 = dma.hbm_to_vmem [thread:$0]  %s7, 8192, %s332, [#allocation11], 256, 256, 16
        $region36: #{multimodal_forward.1} parent=11 // pred_fallthru
          _
        // Predicated region
        $region37: #{multimodal_forward.1} parent=11 // pred_check
          %p338 = pneg %p222
        $region38: #{multimodal_forward.1} parent=11 // pred_check_branch
          %340 = sbr.rel (%p338) target = $region40
        $region39: #{multimodal_forward.1} parent=11 // pred_region
          _
        $region40: #{multimodal_forward.1} parent=11 // pred_fallthru
          _
        // Predicated region
        $region41: #{multimodal_forward.1} parent=11 // pred_check
          %p341 = pneg %p243
        $region42: #{multimodal_forward.1} parent=11 // pred_check_branch
          %343 = sbr.rel (%p341) target = $region44
        $region43: #{multimodal_forward.1} parent=11 // pred_region
          _
        $region44: #{multimodal_forward.1} parent=11 // pred_fallthru
          _
        // Predicated region
        $region45: #{multimodal_forward.1} parent=11 // pred_check
          %p344 = pneg %p264
        $region46: #{multimodal_forward.1} parent=11 // pred_check_branch
          %346 = sbr.rel (%p344) target = $region48
        $region47: #{multimodal_forward.1} parent=11 // pred_region
          %s348 = ssub.s32 16, 16
          %349 = vsyncadd [#allocation11], %s348
          %s351 = sshll.u32 [#allocation12], 4
          %s352 = int_to_ptr.vmem [resolvable:$true] %s351
          %354 = dma.hbm_to_vmem [thread:$0]  %s10, 16, %s352, [#allocation11]
        $region48: #{multimodal_forward.1} parent=11 // pred_fallthru
          _
      $region12: #{multimodal_forward.1} parent=5 // pred_fallthru
        _
      %p355 = scmp.lt.s32.totalorder %s23, 6
      // Predicated region
      $region49: #{multimodal_forward.1} parent=5 // pred_check
        %p356 = pneg %p355
      $region50: #{multimodal_forward.1} parent=5 // pred_check_branch
        %358 = sbr.rel (%p356) target = $region52
      $region51: #{multimodal_forward.1} parent=5 // pred_region
        // Predicated region
        $region53: #{multimodal_forward.1} parent=51 // pred_check
          %p359 = pneg %p127
        $region54: #{multimodal_forward.1} parent=51 // pred_check_branch
          %361 = sbr.rel (%p359) target = $region56
        $region55: #{multimodal_forward.1} parent=51 // pred_region
          %s362 = sand.u32 %s23, 1
          %s363 = scalar_lea.sflag [#allocation8], %s362
          %s364 = sand.u32 %s117, 1
          %s365 = smul.addr %s364, 2992
          %s366 = scalar_lea.vmem [#allocation7], %s365
          %s367 = smul.u32 44, %s23
          %s369 = ssub.s32 47872, 47872
          %370 = vsyncadd %s363, %s369
          %s371 = smul.addr %s367, 17
          %s372 = smul.addr %s371, 64
          %s373 = scalar_lea.hbm %s4, %s372
          %s374 = sshll.u32 %s366, 4
          %s375 = int_to_ptr.vmem [resolvable:$true] %s374
          %380 = dma.hbm_to_vmem [thread:$0]  %s373, 47872, %s375, %s363, 1088, 1088, 68
        $region56: #{multimodal_forward.1} parent=51 // pred_fallthru
          _
        // Predicated region
        $region57: #{multimodal_forward.1} parent=51 // pred_check
          %p381 = pneg %p153
        $region58: #{multimodal_forward.1} parent=51 // pred_check_branch
          %383 = sbr.rel (%p381) target = $region60
        $region59: #{multimodal_forward.1} parent=51 // pred_region
          %s384 = sand.u32 %s23, 1
          %s385 = scalar_lea.sflag [#allocation8], %s384
          %s386 = sand.u32 %s143, 1
          %s387 = smul.addr %s386, 704
          %s388 = scalar_lea.vmem [#allocation9], %s387
          %s389 = smul.u32 44, %s23
          %s391 = ssub.s32 11264, 11264
          %392 = vsyncadd %s385, %s391
          %s393 = smul.addr %s389, 4
          %s394 = smul.addr %s393, 64
          %s395 = scalar_lea.hbm %s5, %s394
          %s396 = sshll.u32 %s388, 4
          %s397 = int_to_ptr.vmem [resolvable:$true] %s396
          %402 = dma.hbm_to_vmem [thread:$0]  %s395, 11264, %s397, %s385, 256, 256, 16
        $region60: #{multimodal_forward.1} parent=51 // pred_fallthru
          _
      $region52: #{multimodal_forward.1} parent=5 // pred_fallthru
        _
      %p403 = scmp.le.s32.totalorder 1, %s23
      %p404 = scmp.lt.s32.totalorder %s23, 7
      %p405 = pnand %p403, %p404
      %p406 = pneg %p405
      // Predicated region
      $region61: #{multimodal_forward.1} parent=5 // pred_check
        _
      $region62: #{multimodal_forward.1} parent=5 // pred_check_branch
        %408 = sbr.rel (%p405) target = $region64
      $region63: #{multimodal_forward.1} parent=5 // pred_region
        %s409 = ssub.s32 %s23, 1
        // Predicated region
        $region65: #{multimodal_forward.1} parent=63 // pred_check
          %p410 = pneg %p107
        $region66: #{multimodal_forward.1} parent=63 // pred_check_branch
          %412 = sbr.rel (%p410) target = $region68
        $region67: #{multimodal_forward.1} parent=63 // pred_region
          %413 = dma.done [#allocation5], 1024
        $region68: #{multimodal_forward.1} parent=63 // pred_fallthru
          _
        %s414 = sand.u32 %s28, 1
        %s415 = scalar_lea.sflag [#allocation8], %s414
        %s416 = sand.u32 %s120, 1
        %s417 = smul.addr %s416, 2992
        %s418 = scalar_lea.vmem [#allocation7], %s417
        // Predicated region
        $region69: #{multimodal_forward.1} parent=63 // pred_check
          %p419 = pneg %p133
        $region70: #{multimodal_forward.1} parent=63 // pred_check_branch
          %421 = sbr.rel (%p419) target = $region72
        $region71: #{multimodal_forward.1} parent=63 // pred_region
          %422 = dma.done %s415, 47872
        $region72: #{multimodal_forward.1} parent=63 // pred_fallthru
          _
        %s423 = sand.u32 %s28, 1
        %s424 = scalar_lea.sflag [#allocation8], %s423
        %s425 = sand.u32 %s146, 1
        %s426 = smul.addr %s425, 704
        %s427 = scalar_lea.vmem [#allocation9], %s426
        // Predicated region
        $region73: #{multimodal_forward.1} parent=63 // pred_check
          %p428 = pneg %p159
        $region74: #{multimodal_forward.1} parent=63 // pred_check_branch
          %430 = sbr.rel (%p428) target = $region76
        $region75: #{multimodal_forward.1} parent=63 // pred_region
          %431 = dma.done %s424, 11264
        $region76: #{multimodal_forward.1} parent=63 // pred_fallthru
          _
        // Predicated region
        $region77: #{multimodal_forward.1} parent=63 // pred_check
          %p432 = pneg %p201
        $region78: #{multimodal_forward.1} parent=63 // pred_check_branch
          %434 = sbr.rel (%p432) target = $region80
        $region79: #{multimodal_forward.1} parent=63 // pred_region
          %435 = dma.done [#allocation11], 8192
        $region80: #{multimodal_forward.1} parent=63 // pred_fallthru
          _
        // Predicated region
        $region81: #{multimodal_forward.1} parent=63 // pred_check
          %p436 = pneg %p264
        $region82: #{multimodal_forward.1} parent=63 // pred_check_branch
          %438 = sbr.rel (%p436) target = $region84
        $region83: #{multimodal_forward.1} parent=63 // pred_region
          %439 = dma.done [#allocation11], 16
        $region84: #{multimodal_forward.1} parent=63 // pred_fallthru
          _
        %p440 = pneg %p44
        %p441 = pneg %p41
        %p442 = pneg %p65
        %p443 = pneg %p62
        %p444 = pneg %p86
        %p445 = pneg %p83
        %p446 = pneg %p107
        %p447 = pneg %p104
        %s448 = sand.u32 %s28, 1
        %s449 = scalar_lea.sflag [#allocation8], %s448
        %s450 = sand.u32 %s120, 1
        %s451 = smul.addr %s450, 2992
        %s452 = scalar_lea.vmem [#allocation7], %s451
        %p453 = pneg %p133
        %p454 = pneg %p130
        %s455 = sand.u32 %s28, 1
        %s456 = scalar_lea.sflag [#allocation8], %s455
        %s457 = sand.u32 %s146, 1
        %s458 = smul.addr %s457, 704
        %s459 = scalar_lea.vmem [#allocation9], %s458
        %p460 = pneg %p159
        %p461 = pneg %p156
        %p462 = pneg %p180
        %p463 = pneg %p177
        %p464 = pneg %p201
        %p465 = pneg %p198
        %p466 = pneg %p222
        %p467 = pneg %p219
        %p468 = pneg %p243
        %p469 = pneg %p240
        %p470 = pneg %p264
        %p471 = pneg %p261
        %p472 = pneg %p285
        %p473 = pneg %p282
        %s474 = smul.u32 44, %s28
        %s475 = smul.u32 44, %s28
        %p477 = scmp.eq.s32.totalorder %s28, 0
        // Predicated region
        $region85: #{multimodal_forward.1} parent=63 // pred_check
          %p478 = pneg %p477
        $region86: #{multimodal_forward.1} parent=63 // pred_check_branch
          %480 = sbr.rel (%p478) target = $region88
        $region87: #{multimodal_forward.1} parent=63 // pred_region
          %v481 = vld [vmem:[%s0] sm:$0xf]
          %v482 = vld [vmem:[%s0 + $0x4] sm:$0xf]
          %v483 = vld [vmem:[%s0 + $0x8] sm:$0xf]
          %v484 = vld [vmem:[%s0 + $0xc] sm:$0xf]
          %v490 = vunpack.c.l.s4 1983009808
          %v491 = vunpack.c.0.s8 %v490
          %v492 = vlaneseq
          %v493 = vshrl.u32 %v492, 7
          %v494 = vsub.s32 %v491, %v493
          %v495 = vrot.slane %v481, %v494
          %v496 = vcombine.high %v495, %v495
          %v498 = vunpack.c.l.s4 1983009808
          %v499 = vunpack.c.0.s8 %v498
          %v500 = vlaneseq
          %v501 = vshrl.u32 %v500, 7
          %v502 = vsub.s32 %v499, %v501
          %v503 = vrot.slane %v482, %v502
          %v504 = vcombine.high %v503, %v503
          %v506 = vunpack.c.l.s4 1983009808
          %v507 = vunpack.c.0.s8 %v506
          %v508 = vlaneseq
          %v509 = vshrl.u32 %v508, 7
          %v510 = vsub.s32 %v507, %v509
          %v511 = vrot.slane %v483, %v510
          %v512 = vcombine.high %v511, %v511
          %v514 = vunpack.c.l.s4 1983009808
          %v515 = vunpack.c.0.s8 %v514
          %v516 = vlaneseq
          %v517 = vshrl.u32 %v516, 7
          %v518 = vsub.s32 %v515, %v517
          %v519 = vrot.slane %v484, %v518
          %v520 = vcombine.high %v519, %v519
          %vm529 = vcmask 1041408
          %v530 = vsel %vm529, %v495, 0.0
          %v531 = vsel %vm529, %v496, 0.0
          %v532 = vadd.f32 %v530, %v531
          %533 = vadd.xlane.f32.xlu0 %v532
          %v534 = vpop.xlane.xlu0 %533
          %v535 = vsel %vm529, %v503, 0.0
          %v536 = vsel %vm529, %v504, 0.0
          %v537 = vadd.f32 %v535, %v536
          %538 = vadd.xlane.f32.xlu0 %v537
          %v539 = vpop.xlane.xlu0 %538
          %v540 = vsel %vm529, %v511, 0.0
          %v541 = vsel %vm529, %v512, 0.0
          %v542 = vadd.f32 %v540, %v541
          %543 = vadd.xlane.f32.xlu0 %v542
          %v544 = vpop.xlane.xlu0 %543
          %v545 = vsel %vm529, %v519, 0.0
          %v546 = vsel %vm529, %v520, 0.0
          %v547 = vadd.f32 %v545, %v546
          %548 = vadd.xlane.f32.xlu0 %v547
          %v549 = vpop.xlane.xlu0 %548
          %v550 = vrcp.pop 256.0
          %v551 = vmul.f32 %v534, %v550
          %v552 = vmul.f32 %v539, %v550
          %v553 = vmul.f32 %v544, %v550
          %v554 = vmul.f32 %v549, %v550
          %v555 = vld [vmem:[%s2] sm:$0xff]
          %v556 = vld [vmem:[%s2 + $0x8] sm:$0xff]
          %v557 = vld [vmem:[%s2 + $0x10] sm:$0xff]
          %v558 = vld [vmem:[%s2 + $0x18] sm:$0xff]
          %v559 = vld [vmem:[%s2 + $0x20] sm:$0xff]
          %v560 = vld [vmem:[%s2 + $0x28] sm:$0xff]
          %v561 = vld [vmem:[%s2 + $0x30] sm:$0xff]
          %v562 = vld [vmem:[%s2 + $0x38] sm:$0xff]
          %v563 = vld [vmem:[%s2 + $0x40] sm:$0xff]
          %v564 = vld [vmem:[%s2 + $0x48] sm:$0xff]
          %v565 = vld [vmem:[%s2 + $0x50] sm:$0xff]
          %v566 = vld [vmem:[%s2 + $0x58] sm:$0xff]
          %v567 = vld [vmem:[%s2 + $0x60] sm:$0xff]
          %v568 = vld [vmem:[%s2 + $0x68] sm:$0xff]
          %v569 = vld [vmem:[%s2 + $0x70] sm:$0xff]
          %v570 = vld [vmem:[%s2 + $0x78] sm:$0xff]
          %v571 = vld [vmem:[%s2 + $0x80] sm:$0xff]
          %v572 = vld [vmem:[%s2 + $0x88] sm:$0xff]
          %v573 = vld [vmem:[%s2 + $0x90] sm:$0xff]
          %v574 = vld [vmem:[%s2 + $0x98] sm:$0xff]
          %v575 = vld [vmem:[%s2 + $0xa0] sm:$0xff]
          %v576 = vld [vmem:[%s2 + $0xa8] sm:$0xff]
          %v577 = vld [vmem:[%s2 + $0xb0] sm:$0xff]
          %v578 = vld [vmem:[%s2 + $0xb8] sm:$0xff]
          %v579 = vld [vmem:[%s2 + $0xc0] sm:$0xff]
          %v580 = vld [vmem:[%s2 + $0xc8] sm:$0xff]
          %v581 = vld [vmem:[%s2 + $0xd0] sm:$0xff]
          %v582 = vld [vmem:[%s2 + $0xd8] sm:$0xff]
          %v583 = vld [vmem:[%s2 + $0xe0] sm:$0xff]
          %v584 = vld [vmem:[%s2 + $0xe8] sm:$0xff]
          %v585 = vld [vmem:[%s2 + $0xf0] sm:$0xff]
          %v586 = vld [vmem:[%s2 + $0xf8] sm:$0xff]
          %v587 = vld [vmem:[%s2 + $0x100] sm:$0xff]
          %v588 = vld [vmem:[%s2 + $0x108] sm:$0xff]
          %v589 = vld [vmem:[%s2 + $0x110] sm:$0xff]
          %v590 = vld [vmem:[%s2 + $0x118] sm:$0xff]
          %v591 = vld [vmem:[%s2 + $0x120] sm:$0xff]
          %v592 = vld [vmem:[%s2 + $0x128] sm:$0xff]
          %v593 = vld [vmem:[%s2 + $0x130] sm:$0xff]
          %v594 = vld [vmem:[%s2 + $0x138] sm:$0xff]
          %v595 = vld [vmem:[%s2 + $0x140] sm:$0xff]
          %v596 = vld [vmem:[%s2 + $0x148] sm:$0xff]
          %v597 = vld [vmem:[%s2 + $0x150] sm:$0xff]
          %v598 = vld [vmem:[%s2 + $0x158] sm:$0xff]
          %v599 = vld [vmem:[%s2 + $0x160] sm:$0xff]
          %v600 = vld [vmem:[%s2 + $0x168] sm:$0xff]
          %v601 = vld [vmem:[%s2 + $0x170] sm:$0xff]
          %v602 = vld [vmem:[%s2 + $0x178] sm:$0xff]
          %v603 = vld [vmem:[%s2 + $0x180] sm:$0xff]
          %v604 = vld [vmem:[%s2 + $0x188] sm:$0xff]
          %v605 = vld [vmem:[%s2 + $0x190] sm:$0xff]
          %v606 = vld [vmem:[%s2 + $0x198] sm:$0xff]
          %v607 = vld [vmem:[%s2 + $0x1a0] sm:$0xff]
          %v608 = vld [vmem:[%s2 + $0x1a8] sm:$0xff]
          %v609 = vld [vmem:[%s2 + $0x1b0] sm:$0xff]
          %v610 = vld [vmem:[%s2 + $0x1b8] sm:$0xff]
          %v611 = vld [vmem:[%s2 + $0x1c0] sm:$0xff]
          %v612 = vld [vmem:[%s2 + $0x1c8] sm:$0xff]
          %v613 = vld [vmem:[%s2 + $0x1d0] sm:$0xff]
          %v614 = vld [vmem:[%s2 + $0x1d8] sm:$0xff]
          %v615 = vld [vmem:[%s2 + $0x1e0] sm:$0xff]
          %v616 = vld [vmem:[%s2 + $0x1e8] sm:$0xff]
          %v617 = vld [vmem:[%s2 + $0x1f0] sm:$0xff]
          %v618 = vld [vmem:[%s2 + $0x1f8] sm:$0xff]
          %v619 = vld [vmem:[%s2 + $0x200] sm:$0xff]
          %v620 = vld [vmem:[%s2 + $0x208] sm:$0xff]
          %v621 = vld [vmem:[%s2 + $0x210] sm:$0xff]
          %v622 = vld [vmem:[%s2 + $0x218] sm:$0xff]
          %v623 = vld [vmem:[%s2 + $0x220] sm:$0xff]
          %v624 = vld [vmem:[%s2 + $0x228] sm:$0xff]
          %v625 = vld [vmem:[%s2 + $0x230] sm:$0xff]
          %v626 = vld [vmem:[%s2 + $0x238] sm:$0xff]
          %v627 = vld [vmem:[%s2 + $0x240] sm:$0xff]
          %v628 = vld [vmem:[%s2 + $0x248] sm:$0xff]
          %v629 = vld [vmem:[%s2 + $0x250] sm:$0xff]
          %v630 = vld [vmem:[%s2 + $0x258] sm:$0xff]
          %v631 = vld [vmem:[%s2 + $0x260] sm:$0xff]
          %v632 = vld [vmem:[%s2 + $0x268] sm:$0xff]
          %v633 = vld [vmem:[%s2 + $0x270] sm:$0xff]
          %v634 = vld [vmem:[%s2 + $0x278] sm:$0xff]
          %v635 = vld [vmem:[%s2 + $0x280] sm:$0xff]
          %v636 = vld [vmem:[%s2 + $0x288] sm:$0xff]
          %v637 = vld [vmem:[%s2 + $0x290] sm:$0xff]
          %v638 = vld [vmem:[%s2 + $0x298] sm:$0xff]
          %v639 = vld [vmem:[%s2 + $0x2a0] sm:$0xff]
          %v640 = vld [vmem:[%s2 + $0x2a8] sm:$0xff]
          %v641 = vld [vmem:[%s2 + $0x2b0] sm:$0xff]
          %v642 = vld [vmem:[%s2 + $0x2b8] sm:$0xff]
          %v643 = vld [vmem:[%s2 + $0x2c0] sm:$0xff]
          %v644 = vld [vmem:[%s2 + $0x2c8] sm:$0xff]
          %v645 = vld [vmem:[%s2 + $0x2d0] sm:$0xff]
          %v646 = vld [vmem:[%s2 + $0x2d8] sm:$0xff]
          %v647 = vld [vmem:[%s2 + $0x2e0] sm:$0xff]
          %v648 = vld [vmem:[%s2 + $0x2e8] sm:$0xff]
          %v649 = vld [vmem:[%s2 + $0x2f0] sm:$0xff]
          %v650 = vld [vmem:[%s2 + $0x2f8] sm:$0xff]
          %v651 = vld [vmem:[%s2 + $0x300] sm:$0xff]
          %v652 = vld [vmem:[%s2 + $0x308] sm:$0xff]
          %v653 = vld [vmem:[%s2 + $0x310] sm:$0xff]
          %v654 = vld [vmem:[%s2 + $0x318] sm:$0xff]
          %v655 = vld [vmem:[%s2 + $0x320] sm:$0xff]
          %v656 = vld [vmem:[%s2 + $0x328] sm:$0xff]
          %v657 = vld [vmem:[%s2 + $0x330] sm:$0xff]
          %v658 = vld [vmem:[%s2 + $0x338] sm:$0xff]
          %v659 = vld [vmem:[%s2 + $0x340] sm:$0xff]
          %v660 = vld [vmem:[%s2 + $0x348] sm:$0xff]
          %v661 = vld [vmem:[%s2 + $0x350] sm:$0xff]
          %v662 = vld [vmem:[%s2 + $0x358] sm:$0xff]
          %v663 = vld [vmem:[%s2 + $0x360] sm:$0xff]
          %v664 = vld [vmem:[%s2 + $0x368] sm:$0xff]
          %v665 = vld [vmem:[%s2 + $0x370] sm:$0xff]
          %v666 = vld [vmem:[%s2 + $0x378] sm:$0xff]
          %v667 = vld [vmem:[%s2 + $0x380] sm:$0xff]
          %v668 = vld [vmem:[%s2 + $0x388] sm:$0xff]
          %v669 = vld [vmem:[%s2 + $0x390] sm:$0xff]
          %v670 = vld [vmem:[%s2 + $0x398] sm:$0xff]
          %v671 = vld [vmem:[%s2 + $0x3a0] sm:$0xff]
          %v672 = vld [vmem:[%s2 + $0x3a8] sm:$0xff]
          %v673 = vld [vmem:[%s2 + $0x3b0] sm:$0xff]
          %v674 = vld [vmem:[%s2 + $0x3b8] sm:$0xff]
          %v675 = vld [vmem:[%s2 + $0x3c0] sm:$0xff]
          %v676 = vld [vmem:[%s2 + $0x3c8] sm:$0xff]
          %v677 = vld [vmem:[%s2 + $0x3d0] sm:$0xff]
          %v678 = vld [vmem:[%s2 + $0x3d8] sm:$0xff]
          %v679 = vld [vmem:[%s2 + $0x3e0] sm:$0xff]
          %v680 = vld [vmem:[%s2 + $0x3e8] sm:$0xff]
          %v681 = vld [vmem:[%s2 + $0x3f0] sm:$0xff]
          %v682 = vld [vmem:[%s2 + $0x3f8] sm:$0xff]
          %v683 = vld [vmem:[%s2 + $0x400] sm:$0xff]
          %v684 = vld [vmem:[%s2 + $0x408] sm:$0xff]
          %v685 = vld [vmem:[%s2 + $0x410] sm:$0xff]
          %v686 = vld [vmem:[%s2 + $0x418] sm:$0xff]
          %v687 = vld [vmem:[%s2 + $0x420] sm:$0xff]
          %v688 = vld [vmem:[%s2 + $0x428] sm:$0xff]
          %v689 = vld [vmem:[%s2 + $0x430] sm:$0xff]
          %v690 = vld [vmem:[%s2 + $0x438] sm:$0xff]
          %v691 = vld [vmem:[%s2 + $0x440] sm:$0xff]
          %v692 = vld [vmem:[%s2 + $0x448] sm:$0xff]
          %v693 = vld [vmem:[%s2 + $0x450] sm:$0xff]
          %v694 = vld [vmem:[%s2 + $0x458] sm:$0xff]
          %v695 = vld [vmem:[%s2 + $0x460] sm:$0xff]
          %v696 = vld [vmem:[%s2 + $0x468] sm:$0xff]
          %v697 = vld [vmem:[%s2 + $0x470] sm:$0xff]
          %v698 = vld [vmem:[%s2 + $0x478] sm:$0xff]
          %v699 = vld [vmem:[%s2 + $0x480] sm:$0xff]
          %v700 = vld [vmem:[%s2 + $0x488] sm:$0xff]
          %v701 = vld [vmem:[%s2 + $0x490] sm:$0xff]
          %v702 = vld [vmem:[%s2 + $0x498] sm:$0xff]
          %v703 = vld [vmem:[%s2 + $0x4a0] sm:$0xff]
          %v704 = vld [vmem:[%s2 + $0x4a8] sm:$0xff]
          %v705 = vld [vmem:[%s2 + $0x4b0] sm:$0xff]
          %v706 = vld [vmem:[%s2 + $0x4b8] sm:$0xff]
          %v707 = vld [vmem:[%s2 + $0x4c0] sm:$0xff]
          %v708 = vld [vmem:[%s2 + $0x4c8] sm:$0xff]
          %v709 = vld [vmem:[%s2 + $0x4d0] sm:$0xff]
          %v710 = vld [vmem:[%s2 + $0x4d8] sm:$0xff]
          %v711 = vld [vmem:[%s2 + $0x4e0] sm:$0xff]
          %v712 = vld [vmem:[%s2 + $0x4e8] sm:$0xff]
          %v713 = vld [vmem:[%s2 + $0x4f0] sm:$0xff]
          %v714 = vld [vmem:[%s2 + $0x4f8] sm:$0xff]
          %v715 = vld [vmem:[%s2 + $0x500] sm:$0xff]
          %v716 = vld [vmem:[%s2 + $0x508] sm:$0xff]
          %v717 = vld [vmem:[%s2 + $0x510] sm:$0xff]
          %v718 = vld [vmem:[%s2 + $0x518] sm:$0xff]
          %v719 = vld [vmem:[%s2 + $0x520] sm:$0xff]
          %v720 = vld [vmem:[%s2 + $0x528] sm:$0xff]
          %v721 = vld [vmem:[%s2 + $0x530] sm:$0xff]
          %v722 = vld [vmem:[%s2 + $0x538] sm:$0xff]
          %v723 = vld [vmem:[%s2 + $0x540] sm:$0xff]
          %v724 = vld [vmem:[%s2 + $0x548] sm:$0xff]
          %v725 = vld [vmem:[%s2 + $0x550] sm:$0xff]
          %v726 = vld [vmem:[%s2 + $0x558] sm:$0xff]
          %v727 = vld [vmem:[%s2 + $0x560] sm:$0xff]
          %v728 = vld [vmem:[%s2 + $0x568] sm:$0xff]
          %v729 = vld [vmem:[%s2 + $0x570] sm:$0xff]
          %v730 = vld [vmem:[%s2 + $0x578] sm:$0xff]
          %v731 = vld [vmem:[%s2 + $0x580] sm:$0xff]
          %v732 = vld [vmem:[%s2 + $0x588] sm:$0xff]
          %v733 = vld [vmem:[%s2 + $0x590] sm:$0xff]
          %v734 = vld [vmem:[%s2 + $0x598] sm:$0xff]
          %v735 = vld [vmem:[%s2 + $0x5a0] sm:$0xff]
          %v736 = vld [vmem:[%s2 + $0x5a8] sm:$0xff]
          %v737 = vld [vmem:[%s2 + $0x5b0] sm:$0xff]
          %v738 = vld [vmem:[%s2 + $0x5b8] sm:$0xff]
          %v739 = vld [vmem:[%s2 + $0x5c0] sm:$0xff]
          %v740 = vld [vmem:[%s2 + $0x5c8] sm:$0xff]
          %v741 = vld [vmem:[%s2 + $0x5d0] sm:$0xff]
          %v742 = vld [vmem:[%s2 + $0x5d8] sm:$0xff]
          %v743 = vld [vmem:[%s2 + $0x5e0] sm:$0xff]
          %v744 = vld [vmem:[%s2 + $0x5e8] sm:$0xff]
          %v745 = vld [vmem:[%s2 + $0x5f0] sm:$0xff]
          %v746 = vld [vmem:[%s2 + $0x5f8] sm:$0xff]
          %v747 = vld [vmem:[%s2 + $0x600] sm:$0xff]
          %v748 = vld [vmem:[%s2 + $0x608] sm:$0xff]
          %v749 = vld [vmem:[%s2 + $0x610] sm:$0xff]
          %v750 = vld [vmem:[%s2 + $0x618] sm:$0xff]
          %v751 = vld [vmem:[%s2 + $0x620] sm:$0xff]
          %v752 = vld [vmem:[%s2 + $0x628] sm:$0xff]
          %v753 = vld [vmem:[%s2 + $0x630] sm:$0xff]
          %v754 = vld [vmem:[%s2 + $0x638] sm:$0xff]
          %v755 = vld [vmem:[%s2 + $0x640] sm:$0xff]
          %v756 = vld [vmem:[%s2 + $0x648] sm:$0xff]
          %v757 = vld [vmem:[%s2 + $0x650] sm:$0xff]
          %v758 = vld [vmem:[%s2 + $0x658] sm:$0xff]
          %v759 = vld [vmem:[%s2 + $0x660] sm:$0xff]
          %v760 = vld [vmem:[%s2 + $0x668] sm:$0xff]
          %v761 = vld [vmem:[%s2 + $0x670] sm:$0xff]
          %v762 = vld [vmem:[%s2 + $0x678] sm:$0xff]
          %v763 = vld [vmem:[%s2 + $0x680] sm:$0xff]
          %v764 = vld [vmem:[%s2 + $0x688] sm:$0xff]
          %v765 = vld [vmem:[%s2 + $0x690] sm:$0xff]
          %v766 = vld [vmem:[%s2 + $0x698] sm:$0xff]
          %v767 = vld [vmem:[%s2 + $0x6a0] sm:$0xff]
          %v768 = vld [vmem:[%s2 + $0x6a8] sm:$0xff]
          %v769 = vld [vmem:[%s2 + $0x6b0] sm:$0xff]
          %v770 = vld [vmem:[%s2 + $0x6b8] sm:$0xff]
          %v771 = vld [vmem:[%s2 + $0x6c0] sm:$0xff]
          %v772 = vld [vmem:[%s2 + $0x6c8] sm:$0xff]
          %v773 = vld [vmem:[%s2 + $0x6d0] sm:$0xff]
          %v774 = vld [vmem:[%s2 + $0x6d8] sm:$0xff]
          %v775 = vld [vmem:[%s2 + $0x6e0] sm:$0xff]
          %v776 = vld [vmem:[%s2 + $0x6e8] sm:$0xff]
          %v777 = vld [vmem:[%s2 + $0x6f0] sm:$0xff]
          %v778 = vld [vmem:[%s2 + $0x6f8] sm:$0xff]
          %v779 = vld [vmem:[%s2 + $0x700] sm:$0xff]
          %v780 = vld [vmem:[%s2 + $0x708] sm:$0xff]
          %v781 = vld [vmem:[%s2 + $0x710] sm:$0xff]
          %v782 = vld [vmem:[%s2 + $0x718] sm:$0xff]
          %v783 = vld [vmem:[%s2 + $0x720] sm:$0xff]
          %v784 = vld [vmem:[%s2 + $0x728] sm:$0xff]
          %v785 = vld [vmem:[%s2 + $0x730] sm:$0xff]
          %v786 = vld [vmem:[%s2 + $0x738] sm:$0xff]
          %v787 = vld [vmem:[%s2 + $0x740] sm:$0xff]
          %v788 = vld [vmem:[%s2 + $0x748] sm:$0xff]
          %v789 = vld [vmem:[%s2 + $0x750] sm:$0xff]
          %v790 = vld [vmem:[%s2 + $0x758] sm:$0xff]
          %v791 = vld [vmem:[%s2 + $0x760] sm:$0xff]
          %v792 = vld [vmem:[%s2 + $0x768] sm:$0xff]
          %v793 = vld [vmem:[%s2 + $0x770] sm:$0xff]
          %v794 = vld [vmem:[%s2 + $0x778] sm:$0xff]
          %v795 = vld [vmem:[%s2 + $0x780] sm:$0xff]
          %v796 = vld [vmem:[%s2 + $0x788] sm:$0xff]
          %v797 = vld [vmem:[%s2 + $0x790] sm:$0xff]
          %v798 = vld [vmem:[%s2 + $0x798] sm:$0xff]
          %v799 = vld [vmem:[%s2 + $0x7a0] sm:$0xff]
          %v800 = vld [vmem:[%s2 + $0x7a8] sm:$0xff]
          %v801 = vld [vmem:[%s2 + $0x7b0] sm:$0xff]
          %v802 = vld [vmem:[%s2 + $0x7b8] sm:$0xff]
          %v803 = vld [vmem:[%s2 + $0x7c0] sm:$0xff]
          %v804 = vld [vmem:[%s2 + $0x7c8] sm:$0xff]
          %v805 = vld [vmem:[%s2 + $0x7d0] sm:$0xff]
          %v806 = vld [vmem:[%s2 + $0x7d8] sm:$0xff]
          %v807 = vld [vmem:[%s2 + $0x7e0] sm:$0xff]
          %v808 = vld [vmem:[%s2 + $0x7e8] sm:$0xff]
          %v809 = vld [vmem:[%s2 + $0x7f0] sm:$0xff]
          %v810 = vld [vmem:[%s2 + $0x7f8] sm:$0xff]
          %v815 = vlaneseq
          %v816 = vand.u32 %v815, 127
          %v817 = vlaneseq
          %v818 = vshrl.u32 %v817, 7
          %v819 = vsub.s32 %v816, %v818
          %v820 = vrot.slane %v551, %v819
          %v821 = vlaneseq
          %v822 = vshrl.u32 %v821, 7
          %v823 = vsub.s32 %v816, %v822
          %v824 = vrot.slane %v552, %v823
          %v825 = vlaneseq
          %v826 = vshrl.u32 %v825, 7
          %v827 = vsub.s32 %v816, %v826
          %v828 = vrot.slane %v553, %v827
          %v829 = vlaneseq
          %v830 = vshrl.u32 %v829, 7
          %v831 = vsub.s32 %v816, %v830
          %v832 = vrot.slane %v554, %v831
          %vm833 = vcmask 1041409
          %v834 = vsel %vm833, %v824, %v820
          %vm835 = vcmask 1042434
          %v836 = vsel %vm835, %v828, %v834
          %vm837 = vcmask 1043459
          %v838 = vsel %vm837, %v832, %v836
          %vm839 = vcmask 31744
          %v841 = vsel %vm839, %v555, 0
          %v844 = vsel %vm839, %v556, 0
          %v847 = vsel %vm839, %v557, 0
          %v850 = vsel %vm839, %v558, 0
          %v853 = vsel %vm839, %v559, 0
          %v856 = vsel %vm839, %v560, 0
          %v859 = vsel %vm839, %v561, 0
          %v862 = vsel %vm839, %v562, 0
          %v865 = vsel %vm839, %v563, 0
          %v868 = vsel %vm839, %v564, 0
          %v871 = vsel %vm839, %v565, 0
          %v874 = vsel %vm839, %v566, 0
          %v877 = vsel %vm839, %v567, 0
          %v880 = vsel %vm839, %v568, 0
          %v883 = vsel %vm839, %v569, 0
          %v886 = vsel %vm839, %v570, 0
          %v889 = vsel %vm839, %v571, 0
          %v892 = vsel %vm839, %v572, 0
          %v895 = vsel %vm839, %v573, 0
          %v898 = vsel %vm839, %v574, 0
          %v901 = vsel %vm839, %v575, 0
          %v904 = vsel %vm839, %v576, 0
          %v907 = vsel %vm839, %v577, 0
          %v910 = vsel %vm839, %v578, 0
          %v913 = vsel %vm839, %v579, 0
          %v916 = vsel %vm839, %v580, 0
          %v919 = vsel %vm839, %v581, 0
          %v922 = vsel %vm839, %v582, 0
          %v925 = vsel %vm839, %v583, 0
          %v928 = vsel %vm839, %v584, 0
          %v931 = vsel %vm839, %v585, 0
          %v934 = vsel %vm839, %v586, 0
          %v937 = vsel %vm839, %v587, 0
          %v940 = vsel %vm839, %v588, 0
          %v943 = vsel %vm839, %v589, 0
          %v946 = vsel %vm839, %v590, 0
          %v949 = vsel %vm839, %v591, 0
          %v952 = vsel %vm839, %v592, 0
          %v955 = vsel %vm839, %v593, 0
          %v958 = vsel %vm839, %v594, 0
          %v961 = vsel %vm839, %v595, 0
          %v964 = vsel %vm839, %v596, 0
          %v967 = vsel %vm839, %v597, 0
          %v970 = vsel %vm839, %v598, 0
          %v973 = vsel %vm839, %v599, 0
          %v976 = vsel %vm839, %v600, 0
          %v979 = vsel %vm839, %v601, 0
          %v982 = vsel %vm839, %v602, 0
          %v985 = vsel %vm839, %v603, 0
          %v988 = vsel %vm839, %v604, 0
          %v991 = vsel %vm839, %v605, 0
          %v994 = vsel %vm839, %v606, 0
          %v997 = vsel %vm839, %v607, 0
          %v1000 = vsel %vm839, %v608, 0
          %v1003 = vsel %vm839, %v609, 0
          %v1006 = vsel %vm839, %v610, 0
          %v1009 = vsel %vm839, %v611, 0
          %v1012 = vsel %vm839, %v612, 0
          %v1015 = vsel %vm839, %v613, 0
          %v1018 = vsel %vm839, %v614, 0
          %v1021 = vsel %vm839, %v615, 0
          %v1024 = vsel %vm839, %v616, 0
          %v1027 = vsel %vm839, %v617, 0
          %v1030 = vsel %vm839, %v618, 0
          %v1033 = vsel %vm839, %v619, 0
          %v1036 = vsel %vm839, %v620, 0
          %v1039 = vsel %vm839, %v621, 0
          %v1042 = vsel %vm839, %v622, 0
          %v1045 = vsel %vm839, %v623, 0
          %v1048 = vsel %vm839, %v624, 0
          %v1051 = vsel %vm839, %v625, 0
          %v1054 = vsel %vm839, %v626, 0
          %v1057 = vsel %vm839, %v627, 0
          %v1060 = vsel %vm839, %v628, 0
          %v1063 = vsel %vm839, %v629, 0
          %v1066 = vsel %vm839, %v630, 0
          %v1069 = vsel %vm839, %v631, 0
          %v1072 = vsel %vm839, %v632, 0
          %v1075 = vsel %vm839, %v633, 0
          %v1078 = vsel %vm839, %v634, 0
          %v1081 = vsel %vm839, %v635, 0
          %v1084 = vsel %vm839, %v636, 0
          %v1087 = vsel %vm839, %v637, 0
          %v1090 = vsel %vm839, %v638, 0
          %v1093 = vsel %vm839, %v639, 0
          %v1096 = vsel %vm839, %v640, 0
          %v1099 = vsel %vm839, %v641, 0
          %v1102 = vsel %vm839, %v642, 0
          %v1105 = vsel %vm839, %v643, 0
          %v1108 = vsel %vm839, %v644, 0
          %v1111 = vsel %vm839, %v645, 0
          %v1114 = vsel %vm839, %v646, 0
          %v1117 = vsel %vm839, %v647, 0
          %v1120 = vsel %vm839, %v648, 0
          %v1123 = vsel %vm839, %v649, 0
          %v1126 = vsel %vm839, %v650, 0
          %v1129 = vsel %vm839, %v651, 0
          %v1132 = vsel %vm839, %v652, 0
          %v1135 = vsel %vm839, %v653, 0
          %v1138 = vsel %vm839, %v654, 0
          %v1141 = vsel %vm839, %v655, 0
          %v1144 = vsel %vm839, %v656, 0
          %v1147 = vsel %vm839, %v657, 0
          %v1150 = vsel %vm839, %v658, 0
          %v1153 = vsel %vm839, %v659, 0
          %v1156 = vsel %vm839, %v660, 0
          %v1159 = vsel %vm839, %v661, 0
          %v1162 = vsel %vm839, %v662, 0
          %v1165 = vsel %vm839, %v663, 0
          %v1168 = vsel %vm839, %v664, 0
          %v1171 = vsel %vm839, %v665, 0
          %v1174 = vsel %vm839, %v666, 0
          %v1177 = vsel %vm839, %v667, 0
          %v1180 = vsel %vm839, %v668, 0
          %v1183 = vsel %vm839, %v669, 0
          %v1186 = vsel %vm839, %v670, 0
          %v1189 = vsel %vm839, %v671, 0
          %v1192 = vsel %vm839, %v672, 0
          %v1195 = vsel %vm839, %v673, 0
          %v1198 = vsel %vm839, %v674, 0
          %v1201 = vsel %vm839, %v675, 0
          %v1204 = vsel %vm839, %v676, 0
          %v1207 = vsel %vm839, %v677, 0
          %v1210 = vsel %vm839, %v678, 0
          %v1213 = vsel %vm839, %v679, 0
          %v1216 = vsel %vm839, %v680, 0
          %v1219 = vsel %vm839, %v681, 0
          %v1222 = vsel %vm839, %v682, 0
          %v1225 = vsel %vm839, %v683, 0
          %v1228 = vsel %vm839, %v684, 0
          %v1231 = vsel %vm839, %v685, 0
          %v1234 = vsel %vm839, %v686, 0
          %v1237 = vsel %vm839, %v687, 0
          %v1240 = vsel %vm839, %v688, 0
          %v1243 = vsel %vm839, %v689, 0
          %v1246 = vsel %vm839, %v690, 0
          %v1249 = vsel %vm839, %v691, 0
          %v1252 = vsel %vm839, %v692, 0
          %v1255 = vsel %vm839, %v693, 0
          %v1258 = vsel %vm839, %v694, 0
          %v1261 = vsel %vm839, %v695, 0
          %v1264 = vsel %vm839, %v696, 0
          %v1267 = vsel %vm839, %v697, 0
          %v1270 = vsel %vm839, %v698, 0
          %v1273 = vsel %vm839, %v699, 0
          %v1276 = vsel %vm839, %v700, 0
          %v1279 = vsel %vm839, %v701, 0
          %v1282 = vsel %vm839, %v702, 0
          %v1285 = vsel %vm839, %v703, 0
          %v1288 = vsel %vm839, %v704, 0
          %v1291 = vsel %vm839, %v705, 0
          %v1294 = vsel %vm839, %v706, 0
          %v1297 = vsel %vm839, %v707, 0
          %v1300 = vsel %vm839, %v708, 0
          %v1303 = vsel %vm839, %v709, 0
          %v1306 = vsel %vm839, %v710, 0
          %v1309 = vsel %vm839, %v711, 0
          %v1312 = vsel %vm839, %v712, 0
          %v1315 = vsel %vm839, %v713, 0
          %v1318 = vsel %vm839, %v714, 0
          %v1321 = vsel %vm839, %v715, 0
          %v1324 = vsel %vm839, %v716, 0
          %v1327 = vsel %vm839, %v717, 0
          %v1330 = vsel %vm839, %v718, 0
          %v1333 = vsel %vm839, %v719, 0
          %v1336 = vsel %vm839, %v720, 0
          %v1339 = vsel %vm839, %v721, 0
          %v1342 = vsel %vm839, %v722, 0
          %v1345 = vsel %vm839, %v723, 0
          %v1348 = vsel %vm839, %v724, 0
          %v1351 = vsel %vm839, %v725, 0
          %v1354 = vsel %vm839, %v726, 0
          %v1357 = vsel %vm839, %v727, 0
          %v1360 = vsel %vm839, %v728, 0
          %v1363 = vsel %vm839, %v729, 0
          %v1366 = vsel %vm839, %v730, 0
          %v1369 = vsel %vm839, %v731, 0
          %v1372 = vsel %vm839, %v732, 0
          %v1375 = vsel %vm839, %v733, 0
          %v1378 = vsel %vm839, %v734, 0
          %v1381 = vsel %vm839, %v735, 0
          %v1384 = vsel %vm839, %v736, 0
          %v1387 = vsel %vm839, %v737, 0
          %v1390 = vsel %vm839, %v738, 0
          %v1393 = vsel %vm839, %v739, 0
          %v1396 = vsel %vm839, %v740, 0
          %v1399 = vsel %vm839, %v741, 0
          %v1402 = vsel %vm839, %v742, 0
          %v1405 = vsel %vm839, %v743, 0
          %v1408 = vsel %vm839, %v744, 0
          %v1411 = vsel %vm839, %v745, 0
          %v1414 = vsel %vm839, %v746, 0
          %v1417 = vsel %vm839, %v747, 0
          %v1420 = vsel %vm839, %v748, 0
          %v1423 = vsel %vm839, %v749, 0
          %v1426 = vsel %vm839, %v750, 0
          %v1429 = vsel %vm839, %v751, 0
          %v1432 = vsel %vm839, %v752, 0
          %v1435 = vsel %vm839, %v753, 0
          %v1438 = vsel %vm839, %v754, 0
          %v1441 = vsel %vm839, %v755, 0
          %v1444 = vsel %vm839, %v756, 0
          %v1447 = vsel %vm839, %v757, 0
          %v1450 = vsel %vm839, %v758, 0
          %v1453 = vsel %vm839, %v759, 0
          %v1456 = vsel %vm839, %v760, 0
          %v1459 = vsel %vm839, %v761, 0
          %v1462 = vsel %vm839, %v762, 0
          %v1465 = vsel %vm839, %v763, 0
          %v1468 = vsel %vm839, %v764, 0
          %v1471 = vsel %vm839, %v765, 0
          %v1474 = vsel %vm839, %v766, 0
          %v1477 = vsel %vm839, %v767, 0
          %v1480 = vsel %vm839, %v768, 0
          %v1483 = vsel %vm839, %v769, 0
          %v1486 = vsel %vm839, %v770, 0
          %v1489 = vsel %vm839, %v771, 0
          %v1492 = vsel %vm839, %v772, 0
          %v1495 = vsel %vm839, %v773, 0
          %v1498 = vsel %vm839, %v774, 0
          %v1501 = vsel %vm839, %v775, 0
          %v1504 = vsel %vm839, %v776, 0
          %v1507 = vsel %vm839, %v777, 0
          %v1510 = vsel %vm839, %v778, 0
          %v1513 = vsel %vm839, %v779, 0
          %v1516 = vsel %vm839, %v780, 0
          %v1519 = vsel %vm839, %v781, 0
          %v1522 = vsel %vm839, %v782, 0
          %v1525 = vsel %vm839, %v783, 0
          %v1528 = vsel %vm839, %v784, 0
          %v1531 = vsel %vm839, %v785, 0
          %v1534 = vsel %vm839, %v786, 0
          %v1537 = vsel %vm839, %v787, 0
          %v1540 = vsel %vm839, %v788, 0
          %v1543 = vsel %vm839, %v789, 0
          %v1546 = vsel %vm839, %v790, 0
          %v1549 = vsel %vm839, %v791, 0
          %v1552 = vsel %vm839, %v792, 0
          %v1555 = vsel %vm839, %v793, 0
          %v1558 = vsel %vm839, %v794, 0
          %v1561 = vsel %vm839, %v795, 0
          %v1564 = vsel %vm839, %v796, 0
          %v1567 = vsel %vm839, %v797, 0
          %v1570 = vsel %vm839, %v798, 0
          %v1573 = vsel %vm839, %v799, 0
          %v1576 = vsel %vm839, %v800, 0
          %v1579 = vsel %vm839, %v801, 0
          %v1582 = vsel %vm839, %v802, 0
          %v1585 = vsel %vm839, %v803, 0
          %v1588 = vsel %vm839, %v804, 0
          %v1591 = vsel %vm839, %v805, 0
          %v1594 = vsel %vm839, %v806, 0
          %v1597 = vsel %vm839, %v807, 0
          %v1600 = vsel %vm839, %v808, 0
          %v1603 = vsel %vm839, %v809, 0
          %v1606 = vsel %vm839, %v810, 0
          %vm1608 = vcmask 1043456
          %v1609 = vsel %vm1608, %v838, 0
          %1611 = vmatprep.subr.mxu0 0.0
          %1612 = vmatpush1.msra.mxu0 %v1609
          %1613 = vmatprep.subr.mxu0 0.0
          %1614 = vmatpush1.msra.mxu0 0.0
          %1615 = vmatprep.subr.mxu0 0.0
          %1616 = vmatpush1.msra.mxu0 0.0
          %1617 = vmatprep.subr.mxu0 0.0
          %1618 = vmatpush1.msra.mxu0 0.0
          %1619 = vmatprep.subr.mxu0 0.0
          %1620 = vmatpush1.msra.mxu0 0.0
          %1621 = vmatprep.subr.mxu0 0.0
          %1622 = vmatpush1.msra.mxu0 0.0
          %1623 = vmatprep.subr.mxu0 0.0
          %1624 = vmatpush1.msra.mxu0 0.0
          %1625 = vmatprep.subr.mxu0 0.0
          %1626 = vmatpush1.msra.mxu0 0.0
          %1627 = vmatprep.subr.mxu0 0.0
          %1628 = vmatpush1.msra.mxu0 0.0
          %1629 = vmatprep.subr.mxu0 0.0
          %1630 = vmatpush1.msra.mxu0 0.0
          %1631 = vmatprep.subr.mxu0 0.0
          %1632 = vmatpush1.msra.mxu0 0.0
          %1633 = vmatprep.subr.mxu0 0.0
          %1634 = vmatpush1.msra.mxu0 0.0
          %1635 = vmatprep.subr.mxu0 0.0
          %1636 = vmatpush1.msra.mxu0 0.0
          %1637 = vmatprep.subr.mxu0 0.0
          %1638 = vmatpush1.msra.mxu0 0.0
          %1639 = vmatprep.subr.mxu0 0.0
          %1640 = vmatpush1.msra.mxu0 0.0
          %1641 = vmatprep.subr.mxu0 0.0
          %1642 = vmatpush1.msra.mxu0 0.0
          %1643 = vmatprep.subr.mxu0 0.0
          %1644 = vmatpush1.msra.mxu0 0.0
          %1645 = vmatprep.subr.mxu0 0.0
          %1646 = vmatpush1.msra.mxu0 0.0
          %1647 = vmatprep.subr.mxu0 0.0
          %1648 = vmatpush1.msra.mxu0 0.0
          %1649 = vmatprep.subr.mxu0 0.0
          %1650 = vmatpush1.msra.mxu0 0.0
          %1651 = vmatprep.subr.mxu0 0.0
          %1652 = vmatpush1.msra.mxu0 0.0
          %1653 = vmatprep.subr.mxu0 0.0
          %1654 = vmatpush1.msra.mxu0 0.0
          %1655 = vmatprep.subr.mxu0 0.0
          %1656 = vmatpush1.msra.mxu0 0.0
          %1657 = vmatprep.subr.mxu0 0.0
          %1658 = vmatpush1.msra.mxu0 0.0
          %1659 = vmatprep.subr.mxu0 0.0
          %1660 = vmatpush1.msra.mxu0 0.0
          %1661 = vmatprep.subr.mxu0 0.0
          %1662 = vmatpush1.msra.mxu0 0.0
          %1663 = vmatprep.subr.mxu0 0.0
          %1664 = vmatpush1.msra.mxu0 0.0
          %1665 = vmatprep.subr.mxu0 0.0
          %1666 = vmatpush1.msra.mxu0 0.0
          %1667 = vmatprep.subr.mxu0 0.0
          %1668 = vmatpush1.msra.mxu0 0.0
          %1669 = vmatprep.subr.mxu0 0.0
          %1670 = vmatpush1.msra.mxu0 0.0
          %1671 = vmatprep.subr.mxu0 0.0
          %1672 = vmatpush1.msra.mxu0 0.0
          %1673 = vmatprep.subr.mxu0 0.0
          %1674 = vmatpush1.msra.mxu0 0.0
          %1675 = vmatprep.mubr.f32.mxu0 0.0
          %1676 = vmatmul.mubr.f32.gmra.mrb[0].mxu0 %v841
          %v1677 = vpop.f32.mrb[0].mxu0
          %v1678 = vadd.f32 0.0, %v1677
          %v1679 = vpop.f32.mrb[0].mxu0
          %1680 = vmatprep.mubr.f32.mxu0 0.0
          %1681 = vmatmul.mubr.f32.gmra.mrb[0].mxu0 %v844
          %v1682 = vpop.f32.mrb[0].mxu0
          %v1683 = vadd.f32 0.0, %v1682
          %v1684 = vpop.f32.mrb[0].mxu0
          %1685 = vmatprep.mubr.f32.mxu0 0.0
          %1686 = vmatmul.mubr.f32.gmra.mrb[0].mxu0 %v847
          %v1687 = vpop.f32.mrb[0].mxu0
          %v1688 = vadd.f32 0.0, %v1687
          %v1689 = vpop.f32.mrb[0].mxu0
          %1690 = vmatprep.mubr.f32.mxu0 0.0
          %1691 = vmatmul.mubr.f32.gmra.mrb[0].mxu0 %v850
          %v1692 = vpop.f32.mrb[0].mxu0
          %v1693 = vadd.f32 0.0, %v1692
          %v1694 = vpop.f32.mrb[0].mxu0
          %1695 = vmatprep.mubr.f32.mxu0 0.0
          %1696 = vmatmul.mubr.f32.gmra.mrb[0].mxu0 %v853
          %v1697 = vpop.f32.mrb[0].mxu0
          %v1698 = vadd.f32 0.0, %v1697
          %v1699 = vpop.f32.mrb[0].mxu0
          %1700 = vmatprep.mubr.f32.mxu0 0.0
          %1701 = vmatmul.mubr.f32.gmra.mrb[0].mxu0 %v856
          %v1702 = vpop.f32.mrb[0].mxu0
          %v1703 = vadd.f32 0.0, %v1702
          %v1704 = vpop.f32.mrb[0].mxu0
          %1705 = vmatprep.mubr.f32.mxu0 0.0
          %1706 = vmatmul.mubr.f32.gmra.mrb[0].mxu0 %v859
          %v1707 = vpop.f32.mrb[0].mxu0
          %v1708 = vadd.f32 0.0, %v1707
          %v1709 = vpop.f32.mrb[0].mxu0
          %1710 = vmatprep.mubr.f32.mxu0 0.0
          %1711 = vmatmul.mubr.f32.gmra.mrb[0].mxu0 %v862
          %v1712 = vpop.f32.mrb[0].mxu0
          %v1713 = vadd.f32 0.0, %v1712
          %v1714 = vpop.f32.mrb[0].mxu0
          %1715 = vmatprep.mubr.f32.mxu0 0.0
          %1716 = vmatmul.mubr.f32.gmra.mrb[0].mxu0 %v865
          %v1717 = vpop.f32.mrb[0].mxu0
          %v1718 = vadd.f32 0.0, %v1717
          %v1719 = vpop.f32.mrb[0].mxu0
          %1720 = vmatprep.mubr.f32.mxu0 0.0
          %1721 = vmatmul.mubr.f32.gmra.mrb[0].mxu0 %v868
          %v1722 = vpop.f32.mrb[0].mxu0
          %v1723 = vadd.f32 0.0, %v1722
          %v1724 = vpop.f32.mrb[0].mxu0
          %1725 = vmatprep.mubr.f32.mxu0 0.0
          %1726 = vmatmul.mubr.f32.gmra.mrb[0].mxu0 %v871
          %v1727 = vpop.f32.mrb[0].mxu0
          %v1728 = vadd.f32 0.0, %v1727
          %v1729 = vpop.f32.mrb[0].mxu0
          %1730 = vmatprep.mubr.f32.mxu0 0.0
          %1731 = vmatmul.mubr.f32.gmra.mrb[0].mxu0 %v874
          %v1732 = vpop.f32.mrb[0].mxu0
          %v1733 = vadd.f32 0.0, %v1732
          %v1734 = vpop.f32.mrb[0].mxu0
          %1735 = vmatprep.mubr.f32.mxu0 0.0
          %1736 = vmatmul.mubr.f32.gmra.mrb[0].mxu0 %v877
          %v1737 = vpop.f32.mrb[0].mxu0
          %v1738 = vadd.f32 0.0, %v1737
          %v1739 = vpop.f32.mrb[0].mxu0
          %1740 = vmatprep.mubr.f32.mxu0 0.0
          %1741 = vmatmul.mubr.f32.gmra.mrb[0].mxu0 %v880
          %v1742 = vpop.f32.mrb[0].mxu0
          %v1743 = vadd.f32 0.0, %v1742
          %v1744 = vpop.f32.mrb[0].mxu0
          %1745 = vmatprep.mubr.f32.mxu0 0.0
          %1746 = vmatmul.mubr.f32.gmra.mrb[0].mxu0 %v883
          %v1747 = vpop.f32.mrb[0].mxu0
          %v1748 = vadd.f32 0.0, %v1747
          %v1749 = vpop.f32.mrb[0].mxu0
          %1750 = vmatprep.mubr.f32.mxu0 0.0
          %1751 = vmatmul.mubr.f32.gmra.mrb[0].mxu0 %v886
          %v1752 = vpop.f32.mrb[0].mxu0
          %v1753 = vadd.f32 0.0, %v1752
          %v1754 = vpop.f32.mrb[0].mxu0
          %1755 = vmatprep.mubr.f32.mxu0 0.0
          %1756 = vmatmul.mubr.f32.gmra.mrb[0].mxu0 %v889
          %v1757 = vpop.f32.mrb[0].mxu0
          %v1758 = vadd.f32 0.0, %v1757
          %v1759 = vpop.f32.mrb[0].mxu0
          %1760 = vmatprep.mubr.f32.mxu0 0.0
          %1761 = vmatmul.mubr.f32.gmra.mrb[0].mxu0 %v892
          %v1762 = vpop.f32.mrb[0].mxu0
          %v1763 = vadd.f32 0.0, %v1762
          %v1764 = vpop.f32.mrb[0].mxu0
          %1765 = vmatprep.mubr.f32.mxu0 0.0
          %1766 = vmatmul.mubr.f32.gmra.mrb[0].mxu0 %v895
          %v1767 = vpop.f32.mrb[0].mxu0
          %v1768 = vadd.f32 0.0, %v1767
          %v1769 = vpop.f32.mrb[0].mxu0
          %1770 = vmatprep.mubr.f32.mxu0 0.0
          %1771 = vmatmul.mubr.f32.gmra.mrb[0].mxu0 %v898
          %v1772 = vpop.f32.mrb[0].mxu0
          %v1773 = vadd.f32 0.0, %v1772
          %v1774 = vpop.f32.mrb[0].mxu0
          %1775 = vmatprep.mubr.f32.mxu0 0.0
          %1776 = vmatmul.mubr.f32.gmra.mrb[0].mxu0 %v901
          %v1777 = vpop.f32.mrb[0].mxu0
          %v1778 = vadd.f32 0.0, %v1777
          %v1779 = vpop.f32.mrb[0].mxu0
          %1780 = vmatprep.mubr.f32.mxu0 0.0
          %1781 = vmatmul.mubr.f32.gmra.mrb[0].mxu0 %v904
          %v1782 = vpop.f32.mrb[0].mxu0
          %v1783 = vadd.f32 0.0, %v1782
          %v1784 = vpop.f32.mrb[0].mxu0
          %1785 = vmatprep.mubr.f32.mxu0 0.0
          %1786 = vmatmul.mubr.f32.gmra.mrb[0].mxu0 %v907
          %v1787 = vpop.f32.mrb[0].mxu0
          %v1788 = vadd.f32 0.0, %v1787
          %v1789 = vpop.f32.mrb[0].mxu0
          %1790 = vmatprep.mubr.f32.mxu0 0.0
          %1791 = vmatmul.mubr.f32.gmra.mrb[0].mxu0 %v910
          %v1792 = vpop.f32.mrb[0].mxu0
          %v1793 = vadd.f32 0.0, %v1792
          %v1794 = vpop.f32.mrb[0].mxu0
          %1795 = vmatprep.mubr.f32.mxu0 0.0
          %1796 = vmatmul.mubr.f32.gmra.mrb[0].mxu0 %v913
          %v1797 = vpop.f32.mrb[0].mxu0
          %v1798 = vadd.f32 0.0, %v1797
          %v1799 = vpop.f32.mrb[0].mxu0
          %1800 = vmatprep.mubr.f32.mxu0 0.0
          %1801 = vmatmul.mubr.f32.gmra.mrb[0].mxu0 %v916
          %v1802 = vpop.f32.mrb[0].mxu0
          %v1803 = vadd.f32 0.0, %v1802
          %v1804 = vpop.f32.mrb[0].mxu0
          %1805 = vmatprep.mubr.f32.mxu0 0.0
          %1806 = vmatmul.mubr.f32.gmra.mrb[0].mxu0 %v919
          %v1807 = vpop.f32.mrb[0].mxu0
          %v1808 = vadd.f32 0.0, %v1807
          %v1809 = vpop.f32.mrb[0].mxu0
          %1810 = vmatprep.mubr.f32.mxu0 0.0
          %1811 = vmatmul.mubr.f32.gmra.mrb[0].mxu0 %v922
          %v1812 = vpop.f32.mrb[0].mxu0
          %v1813 = vadd.f32 0.0, %v1812
          %v1814 = vpop.f32.mrb[0].mxu0
          %1815 = vmatprep.mubr.f32.mxu0 0.0
          %1816 = vmatmul.mubr.f32.gmra.mrb[0].mxu0 %v925
          %v1817 = vpop.f32.mrb[0].mxu0
          %v1818 = vadd.f32 0.0, %v1817
          %v1819 = vpop.f32.mrb[0].mxu0
          %1820 = vmatprep.mubr.f32.mxu0 0.0
          %1821 = vmatmul.mubr.f32.gmra.mrb[0].mxu0 %v928
          %v1822 = vpop.f32.mrb[0].mxu0
          %v1823 = vadd.f32 0.0, %v1822
          %v1824 = vpop.f32.mrb[0].mxu0
          %1825 = vmatprep.mubr.f32.mxu0 0.0
          %1826 = vmatmul.mubr.f32.gmra.mrb[0].mxu0 %v931
          %v1827 = vpop.f32.mrb[0].mxu0
          %v1828 = vadd.f32 0.0, %v1827
          %v1829 = vpop.f32.mrb[0].mxu0
          %1830 = vmatprep.mubr.f32.mxu0 0.0
          %1831 = vmatmul.mubr.f32.gmra.mrb[0].mxu0 %v934
          %v1832 = vpop.f32.mrb[0].mxu0
          %v1833 = vadd.f32 0.0, %v1832
          %v1834 = vpop.f32.mrb[0].mxu0
          %1835 = vmatprep.mubr.f32.mxu0 0.0
          %1836 = vmatmul.mubr.f32.gmra.mrb[0].mxu0 %v937
          %v1837 = vpop.f32.mrb[0].mxu0
          %v1838 = vadd.f32 0.0, %v1837
          %v1839 = vpop.f32.mrb[0].mxu0
          %1840 = vmatprep.mubr.f32.mxu0 0.0
          %1841 = vmatmul.mubr.f32.gmra.mrb[0].mxu0 %v940
          %v1842 = vpop.f32.mrb[0].mxu0
          %v1843 = vadd.f32 0.0, %v1842
          %v1844 = vpop.f32.mrb[0].mxu0
          %1845 = vmatprep.mubr.f32.mxu0 0.0
          %1846 = vmatmul.mubr.f32.gmra.mrb[0].mxu0 %v943
          %v1847 = vpop.f32.mrb[0].mxu0
          %v1848 = vadd.f32 0.0, %v1847
          %v1849 = vpop.f32.mrb[0].mxu0
          %1850 = vmatprep.mubr.f32.mxu0 0.0
          %1851 = vmatmul.mubr.f32.gmra.mrb[0].mxu0 %v946
          %v1852 = vpop.f32.mrb[0].mxu0
          %v1853 = vadd.f32 0.0, %v1852
          %v1854 = vpop.f32.mrb[0].mxu0
          %1855 = vmatprep.mubr.f32.mxu0 0.0
          %1856 = vmatmul.mubr.f32.gmra.mrb[0].mxu0 %v949
          %v1857 = vpop.f32.mrb[0].mxu0
          %v1858 = vadd.f32 0.0, %v1857
          %v1859 = vpop.f32.mrb[0].mxu0
          %1860 = vmatprep.mubr.f32.mxu0 0.0
          %1861 = vmatmul.mubr.f32.gmra.mrb[0].mxu0 %v952
          %v1862 = vpop.f32.mrb[0].mxu0
          %v1863 = vadd.f32 0.0, %v1862
          %v1864 = vpop.f32.mrb[0].mxu0
          %1865 = vmatprep.mubr.f32.mxu0 0.0
          %1866 = vmatmul.mubr.f32.gmra.mrb[0].mxu0 %v955
          %v1867 = vpop.f32.mrb[0].mxu0
          %v1868 = vadd.f32 0.0, %v1867
          %v1869 = vpop.f32.mrb[0].mxu0
          %1870 = vmatprep.mubr.f32.mxu0 0.0
          %1871 = vmatmul.mubr.f32.gmra.mrb[0].mxu0 %v958
          %v1872 = vpop.f32.mrb[0].mxu0
          %v1873 = vadd.f32 0.0, %v1872
          %v1874 = vpop.f32.mrb[0].mxu0
          %1875 = vmatprep.mubr.f32.mxu0 0.0
          %1876 = vmatmul.mubr.f32.gmra.mrb[0].mxu0 %v961
          %v1877 = vpop.f32.mrb[0].mxu0
          %v1878 = vadd.f32 0.0, %v1877
          %v1879 = vpop.f32.mrb[0].mxu0
          %1880 = vmatprep.mubr.f32.mxu0 0.0
          %1881 = vmatmul.mubr.f32.gmra.mrb[0].mxu0 %v964
          %v1882 = vpop.f32.mrb[0].mxu0
          %v1883 = vadd.f32 0.0, %v1882
          %v1884 = vpop.f32.mrb[0].mxu0
          %1885 = vmatprep.mubr.f32.mxu0 0.0
          %1886 = vmatmul.mubr.f32.gmra.mrb[0].mxu0 %v967
          %v1887 = vpop.f32.mrb[0].mxu0
          %v1888 = vadd.f32 0.0, %v1887
          %v1889 = vpop.f32.mrb[0].mxu0
          %1890 = vmatprep.mubr.f32.mxu0 0.0
          %1891 = vmatmul.mubr.f32.gmra.mrb[0].mxu0 %v970
          %v1892 = vpop.f32.mrb[0].mxu0
          %v1893 = vadd.f32 0.0, %v1892
          %v1894 = vpop.f32.mrb[0].mxu0
          %1895 = vmatprep.mubr.f32.mxu0 0.0
          %1896 = vmatmul.mubr.f32.gmra.mrb[0].mxu0 %v973
          %v1897 = vpop.f32.mrb[0].mxu0
          %v1898 = vadd.f32 0.0, %v1897
          %v1899 = vpop.f32.mrb[0].mxu0
          %1900 = vmatprep.mubr.f32.mxu0 0.0
          %1901 = vmatmul.mubr.f32.gmra.mrb[0].mxu0 %v976
          %v1902 = vpop.f32.mrb[0].mxu0
          %v1903 = vadd.f32 0.0, %v1902
          %v1904 = vpop.f32.mrb[0].mxu0
          %1905 = vmatprep.mubr.f32.mxu0 0.0
          %1906 = vmatmul.mubr.f32.gmra.mrb[0].mxu0 %v979
          %v1907 = vpop.f32.mrb[0].mxu0
          %v1908 = vadd.f32 0.0, %v1907
          %v1909 = vpop.f32.mrb[0].mxu0
          %1910 = vmatprep.mubr.f32.mxu0 0.0
          %1911 = vmatmul.mubr.f32.gmra.mrb[0].mxu0 %v982
          %v1912 = vpop.f32.mrb[0].mxu0
          %v1913 = vadd.f32 0.0, %v1912
          %v1914 = vpop.f32.mrb[0].mxu0
          %1915 = vmatprep.mubr.f32.mxu0 0.0
          %1916 = vmatmul.mubr.f32.gmra.mrb[0].mxu0 %v985
          %v1917 = vpop.f32.mrb[0].mxu0
          %v1918 = vadd.f32 0.0, %v1917
          %v1919 = vpop.f32.mrb[0].mxu0
          %1920 = vmatprep.mubr.f32.mxu0 0.0
          %1921 = vmatmul.mubr.f32.gmra.mrb[0].mxu0 %v988
          %v1922 = vpop.f32.mrb[0].mxu0
          %v1923 = vadd.f32 0.0, %v1922
          %v1924 = vpop.f32.mrb[0].mxu0
          %1925 = vmatprep.mubr.f32.mxu0 0.0
          %1926 = vmatmul.mubr.f32.gmra.mrb[0].mxu0 %v991
          %v1927 = vpop.f32.mrb[0].mxu0
          %v1928 = vadd.f32 0.0, %v1927
          %v1929 = vpop.f32.mrb[0].mxu0
          %1930 = vmatprep.mubr.f32.mxu0 0.0
          %1931 = vmatmul.mubr.f32.gmra.mrb[0].mxu0 %v994
          %v1932 = vpop.f32.mrb[0].mxu0
          %v1933 = vadd.f32 0.0, %v1932
          %v1934 = vpop.f32.mrb[0].mxu0
          %1935 = vmatprep.mubr.f32.mxu0 0.0
          %1936 = vmatmul.mubr.f32.gmra.mrb[0].mxu0 %v997
          %v1937 = vpop.f32.mrb[0].mxu0
          %v1938 = vadd.f32 0.0, %v1937
          %v1939 = vpop.f32.mrb[0].mxu0
          %1940 = vmatprep.mubr.f32.mxu0 0.0
          %1941 = vmatmul.mubr.f32.gmra.mrb[0].mxu0 %v1000
          %v1942 = vpop.f32.mrb[0].mxu0
          %v1943 = vadd.f32 0.0, %v1942
          %v1944 = vpop.f32.mrb[0].mxu0
          %1945 = vmatprep.mubr.f32.mxu0 0.0
          %1946 = vmatmul.mubr.f32.gmra.mrb[0].mxu0 %v1003
          %v1947 = vpop.f32.mrb[0].mxu0
          %v1948 = vadd.f32 0.0, %v1947
          %v1949 = vpop.f32.mrb[0].mxu0
          %1950 = vmatprep.mubr.f32.mxu0 0.0
          %1951 = vmatmul.mubr.f32.gmra.mrb[0].mxu0 %v1006
          %v1952 = vpop.f32.mrb[0].mxu0
          %v1953 = vadd.f32 0.0, %v1952
          %v1954 = vpop.f32.mrb[0].mxu0
          %1955 = vmatprep.mubr.f32.mxu0 0.0
          %1956 = vmatmul.mubr.f32.gmra.mrb[0].mxu0 %v1009
          %v1957 = vpop.f32.mrb[0].mxu0
          %v1958 = vadd.f32 0.0, %v1957
          %v1959 = vpop.f32.mrb[0].mxu0
          %1960 = vmatprep.mubr.f32.mxu0 0.0
          %1961 = vmatmul.mubr.f32.gmra.mrb[0].mxu0 %v1012
          %v1962 = vpop.f32.mrb[0].mxu0
          %v1963 = vadd.f32 0.0, %v1962
          %v1964 = vpop.f32.mrb[0].mxu0
          %1965 = vmatprep.mubr.f32.mxu0 0.0
          %1966 = vmatmul.mubr.f32.gmra.mrb[0].mxu0 %v1015
          %v1967 = vpop.f32.mrb[0].mxu0
          %v1968 = vadd.f32 0.0, %v1967
          %v1969 = vpop.f32.mrb[0].mxu0
          %1970 = vmatprep.mubr.f32.mxu0 0.0
          %1971 = vmatmul.mubr.f32.gmra.mrb[0].mxu0 %v1018
          %v1972 = vpop.f32.mrb[0].mxu0
          %v1973 = vadd.f32 0.0, %v1972
          %v1974 = vpop.f32.mrb[0].mxu0
          %1975 = vmatprep.mubr.f32.mxu0 0.0
          %1976 = vmatmul.mubr.f32.gmra.mrb[0].mxu0 %v1021
          %v1977 = vpop.f32.mrb[0].mxu0
          %v1978 = vadd.f32 0.0, %v1977
          %v1979 = vpop.f32.mrb[0].mxu0
          %1980 = vmatprep.mubr.f32.mxu0 0.0
          %1981 = vmatmul.mubr.f32.gmra.mrb[0].mxu0 %v1024
          %v1982 = vpop.f32.mrb[0].mxu0
          %v1983 = vadd.f32 0.0, %v1982
          %v1984 = vpop.f32.mrb[0].mxu0
          %1985 = vmatprep.mubr.f32.mxu0 0.0
          %1986 = vmatmul.mubr.f32.gmra.mrb[0].mxu0 %v1027
          %v1987 = vpop.f32.mrb[0].mxu0
          %v1988 = vadd.f32 0.0, %v1987
          %v1989 = vpop.f32.mrb[0].mxu0
          %1990 = vmatprep.mubr.f32.mxu0 0.0
          %1991 = vmatmul.mubr.f32.gmra.mrb[0].mxu0 %v1030
          %v1992 = vpop.f32.mrb[0].mxu0
          %v1993 = vadd.f32 0.0, %v1992
          %v1994 = vpop.f32.mrb[0].mxu0
          %1995 = vmatprep.mubr.f32.mxu0 0.0
          %1996 = vmatmul.mubr.f32.gmra.mrb[0].mxu0 %v1033
          %v1997 = vpop.f32.mrb[0].mxu0
          %v1998 = vadd.f32 0.0, %v1997
          %v1999 = vpop.f32.mrb[0].mxu0
          %2000 = vmatprep.mubr.f32.mxu0 0.0
          %2001 = vmatmul.mubr.f32.gmra.mrb[0].mxu0 %v1036
          %v2002 = vpop.f32.mrb[0].mxu0
          %v2003 = vadd.f32 0.0, %v2002
          %v2004 = vpop.f32.mrb[0].mxu0
          %2005 = vmatprep.mubr.f32.mxu0 0.0
          %2006 = vmatmul.mubr.f32.gmra.mrb[0].mxu0 %v1039
          %v2007 = vpop.f32.mrb[0].mxu0
          %v2008 = vadd.f32 0.0, %v2007
          %v2009 = vpop.f32.mrb[0].mxu0
          %2010 = vmatprep.mubr.f32.mxu0 0.0
          %2011 = vmatmul.mubr.f32.gmra.mrb[0].mxu0 %v1042
          %v2012 = vpop.f32.mrb[0].mxu0
          %v2013 = vadd.f32 0.0, %v2012
          %v2014 = vpop.f32.mrb[0].mxu0
          %2015 = vmatprep.mubr.f32.mxu0 0.0
          %2016 = vmatmul.mubr.f32.gmra.mrb[0].mxu0 %v1045
          %v2017 = vpop.f32.mrb[0].mxu0
          %v2018 = vadd.f32 0.0, %v2017
          %v2019 = vpop.f32.mrb[0].mxu0
          %2020 = vmatprep.mubr.f32.mxu0 0.0
          %2021 = vmatmul.mubr.f32.gmra.mrb[0].mxu0 %v1048
          %v2022 = vpop.f32.mrb[0].mxu0
          %v2023 = vadd.f32 0.0, %v2022
          %v2024 = vpop.f32.mrb[0].mxu0
          %2025 = vmatprep.mubr.f32.mxu0 0.0
          %2026 = vmatmul.mubr.f32.gmra.mrb[0].mxu0 %v1051
          %v2027 = vpop.f32.mrb[0].mxu0
          %v2028 = vadd.f32 0.0, %v2027
          %v2029 = vpop.f32.mrb[0].mxu0
          %2030 = vmatprep.mubr.f32.mxu0 0.0
          %2031 = vmatmul.mubr.f32.gmra.mrb[0].mxu0 %v1054
          %v2032 = vpop.f32.mrb[0].mxu0
          %v2033 = vadd.f32 0.0, %v2032
          %v2034 = vpop.f32.mrb[0].mxu0
          %2035 = vmatprep.mubr.f32.mxu0 0.0
          %2036 = vmatmul.mubr.f32.gmra.mrb[0].mxu0 %v1057
          %v2037 = vpop.f32.mrb[0].mxu0
          %v2038 = vadd.f32 0.0, %v2037
          %v2039 = vpop.f32.mrb[0].mxu0
          %2040 = vmatprep.mubr.f32.mxu0 0.0
          %2041 = vmatmul.mubr.f32.gmra.mrb[0].mxu0 %v1060
          %v2042 = vpop.f32.mrb[0].mxu0
          %v2043 = vadd.f32 0.0, %v2042
          %v2044 = vpop.f32.mrb[0].mxu0
          %2045 = vmatprep.mubr.f32.mxu0 0.0
          %2046 = vmatmul.mubr.f32.gmra.mrb[0].mxu0 %v1063
          %v2047 = vpop.f32.mrb[0].mxu0
          %v2048 = vadd.f32 0.0, %v2047
          %v2049 = vpop.f32.mrb[0].mxu0
          %2050 = vmatprep.mubr.f32.mxu0 0.0
          %2051 = vmatmul.mubr.f32.gmra.mrb[0].mxu0 %v1066
          %v2052 = vpop.f32.mrb[0].mxu0
          %v2053 = vadd.f32 0.0, %v2052
          %v2054 = vpop.f32.mrb[0].mxu0
          %2055 = vmatprep.mubr.f32.mxu0 0.0
          %2056 = vmatmul.mubr.f32.gmra.mrb[0].mxu0 %v1069
          %v2057 = vpop.f32.mrb[0].mxu0
          %v2058 = vadd.f32 0.0, %v2057
          %v2059 = vpop.f32.mrb[0].mxu0
          %2060 = vmatprep.mubr.f32.mxu0 0.0
          %2061 = vmatmul.mubr.f32.gmra.mrb[0].mxu0 %v1072
          %v2062 = vpop.f32.mrb[0].mxu0
          %v2063 = vadd.f32 0.0, %v2062
          %v2064 = vpop.f32.mrb[0].mxu0
          %2065 = vmatprep.mubr.f32.mxu0 0.0
          %2066 = vmatmul.mubr.f32.gmra.mrb[0].mxu0 %v1075
          %v2067 = vpop.f32.mrb[0].mxu0
          %v2068 = vadd.f32 0.0, %v2067
          %v2069 = vpop.f32.mrb[0].mxu0
          %2070 = vmatprep.mubr.f32.mxu0 0.0
          %2071 = vmatmul.mubr.f32.gmra.mrb[0].mxu0 %v1078
          %v2072 = vpop.f32.mrb[0].mxu0
          %v2073 = vadd.f32 0.0, %v2072
          %v2074 = vpop.f32.mrb[0].mxu0
          %2075 = vmatprep.mubr.f32.mxu0 0.0
          %2076 = vmatmul.mubr.f32.gmra.mrb[0].mxu0 %v1081
          %v2077 = vpop.f32.mrb[0].mxu0
          %v2078 = vadd.f32 0.0, %v2077
          %v2079 = vpop.f32.mrb[0].mxu0
          %2080 = vmatprep.mubr.f32.mxu0 0.0
          %2081 = vmatmul.mubr.f32.gmra.mrb[0].mxu0 %v1084
          %v2082 = vpop.f32.mrb[0].mxu0
          %v2083 = vadd.f32 0.0, %v2082
          %v2084 = vpop.f32.mrb[0].mxu0
          %2085 = vmatprep.mubr.f32.mxu0 0.0
          %2086 = vmatmul.mubr.f32.gmra.mrb[0].mxu0 %v1087
          %v2087 = vpop.f32.mrb[0].mxu0
          %v2088 = vadd.f32 0.0, %v2087
          %v2089 = vpop.f32.mrb[0].mxu0
          %2090 = vmatprep.mubr.f32.mxu0 0.0
          %2091 = vmatmul.mubr.f32.gmra.mrb[0].mxu0 %v1090
          %v2092 = vpop.f32.mrb[0].mxu0
          %v2093 = vadd.f32 0.0, %v2092
          %v2094 = vpop.f32.mrb[0].mxu0
          %2095 = vmatprep.mubr.f32.mxu0 0.0
          %2096 = vmatmul.mubr.f32.gmra.mrb[0].mxu0 %v1093
          %v2097 = vpop.f32.mrb[0].mxu0
          %v2098 = vadd.f32 0.0, %v2097
          %v2099 = vpop.f32.mrb[0].mxu0
          %2100 = vmatprep.mubr.f32.mxu0 0.0
          %2101 = vmatmul.mubr.f32.gmra.mrb[0].mxu0 %v1096
          %v2102 = vpop.f32.mrb[0].mxu0
          %v2103 = vadd.f32 0.0, %v2102
          %v2104 = vpop.f32.mrb[0].mxu0
          %2105 = vmatprep.mubr.f32.mxu0 0.0
          %2106 = vmatmul.mubr.f32.gmra.mrb[0].mxu0 %v1099
          %v2107 = vpop.f32.mrb[0].mxu0
          %v2108 = vadd.f32 0.0, %v2107
          %v2109 = vpop.f32.mrb[0].mxu0
          %2110 = vmatprep.mubr.f32.mxu0 0.0
          %2111 = vmatmul.mubr.f32.gmra.mrb[0].mxu0 %v1102
          %v2112 = vpop.f32.mrb[0].mxu0
          %v2113 = vadd.f32 0.0, %v2112
          %v2114 = vpop.f32.mrb[0].mxu0
          %2115 = vmatprep.mubr.f32.mxu0 0.0
          %2116 = vmatmul.mubr.f32.gmra.mrb[0].mxu0 %v1105
          %v2117 = vpop.f32.mrb[0].mxu0
          %v2118 = vadd.f32 0.0, %v2117
          %v2119 = vpop.f32.mrb[0].mxu0
          %2120 = vmatprep.mubr.f32.mxu0 0.0
          %2121 = vmatmul.mubr.f32.gmra.mrb[0].mxu0 %v1108
          %v2122 = vpop.f32.mrb[0].mxu0
          %v2123 = vadd.f32 0.0, %v2122
          %v2124 = vpop.f32.mrb[0].mxu0
          %2125 = vmatprep.mubr.f32.mxu0 0.0
          %2126 = vmatmul.mubr.f32.gmra.mrb[0].mxu0 %v1111
          %v2127 = vpop.f32.mrb[0].mxu0
          %v2128 = vadd.f32 0.0, %v2127
          %v2129 = vpop.f32.mrb[0].mxu0
          %2130 = vmatprep.mubr.f32.mxu0 0.0
          %2131 = vmatmul.mubr.f32.gmra.mrb[0].mxu0 %v1114
          %v2132 = vpop.f32.mrb[0].mxu0
          %v2133 = vadd.f32 0.0, %v2132
          %v2134 = vpop.f32.mrb[0].mxu0
          %2135 = vmatprep.mubr.f32.mxu0 0.0
          %2136 = vmatmul.mubr.f32.gmra.mrb[0].mxu0 %v1117
          %v2137 = vpop.f32.mrb[0].mxu0
          %v2138 = vadd.f32 0.0, %v2137
          %v2139 = vpop.f32.mrb[0].mxu0
          %2140 = vmatprep.mubr.f32.mxu0 0.0
          %2141 = vmatmul.mubr.f32.gmra.mrb[0].mxu0 %v1120
          %v2142 = vpop.f32.mrb[0].mxu0
          %v2143 = vadd.f32 0.0, %v2142
          %v2144 = vpop.f32.mrb[0].mxu0
          %2145 = vmatprep.mubr.f32.mxu0 0.0
          %2146 = vmatmul.mubr.f32.gmra.mrb[0].mxu0 %v1123
          %v2147 = vpop.f32.mrb[0].mxu0
          %v2148 = vadd.f32 0.0, %v2147
          %v2149 = vpop.f32.mrb[0].mxu0
          %2150 = vmatprep.mubr.f32.mxu0 0.0
          %2151 = vmatmul.mubr.f32.gmra.mrb[0].mxu0 %v1126
          %v2152 = vpop.f32.mrb[0].mxu0
          %v2153 = vadd.f32 0.0, %v2152
          %v2154 = vpop.f32.mrb[0].mxu0
          %2155 = vmatprep.mubr.f32.mxu0 0.0
          %2156 = vmatmul.mubr.f32.gmra.mrb[0].mxu0 %v1129
          %v2157 = vpop.f32.mrb[0].mxu0
          %v2158 = vadd.f32 0.0, %v2157
          %v2159 = vpop.f32.mrb[0].mxu0
          %2160 = vmatprep.mubr.f32.mxu0 0.0
          %2161 = vmatmul.mubr.f32.gmra.mrb[0].mxu0 %v1132
          %v2162 = vpop.f32.mrb[0].mxu0
          %v2163 = vadd.f32 0.0, %v2162
          %v2164 = vpop.f32.mrb[0].mxu0
          %2165 = vmatprep.mubr.f32.mxu0 0.0
          %2166 = vmatmul.mubr.f32.gmra.mrb[0].mxu0 %v1135
          %v2167 = vpop.f32.mrb[0].mxu0
          %v2168 = vadd.f32 0.0, %v2167
          %v2169 = vpop.f32.mrb[0].mxu0
          %2170 = vmatprep.mubr.f32.mxu0 0.0
          %2171 = vmatmul.mubr.f32.gmra.mrb[0].mxu0 %v1138
          %v2172 = vpop.f32.mrb[0].mxu0
          %v2173 = vadd.f32 0.0, %v2172
          %v2174 = vpop.f32.mrb[0].mxu0
          %2175 = vmatprep.mubr.f32.mxu0 0.0
          %2176 = vmatmul.mubr.f32.gmra.mrb[0].mxu0 %v1141
          %v2177 = vpop.f32.mrb[0].mxu0
          %v2178 = vadd.f32 0.0, %v2177
          %v2179 = vpop.f32.mrb[0].mxu0
          %2180 = vmatprep.mubr.f32.mxu0 0.0
          %2181 = vmatmul.mubr.f32.gmra.mrb[0].mxu0 %v1144
          %v2182 = vpop.f32.mrb[0].mxu0
          %v2183 = vadd.f32 0.0, %v2182
          %v2184 = vpop.f32.mrb[0].mxu0
          %2185 = vmatprep.mubr.f32.mxu0 0.0
          %2186 = vmatmul.mubr.f32.gmra.mrb[0].mxu0 %v1147
          %v2187 = vpop.f32.mrb[0].mxu0
          %v2188 = vadd.f32 0.0, %v2187
          %v2189 = vpop.f32.mrb[0].mxu0
          %2190 = vmatprep.mubr.f32.mxu0 0.0
          %2191 = vmatmul.mubr.f32.gmra.mrb[0].mxu0 %v1150
          %v2192 = vpop.f32.mrb[0].mxu0
          %v2193 = vadd.f32 0.0, %v2192
          %v2194 = vpop.f32.mrb[0].mxu0
          %2195 = vmatprep.mubr.f32.mxu0 0.0
          %2196 = vmatmul.mubr.f32.gmra.mrb[0].mxu0 %v1153
          %v2197 = vpop.f32.mrb[0].mxu0
          %v2198 = vadd.f32 0.0, %v2197
          %v2199 = vpop.f32.mrb[0].mxu0
          %2200 = vmatprep.mubr.f32.mxu0 0.0
          %2201 = vmatmul.mubr.f32.gmra.mrb[0].mxu0 %v1156
          %v2202 = vpop.f32.mrb[0].mxu0
          %v2203 = vadd.f32 0.0, %v2202
          %v2204 = vpop.f32.mrb[0].mxu0
          %2205 = vmatprep.mubr.f32.mxu0 0.0
          %2206 = vmatmul.mubr.f32.gmra.mrb[0].mxu0 %v1159
          %v2207 = vpop.f32.mrb[0].mxu0
          %v2208 = vadd.f32 0.0, %v2207
          %v2209 = vpop.f32.mrb[0].mxu0
          %2210 = vmatprep.mubr.f32.mxu0 0.0
          %2211 = vmatmul.mubr.f32.gmra.mrb[0].mxu0 %v1162
          %v2212 = vpop.f32.mrb[0].mxu0
          %v2213 = vadd.f32 0.0, %v2212
          %v2214 = vpop.f32.mrb[0].mxu0
          %2215 = vmatprep.mubr.f32.mxu0 0.0
          %2216 = vmatmul.mubr.f32.gmra.mrb[0].mxu0 %v1165
          %v2217 = vpop.f32.mrb[0].mxu0
          %v2218 = vadd.f32 0.0, %v2217
          %v2219 = vpop.f32.mrb[0].mxu0
          %2220 = vmatprep.mubr.f32.mxu0 0.0
          %2221 = vmatmul.mubr.f32.gmra.mrb[0].mxu0 %v1168
          %v2222 = vpop.f32.mrb[0].mxu0
          %v2223 = vadd.f32 0.0, %v2222
          %v2224 = vpop.f32.mrb[0].mxu0
          %2225 = vmatprep.mubr.f32.mxu0 0.0
          %2226 = vmatmul.mubr.f32.gmra.mrb[0].mxu0 %v1171
          %v2227 = vpop.f32.mrb[0].mxu0
          %v2228 = vadd.f32 0.0, %v2227
          %v2229 = vpop.f32.mrb[0].mxu0
          %2230 = vmatprep.mubr.f32.mxu0 0.0
          %2231 = vmatmul.mubr.f32.gmra.mrb[0].mxu0 %v1174
          %v2232 = vpop.f32.mrb[0].mxu0
          %v2233 = vadd.f32 0.0, %v2232
          %v2234 = vpop.f32.mrb[0].mxu0
          %2235 = vmatprep.mubr.f32.mxu0 0.0
          %2236 = vmatmul.mubr.f32.gmra.mrb[0].mxu0 %v1177
          %v2237 = vpop.f32.mrb[0].mxu0
          %v2238 = vadd.f32 0.0, %v2237
          %v2239 = vpop.f32.mrb[0].mxu0
          %2240 = vmatprep.mubr.f32.mxu0 0.0
          %2241 = vmatmul.mubr.f32.gmra.mrb[0].mxu0 %v1180
          %v2242 = vpop.f32.mrb[0].mxu0
          %v2243 = vadd.f32 0.0, %v2242
          %v2244 = vpop.f32.mrb[0].mxu0
          %2245 = vmatprep.mubr.f32.mxu0 0.0
          %2246 = vmatmul.mubr.f32.gmra.mrb[0].mxu0 %v1183
          %v2247 = vpop.f32.mrb[0].mxu0
          %v2248 = vadd.f32 0.0, %v2247
          %v2249 = vpop.f32.mrb[0].mxu0
          %2250 = vmatprep.mubr.f32.mxu0 0.0
          %2251 = vmatmul.mubr.f32.gmra.mrb[0].mxu0 %v1186
          %v2252 = vpop.f32.mrb[0].mxu0
          %v2253 = vadd.f32 0.0, %v2252
          %v2254 = vpop.f32.mrb[0].mxu0
          %2255 = vmatprep.mubr.f32.mxu0 0.0
          %2256 = vmatmul.mubr.f32.gmra.mrb[0].mxu0 %v1189
          %v2257 = vpop.f32.mrb[0].mxu0
          %v2258 = vadd.f32 0.0, %v2257
          %v2259 = vpop.f32.mrb[0].mxu0
          %2260 = vmatprep.mubr.f32.mxu0 0.0
          %2261 = vmatmul.mubr.f32.gmra.mrb[0].mxu0 %v1192
          %v2262 = vpop.f32.mrb[0].mxu0
          %v2263 = vadd.f32 0.0, %v2262
          %v2264 = vpop.f32.mrb[0].mxu0
          %2265 = vmatprep.mubr.f32.mxu0 0.0
          %2266 = vmatmul.mubr.f32.gmra.mrb[0].mxu0 %v1195
          %v2267 = vpop.f32.mrb[0].mxu0
          %v2268 = vadd.f32 0.0, %v2267
          %v2269 = vpop.f32.mrb[0].mxu0
          %2270 = vmatprep.mubr.f32.mxu0 0.0
          %2271 = vmatmul.mubr.f32.gmra.mrb[0].mxu0 %v1198
          %v2272 = vpop.f32.mrb[0].mxu0
          %v2273 = vadd.f32 0.0, %v2272
          %v2274 = vpop.f32.mrb[0].mxu0
          %2275 = vmatprep.mubr.f32.mxu0 0.0
          %2276 = vmatmul.mubr.f32.gmra.mrb[0].mxu0 %v1201
          %v2277 = vpop.f32.mrb[0].mxu0
          %v2278 = vadd.f32 0.0, %v2277
          %v2279 = vpop.f32.mrb[0].mxu0
          %2280 = vmatprep.mubr.f32.mxu0 0.0
          %2281 = vmatmul.mubr.f32.gmra.mrb[0].mxu0 %v1204
          %v2282 = vpop.f32.mrb[0].mxu0
          %v2283 = vadd.f32 0.0, %v2282
          %v2284 = vpop.f32.mrb[0].mxu0
          %2285 = vmatprep.mubr.f32.mxu0 0.0
          %2286 = vmatmul.mubr.f32.gmra.mrb[0].mxu0 %v1207
          %v2287 = vpop.f32.mrb[0].mxu0
          %v2288 = vadd.f32 0.0, %v2287
          %v2289 = vpop.f32.mrb[0].mxu0
          %2290 = vmatprep.mubr.f32.mxu0 0.0
          %2291 = vmatmul.mubr.f32.gmra.mrb[0].mxu0 %v1210
          %v2292 = vpop.f32.mrb[0].mxu0
          %v2293 = vadd.f32 0.0, %v2292
          %v2294 = vpop.f32.mrb[0].mxu0
          %2295 = vmatprep.mubr.f32.mxu0 0.0
          %2296 = vmatmul.mubr.f32.gmra.mrb[0].mxu0 %v1213
          %v2297 = vpop.f32.mrb[0].mxu0
          %v2298 = vadd.f32 0.0, %v2297
          %v2299 = vpop.f32.mrb[0].mxu0
          %2300 = vmatprep.mubr.f32.mxu0 0.0
          %2301 = vmatmul.mubr.f32.gmra.mrb[0].mxu0 %v1216
          %v2302 = vpop.f32.mrb[0].mxu0
          %v2303 = vadd.f32 0.0, %v2302
          %v2304 = vpop.f32.mrb[0].mxu0
          %2305 = vmatprep.mubr.f32.mxu0 0.0
          %2306 = vmatmul.mubr.f32.gmra.mrb[0].mxu0 %v1219
          %v2307 = vpop.f32.mrb[0].mxu0
          %v2308 = vadd.f32 0.0, %v2307
          %v2309 = vpop.f32.mrb[0].mxu0
          %2310 = vmatprep.mubr.f32.mxu0 0.0
          %2311 = vmatmul.mubr.f32.gmra.mrb[0].mxu0 %v1222
          %v2312 = vpop.f32.mrb[0].mxu0
          %v2313 = vadd.f32 0.0, %v2312
          %v2314 = vpop.f32.mrb[0].mxu0
          %2315 = vmatprep.mubr.f32.mxu0 0.0
          %2316 = vmatmul.mubr.f32.gmra.mrb[0].mxu0 %v1225
          %v2317 = vpop.f32.mrb[0].mxu0
          %v2318 = vadd.f32 0.0, %v2317
          %v2319 = vpop.f32.mrb[0].mxu0
          %2320 = vmatprep.mubr.f32.mxu0 0.0
          %2321 = vmatmul.mubr.f32.gmra.mrb[0].mxu0 %v1228
          %v2322 = vpop.f32.mrb[0].mxu0
          %v2323 = vadd.f32 0.0, %v2322
          %v2324 = vpop.f32.mrb[0].mxu0
          %2325 = vmatprep.mubr.f32.mxu0 0.0
          %2326 = vmatmul.mubr.f32.gmra.mrb[0].mxu0 %v1231
          %v2327 = vpop.f32.mrb[0].mxu0
          %v2328 = vadd.f32 0.0, %v2327
          %v2329 = vpop.f32.mrb[0].mxu0
          %2330 = vmatprep.mubr.f32.mxu0 0.0
          %2331 = vmatmul.mubr.f32.gmra.mrb[0].mxu0 %v1234
          %v2332 = vpop.f32.mrb[0].mxu0
          %v2333 = vadd.f32 0.0, %v2332
          %v2334 = vpop.f32.mrb[0].mxu0
          %2335 = vmatprep.mubr.f32.mxu0 0.0
          %2336 = vmatmul.mubr.f32.gmra.mrb[0].mxu0 %v1237
          %v2337 = vpop.f32.mrb[0].mxu0
          %v2338 = vadd.f32 0.0, %v2337
          %v2339 = vpop.f32.mrb[0].mxu0
          %2340 = vmatprep.mubr.f32.mxu0 0.0
          %2341 = vmatmul.mubr.f32.gmra.mrb[0].mxu0 %v1240
          %v2342 = vpop.f32.mrb[0].mxu0
          %v2343 = vadd.f32 0.0, %v2342
          %v2344 = vpop.f32.mrb[0].mxu0
          %2345 = vmatprep.mubr.f32.mxu0 0.0
          %2346 = vmatmul.mubr.f32.gmra.mrb[0].mxu0 %v1243
          %v2347 = vpop.f32.mrb[0].mxu0
          %v2348 = vadd.f32 0.0, %v2347
          %v2349 = vpop.f32.mrb[0].mxu0
          %2350 = vmatprep.mubr.f32.mxu0 0.0
          %2351 = vmatmul.mubr.f32.gmra.mrb[0].mxu0 %v1246
          %v2352 = vpop.f32.mrb[0].mxu0
          %v2353 = vadd.f32 0.0, %v2352
          %v2354 = vpop.f32.mrb[0].mxu0
          %2355 = vmatprep.mubr.f32.mxu0 0.0
          %2356 = vmatmul.mubr.f32.gmra.mrb[0].mxu0 %v1249
          %v2357 = vpop.f32.mrb[0].mxu0
          %v2358 = vadd.f32 0.0, %v2357
          %v2359 = vpop.f32.mrb[0].mxu0
          %2360 = vmatprep.mubr.f32.mxu0 0.0
          %2361 = vmatmul.mubr.f32.gmra.mrb[0].mxu0 %v1252
          %v2362 = vpop.f32.mrb[0].mxu0
          %v2363 = vadd.f32 0.0, %v2362
          %v2364 = vpop.f32.mrb[0].mxu0
          %2365 = vmatprep.mubr.f32.mxu0 0.0
          %2366 = vmatmul.mubr.f32.gmra.mrb[0].mxu0 %v1255
          %v2367 = vpop.f32.mrb[0].mxu0
          %v2368 = vadd.f32 0.0, %v2367
          %v2369 = vpop.f32.mrb[0].mxu0
          %2370 = vmatprep.mubr.f32.mxu0 0.0
          %2371 = vmatmul.mubr.f32.gmra.mrb[0].mxu0 %v1258
          %v2372 = vpop.f32.mrb[0].mxu0
          %v2373 = vadd.f32 0.0, %v2372
          %v2374 = vpop.f32.mrb[0].mxu0
          %2375 = vmatprep.mubr.f32.mxu0 0.0
          %2376 = vmatmul.mubr.f32.gmra.mrb[0].mxu0 %v1261
          %v2377 = vpop.f32.mrb[0].mxu0
          %v2378 = vadd.f32 0.0, %v2377
          %v2379 = vpop.f32.mrb[0].mxu0
          %2380 = vmatprep.mubr.f32.mxu0 0.0
          %2381 = vmatmul.mubr.f32.gmra.mrb[0].mxu0 %v1264
          %v2382 = vpop.f32.mrb[0].mxu0
          %v2383 = vadd.f32 0.0, %v2382
          %v2384 = vpop.f32.mrb[0].mxu0
          %2385 = vmatprep.mubr.f32.mxu0 0.0
          %2386 = vmatmul.mubr.f32.gmra.mrb[0].mxu0 %v1267
          %v2387 = vpop.f32.mrb[0].mxu0
          %v2388 = vadd.f32 0.0, %v2387
          %v2389 = vpop.f32.mrb[0].mxu0
          %2390 = vmatprep.mubr.f32.mxu0 0.0
          %2391 = vmatmul.mubr.f32.gmra.mrb[0].mxu0 %v1270
          %v2392 = vpop.f32.mrb[0].mxu0
          %v2393 = vadd.f32 0.0, %v2392
          %v2394 = vpop.f32.mrb[0].mxu0
          %2395 = vmatprep.mubr.f32.mxu0 0.0
          %2396 = vmatmul.mubr.f32.gmra.mrb[0].mxu0 %v1273
          %v2397 = vpop.f32.mrb[0].mxu0
          %v2398 = vadd.f32 0.0, %v2397
          %v2399 = vpop.f32.mrb[0].mxu0
          %2400 = vmatprep.mubr.f32.mxu0 0.0
          %2401 = vmatmul.mubr.f32.gmra.mrb[0].mxu0 %v1276
          %v2402 = vpop.f32.mrb[0].mxu0
          %v2403 = vadd.f32 0.0, %v2402
          %v2404 = vpop.f32.mrb[0].mxu0
          %2405 = vmatprep.mubr.f32.mxu0 0.0
          %2406 = vmatmul.mubr.f32.gmra.mrb[0].mxu0 %v1279
          %v2407 = vpop.f32.mrb[0].mxu0
          %v2408 = vadd.f32 0.0, %v2407
          %v2409 = vpop.f32.mrb[0].mxu0
          %2410 = vmatprep.mubr.f32.mxu0 0.0
          %2411 = vmatmul.mubr.f32.gmra.mrb[0].mxu0 %v1282
          %v2412 = vpop.f32.mrb[0].mxu0
          %v2413 = vadd.f32 0.0, %v2412
          %v2414 = vpop.f32.mrb[0].mxu0
          %2415 = vmatprep.mubr.f32.mxu0 0.0
          %2416 = vmatmul.mubr.f32.gmra.mrb[0].mxu0 %v1285
          %v2417 = vpop.f32.mrb[0].mxu0
          %v2418 = vadd.f32 0.0, %v2417
          %v2419 = vpop.f32.mrb[0].mxu0
          %2420 = vmatprep.mubr.f32.mxu0 0.0
          %2421 = vmatmul.mubr.f32.gmra.mrb[0].mxu0 %v1288
          %v2422 = vpop.f32.mrb[0].mxu0
          %v2423 = vadd.f32 0.0, %v2422
          %v2424 = vpop.f32.mrb[0].mxu0
          %2425 = vmatprep.mubr.f32.mxu0 0.0
          %2426 = vmatmul.mubr.f32.gmra.mrb[0].mxu0 %v1291
          %v2427 = vpop.f32.mrb[0].mxu0
          %v2428 = vadd.f32 0.0, %v2427
          %v2429 = vpop.f32.mrb[0].mxu0
          %2430 = vmatprep.mubr.f32.mxu0 0.0
          %2431 = vmatmul.mubr.f32.gmra.mrb[0].mxu0 %v1294
          %v2432 = vpop.f32.mrb[0].mxu0
          %v2433 = vadd.f32 0.0, %v2432
          %v2434 = vpop.f32.mrb[0].mxu0
          %2435 = vmatprep.mubr.f32.mxu0 0.0
          %2436 = vmatmul.mubr.f32.gmra.mrb[0].mxu0 %v1297
          %v2437 = vpop.f32.mrb[0].mxu0
          %v2438 = vadd.f32 0.0, %v2437
          %v2439 = vpop.f32.mrb[0].mxu0
          %2440 = vmatprep.mubr.f32.mxu0 0.0
          %2441 = vmatmul.mubr.f32.gmra.mrb[0].mxu0 %v1300
          %v2442 = vpop.f32.mrb[0].mxu0
          %v2443 = vadd.f32 0.0, %v2442
          %v2444 = vpop.f32.mrb[0].mxu0
          %2445 = vmatprep.mubr.f32.mxu0 0.0
          %2446 = vmatmul.mubr.f32.gmra.mrb[0].mxu0 %v1303
          %v2447 = vpop.f32.mrb[0].mxu0
          %v2448 = vadd.f32 0.0, %v2447
          %v2449 = vpop.f32.mrb[0].mxu0
          %2450 = vmatprep.mubr.f32.mxu0 0.0
          %2451 = vmatmul.mubr.f32.gmra.mrb[0].mxu0 %v1306
          %v2452 = vpop.f32.mrb[0].mxu0
          %v2453 = vadd.f32 0.0, %v2452
          %v2454 = vpop.f32.mrb[0].mxu0
          %2455 = vmatprep.mubr.f32.mxu0 0.0
          %2456 = vmatmul.mubr.f32.gmra.mrb[0].mxu0 %v1309
          %v2457 = vpop.f32.mrb[0].mxu0
          %v2458 = vadd.f32 0.0, %v2457
          %v2459 = vpop.f32.mrb[0].mxu0
          %2460 = vmatprep.mubr.f32.mxu0 0.0
          %2461 = vmatmul.mubr.f32.gmra.mrb[0].mxu0 %v1312
          %v2462 = vpop.f32.mrb[0].mxu0
          %v2463 = vadd.f32 0.0, %v2462
          %v2464 = vpop.f32.mrb[0].mxu0
          %2465 = vmatprep.mubr.f32.mxu0 0.0
          %2466 = vmatmul.mubr.f32.gmra.mrb[0].mxu0 %v1315
          %v2467 = vpop.f32.mrb[0].mxu0
          %v2468 = vadd.f32 0.0, %v2467
          %v2469 = vpop.f32.mrb[0].mxu0
          %2470 = vmatprep.mubr.f32.mxu0 0.0
          %2471 = vmatmul.mubr.f32.gmra.mrb[0].mxu0 %v1318
          %v2472 = vpop.f32.mrb[0].mxu0
          %v2473 = vadd.f32 0.0, %v2472
          %v2474 = vpop.f32.mrb[0].mxu0
          %2475 = vmatprep.mubr.f32.mxu0 0.0
          %2476 = vmatmul.mubr.f32.gmra.mrb[0].mxu0 %v1321
          %v2477 = vpop.f32.mrb[0].mxu0
          %v2478 = vadd.f32 0.0, %v2477
          %v2479 = vpop.f32.mrb[0].mxu0
          %2480 = vmatprep.mubr.f32.mxu0 0.0
          %2481 = vmatmul.mubr.f32.gmra.mrb[0].mxu0 %v1324
          %v2482 = vpop.f32.mrb[0].mxu0
          %v2483 = vadd.f32 0.0, %v2482
          %v2484 = vpop.f32.mrb[0].mxu0
          %2485 = vmatprep.mubr.f32.mxu0 0.0
          %2486 = vmatmul.mubr.f32.gmra.mrb[0].mxu0 %v1327
          %v2487 = vpop.f32.mrb[0].mxu0
          %v2488 = vadd.f32 0.0, %v2487
          %v2489 = vpop.f32.mrb[0].mxu0
          %2490 = vmatprep.mubr.f32.mxu0 0.0
          %2491 = vmatmul.mubr.f32.gmra.mrb[0].mxu0 %v1330
          %v2492 = vpop.f32.mrb[0].mxu0
          %v2493 = vadd.f32 0.0, %v2492
          %v2494 = vpop.f32.mrb[0].mxu0
          %2495 = vmatprep.mubr.f32.mxu0 0.0
          %2496 = vmatmul.mubr.f32.gmra.mrb[0].mxu0 %v1333
          %v2497 = vpop.f32.mrb[0].mxu0
          %v2498 = vadd.f32 0.0, %v2497
          %v2499 = vpop.f32.mrb[0].mxu0
          %2500 = vmatprep.mubr.f32.mxu0 0.0
          %2501 = vmatmul.mubr.f32.gmra.mrb[0].mxu0 %v1336
          %v2502 = vpop.f32.mrb[0].mxu0
          %v2503 = vadd.f32 0.0, %v2502
          %v2504 = vpop.f32.mrb[0].mxu0
          %2505 = vmatprep.mubr.f32.mxu0 0.0
          %2506 = vmatmul.mubr.f32.gmra.mrb[0].mxu0 %v1339
          %v2507 = vpop.f32.mrb[0].mxu0
          %v2508 = vadd.f32 0.0, %v2507
          %v2509 = vpop.f32.mrb[0].mxu0
          %2510 = vmatprep.mubr.f32.mxu0 0.0
          %2511 = vmatmul.mubr.f32.gmra.mrb[0].mxu0 %v1342
          %v2512 = vpop.f32.mrb[0].mxu0
          %v2513 = vadd.f32 0.0, %v2512
          %v2514 = vpop.f32.mrb[0].mxu0
          %2515 = vmatprep.mubr.f32.mxu0 0.0
          %2516 = vmatmul.mubr.f32.gmra.mrb[0].mxu0 %v1345
          %v2517 = vpop.f32.mrb[0].mxu0
          %v2518 = vadd.f32 0.0, %v2517
          %v2519 = vpop.f32.mrb[0].mxu0
          %2520 = vmatprep.mubr.f32.mxu0 0.0
          %2521 = vmatmul.mubr.f32.gmra.mrb[0].mxu0 %v1348
          %v2522 = vpop.f32.mrb[0].mxu0
          %v2523 = vadd.f32 0.0, %v2522
          %v2524 = vpop.f32.mrb[0].mxu0
          %2525 = vmatprep.mubr.f32.mxu0 0.0
          %2526 = vmatmul.mubr.f32.gmra.mrb[0].mxu0 %v1351
          %v2527 = vpop.f32.mrb[0].mxu0
          %v2528 = vadd.f32 0.0, %v2527
          %v2529 = vpop.f32.mrb[0].mxu0
          %2530 = vmatprep.mubr.f32.mxu0 0.0
          %2531 = vmatmul.mubr.f32.gmra.mrb[0].mxu0 %v1354
          %v2532 = vpop.f32.mrb[0].mxu0
          %v2533 = vadd.f32 0.0, %v2532
          %v2534 = vpop.f32.mrb[0].mxu0
          %2535 = vmatprep.mubr.f32.mxu0 0.0
          %2536 = vmatmul.mubr.f32.gmra.mrb[0].mxu0 %v1357
          %v2537 = vpop.f32.mrb[0].mxu0
          %v2538 = vadd.f32 0.0, %v2537
          %v2539 = vpop.f32.mrb[0].mxu0
          %2540 = vmatprep.mubr.f32.mxu0 0.0
          %2541 = vmatmul.mubr.f32.gmra.mrb[0].mxu0 %v1360
          %v2542 = vpop.f32.mrb[0].mxu0
          %v2543 = vadd.f32 0.0, %v2542
          %v2544 = vpop.f32.mrb[0].mxu0
          %2545 = vmatprep.mubr.f32.mxu0 0.0
          %2546 = vmatmul.mubr.f32.gmra.mrb[0].mxu0 %v1363
          %v2547 = vpop.f32.mrb[0].mxu0
          %v2548 = vadd.f32 0.0, %v2547
          %v2549 = vpop.f32.mrb[0].mxu0
          %2550 = vmatprep.mubr.f32.mxu0 0.0
          %2551 = vmatmul.mubr.f32.gmra.mrb[0].mxu0 %v1366
          %v2552 = vpop.f32.mrb[0].mxu0
          %v2553 = vadd.f32 0.0, %v2552
          %v2554 = vpop.f32.mrb[0].mxu0
          %2555 = vmatprep.mubr.f32.mxu0 0.0
          %2556 = vmatmul.mubr.f32.gmra.mrb[0].mxu0 %v1369
          %v2557 = vpop.f32.mrb[0].mxu0
          %v2558 = vadd.f32 0.0, %v2557
          %v2559 = vpop.f32.mrb[0].mxu0
          %2560 = vmatprep.mubr.f32.mxu0 0.0
          %2561 = vmatmul.mubr.f32.gmra.mrb[0].mxu0 %v1372
          %v2562 = vpop.f32.mrb[0].mxu0
          %v2563 = vadd.f32 0.0, %v2562
          %v2564 = vpop.f32.mrb[0].mxu0
          %2565 = vmatprep.mubr.f32.mxu0 0.0
          %2566 = vmatmul.mubr.f32.gmra.mrb[0].mxu0 %v1375
          %v2567 = vpop.f32.mrb[0].mxu0
          %v2568 = vadd.f32 0.0, %v2567
          %v2569 = vpop.f32.mrb[0].mxu0
          %2570 = vmatprep.mubr.f32.mxu0 0.0
          %2571 = vmatmul.mubr.f32.gmra.mrb[0].mxu0 %v1378
          %v2572 = vpop.f32.mrb[0].mxu0
          %v2573 = vadd.f32 0.0, %v2572
          %v2574 = vpop.f32.mrb[0].mxu0
          %2575 = vmatprep.mubr.f32.mxu0 0.0
          %2576 = vmatmul.mubr.f32.gmra.mrb[0].mxu0 %v1381
          %v2577 = vpop.f32.mrb[0].mxu0
          %v2578 = vadd.f32 0.0, %v2577
          %v2579 = vpop.f32.mrb[0].mxu0
          %2580 = vmatprep.mubr.f32.mxu0 0.0
          %2581 = vmatmul.mubr.f32.gmra.mrb[0].mxu0 %v1384
          %v2582 = vpop.f32.mrb[0].mxu0
          %v2583 = vadd.f32 0.0, %v2582
          %v2584 = vpop.f32.mrb[0].mxu0
          %2585 = vmatprep.mubr.f32.mxu0 0.0
          %2586 = vmatmul.mubr.f32.gmra.mrb[0].mxu0 %v1387
          %v2587 = vpop.f32.mrb[0].mxu0
          %v2588 = vadd.f32 0.0, %v2587
          %v2589 = vpop.f32.mrb[0].mxu0
          %2590 = vmatprep.mubr.f32.mxu0 0.0
          %2591 = vmatmul.mubr.f32.gmra.mrb[0].mxu0 %v1390
          %v2592 = vpop.f32.mrb[0].mxu0
          %v2593 = vadd.f32 0.0, %v2592
          %v2594 = vpop.f32.mrb[0].mxu0
          %2595 = vmatprep.mubr.f32.mxu0 0.0
          %2596 = vmatmul.mubr.f32.gmra.mrb[0].mxu0 %v1393
          %v2597 = vpop.f32.mrb[0].mxu0
          %v2598 = vadd.f32 0.0, %v2597
          %v2599 = vpop.f32.mrb[0].mxu0
          %2600 = vmatprep.mubr.f32.mxu0 0.0
          %2601 = vmatmul.mubr.f32.gmra.mrb[0].mxu0 %v1396
          %v2602 = vpop.f32.mrb[0].mxu0
          %v2603 = vadd.f32 0.0, %v2602
          %v2604 = vpop.f32.mrb[0].mxu0
          %2605 = vmatprep.mubr.f32.mxu0 0.0
          %2606 = vmatmul.mubr.f32.gmra.mrb[0].mxu0 %v1399
          %v2607 = vpop.f32.mrb[0].mxu0
          %v2608 = vadd.f32 0.0, %v2607
          %v2609 = vpop.f32.mrb[0].mxu0
          %2610 = vmatprep.mubr.f32.mxu0 0.0
          %2611 = vmatmul.mubr.f32.gmra.mrb[0].mxu0 %v1402
          %v2612 = vpop.f32.mrb[0].mxu0
          %v2613 = vadd.f32 0.0, %v2612
          %v2614 = vpop.f32.mrb[0].mxu0
          %2615 = vmatprep.mubr.f32.mxu0 0.0
          %2616 = vmatmul.mubr.f32.gmra.mrb[0].mxu0 %v1405
          %v2617 = vpop.f32.mrb[0].mxu0
          %v2618 = vadd.f32 0.0, %v2617
          %v2619 = vpop.f32.mrb[0].mxu0
          %2620 = vmatprep.mubr.f32.mxu0 0.0
          %2621 = vmatmul.mubr.f32.gmra.mrb[0].mxu0 %v1408
          %v2622 = vpop.f32.mrb[0].mxu0
          %v2623 = vadd.f32 0.0, %v2622
          %v2624 = vpop.f32.mrb[0].mxu0
          %2625 = vmatprep.mubr.f32.mxu0 0.0
          %2626 = vmatmul.mubr.f32.gmra.mrb[0].mxu0 %v1411
          %v2627 = vpop.f32.mrb[0].mxu0
          %v2628 = vadd.f32 0.0, %v2627
          %v2629 = vpop.f32.mrb[0].mxu0
          %2630 = vmatprep.mubr.f32.mxu0 0.0
          %2631 = vmatmul.mubr.f32.gmra.mrb[0].mxu0 %v1414
          %v2632 = vpop.f32.mrb[0].mxu0
          %v2633 = vadd.f32 0.0, %v2632
          %v2634 = vpop.f32.mrb[0].mxu0
          %2635 = vmatprep.mubr.f32.mxu0 0.0
          %2636 = vmatmul.mubr.f32.gmra.mrb[0].mxu0 %v1417
          %v2637 = vpop.f32.mrb[0].mxu0
          %v2638 = vadd.f32 0.0, %v2637
          %v2639 = vpop.f32.mrb[0].mxu0
          %2640 = vmatprep.mubr.f32.mxu0 0.0
          %2641 = vmatmul.mubr.f32.gmra.mrb[0].mxu0 %v1420
          %v2642 = vpop.f32.mrb[0].mxu0
          %v2643 = vadd.f32 0.0, %v2642
          %v2644 = vpop.f32.mrb[0].mxu0
          %2645 = vmatprep.mubr.f32.mxu0 0.0
          %2646 = vmatmul.mubr.f32.gmra.mrb[0].mxu0 %v1423
          %v2647 = vpop.f32.mrb[0].mxu0
          %v2648 = vadd.f32 0.0, %v2647
          %v2649 = vpop.f32.mrb[0].mxu0
          %2650 = vmatprep.mubr.f32.mxu0 0.0
          %2651 = vmatmul.mubr.f32.gmra.mrb[0].mxu0 %v1426
          %v2652 = vpop.f32.mrb[0].mxu0
          %v2653 = vadd.f32 0.0, %v2652
          %v2654 = vpop.f32.mrb[0].mxu0
          %2655 = vmatprep.mubr.f32.mxu0 0.0
          %2656 = vmatmul.mubr.f32.gmra.mrb[0].mxu0 %v1429
          %v2657 = vpop.f32.mrb[0].mxu0
          %v2658 = vadd.f32 0.0, %v2657
          %v2659 = vpop.f32.mrb[0].mxu0
          %2660 = vmatprep.mubr.f32.mxu0 0.0
          %2661 = vmatmul.mubr.f32.gmra.mrb[0].mxu0 %v1432
          %v2662 = vpop.f32.mrb[0].mxu0
          %v2663 = vadd.f32 0.0, %v2662
          %v2664 = vpop.f32.mrb[0].mxu0
          %2665 = vmatprep.mubr.f32.mxu0 0.0
          %2666 = vmatmul.mubr.f32.gmra.mrb[0].mxu0 %v1435
          %v2667 = vpop.f32.mrb[0].mxu0
          %v2668 = vadd.f32 0.0, %v2667
          %v2669 = vpop.f32.mrb[0].mxu0
          %2670 = vmatprep.mubr.f32.mxu0 0.0
          %2671 = vmatmul.mubr.f32.gmra.mrb[0].mxu0 %v1438
          %v2672 = vpop.f32.mrb[0].mxu0
          %v2673 = vadd.f32 0.0, %v2672
          %v2674 = vpop.f32.mrb[0].mxu0
          %2675 = vmatprep.mubr.f32.mxu0 0.0
          %2676 = vmatmul.mubr.f32.gmra.mrb[0].mxu0 %v1441
          %v2677 = vpop.f32.mrb[0].mxu0
          %v2678 = vadd.f32 0.0, %v2677
          %v2679 = vpop.f32.mrb[0].mxu0
          %2680 = vmatprep.mubr.f32.mxu0 0.0
          %2681 = vmatmul.mubr.f32.gmra.mrb[0].mxu0 %v1444
          %v2682 = vpop.f32.mrb[0].mxu0
          %v2683 = vadd.f32 0.0, %v2682
          %v2684 = vpop.f32.mrb[0].mxu0
          %2685 = vmatprep.mubr.f32.mxu0 0.0
          %2686 = vmatmul.mubr.f32.gmra.mrb[0].mxu0 %v1447
          %v2687 = vpop.f32.mrb[0].mxu0
          %v2688 = vadd.f32 0.0, %v2687
          %v2689 = vpop.f32.mrb[0].mxu0
          %2690 = vmatprep.mubr.f32.mxu0 0.0
          %2691 = vmatmul.mubr.f32.gmra.mrb[0].mxu0 %v1450
          %v2692 = vpop.f32.mrb[0].mxu0
          %v2693 = vadd.f32 0.0, %v2692
          %v2694 = vpop.f32.mrb[0].mxu0
          %2695 = vmatprep.mubr.f32.mxu0 0.0
          %2696 = vmatmul.mubr.f32.gmra.mrb[0].mxu0 %v1453
          %v2697 = vpop.f32.mrb[0].mxu0
          %v2698 = vadd.f32 0.0, %v2697
          %v2699 = vpop.f32.mrb[0].mxu0
          %2700 = vmatprep.mubr.f32.mxu0 0.0
          %2701 = vmatmul.mubr.f32.gmra.mrb[0].mxu0 %v1456
          %v2702 = vpop.f32.mrb[0].mxu0
          %v2703 = vadd.f32 0.0, %v2702
          %v2704 = vpop.f32.mrb[0].mxu0
          %2705 = vmatprep.mubr.f32.mxu0 0.0
          %2706 = vmatmul.mubr.f32.gmra.mrb[0].mxu0 %v1459
          %v2707 = vpop.f32.mrb[0].mxu0
          %v2708 = vadd.f32 0.0, %v2707
          %v2709 = vpop.f32.mrb[0].mxu0
          %2710 = vmatprep.mubr.f32.mxu0 0.0
          %2711 = vmatmul.mubr.f32.gmra.mrb[0].mxu0 %v1462
          %v2712 = vpop.f32.mrb[0].mxu0
          %v2713 = vadd.f32 0.0, %v2712
          %v2714 = vpop.f32.mrb[0].mxu0
          %2715 = vmatprep.mubr.f32.mxu0 0.0
          %2716 = vmatmul.mubr.f32.gmra.mrb[0].mxu0 %v1465
          %v2717 = vpop.f32.mrb[0].mxu0
          %v2718 = vadd.f32 0.0, %v2717
          %v2719 = vpop.f32.mrb[0].mxu0
          %2720 = vmatprep.mubr.f32.mxu0 0.0
          %2721 = vmatmul.mubr.f32.gmra.mrb[0].mxu0 %v1468
          %v2722 = vpop.f32.mrb[0].mxu0
          %v2723 = vadd.f32 0.0, %v2722
          %v2724 = vpop.f32.mrb[0].mxu0
          %2725 = vmatprep.mubr.f32.mxu0 0.0
          %2726 = vmatmul.mubr.f32.gmra.mrb[0].mxu0 %v1471
          %v2727 = vpop.f32.mrb[0].mxu0
          %v2728 = vadd.f32 0.0, %v2727
          %v2729 = vpop.f32.mrb[0].mxu0
          %2730 = vmatprep.mubr.f32.mxu0 0.0
          %2731 = vmatmul.mubr.f32.gmra.mrb[0].mxu0 %v1474
          %v2732 = vpop.f32.mrb[0].mxu0
          %v2733 = vadd.f32 0.0, %v2732
          %v2734 = vpop.f32.mrb[0].mxu0
          %2735 = vmatprep.mubr.f32.mxu0 0.0
          %2736 = vmatmul.mubr.f32.gmra.mrb[0].mxu0 %v1477
          %v2737 = vpop.f32.mrb[0].mxu0
          %v2738 = vadd.f32 0.0, %v2737
          %v2739 = vpop.f32.mrb[0].mxu0
          %2740 = vmatprep.mubr.f32.mxu0 0.0
          %2741 = vmatmul.mubr.f32.gmra.mrb[0].mxu0 %v1480
          %v2742 = vpop.f32.mrb[0].mxu0
          %v2743 = vadd.f32 0.0, %v2742
          %v2744 = vpop.f32.mrb[0].mxu0
          %2745 = vmatprep.mubr.f32.mxu0 0.0
          %2746 = vmatmul.mubr.f32.gmra.mrb[0].mxu0 %v1483
          %v2747 = vpop.f32.mrb[0].mxu0
          %v2748 = vadd.f32 0.0, %v2747
          %v2749 = vpop.f32.mrb[0].mxu0
          %2750 = vmatprep.mubr.f32.mxu0 0.0
          %2751 = vmatmul.mubr.f32.gmra.mrb[0].mxu0 %v1486
          %v2752 = vpop.f32.mrb[0].mxu0
          %v2753 = vadd.f32 0.0, %v2752
          %v2754 = vpop.f32.mrb[0].mxu0
          %2755 = vmatprep.mubr.f32.mxu0 0.0
          %2756 = vmatmul.mubr.f32.gmra.mrb[0].mxu0 %v1489
          %v2757 = vpop.f32.mrb[0].mxu0
          %v2758 = vadd.f32 0.0, %v2757
          %v2759 = vpop.f32.mrb[0].mxu0
          %2760 = vmatprep.mubr.f32.mxu0 0.0
          %2761 = vmatmul.mubr.f32.gmra.mrb[0].mxu0 %v1492
          %v2762 = vpop.f32.mrb[0].mxu0
          %v2763 = vadd.f32 0.0, %v2762
          %v2764 = vpop.f32.mrb[0].mxu0
          %2765 = vmatprep.mubr.f32.mxu0 0.0
          %2766 = vmatmul.mubr.f32.gmra.mrb[0].mxu0 %v1495
          %v2767 = vpop.f32.mrb[0].mxu0
          %v2768 = vadd.f32 0.0, %v2767
          %v2769 = vpop.f32.mrb[0].mxu0
          %2770 = vmatprep.mubr.f32.mxu0 0.0
          %2771 = vmatmul.mubr.f32.gmra.mrb[0].mxu0 %v1498
          %v2772 = vpop.f32.mrb[0].mxu0
          %v2773 = vadd.f32 0.0, %v2772
          %v2774 = vpop.f32.mrb[0].mxu0
          %2775 = vmatprep.mubr.f32.mxu0 0.0
          %2776 = vmatmul.mubr.f32.gmra.mrb[0].mxu0 %v1501
          %v2777 = vpop.f32.mrb[0].mxu0
          %v2778 = vadd.f32 0.0, %v2777
          %v2779 = vpop.f32.mrb[0].mxu0
          %2780 = vmatprep.mubr.f32.mxu0 0.0
          %2781 = vmatmul.mubr.f32.gmra.mrb[0].mxu0 %v1504
          %v2782 = vpop.f32.mrb[0].mxu0
          %v2783 = vadd.f32 0.0, %v2782
          %v2784 = vpop.f32.mrb[0].mxu0
          %2785 = vmatprep.mubr.f32.mxu0 0.0
          %2786 = vmatmul.mubr.f32.gmra.mrb[0].mxu0 %v1507
          %v2787 = vpop.f32.mrb[0].mxu0
          %v2788 = vadd.f32 0.0, %v2787
          %v2789 = vpop.f32.mrb[0].mxu0
          %2790 = vmatprep.mubr.f32.mxu0 0.0
          %2791 = vmatmul.mubr.f32.gmra.mrb[0].mxu0 %v1510
          %v2792 = vpop.f32.mrb[0].mxu0
          %v2793 = vadd.f32 0.0, %v2792
          %v2794 = vpop.f32.mrb[0].mxu0
          %2795 = vmatprep.mubr.f32.mxu0 0.0
          %2796 = vmatmul.mubr.f32.gmra.mrb[0].mxu0 %v1513
          %v2797 = vpop.f32.mrb[0].mxu0
          %v2798 = vadd.f32 0.0, %v2797
          %v2799 = vpop.f32.mrb[0].mxu0
          %2800 = vmatprep.mubr.f32.mxu0 0.0
          %2801 = vmatmul.mubr.f32.gmra.mrb[0].mxu0 %v1516
          %v2802 = vpop.f32.mrb[0].mxu0
          %v2803 = vadd.f32 0.0, %v2802
          %v2804 = vpop.f32.mrb[0].mxu0
          %2805 = vmatprep.mubr.f32.mxu0 0.0
          %2806 = vmatmul.mubr.f32.gmra.mrb[0].mxu0 %v1519
          %v2807 = vpop.f32.mrb[0].mxu0
          %v2808 = vadd.f32 0.0, %v2807
          %v2809 = vpop.f32.mrb[0].mxu0
          %2810 = vmatprep.mubr.f32.mxu0 0.0
          %2811 = vmatmul.mubr.f32.gmra.mrb[0].mxu0 %v1522
          %v2812 = vpop.f32.mrb[0].mxu0
          %v2813 = vadd.f32 0.0, %v2812
          %v2814 = vpop.f32.mrb[0].mxu0
          %2815 = vmatprep.mubr.f32.mxu0 0.0
          %2816 = vmatmul.mubr.f32.gmra.mrb[0].mxu0 %v1525
          %v2817 = vpop.f32.mrb[0].mxu0
          %v2818 = vadd.f32 0.0, %v2817
          %v2819 = vpop.f32.mrb[0].mxu0
          %2820 = vmatprep.mubr.f32.mxu0 0.0
          %2821 = vmatmul.mubr.f32.gmra.mrb[0].mxu0 %v1528
          %v2822 = vpop.f32.mrb[0].mxu0
          %v2823 = vadd.f32 0.0, %v2822
          %v2824 = vpop.f32.mrb[0].mxu0
          %2825 = vmatprep.mubr.f32.mxu0 0.0
          %2826 = vmatmul.mubr.f32.gmra.mrb[0].mxu0 %v1531
          %v2827 = vpop.f32.mrb[0].mxu0
          %v2828 = vadd.f32 0.0, %v2827
          %v2829 = vpop.f32.mrb[0].mxu0
          %2830 = vmatprep.mubr.f32.mxu0 0.0
          %2831 = vmatmul.mubr.f32.gmra.mrb[0].mxu0 %v1534
          %v2832 = vpop.f32.mrb[0].mxu0
          %v2833 = vadd.f32 0.0, %v2832
          %v2834 = vpop.f32.mrb[0].mxu0
          %2835 = vmatprep.mubr.f32.mxu0 0.0
          %2836 = vmatmul.mubr.f32.gmra.mrb[0].mxu0 %v1537
          %v2837 = vpop.f32.mrb[0].mxu0
          %v2838 = vadd.f32 0.0, %v2837
          %v2839 = vpop.f32.mrb[0].mxu0
          %2840 = vmatprep.mubr.f32.mxu0 0.0
          %2841 = vmatmul.mubr.f32.gmra.mrb[0].mxu0 %v1540
          %v2842 = vpop.f32.mrb[0].mxu0
          %v2843 = vadd.f32 0.0, %v2842
          %v2844 = vpop.f32.mrb[0].mxu0
          %2845 = vmatprep.mubr.f32.mxu0 0.0
          %2846 = vmatmul.mubr.f32.gmra.mrb[0].mxu0 %v1543
          %v2847 = vpop.f32.mrb[0].mxu0
          %v2848 = vadd.f32 0.0, %v2847
          %v2849 = vpop.f32.mrb[0].mxu0
          %2850 = vmatprep.mubr.f32.mxu0 0.0
          %2851 = vmatmul.mubr.f32.gmra.mrb[0].mxu0 %v1546
          %v2852 = vpop.f32.mrb[0].mxu0
          %v2853 = vadd.f32 0.0, %v2852
          %v2854 = vpop.f32.mrb[0].mxu0
          %2855 = vmatprep.mubr.f32.mxu0 0.0
          %2856 = vmatmul.mubr.f32.gmra.mrb[0].mxu0 %v1549
          %v2857 = vpop.f32.mrb[0].mxu0
          %v2858 = vadd.f32 0.0, %v2857
          %v2859 = vpop.f32.mrb[0].mxu0
          %2860 = vmatprep.mubr.f32.mxu0 0.0
          %2861 = vmatmul.mubr.f32.gmra.mrb[0].mxu0 %v1552
          %v2862 = vpop.f32.mrb[0].mxu0
          %v2863 = vadd.f32 0.0, %v2862
          %v2864 = vpop.f32.mrb[0].mxu0
          %2865 = vmatprep.mubr.f32.mxu0 0.0
          %2866 = vmatmul.mubr.f32.gmra.mrb[0].mxu0 %v1555
          %v2867 = vpop.f32.mrb[0].mxu0
          %v2868 = vadd.f32 0.0, %v2867
          %v2869 = vpop.f32.mrb[0].mxu0
          %2870 = vmatprep.mubr.f32.mxu0 0.0
          %2871 = vmatmul.mubr.f32.gmra.mrb[0].mxu0 %v1558
          %v2872 = vpop.f32.mrb[0].mxu0
          %v2873 = vadd.f32 0.0, %v2872
          %v2874 = vpop.f32.mrb[0].mxu0
          %2875 = vmatprep.mubr.f32.mxu0 0.0
          %2876 = vmatmul.mubr.f32.gmra.mrb[0].mxu0 %v1561
          %v2877 = vpop.f32.mrb[0].mxu0
          %v2878 = vadd.f32 0.0, %v2877
          %v2879 = vpop.f32.mrb[0].mxu0
          %2880 = vmatprep.mubr.f32.mxu0 0.0
          %2881 = vmatmul.mubr.f32.gmra.mrb[0].mxu0 %v1564
          %v2882 = vpop.f32.mrb[0].mxu0
          %v2883 = vadd.f32 0.0, %v2882
          %v2884 = vpop.f32.mrb[0].mxu0
          %2885 = vmatprep.mubr.f32.mxu0 0.0
          %2886 = vmatmul.mubr.f32.gmra.mrb[0].mxu0 %v1567
          %v2887 = vpop.f32.mrb[0].mxu0
          %v2888 = vadd.f32 0.0, %v2887
          %v2889 = vpop.f32.mrb[0].mxu0
          %2890 = vmatprep.mubr.f32.mxu0 0.0
          %2891 = vmatmul.mubr.f32.gmra.mrb[0].mxu0 %v1570
          %v2892 = vpop.f32.mrb[0].mxu0
          %v2893 = vadd.f32 0.0, %v2892
          %v2894 = vpop.f32.mrb[0].mxu0
          %2895 = vmatprep.mubr.f32.mxu0 0.0
          %2896 = vmatmul.mubr.f32.gmra.mrb[0].mxu0 %v1573
          %v2897 = vpop.f32.mrb[0].mxu0
          %v2898 = vadd.f32 0.0, %v2897
          %v2899 = vpop.f32.mrb[0].mxu0
          %2900 = vmatprep.mubr.f32.mxu0 0.0
          %2901 = vmatmul.mubr.f32.gmra.mrb[0].mxu0 %v1576
          %v2902 = vpop.f32.mrb[0].mxu0
          %v2903 = vadd.f32 0.0, %v2902
          %v2904 = vpop.f32.mrb[0].mxu0
          %2905 = vmatprep.mubr.f32.mxu0 0.0
          %2906 = vmatmul.mubr.f32.gmra.mrb[0].mxu0 %v1579
          %v2907 = vpop.f32.mrb[0].mxu0
          %v2908 = vadd.f32 0.0, %v2907
          %v2909 = vpop.f32.mrb[0].mxu0
          %2910 = vmatprep.mubr.f32.mxu0 0.0
          %2911 = vmatmul.mubr.f32.gmra.mrb[0].mxu0 %v1582
          %v2912 = vpop.f32.mrb[0].mxu0
          %v2913 = vadd.f32 0.0, %v2912
          %v2914 = vpop.f32.mrb[0].mxu0
          %2915 = vmatprep.mubr.f32.mxu0 0.0
          %2916 = vmatmul.mubr.f32.gmra.mrb[0].mxu0 %v1585
          %v2917 = vpop.f32.mrb[0].mxu0
          %v2918 = vadd.f32 0.0, %v2917
          %v2919 = vpop.f32.mrb[0].mxu0
          %2920 = vmatprep.mubr.f32.mxu0 0.0
          %2921 = vmatmul.mubr.f32.gmra.mrb[0].mxu0 %v1588
          %v2922 = vpop.f32.mrb[0].mxu0
          %v2923 = vadd.f32 0.0, %v2922
          %v2924 = vpop.f32.mrb[0].mxu0
          %2925 = vmatprep.mubr.f32.mxu0 0.0
          %2926 = vmatmul.mubr.f32.gmra.mrb[0].mxu0 %v1591
          %v2927 = vpop.f32.mrb[0].mxu0
          %v2928 = vadd.f32 0.0, %v2927
          %v2929 = vpop.f32.mrb[0].mxu0
          %2930 = vmatprep.mubr.f32.mxu0 0.0
          %2931 = vmatmul.mubr.f32.gmra.mrb[0].mxu0 %v1594
          %v2932 = vpop.f32.mrb[0].mxu0
          %v2933 = vadd.f32 0.0, %v2932
          %v2934 = vpop.f32.mrb[0].mxu0
          %2935 = vmatprep.mubr.f32.mxu0 0.0
          %2936 = vmatmul.mubr.f32.gmra.mrb[0].mxu0 %v1597
          %v2937 = vpop.f32.mrb[0].mxu0
          %v2938 = vadd.f32 0.0, %v2937
          %v2939 = vpop.f32.mrb[0].mxu0
          %2940 = vmatprep.mubr.f32.mxu0 0.0
          %2941 = vmatmul.mubr.f32.gmra.mrb[0].mxu0 %v1600
          %v2942 = vpop.f32.mrb[0].mxu0
          %v2943 = vadd.f32 0.0, %v2942
          %v2944 = vpop.f32.mrb[0].mxu0
          %2945 = vmatprep.mubr.f32.mxu0 0.0
          %2946 = vmatmul.mubr.f32.gmra.mrb[0].mxu0 %v1603
          %v2947 = vpop.f32.mrb[0].mxu0
          %v2948 = vadd.f32 0.0, %v2947
          %v2949 = vpop.f32.mrb[0].mxu0
          %2950 = vmatprep.mubr.f32.mxu0 0.0
          %2951 = vmatmul.mubr.f32.gmra.mrb[0].mxu0 %v1606
          %v2952 = vpop.f32.mrb[0].mxu0
          %v2953 = vadd.f32 0.0, %v2952
          %v2954 = vpop.f32.mrb[0].mxu0
          %2955 = vdwg.mxu0
          %v2956 = vld [vmem:[#allocation4] sm:$0xff]
          %v2957 = vld [vmem:[#allocation4 + $0x8] sm:$0xff]
          %v2958 = vld [vmem:[#allocation4 + $0x10] sm:$0xff]
          %v2959 = vld [vmem:[#allocation4 + $0x18] sm:$0xff]
          %v2960 = vld [vmem:[#allocation4 + $0x20] sm:$0xff]
          %v2961 = vld [vmem:[#allocation4 + $0x28] sm:$0xff]
          %v2962 = vld [vmem:[#allocation4 + $0x30] sm:$0xff]
          %v2963 = vld [vmem:[#allocation4 + $0x38] sm:$0xff]
          %v2964 = vld [vmem:[%s1] sm:$0xff]
          %v2965 = vld [vmem:[%s1 + $0x8] sm:$0xff]
          %v2966 = vld [vmem:[%s1 + $0x10] sm:$0xff]
          %v2967 = vld [vmem:[%s1 + $0x18] sm:$0xff]
          %v2968 = vld [vmem:[%s1 + $0x20] sm:$0xff]
          %v2969 = vld [vmem:[%s1 + $0x28] sm:$0xff]
          %v2970 = vld [vmem:[%s1 + $0x30] sm:$0xff]
          %v2971 = vld [vmem:[%s1 + $0x38] sm:$0xff]
          %v2972 = vld [vmem:[%s1 + $0x40] sm:$0xff]
          %v2973 = vld [vmem:[%s1 + $0x48] sm:$0x1f]
          %vm2974 = vcmask 629760
          %v2976 = vsel %vm2974, %v2956, 0
          %v2979 = vsel %vm2974, %v2957, 0
          %v2982 = vsel %vm2974, %v2958, 0
          %v2985 = vsel %vm2974, %v2959, 0
          %v2988 = vsel %vm2974, %v2960, 0
          %v2991 = vsel %vm2974, %v2961, 0
          %v2994 = vsel %vm2974, %v2962, 0
          %v2997 = vsel %vm2974, %v2963, 0
          %vm2999 = vcmask 1044480
          %v3001 = vsel %vm2999, %v2973, 0
          %3003 = vmatprep.subr.mxu0 0.0
          %3004 = vmatpush1.msra.mxu0 %v2964
          %3005 = vmatprep.subr.mxu0 0.0
          %3006 = vmatpush1.msra.mxu0 %v2965
          %3007 = vmatprep.subr.mxu0 0.0
          %3008 = vmatpush1.msra.mxu0 %v2966
          %3009 = vmatprep.subr.mxu0 0.0
          %3010 = vmatpush1.msra.mxu0 %v2967
          %3011 = vmatprep.subr.mxu0 0.0
          %3012 = vmatpush1.msra.mxu0 %v2968
          %3013 = vmatprep.subr.mxu0 0.0
          %3014 = vmatpush1.msra.mxu0 %v2969
          %3015 = vmatprep.subr.mxu0 0.0
          %3016 = vmatpush1.msra.mxu0 %v2970
          %3017 = vmatprep.subr.mxu0 0.0
          %3018 = vmatpush1.msra.mxu0 %v2971
          %3019 = vmatprep.subr.mxu0 0.0
          %3020 = vmatpush1.msra.mxu0 %v2972
          %3021 = vmatprep.subr.mxu0 0.0
          %3022 = vmatpush1.msra.mxu0 %v3001
          %3023 = vmatprep.subr.mxu0 0.0
          %3024 = vmatpush1.msra.mxu0 0.0
          %3025 = vmatprep.subr.mxu0 0.0
          %3026 = vmatpush1.msra.mxu0 0.0
          %3027 = vmatprep.subr.mxu0 0.0
          %3028 = vmatpush1.msra.mxu0 0.0
          %3029 = vmatprep.subr.mxu0 0.0
          %3030 = vmatpush1.msra.mxu0 0.0
          %3031 = vmatprep.subr.mxu0 0.0
          %3032 = vmatpush1.msra.mxu0 0.0
          %3033 = vmatprep.subr.mxu0 0.0
          %3034 = vmatpush1.msra.mxu0 0.0
          %3035 = vmatprep.subr.mxu0 0.0
          %3036 = vmatpush1.msra.mxu0 0.0
          %3037 = vmatprep.subr.mxu0 0.0
          %3038 = vmatpush1.msra.mxu0 0.0
          %3039 = vmatprep.subr.mxu0 0.0
          %3040 = vmatpush1.msra.mxu0 0.0
          %3041 = vmatprep.subr.mxu0 0.0
          %3042 = vmatpush1.msra.mxu0 0.0
          %3043 = vmatprep.subr.mxu0 0.0
          %3044 = vmatpush1.msra.mxu0 0.0
          %3045 = vmatprep.subr.mxu0 0.0
          %3046 = vmatpush1.msra.mxu0 0.0
          %3047 = vmatprep.subr.mxu0 0.0
          %3048 = vmatpush1.msra.mxu0 0.0
          %3049 = vmatprep.subr.mxu0 0.0
          %3050 = vmatpush1.msra.mxu0 0.0
          %3051 = vmatprep.subr.mxu0 0.0
          %3052 = vmatpush1.msra.mxu0 0.0
          %3053 = vmatprep.subr.mxu0 0.0
          %3054 = vmatpush1.msra.mxu0 0.0
          %3055 = vmatprep.subr.mxu0 0.0
          %3056 = vmatpush1.msra.mxu0 0.0
          %3057 = vmatprep.subr.mxu0 0.0
          %3058 = vmatpush1.msra.mxu0 0.0
          %3059 = vmatprep.subr.mxu0 0.0
          %3060 = vmatpush1.msra.mxu0 0.0
          %3061 = vmatprep.subr.mxu0 0.0
          %3062 = vmatpush1.msra.mxu0 0.0
          %3063 = vmatprep.subr.mxu0 0.0
          %3064 = vmatpush1.msra.mxu0 0.0
          %3065 = vmatprep.subr.mxu0 0.0
          %3066 = vmatpush1.msra.mxu0 0.0
          %3067 = vmatprep.mubr.f32.mxu0 0.0
          %3068 = vmatmul.mubr.f32.gmra.mrb[0].mxu0 %v2976
          %v3069 = vpop.f32.mrb[0].mxu0
          %v3070 = vadd.f32 0.0, %v3069
          %v3071 = vpop.f32.mrb[0].mxu0
          %3072 = vmatprep.mubr.f32.mxu0 0.0
          %3073 = vmatmul.mubr.f32.gmra.mrb[0].mxu0 %v2979
          %v3074 = vpop.f32.mrb[0].mxu0
          %v3075 = vadd.f32 0.0, %v3074
          %v3076 = vpop.f32.mrb[0].mxu0
          %3077 = vmatprep.mubr.f32.mxu0 0.0
          %3078 = vmatmul.mubr.f32.gmra.mrb[0].mxu0 %v2982
          %v3079 = vpop.f32.mrb[0].mxu0
          %v3080 = vadd.f32 0.0, %v3079
          %v3081 = vpop.f32.mrb[0].mxu0
          %3082 = vmatprep.mubr.f32.mxu0 0.0
          %3083 = vmatmul.mubr.f32.gmra.mrb[0].mxu0 %v2985
          %v3084 = vpop.f32.mrb[0].mxu0
          %v3085 = vadd.f32 0.0, %v3084
          %v3086 = vpop.f32.mrb[0].mxu0
          %3087 = vmatprep.mubr.f32.mxu0 0.0
          %3088 = vmatmul.mubr.f32.gmra.mrb[0].mxu0 %v2988
          %v3089 = vpop.f32.mrb[0].mxu0
          %v3090 = vadd.f32 0.0, %v3089
          %v3091 = vpop.f32.mrb[0].mxu0
          %3092 = vmatprep.mubr.f32.mxu0 0.0
          %3093 = vmatmul.mubr.f32.gmra.mrb[0].mxu0 %v2991
          %v3094 = vpop.f32.mrb[0].mxu0
          %v3095 = vadd.f32 0.0, %v3094
          %v3096 = vpop.f32.mrb[0].mxu0
          %3097 = vmatprep.mubr.f32.mxu0 0.0
          %3098 = vmatmul.mubr.f32.gmra.mrb[0].mxu0 %v2994
          %v3099 = vpop.f32.mrb[0].mxu0
          %v3100 = vadd.f32 0.0, %v3099
          %v3101 = vpop.f32.mrb[0].mxu0
          %3102 = vmatprep.mubr.f32.mxu0 0.0
          %3103 = vmatmul.mubr.f32.gmra.mrb[0].mxu0 %v2997
          %v3104 = vpop.f32.mrb[0].mxu0
          %v3105 = vadd.f32 0.0, %v3104
          %v3106 = vpop.f32.mrb[0].mxu0
          %3107 = vdwg.mxu0
          %v3108 = vmax.f32 %v1678, 0.0
          %v3109 = vmax.f32 %v1683, 0.0
          %v3110 = vmax.f32 %v1688, 0.0
          %v3111 = vmax.f32 %v1693, 0.0
          %v3112 = vmax.f32 %v1698, 0.0
          %v3113 = vmax.f32 %v1703, 0.0
          %v3114 = vmax.f32 %v1708, 0.0
          %v3115 = vmax.f32 %v1713, 0.0
          %v3116 = vmax.f32 %v1718, 0.0
          %v3117 = vmax.f32 %v1723, 0.0
          %v3118 = vmax.f32 %v1728, 0.0
          %v3119 = vmax.f32 %v1733, 0.0
          %v3120 = vmax.f32 %v1738, 0.0
          %v3121 = vmax.f32 %v1743, 0.0
          %v3122 = vmax.f32 %v1748, 0.0
          %v3123 = vmax.f32 %v1753, 0.0
          %v3124 = vmax.f32 %v1758, 0.0
          %v3125 = vmax.f32 %v1763, 0.0
          %v3126 = vmax.f32 %v1768, 0.0
          %v3127 = vmax.f32 %v1773, 0.0
          %v3128 = vmax.f32 %v1778, 0.0
          %v3129 = vmax.f32 %v1783, 0.0
          %v3130 = vmax.f32 %v1788, 0.0
          %v3131 = vmax.f32 %v1793, 0.0
          %v3132 = vmax.f32 %v1798, 0.0
          %v3133 = vmax.f32 %v1803, 0.0
          %v3134 = vmax.f32 %v1808, 0.0
          %v3135 = vmax.f32 %v1813, 0.0
          %v3136 = vmax.f32 %v1818, 0.0
          %v3137 = vmax.f32 %v1823, 0.0
          %v3138 = vmax.f32 %v1828, 0.0
          %v3139 = vmax.f32 %v1833, 0.0
          %v3140 = vmax.f32 %v1838, 0.0
          %v3141 = vmax.f32 %v1843, 0.0
          %v3142 = vmax.f32 %v1848, 0.0
          %v3143 = vmax.f32 %v1853, 0.0
          %v3144 = vmax.f32 %v1858, 0.0
          %v3145 = vmax.f32 %v1863, 0.0
          %v3146 = vmax.f32 %v1868, 0.0
          %v3147 = vmax.f32 %v1873, 0.0
          %v3148 = vmax.f32 %v1878, 0.0
          %v3149 = vmax.f32 %v1883, 0.0
          %v3150 = vmax.f32 %v1888, 0.0
          %v3151 = vmax.f32 %v1893, 0.0
          %v3152 = vmax.f32 %v1898, 0.0
          %v3153 = vmax.f32 %v1903, 0.0
          %v3154 = vmax.f32 %v1908, 0.0
          %v3155 = vmax.f32 %v1913, 0.0
          %v3156 = vmax.f32 %v1918, 0.0
          %v3157 = vmax.f32 %v1923, 0.0
          %v3158 = vmax.f32 %v1928, 0.0
          %v3159 = vmax.f32 %v1933, 0.0
          %v3160 = vmax.f32 %v1938, 0.0
          %v3161 = vmax.f32 %v1943, 0.0
          %v3162 = vmax.f32 %v1948, 0.0
          %v3163 = vmax.f32 %v1953, 0.0
          %v3164 = vmax.f32 %v1958, 0.0
          %v3165 = vmax.f32 %v1963, 0.0
          %v3166 = vmax.f32 %v1968, 0.0
          %v3167 = vmax.f32 %v1973, 0.0
          %v3168 = vmax.f32 %v1978, 0.0
          %v3169 = vmax.f32 %v1983, 0.0
          %v3170 = vmax.f32 %v1988, 0.0
          %v3171 = vmax.f32 %v1993, 0.0
          %v3172 = vmax.f32 %v1998, 0.0
          %v3173 = vmax.f32 %v2003, 0.0
          %v3174 = vmax.f32 %v2008, 0.0
          %v3175 = vmax.f32 %v2013, 0.0
          %v3176 = vmax.f32 %v2018, 0.0
          %v3177 = vmax.f32 %v2023, 0.0
          %v3178 = vmax.f32 %v2028, 0.0
          %v3179 = vmax.f32 %v2033, 0.0
          %v3180 = vmax.f32 %v2038, 0.0
          %v3181 = vmax.f32 %v2043, 0.0
          %v3182 = vmax.f32 %v2048, 0.0
          %v3183 = vmax.f32 %v2053, 0.0
          %v3184 = vmax.f32 %v2058, 0.0
          %v3185 = vmax.f32 %v2063, 0.0
          %v3186 = vmax.f32 %v2068, 0.0
          %v3187 = vmax.f32 %v2073, 0.0
          %v3188 = vmax.f32 %v2078, 0.0
          %v3189 = vmax.f32 %v2083, 0.0
          %v3190 = vmax.f32 %v2088, 0.0
          %v3191 = vmax.f32 %v2093, 0.0
          %v3192 = vmax.f32 %v2098, 0.0
          %v3193 = vmax.f32 %v2103, 0.0
          %v3194 = vmax.f32 %v2108, 0.0
          %v3195 = vmax.f32 %v2113, 0.0
          %v3196 = vmax.f32 %v2118, 0.0
          %v3197 = vmax.f32 %v2123, 0.0
          %v3198 = vmax.f32 %v2128, 0.0
          %v3199 = vmax.f32 %v2133, 0.0
          %v3200 = vmax.f32 %v2138, 0.0
          %v3201 = vmax.f32 %v2143, 0.0
          %v3202 = vmax.f32 %v2148, 0.0
          %v3203 = vmax.f32 %v2153, 0.0
          %v3204 = vmax.f32 %v2158, 0.0
          %v3205 = vmax.f32 %v2163, 0.0
          %v3206 = vmax.f32 %v2168, 0.0
          %v3207 = vmax.f32 %v2173, 0.0
          %v3208 = vmax.f32 %v2178, 0.0
          %v3209 = vmax.f32 %v2183, 0.0
          %v3210 = vmax.f32 %v2188, 0.0
          %v3211 = vmax.f32 %v2193, 0.0
          %v3212 = vmax.f32 %v2198, 0.0
          %v3213 = vmax.f32 %v2203, 0.0
          %v3214 = vmax.f32 %v2208, 0.0
          %v3215 = vmax.f32 %v2213, 0.0
          %v3216 = vmax.f32 %v2218, 0.0
          %v3217 = vmax.f32 %v2223, 0.0
          %v3218 = vmax.f32 %v2228, 0.0
          %v3219 = vmax.f32 %v2233, 0.0
          %v3220 = vmax.f32 %v2238, 0.0
          %v3221 = vmax.f32 %v2243, 0.0
          %v3222 = vmax.f32 %v2248, 0.0
          %v3223 = vmax.f32 %v2253, 0.0
          %v3224 = vmax.f32 %v2258, 0.0
          %v3225 = vmax.f32 %v2263, 0.0
          %v3226 = vmax.f32 %v2268, 0.0
          %v3227 = vmax.f32 %v2273, 0.0
          %v3228 = vmax.f32 %v2278, 0.0
          %v3229 = vmax.f32 %v2283, 0.0
          %v3230 = vmax.f32 %v2288, 0.0
          %v3231 = vmax.f32 %v2293, 0.0
          %v3232 = vmax.f32 %v2298, 0.0
          %v3233 = vmax.f32 %v2303, 0.0
          %v3234 = vmax.f32 %v2308, 0.0
          %v3235 = vmax.f32 %v2313, 0.0
          %v3236 = vmax.f32 %v2318, 0.0
          %v3237 = vmax.f32 %v2323, 0.0
          %v3238 = vmax.f32 %v2328, 0.0
          %v3239 = vmax.f32 %v2333, 0.0
          %v3240 = vmax.f32 %v2338, 0.0
          %v3241 = vmax.f32 %v2343, 0.0
          %v3242 = vmax.f32 %v2348, 0.0
          %v3243 = vmax.f32 %v2353, 0.0
          %v3244 = vmax.f32 %v2358, 0.0
          %v3245 = vmax.f32 %v2363, 0.0
          %v3246 = vmax.f32 %v2368, 0.0
          %v3247 = vmax.f32 %v2373, 0.0
          %v3248 = vmax.f32 %v2378, 0.0
          %v3249 = vmax.f32 %v2383, 0.0
          %v3250 = vmax.f32 %v2388, 0.0
          %v3251 = vmax.f32 %v2393, 0.0
          %v3252 = vmax.f32 %v2398, 0.0
          %v3253 = vmax.f32 %v2403, 0.0
          %v3254 = vmax.f32 %v2408, 0.0
          %v3255 = vmax.f32 %v2413, 0.0
          %v3256 = vmax.f32 %v2418, 0.0
          %v3257 = vmax.f32 %v2423, 0.0
          %v3258 = vmax.f32 %v2428, 0.0
          %v3259 = vmax.f32 %v2433, 0.0
          %v3260 = vmax.f32 %v2438, 0.0
          %v3261 = vmax.f32 %v2443, 0.0
          %v3262 = vmax.f32 %v2448, 0.0
          %v3263 = vmax.f32 %v2453, 0.0
          %v3264 = vmax.f32 %v2458, 0.0
          %v3265 = vmax.f32 %v2463, 0.0
          %v3266 = vmax.f32 %v2468, 0.0
          %v3267 = vmax.f32 %v2473, 0.0
          %v3268 = vmax.f32 %v2478, 0.0
          %v3269 = vmax.f32 %v2483, 0.0
          %v3270 = vmax.f32 %v2488, 0.0
          %v3271 = vmax.f32 %v2493, 0.0
          %v3272 = vmax.f32 %v2498, 0.0
          %v3273 = vmax.f32 %v2503, 0.0
          %v3274 = vmax.f32 %v2508, 0.0
          %v3275 = vmax.f32 %v2513, 0.0
          %v3276 = vmax.f32 %v2518, 0.0
          %v3277 = vmax.f32 %v2523, 0.0
          %v3278 = vmax.f32 %v2528, 0.0
          %v3279 = vmax.f32 %v2533, 0.0
          %v3280 = vmax.f32 %v2538, 0.0
          %v3281 = vmax.f32 %v2543, 0.0
          %v3282 = vmax.f32 %v2548, 0.0
          %v3283 = vmax.f32 %v2553, 0.0
          %v3284 = vmax.f32 %v2558, 0.0
          %v3285 = vmax.f32 %v2563, 0.0
          %v3286 = vmax.f32 %v2568, 0.0
          %v3287 = vmax.f32 %v2573, 0.0
          %v3288 = vmax.f32 %v2578, 0.0
          %v3289 = vmax.f32 %v2583, 0.0
          %v3290 = vmax.f32 %v2588, 0.0
          %v3291 = vmax.f32 %v2593, 0.0
          %v3292 = vmax.f32 %v2598, 0.0
          %v3293 = vmax.f32 %v2603, 0.0
          %v3294 = vmax.f32 %v2608, 0.0
          %v3295 = vmax.f32 %v2613, 0.0
          %v3296 = vmax.f32 %v2618, 0.0
          %v3297 = vmax.f32 %v2623, 0.0
          %v3298 = vmax.f32 %v2628, 0.0
          %v3299 = vmax.f32 %v2633, 0.0
          %v3300 = vmax.f32 %v2638, 0.0
          %v3301 = vmax.f32 %v2643, 0.0
          %v3302 = vmax.f32 %v2648, 0.0
          %v3303 = vmax.f32 %v2653, 0.0
          %v3304 = vmax.f32 %v2658, 0.0
          %v3305 = vmax.f32 %v2663, 0.0
          %v3306 = vmax.f32 %v2668, 0.0
          %v3307 = vmax.f32 %v2673, 0.0
          %v3308 = vmax.f32 %v2678, 0.0
          %v3309 = vmax.f32 %v2683, 0.0
          %v3310 = vmax.f32 %v2688, 0.0
          %v3311 = vmax.f32 %v2693, 0.0
          %v3312 = vmax.f32 %v2698, 0.0
          %v3313 = vmax.f32 %v2703, 0.0
          %v3314 = vmax.f32 %v2708, 0.0
          %v3315 = vmax.f32 %v2713, 0.0
          %v3316 = vmax.f32 %v2718, 0.0
          %v3317 = vmax.f32 %v2723, 0.0
          %v3318 = vmax.f32 %v2728, 0.0
          %v3319 = vmax.f32 %v2733, 0.0
          %v3320 = vmax.f32 %v2738, 0.0
          %v3321 = vmax.f32 %v2743, 0.0
          %v3322 = vmax.f32 %v2748, 0.0
          %v3323 = vmax.f32 %v2753, 0.0
          %v3324 = vmax.f32 %v2758, 0.0
          %v3325 = vmax.f32 %v2763, 0.0
          %v3326 = vmax.f32 %v2768, 0.0
          %v3327 = vmax.f32 %v2773, 0.0
          %v3328 = vmax.f32 %v2778, 0.0
          %v3329 = vmax.f32 %v2783, 0.0
          %v3330 = vmax.f32 %v2788, 0.0
          %v3331 = vmax.f32 %v2793, 0.0
          %v3332 = vmax.f32 %v2798, 0.0
          %v3333 = vmax.f32 %v2803, 0.0
          %v3334 = vmax.f32 %v2808, 0.0
          %v3335 = vmax.f32 %v2813, 0.0
          %v3336 = vmax.f32 %v2818, 0.0
          %v3337 = vmax.f32 %v2823, 0.0
          %v3338 = vmax.f32 %v2828, 0.0
          %v3339 = vmax.f32 %v2833, 0.0
          %v3340 = vmax.f32 %v2838, 0.0
          %v3341 = vmax.f32 %v2843, 0.0
          %v3342 = vmax.f32 %v2848, 0.0
          %v3343 = vmax.f32 %v2853, 0.0
          %v3344 = vmax.f32 %v2858, 0.0
          %v3345 = vmax.f32 %v2863, 0.0
          %v3346 = vmax.f32 %v2868, 0.0
          %v3347 = vmax.f32 %v2873, 0.0
          %v3348 = vmax.f32 %v2878, 0.0
          %v3349 = vmax.f32 %v2883, 0.0
          %v3350 = vmax.f32 %v2888, 0.0
          %v3351 = vmax.f32 %v2893, 0.0
          %v3352 = vmax.f32 %v2898, 0.0
          %v3353 = vmax.f32 %v2903, 0.0
          %v3354 = vmax.f32 %v2908, 0.0
          %v3355 = vmax.f32 %v2913, 0.0
          %v3356 = vmax.f32 %v2918, 0.0
          %v3357 = vmax.f32 %v2923, 0.0
          %v3358 = vmax.f32 %v2928, 0.0
          %v3359 = vmax.f32 %v2933, 0.0
          %v3360 = vmax.f32 %v2938, 0.0
          %v3361 = vmax.f32 %v2943, 0.0
          %v3362 = vmax.f32 %v2948, 0.0
          %v3363 = vmax.f32 %v2953, 0.0
          %v3364 = vpack.c.bf16 %v3109, %v3108
          %v3365 = vpack.c.bf16 %v3111, %v3110
          %v3366 = vpack.c.bf16 %v3113, %v3112
          %v3367 = vpack.c.bf16 %v3115, %v3114
          %v3368 = vpack.c.bf16 %v3117, %v3116
          %v3369 = vpack.c.bf16 %v3119, %v3118
          %v3370 = vpack.c.bf16 %v3121, %v3120
          %v3371 = vpack.c.bf16 %v3123, %v3122
          %v3372 = vpack.c.bf16 %v3125, %v3124
          %v3373 = vpack.c.bf16 %v3127, %v3126
          %v3374 = vpack.c.bf16 %v3129, %v3128
          %v3375 = vpack.c.bf16 %v3131, %v3130
          %v3376 = vpack.c.bf16 %v3133, %v3132
          %v3377 = vpack.c.bf16 %v3135, %v3134
          %v3378 = vpack.c.bf16 %v3137, %v3136
          %v3379 = vpack.c.bf16 %v3139, %v3138
          %v3380 = vpack.c.bf16 %v3141, %v3140
          %v3381 = vpack.c.bf16 %v3143, %v3142
          %v3382 = vpack.c.bf16 %v3145, %v3144
          %v3383 = vpack.c.bf16 %v3147, %v3146
          %v3384 = vpack.c.bf16 %v3149, %v3148
          %v3385 = vpack.c.bf16 %v3151, %v3150
          %v3386 = vpack.c.bf16 %v3153, %v3152
          %v3387 = vpack.c.bf16 %v3155, %v3154
          %v3388 = vpack.c.bf16 %v3157, %v3156
          %v3389 = vpack.c.bf16 %v3159, %v3158
          %v3390 = vpack.c.bf16 %v3161, %v3160
          %v3391 = vpack.c.bf16 %v3163, %v3162
          %v3392 = vpack.c.bf16 %v3165, %v3164
          %v3393 = vpack.c.bf16 %v3167, %v3166
          %v3394 = vpack.c.bf16 %v3169, %v3168
          %v3395 = vpack.c.bf16 %v3171, %v3170
          %v3396 = vpack.c.bf16 %v3173, %v3172
          %v3397 = vpack.c.bf16 %v3175, %v3174
          %v3398 = vpack.c.bf16 %v3177, %v3176
          %v3399 = vpack.c.bf16 %v3179, %v3178
          %v3400 = vpack.c.bf16 %v3181, %v3180
          %v3401 = vpack.c.bf16 %v3183, %v3182
          %v3402 = vpack.c.bf16 %v3185, %v3184
          %v3403 = vpack.c.bf16 %v3187, %v3186
          %v3404 = vpack.c.bf16 %v3189, %v3188
          %v3405 = vpack.c.bf16 %v3191, %v3190
          %v3406 = vpack.c.bf16 %v3193, %v3192
          %v3407 = vpack.c.bf16 %v3195, %v3194
          %v3408 = vpack.c.bf16 %v3197, %v3196
          %v3409 = vpack.c.bf16 %v3199, %v3198
          %v3410 = vpack.c.bf16 %v3201, %v3200
          %v3411 = vpack.c.bf16 %v3203, %v3202
          %v3412 = vpack.c.bf16 %v3205, %v3204
          %v3413 = vpack.c.bf16 %v3207, %v3206
          %v3414 = vpack.c.bf16 %v3209, %v3208
          %v3415 = vpack.c.bf16 %v3211, %v3210
          %v3416 = vpack.c.bf16 %v3213, %v3212
          %v3417 = vpack.c.bf16 %v3215, %v3214
          %v3418 = vpack.c.bf16 %v3217, %v3216
          %v3419 = vpack.c.bf16 %v3219, %v3218
          %v3420 = vpack.c.bf16 %v3221, %v3220
          %v3421 = vpack.c.bf16 %v3223, %v3222
          %v3422 = vpack.c.bf16 %v3225, %v3224
          %v3423 = vpack.c.bf16 %v3227, %v3226
          %v3424 = vpack.c.bf16 %v3229, %v3228
          %v3425 = vpack.c.bf16 %v3231, %v3230
          %v3426 = vpack.c.bf16 %v3233, %v3232
          %v3427 = vpack.c.bf16 %v3235, %v3234
          %v3428 = vpack.c.bf16 %v3237, %v3236
          %v3429 = vpack.c.bf16 %v3239, %v3238
          %v3430 = vpack.c.bf16 %v3241, %v3240
          %v3431 = vpack.c.bf16 %v3243, %v3242
          %v3432 = vpack.c.bf16 %v3245, %v3244
          %v3433 = vpack.c.bf16 %v3247, %v3246
          %v3434 = vpack.c.bf16 %v3249, %v3248
          %v3435 = vpack.c.bf16 %v3251, %v3250
          %v3436 = vpack.c.bf16 %v3253, %v3252
          %v3437 = vpack.c.bf16 %v3255, %v3254
          %v3438 = vpack.c.bf16 %v3257, %v3256
          %v3439 = vpack.c.bf16 %v3259, %v3258
          %v3440 = vpack.c.bf16 %v3261, %v3260
          %v3441 = vpack.c.bf16 %v3263, %v3262
          %v3442 = vpack.c.bf16 %v3265, %v3264
          %v3443 = vpack.c.bf16 %v3267, %v3266
          %v3444 = vpack.c.bf16 %v3269, %v3268
          %v3445 = vpack.c.bf16 %v3271, %v3270
          %v3446 = vpack.c.bf16 %v3273, %v3272
          %v3447 = vpack.c.bf16 %v3275, %v3274
          %v3448 = vpack.c.bf16 %v3277, %v3276
          %v3449 = vpack.c.bf16 %v3279, %v3278
          %v3450 = vpack.c.bf16 %v3281, %v3280
          %v3451 = vpack.c.bf16 %v3283, %v3282
          %v3452 = vpack.c.bf16 %v3285, %v3284
          %v3453 = vpack.c.bf16 %v3287, %v3286
          %v3454 = vpack.c.bf16 %v3289, %v3288
          %v3455 = vpack.c.bf16 %v3291, %v3290
          %v3456 = vpack.c.bf16 %v3293, %v3292
          %v3457 = vpack.c.bf16 %v3295, %v3294
          %v3458 = vpack.c.bf16 %v3297, %v3296
          %v3459 = vpack.c.bf16 %v3299, %v3298
          %v3460 = vpack.c.bf16 %v3301, %v3300
          %v3461 = vpack.c.bf16 %v3303, %v3302
          %v3462 = vpack.c.bf16 %v3305, %v3304
          %v3463 = vpack.c.bf16 %v3307, %v3306
          %v3464 = vpack.c.bf16 %v3309, %v3308
          %v3465 = vpack.c.bf16 %v3311, %v3310
          %v3466 = vpack.c.bf16 %v3313, %v3312
          %v3467 = vpack.c.bf16 %v3315, %v3314
          %v3468 = vpack.c.bf16 %v3317, %v3316
          %v3469 = vpack.c.bf16 %v3319, %v3318
          %v3470 = vpack.c.bf16 %v3321, %v3320
          %v3471 = vpack.c.bf16 %v3323, %v3322
          %v3472 = vpack.c.bf16 %v3325, %v3324
          %v3473 = vpack.c.bf16 %v3327, %v3326
          %v3474 = vpack.c.bf16 %v3329, %v3328
          %v3475 = vpack.c.bf16 %v3331, %v3330
          %v3476 = vpack.c.bf16 %v3333, %v3332
          %v3477 = vpack.c.bf16 %v3335, %v3334
          %v3478 = vpack.c.bf16 %v3337, %v3336
          %v3479 = vpack.c.bf16 %v3339, %v3338
          %v3480 = vpack.c.bf16 %v3341, %v3340
          %v3481 = vpack.c.bf16 %v3343, %v3342
          %v3482 = vpack.c.bf16 %v3345, %v3344
          %v3483 = vpack.c.bf16 %v3347, %v3346
          %v3484 = vpack.c.bf16 %v3349, %v3348
          %v3485 = vpack.c.bf16 %v3351, %v3350
          %v3486 = vpack.c.bf16 %v3353, %v3352
          %v3487 = vpack.c.bf16 %v3355, %v3354
          %v3488 = vpack.c.bf16 %v3357, %v3356
          %v3489 = vpack.c.bf16 %v3359, %v3358
          %v3490 = vpack.c.bf16 %v3361, %v3360
          %v3491 = vpack.c.bf16 %v3363, %v3362
          %vm3492 = vcmask 15360
          %3493 = vst.msk [vmem:[#allocation2] sm:$0xff] %vm3492, %v3364
          %3494 = vst.msk [vmem:[#allocation2 + $0x8] sm:$0xff] %vm3492, %v3365
          %3495 = vst.msk [vmem:[#allocation2 + $0x10] sm:$0xff] %vm3492, %v3366
          %3496 = vst.msk [vmem:[#allocation2 + $0x18] sm:$0xff] %vm3492, %v3367
          %3497 = vst.msk [vmem:[#allocation2 + $0x20] sm:$0xff] %vm3492, %v3368
          %3498 = vst.msk [vmem:[#allocation2 + $0x28] sm:$0xff] %vm3492, %v3369
          %3499 = vst.msk [vmem:[#allocation2 + $0x30] sm:$0xff] %vm3492, %v3370
          %3500 = vst.msk [vmem:[#allocation2 + $0x38] sm:$0xff] %vm3492, %v3371
          %3501 = vst.msk [vmem:[#allocation2 + $0x40] sm:$0xff] %vm3492, %v3372
          %3502 = vst.msk [vmem:[#allocation2 + $0x48] sm:$0xff] %vm3492, %v3373
          %3503 = vst.msk [vmem:[#allocation2 + $0x50] sm:$0xff] %vm3492, %v3374
          %3504 = vst.msk [vmem:[#allocation2 + $0x58] sm:$0xff] %vm3492, %v3375
          %3505 = vst.msk [vmem:[#allocation2 + $0x60] sm:$0xff] %vm3492, %v3376
          %3506 = vst.msk [vmem:[#allocation2 + $0x68] sm:$0xff] %vm3492, %v3377
          %3507 = vst.msk [vmem:[#allocation2 + $0x70] sm:$0xff] %vm3492, %v3378
          %3508 = vst.msk [vmem:[#allocation2 + $0x78] sm:$0xff] %vm3492, %v3379
          %3509 = vst.msk [vmem:[#allocation2 + $0x80] sm:$0xff] %vm3492, %v3380
          %3510 = vst.msk [vmem:[#allocation2 + $0x88] sm:$0xff] %vm3492, %v3381
          %3511 = vst.msk [vmem:[#allocation2 + $0x90] sm:$0xff] %vm3492, %v3382
          %3512 = vst.msk [vmem:[#allocation2 + $0x98] sm:$0xff] %vm3492, %v3383
          %3513 = vst.msk [vmem:[#allocation2 + $0xa0] sm:$0xff] %vm3492, %v3384
          %3514 = vst.msk [vmem:[#allocation2 + $0xa8] sm:$0xff] %vm3492, %v3385
          %3515 = vst.msk [vmem:[#allocation2 + $0xb0] sm:$0xff] %vm3492, %v3386
          %3516 = vst.msk [vmem:[#allocation2 + $0xb8] sm:$0xff] %vm3492, %v3387
          %3517 = vst.msk [vmem:[#allocation2 + $0xc0] sm:$0xff] %vm3492, %v3388
          %3518 = vst.msk [vmem:[#allocation2 + $0xc8] sm:$0xff] %vm3492, %v3389
          %3519 = vst.msk [vmem:[#allocation2 + $0xd0] sm:$0xff] %vm3492, %v3390
          %3520 = vst.msk [vmem:[#allocation2 + $0xd8] sm:$0xff] %vm3492, %v3391
          %3521 = vst.msk [vmem:[#allocation2 + $0xe0] sm:$0xff] %vm3492, %v3392
          %3522 = vst.msk [vmem:[#allocation2 + $0xe8] sm:$0xff] %vm3492, %v3393
          %3523 = vst.msk [vmem:[#allocation2 + $0xf0] sm:$0xff] %vm3492, %v3394
          %3524 = vst.msk [vmem:[#allocation2 + $0xf8] sm:$0xff] %vm3492, %v3395
          %3525 = vst.msk [vmem:[#allocation2 + $0x100] sm:$0xff] %vm3492, %v3396
          %3526 = vst.msk [vmem:[#allocation2 + $0x108] sm:$0xff] %vm3492, %v3397
          %3527 = vst.msk [vmem:[#allocation2 + $0x110] sm:$0xff] %vm3492, %v3398
          %3528 = vst.msk [vmem:[#allocation2 + $0x118] sm:$0xff] %vm3492, %v3399
          %3529 = vst.msk [vmem:[#allocation2 + $0x120] sm:$0xff] %vm3492, %v3400
          %3530 = vst.msk [vmem:[#allocation2 + $0x128] sm:$0xff] %vm3492, %v3401
          %3531 = vst.msk [vmem:[#allocation2 + $0x130] sm:$0xff] %vm3492, %v3402
          %3532 = vst.msk [vmem:[#allocation2 + $0x138] sm:$0xff] %vm3492, %v3403
          %3533 = vst.msk [vmem:[#allocation2 + $0x140] sm:$0xff] %vm3492, %v3404
          %3534 = vst.msk [vmem:[#allocation2 + $0x148] sm:$0xff] %vm3492, %v3405
          %3535 = vst.msk [vmem:[#allocation2 + $0x150] sm:$0xff] %vm3492, %v3406
          %3536 = vst.msk [vmem:[#allocation2 + $0x158] sm:$0xff] %vm3492, %v3407
          %3537 = vst.msk [vmem:[#allocation2 + $0x160] sm:$0xff] %vm3492, %v3408
          %3538 = vst.msk [vmem:[#allocation2 + $0x168] sm:$0xff] %vm3492, %v3409
          %3539 = vst.msk [vmem:[#allocation2 + $0x170] sm:$0xff] %vm3492, %v3410
          %3540 = vst.msk [vmem:[#allocation2 + $0x178] sm:$0xff] %vm3492, %v3411
          %3541 = vst.msk [vmem:[#allocation2 + $0x180] sm:$0xff] %vm3492, %v3412
          %3542 = vst.msk [vmem:[#allocation2 + $0x188] sm:$0xff] %vm3492, %v3413
          %3543 = vst.msk [vmem:[#allocation2 + $0x190] sm:$0xff] %vm3492, %v3414
          %3544 = vst.msk [vmem:[#allocation2 + $0x198] sm:$0xff] %vm3492, %v3415
          %3545 = vst.msk [vmem:[#allocation2 + $0x1a0] sm:$0xff] %vm3492, %v3416
          %3546 = vst.msk [vmem:[#allocation2 + $0x1a8] sm:$0xff] %vm3492, %v3417
          %3547 = vst.msk [vmem:[#allocation2 + $0x1b0] sm:$0xff] %vm3492, %v3418
          %3548 = vst.msk [vmem:[#allocation2 + $0x1b8] sm:$0xff] %vm3492, %v3419
          %3549 = vst.msk [vmem:[#allocation2 + $0x1c0] sm:$0xff] %vm3492, %v3420
          %3550 = vst.msk [vmem:[#allocation2 + $0x1c8] sm:$0xff] %vm3492, %v3421
          %3551 = vst.msk [vmem:[#allocation2 + $0x1d0] sm:$0xff] %vm3492, %v3422
          %3552 = vst.msk [vmem:[#allocation2 + $0x1d8] sm:$0xff] %vm3492, %v3423
          %3553 = vst.msk [vmem:[#allocation2 + $0x1e0] sm:$0xff] %vm3492, %v3424
          %3554 = vst.msk [vmem:[#allocation2 + $0x1e8] sm:$0xff] %vm3492, %v3425
          %3555 = vst.msk [vmem:[#allocation2 + $0x1f0] sm:$0xff] %vm3492, %v3426
          %3556 = vst.msk [vmem:[#allocation2 + $0x1f8] sm:$0xff] %vm3492, %v3427
          %3557 = vst.msk [vmem:[#allocation2 + $0x200] sm:$0xff] %vm3492, %v3428
          %3558 = vst.msk [vmem:[#allocation2 + $0x208] sm:$0xff] %vm3492, %v3429
          %3559 = vst.msk [vmem:[#allocation2 + $0x210] sm:$0xff] %vm3492, %v3430
          %3560 = vst.msk [vmem:[#allocation2 + $0x218] sm:$0xff] %vm3492, %v3431
          %3561 = vst.msk [vmem:[#allocation2 + $0x220] sm:$0xff] %vm3492, %v3432
          %3562 = vst.msk [vmem:[#allocation2 + $0x228] sm:$0xff] %vm3492, %v3433
          %3563 = vst.msk [vmem:[#allocation2 + $0x230] sm:$0xff] %vm3492, %v3434
          %3564 = vst.msk [vmem:[#allocation2 + $0x238] sm:$0xff] %vm3492, %v3435
          %3565 = vst.msk [vmem:[#allocation2 + $0x240] sm:$0xff] %vm3492, %v3436
          %3566 = vst.msk [vmem:[#allocation2 + $0x248] sm:$0xff] %vm3492, %v3437
          %3567 = vst.msk [vmem:[#allocation2 + $0x250] sm:$0xff] %vm3492, %v3438
          %3568 = vst.msk [vmem:[#allocation2 + $0x258] sm:$0xff] %vm3492, %v3439
          %3569 = vst.msk [vmem:[#allocation2 + $0x260] sm:$0xff] %vm3492, %v3440
          %3570 = vst.msk [vmem:[#allocation2 + $0x268] sm:$0xff] %vm3492, %v3441
          %3571 = vst.msk [vmem:[#allocation2 + $0x270] sm:$0xff] %vm3492, %v3442
          %3572 = vst.msk [vmem:[#allocation2 + $0x278] sm:$0xff] %vm3492, %v3443
          %3573 = vst.msk [vmem:[#allocation2 + $0x280] sm:$0xff] %vm3492, %v3444
          %3574 = vst.msk [vmem:[#allocation2 + $0x288] sm:$0xff] %vm3492, %v3445
          %3575 = vst.msk [vmem:[#allocation2 + $0x290] sm:$0xff] %vm3492, %v3446
          %3576 = vst.msk [vmem:[#allocation2 + $0x298] sm:$0xff] %vm3492, %v3447
          %3577 = vst.msk [vmem:[#allocation2 + $0x2a0] sm:$0xff] %vm3492, %v3448
          %3578 = vst.msk [vmem:[#allocation2 + $0x2a8] sm:$0xff] %vm3492, %v3449
          %3579 = vst.msk [vmem:[#allocation2 + $0x2b0] sm:$0xff] %vm3492, %v3450
          %3580 = vst.msk [vmem:[#allocation2 + $0x2b8] sm:$0xff] %vm3492, %v3451
          %3581 = vst.msk [vmem:[#allocation2 + $0x2c0] sm:$0xff] %vm3492, %v3452
          %3582 = vst.msk [vmem:[#allocation2 + $0x2c8] sm:$0xff] %vm3492, %v3453
          %3583 = vst.msk [vmem:[#allocation2 + $0x2d0] sm:$0xff] %vm3492, %v3454
          %3584 = vst.msk [vmem:[#allocation2 + $0x2d8] sm:$0xff] %vm3492, %v3455
          %3585 = vst.msk [vmem:[#allocation2 + $0x2e0] sm:$0xff] %vm3492, %v3456
          %3586 = vst.msk [vmem:[#allocation2 + $0x2e8] sm:$0xff] %vm3492, %v3457
          %3587 = vst.msk [vmem:[#allocation2 + $0x2f0] sm:$0xff] %vm3492, %v3458
          %3588 = vst.msk [vmem:[#allocation2 + $0x2f8] sm:$0xff] %vm3492, %v3459
          %3589 = vst.msk [vmem:[#allocation2 + $0x300] sm:$0xff] %vm3492, %v3460
          %3590 = vst.msk [vmem:[#allocation2 + $0x308] sm:$0xff] %vm3492, %v3461
          %3591 = vst.msk [vmem:[#allocation2 + $0x310] sm:$0xff] %vm3492, %v3462
          %3592 = vst.msk [vmem:[#allocation2 + $0x318] sm:$0xff] %vm3492, %v3463
          %3593 = vst.msk [vmem:[#allocation2 + $0x320] sm:$0xff] %vm3492, %v3464
          %3594 = vst.msk [vmem:[#allocation2 + $0x328] sm:$0xff] %vm3492, %v3465
          %3595 = vst.msk [vmem:[#allocation2 + $0x330] sm:$0xff] %vm3492, %v3466
          %3596 = vst.msk [vmem:[#allocation2 + $0x338] sm:$0xff] %vm3492, %v3467
          %3597 = vst.msk [vmem:[#allocation2 + $0x340] sm:$0xff] %vm3492, %v3468
          %3598 = vst.msk [vmem:[#allocation2 + $0x348] sm:$0xff] %vm3492, %v3469
          %3599 = vst.msk [vmem:[#allocation2 + $0x350] sm:$0xff] %vm3492, %v3470
          %3600 = vst.msk [vmem:[#allocation2 + $0x358] sm:$0xff] %vm3492, %v3471
          %3601 = vst.msk [vmem:[#allocation2 + $0x360] sm:$0xff] %vm3492, %v3472
          %3602 = vst.msk [vmem:[#allocation2 + $0x368] sm:$0xff] %vm3492, %v3473
          %3603 = vst.msk [vmem:[#allocation2 + $0x370] sm:$0xff] %vm3492, %v3474
          %3604 = vst.msk [vmem:[#allocation2 + $0x378] sm:$0xff] %vm3492, %v3475
          %3605 = vst.msk [vmem:[#allocation2 + $0x380] sm:$0xff] %vm3492, %v3476
          %3606 = vst.msk [vmem:[#allocation2 + $0x388] sm:$0xff] %vm3492, %v3477
          %3607 = vst.msk [vmem:[#allocation2 + $0x390] sm:$0xff] %vm3492, %v3478
          %3608 = vst.msk [vmem:[#allocation2 + $0x398] sm:$0xff] %vm3492, %v3479
          %3609 = vst.msk [vmem:[#allocation2 + $0x3a0] sm:$0xff] %vm3492, %v3480
          %3610 = vst.msk [vmem:[#allocation2 + $0x3a8] sm:$0xff] %vm3492, %v3481
          %3611 = vst.msk [vmem:[#allocation2 + $0x3b0] sm:$0xff] %vm3492, %v3482
          %3612 = vst.msk [vmem:[#allocation2 + $0x3b8] sm:$0xff] %vm3492, %v3483
          %3613 = vst.msk [vmem:[#allocation2 + $0x3c0] sm:$0xff] %vm3492, %v3484
          %3614 = vst.msk [vmem:[#allocation2 + $0x3c8] sm:$0xff] %vm3492, %v3485
          %3615 = vst.msk [vmem:[#allocation2 + $0x3d0] sm:$0xff] %vm3492, %v3486
          %3616 = vst.msk [vmem:[#allocation2 + $0x3d8] sm:$0xff] %vm3492, %v3487
          %3617 = vst.msk [vmem:[#allocation2 + $0x3e0] sm:$0xff] %vm3492, %v3488
          %3618 = vst.msk [vmem:[#allocation2 + $0x3e8] sm:$0xff] %vm3492, %v3489
          %3619 = vst.msk [vmem:[#allocation2 + $0x3f0] sm:$0xff] %vm3492, %v3490
          %3620 = vst.msk [vmem:[#allocation2 + $0x3f8] sm:$0xff] %vm3492, %v3491
          %v3621 = vmax.f32 %v3070, 0.0
          %v3622 = vmax.f32 %v3075, 0.0
          %v3623 = vmax.f32 %v3080, 0.0
          %v3624 = vmax.f32 %v3085, 0.0
          %v3625 = vmax.f32 %v3090, 0.0
          %v3626 = vmax.f32 %v3095, 0.0
          %v3627 = vmax.f32 %v3100, 0.0
          %v3628 = vmax.f32 %v3105, 0.0
          %v3629 = vpack.c.bf16 %v3622, %v3621
          %v3630 = vpack.c.bf16 %v3624, %v3623
          %v3631 = vpack.c.bf16 %v3626, %v3625
          %v3632 = vpack.c.bf16 %v3628, %v3627
          %3633 = vst.msk [vmem:[#allocation2 + $0x400] sm:$0xff] %vm3492, %v3629
          %3634 = vst.msk [vmem:[#allocation2 + $0x408] sm:$0xff] %vm3492, %v3630
          %3635 = vst.msk [vmem:[#allocation2 + $0x410] sm:$0xff] %vm3492, %v3631
          %3636 = vst.msk [vmem:[#allocation2 + $0x418] sm:$0xff] %vm3492, %v3632
          %3637 = vst.msk [vmem:[#allocation3] sm:$0xff] %vm3492, 0.0
          %3638 = vst.msk [vmem:[#allocation3 + $0x8] sm:$0xff] %vm3492, 0.0
          %3639 = vst.msk [vmem:[#allocation3 + $0x10] sm:$0xff] %vm3492, 0.0
          %3640 = vst.msk [vmem:[#allocation3 + $0x18] sm:$0xff] %vm3492, 0.0
          %3641 = vst.msk [vmem:[#allocation3 + $0x20] sm:$0xff] %vm3492, 0.0
          %3642 = vst.msk [vmem:[#allocation3 + $0x28] sm:$0xff] %vm3492, 0.0
          %3643 = vst.msk [vmem:[#allocation3 + $0x30] sm:$0xff] %vm3492, 0.0
          %3644 = vst.msk [vmem:[#allocation3 + $0x38] sm:$0xff] %vm3492, 0.0
          %3645 = vst.msk [vmem:[#allocation3 + $0x40] sm:$0xff] %vm3492, 0.0
          %3646 = vst.msk [vmem:[#allocation3 + $0x48] sm:$0xff] %vm3492, 0.0
          %3647 = vst.msk [vmem:[#allocation3 + $0x50] sm:$0xff] %vm3492, 0.0
          %3648 = vst.msk [vmem:[#allocation3 + $0x58] sm:$0xff] %vm3492, 0.0
          %3649 = vst.msk [vmem:[#allocation3 + $0x60] sm:$0xff] %vm3492, 0.0
          %3650 = vst.msk [vmem:[#allocation3 + $0x68] sm:$0xff] %vm3492, 0.0
          %3651 = vst.msk [vmem:[#allocation3 + $0x70] sm:$0xff] %vm3492, 0.0
          %3652 = vst.msk [vmem:[#allocation3 + $0x78] sm:$0xff] %vm3492, 0.0
          %3653 = vst.msk [vmem:[#allocation3 + $0x80] sm:$0xff] %vm3492, 0.0
          %3654 = vst.msk [vmem:[#allocation3 + $0x88] sm:$0xff] %vm3492, 0.0
          %3655 = vst.msk [vmem:[#allocation3 + $0x90] sm:$0xff] %vm3492, 0.0
          %3656 = vst.msk [vmem:[#allocation3 + $0x98] sm:$0xff] %vm3492, 0.0
          %3657 = vst.msk [vmem:[#allocation3 + $0xa0] sm:$0xff] %vm3492, 0.0
          %3658 = vst.msk [vmem:[#allocation3 + $0xa8] sm:$0xff] %vm3492, 0.0
          %3659 = vst.msk [vmem:[#allocation3 + $0xb0] sm:$0xff] %vm3492, 0.0
          %3660 = vst.msk [vmem:[#allocation3 + $0xb8] sm:$0xff] %vm3492, 0.0
          %3661 = vst.msk [vmem:[#allocation3 + $0xc0] sm:$0xff] %vm3492, 0.0
          %3662 = vst.msk [vmem:[#allocation3 + $0xc8] sm:$0xff] %vm3492, 0.0
          %3663 = vst.msk [vmem:[#allocation3 + $0xd0] sm:$0xff] %vm3492, 0.0
          %3664 = vst.msk [vmem:[#allocation3 + $0xd8] sm:$0xff] %vm3492, 0.0
          %3665 = vst.msk [vmem:[#allocation3 + $0xe0] sm:$0xff] %vm3492, 0.0
          %3666 = vst.msk [vmem:[#allocation3 + $0xe8] sm:$0xff] %vm3492, 0.0
          %3667 = vst.msk [vmem:[#allocation3 + $0xf0] sm:$0xff] %vm3492, 0.0
          %3668 = vst.msk [vmem:[#allocation3 + $0xf8] sm:$0xff] %vm3492, 0.0
          %3669 = vst.msk [vmem:[#allocation3 + $0x100] sm:$0xff] %vm3492, 0.0
          %3670 = vst.msk [vmem:[#allocation3 + $0x108] sm:$0xff] %vm3492, 0.0
          %3671 = vst.msk [vmem:[#allocation3 + $0x110] sm:$0xff] %vm3492, 0.0
          %3672 = vst.msk [vmem:[#allocation3 + $0x118] sm:$0xff] %vm3492, 0.0
          %3673 = vst.msk [vmem:[#allocation3 + $0x120] sm:$0xff] %vm3492, 0.0
          %3674 = vst.msk [vmem:[#allocation3 + $0x128] sm:$0xff] %vm3492, 0.0
          %3675 = vst.msk [vmem:[#allocation3 + $0x130] sm:$0xff] %vm3492, 0.0
          %3676 = vst.msk [vmem:[#allocation3 + $0x138] sm:$0xff] %vm3492, 0.0
          %3677 = vst.msk [vmem:[#allocation3 + $0x140] sm:$0xff] %vm3492, 0.0
          %3678 = vst.msk [vmem:[#allocation3 + $0x148] sm:$0xff] %vm3492, 0.0
          %3679 = vst.msk [vmem:[#allocation3 + $0x150] sm:$0xff] %vm3492, 0.0
          %3680 = vst.msk [vmem:[#allocation3 + $0x158] sm:$0xff] %vm3492, 0.0
          %3681 = vst.msk [vmem:[#allocation3 + $0x160] sm:$0xff] %vm3492, 0.0
          %3682 = vst.msk [vmem:[#allocation3 + $0x168] sm:$0xff] %vm3492, 0.0
          %3683 = vst.msk [vmem:[#allocation3 + $0x170] sm:$0xff] %vm3492, 0.0
          %3684 = vst.msk [vmem:[#allocation3 + $0x178] sm:$0xff] %vm3492, 0.0
          %3685 = vst.msk [vmem:[#allocation3 + $0x180] sm:$0xff] %vm3492, 0.0
          %3686 = vst.msk [vmem:[#allocation3 + $0x188] sm:$0xff] %vm3492, 0.0
          %3687 = vst.msk [vmem:[#allocation3 + $0x190] sm:$0xff] %vm3492, 0.0
          %3688 = vst.msk [vmem:[#allocation3 + $0x198] sm:$0xff] %vm3492, 0.0
          %3689 = vst.msk [vmem:[#allocation3 + $0x1a0] sm:$0xff] %vm3492, 0.0
          %3690 = vst.msk [vmem:[#allocation3 + $0x1a8] sm:$0xff] %vm3492, 0.0
          %3691 = vst.msk [vmem:[#allocation3 + $0x1b0] sm:$0xff] %vm3492, 0.0
          %3692 = vst.msk [vmem:[#allocation3 + $0x1b8] sm:$0xff] %vm3492, 0.0
          %3693 = vst.msk [vmem:[#allocation3 + $0x1c0] sm:$0xff] %vm3492, 0.0
          %3694 = vst.msk [vmem:[#allocation3 + $0x1c8] sm:$0xff] %vm3492, 0.0
          %3695 = vst.msk [vmem:[#allocation3 + $0x1d0] sm:$0xff] %vm3492, 0.0
          %3696 = vst.msk [vmem:[#allocation3 + $0x1d8] sm:$0xff] %vm3492, 0.0
          %3697 = vst.msk [vmem:[#allocation3 + $0x1e0] sm:$0xff] %vm3492, 0.0
          %3698 = vst.msk [vmem:[#allocation3 + $0x1e8] sm:$0xff] %vm3492, 0.0
          %3699 = vst.msk [vmem:[#allocation3 + $0x1f0] sm:$0xff] %vm3492, 0.0
          %3700 = vst.msk [vmem:[#allocation3 + $0x1f8] sm:$0xff] %vm3492, 0.0
        $region88: #{multimodal_forward.1} parent=63 // pred_fallthru
          _
        %v3701 = vld [vmem:[%s418] sm:$0xff]
        %v3702 = vld [vmem:[%s418 + $0x8] sm:$0xff]
        %v3703 = vld [vmem:[%s418 + $0x10] sm:$0xff]
        %v3704 = vld [vmem:[%s418 + $0x18] sm:$0xff]
        %v3705 = vld [vmem:[%s418 + $0x20] sm:$0xff]
        %v3706 = vld [vmem:[%s418 + $0x28] sm:$0xff]
        %v3707 = vld [vmem:[%s418 + $0x30] sm:$0xff]
        %v3708 = vld [vmem:[%s418 + $0x38] sm:$0xff]
        %v3709 = vld [vmem:[%s418 + $0x40] sm:$0xf]
        %v3710 = vld [vmem:[%s418 + $0x44] sm:$0xff]
        %v3711 = vld [vmem:[%s418 + $0x4c] sm:$0xff]
        %v3712 = vld [vmem:[%s418 + $0x54] sm:$0xff]
        %v3713 = vld [vmem:[%s418 + $0x5c] sm:$0xff]
        %v3714 = vld [vmem:[%s418 + $0x64] sm:$0xff]
        %v3715 = vld [vmem:[%s418 + $0x6c] sm:$0xff]
        %v3716 = vld [vmem:[%s418 + $0x74] sm:$0xff]
        %v3717 = vld [vmem:[%s418 + $0x7c] sm:$0xff]
        %v3718 = vld [vmem:[%s418 + $0x84] sm:$0xf]
        %v3719 = vld [vmem:[%s418 + $0x88] sm:$0xff]
        %v3720 = vld [vmem:[%s418 + $0x90] sm:$0xff]
        %v3721 = vld [vmem:[%s418 + $0x98] sm:$0xff]
        %v3722 = vld [vmem:[%s418 + $0xa0] sm:$0xff]
        %v3723 = vld [vmem:[%s418 + $0xa8] sm:$0xff]
        %v3724 = vld [vmem:[%s418 + $0xb0] sm:$0xff]
        %v3725 = vld [vmem:[%s418 + $0xb8] sm:$0xff]
        %v3726 = vld [vmem:[%s418 + $0xc0] sm:$0xff]
        %v3727 = vld [vmem:[%s418 + $0xc8] sm:$0xf]
        %v3728 = vld [vmem:[%s418 + $0xcc] sm:$0xff]
        %v3729 = vld [vmem:[%s418 + $0xd4] sm:$0xff]
        %v3730 = vld [vmem:[%s418 + $0xdc] sm:$0xff]
        %v3731 = vld [vmem:[%s418 + $0xe4] sm:$0xff]
        %v3732 = vld [vmem:[%s418 + $0xec] sm:$0xff]
        %v3733 = vld [vmem:[%s418 + $0xf4] sm:$0xff]
        %v3734 = vld [vmem:[%s418 + $0xfc] sm:$0xff]
        %v3735 = vld [vmem:[%s418 + $0x104] sm:$0xff]
        %v3736 = vld [vmem:[%s418 + $0x10c] sm:$0xf]
        %v3737 = vld [vmem:[%s418 + $0x110] sm:$0xff]
        %v3738 = vld [vmem:[%s418 + $0x118] sm:$0xff]
        %v3739 = vld [vmem:[%s418 + $0x120] sm:$0xff]
        %v3740 = vld [vmem:[%s418 + $0x128] sm:$0xff]
        %v3741 = vld [vmem:[%s418 + $0x130] sm:$0xff]
        %v3742 = vld [vmem:[%s418 + $0x138] sm:$0xff]
        %v3743 = vld [vmem:[%s418 + $0x140] sm:$0xff]
        %v3744 = vld [vmem:[%s418 + $0x148] sm:$0xff]
        %v3745 = vld [vmem:[%s418 + $0x150] sm:$0xf]
        %v3746 = vld [vmem:[%s418 + $0x154] sm:$0xff]
        %v3747 = vld [vmem:[%s418 + $0x15c] sm:$0xff]
        %v3748 = vld [vmem:[%s418 + $0x164] sm:$0xff]
        %v3749 = vld [vmem:[%s418 + $0x16c] sm:$0xff]
        %v3750 = vld [vmem:[%s418 + $0x174] sm:$0xff]
        %v3751 = vld [vmem:[%s418 + $0x17c] sm:$0xff]
        %v3752 = vld [vmem:[%s418 + $0x184] sm:$0xff]
        %v3753 = vld [vmem:[%s418 + $0x18c] sm:$0xff]
        %v3754 = vld [vmem:[%s418 + $0x194] sm:$0xf]
        %v3755 = vld [vmem:[%s418 + $0x198] sm:$0xff]
        %v3756 = vld [vmem:[%s418 + $0x1a0] sm:$0xff]
        %v3757 = vld [vmem:[%s418 + $0x1a8] sm:$0xff]
        %v3758 = vld [vmem:[%s418 + $0x1b0] sm:$0xff]
        %v3759 = vld [vmem:[%s418 + $0x1b8] sm:$0xff]
        %v3760 = vld [vmem:[%s418 + $0x1c0] sm:$0xff]
        %v3761 = vld [vmem:[%s418 + $0x1c8] sm:$0xff]
        %v3762 = vld [vmem:[%s418 + $0x1d0] sm:$0xff]
        %v3763 = vld [vmem:[%s418 + $0x1d8] sm:$0xf]
        %v3764 = vld [vmem:[%s418 + $0x1dc] sm:$0xff]
        %v3765 = vld [vmem:[%s418 + $0x1e4] sm:$0xff]
        %v3766 = vld [vmem:[%s418 + $0x1ec] sm:$0xff]
        %v3767 = vld [vmem:[%s418 + $0x1f4] sm:$0xff]
        %v3768 = vld [vmem:[%s418 + $0x1fc] sm:$0xff]
        %v3769 = vld [vmem:[%s418 + $0x204] sm:$0xff]
        %v3770 = vld [vmem:[%s418 + $0x20c] sm:$0xff]
        %v3771 = vld [vmem:[%s418 + $0x214] sm:$0xff]
        %v3772 = vld [vmem:[%s418 + $0x21c] sm:$0xf]
        %v3773 = vld [vmem:[%s418 + $0x220] sm:$0xff]
        %v3774 = vld [vmem:[%s418 + $0x228] sm:$0xff]
        %v3775 = vld [vmem:[%s418 + $0x230] sm:$0xff]
        %v3776 = vld [vmem:[%s418 + $0x238] sm:$0xff]
        %v3777 = vld [vmem:[%s418 + $0x240] sm:$0xff]
        %v3778 = vld [vmem:[%s418 + $0x248] sm:$0xff]
        %v3779 = vld [vmem:[%s418 + $0x250] sm:$0xff]
        %v3780 = vld [vmem:[%s418 + $0x258] sm:$0xff]
        %v3781 = vld [vmem:[%s418 + $0x260] sm:$0xf]
        %v3782 = vld [vmem:[%s418 + $0x264] sm:$0xff]
        %v3783 = vld [vmem:[%s418 + $0x26c] sm:$0xff]
        %v3784 = vld [vmem:[%s418 + $0x274] sm:$0xff]
        %v3785 = vld [vmem:[%s418 + $0x27c] sm:$0xff]
        %v3786 = vld [vmem:[%s418 + $0x284] sm:$0xff]
        %v3787 = vld [vmem:[%s418 + $0x28c] sm:$0xff]
        %v3788 = vld [vmem:[%s418 + $0x294] sm:$0xff]
        %v3789 = vld [vmem:[%s418 + $0x29c] sm:$0xff]
        %v3790 = vld [vmem:[%s418 + $0x2a4] sm:$0xf]
        %v3791 = vld [vmem:[%s418 + $0x2a8] sm:$0xff]
        %v3792 = vld [vmem:[%s418 + $0x2b0] sm:$0xff]
        %v3793 = vld [vmem:[%s418 + $0x2b8] sm:$0xff]
        %v3794 = vld [vmem:[%s418 + $0x2c0] sm:$0xff]
        %v3795 = vld [vmem:[%s418 + $0x2c8] sm:$0xff]
        %v3796 = vld [vmem:[%s418 + $0x2d0] sm:$0xff]
        %v3797 = vld [vmem:[%s418 + $0x2d8] sm:$0xff]
        %v3798 = vld [vmem:[%s418 + $0x2e0] sm:$0xff]
        %v3799 = vld [vmem:[%s418 + $0x2e8] sm:$0xf]
        %v3800 = vld [vmem:[%s418 + $0x2ec] sm:$0xff]
        %v3801 = vld [vmem:[%s418 + $0x2f4] sm:$0xff]
        %v3802 = vld [vmem:[%s418 + $0x2fc] sm:$0xff]
        %v3803 = vld [vmem:[%s418 + $0x304] sm:$0xff]
        %v3804 = vld [vmem:[%s418 + $0x30c] sm:$0xff]
        %v3805 = vld [vmem:[%s418 + $0x314] sm:$0xff]
        %v3806 = vld [vmem:[%s418 + $0x31c] sm:$0xff]
        %v3807 = vld [vmem:[%s418 + $0x324] sm:$0xff]
        %v3808 = vld [vmem:[%s418 + $0x32c] sm:$0xf]
        %v3809 = vld [vmem:[%s418 + $0x330] sm:$0xff]
        %v3810 = vld [vmem:[%s418 + $0x338] sm:$0xff]
        %v3811 = vld [vmem:[%s418 + $0x340] sm:$0xff]
        %v3812 = vld [vmem:[%s418 + $0x348] sm:$0xff]
        %v3813 = vld [vmem:[%s418 + $0x350] sm:$0xff]
        %v3814 = vld [vmem:[%s418 + $0x358] sm:$0xff]
        %v3815 = vld [vmem:[%s418 + $0x360] sm:$0xff]
        %v3816 = vld [vmem:[%s418 + $0x368] sm:$0xff]
        %v3817 = vld [vmem:[%s418 + $0x370] sm:$0xf]
        %v3818 = vld [vmem:[%s418 + $0x374] sm:$0xff]
        %v3819 = vld [vmem:[%s418 + $0x37c] sm:$0xff]
        %v3820 = vld [vmem:[%s418 + $0x384] sm:$0xff]
        %v3821 = vld [vmem:[%s418 + $0x38c] sm:$0xff]
        %v3822 = vld [vmem:[%s418 + $0x394] sm:$0xff]
        %v3823 = vld [vmem:[%s418 + $0x39c] sm:$0xff]
        %v3824 = vld [vmem:[%s418 + $0x3a4] sm:$0xff]
        %v3825 = vld [vmem:[%s418 + $0x3ac] sm:$0xff]
        %v3826 = vld [vmem:[%s418 + $0x3b4] sm:$0xf]
        %v3827 = vld [vmem:[%s418 + $0x3b8] sm:$0xff]
        %v3828 = vld [vmem:[%s418 + $0x3c0] sm:$0xff]
        %v3829 = vld [vmem:[%s418 + $0x3c8] sm:$0xff]
        %v3830 = vld [vmem:[%s418 + $0x3d0] sm:$0xff]
        %v3831 = vld [vmem:[%s418 + $0x3d8] sm:$0xff]
        %v3832 = vld [vmem:[%s418 + $0x3e0] sm:$0xff]
        %v3833 = vld [vmem:[%s418 + $0x3e8] sm:$0xff]
        %v3834 = vld [vmem:[%s418 + $0x3f0] sm:$0xff]
        %v3835 = vld [vmem:[%s418 + $0x3f8] sm:$0xf]
        %v3836 = vld [vmem:[%s418 + $0x3fc] sm:$0xff]
        %v3837 = vld [vmem:[%s418 + $0x404] sm:$0xff]
        %v3838 = vld [vmem:[%s418 + $0x40c] sm:$0xff]
        %v3839 = vld [vmem:[%s418 + $0x414] sm:$0xff]
        %v3840 = vld [vmem:[%s418 + $0x41c] sm:$0xff]
        %v3841 = vld [vmem:[%s418 + $0x424] sm:$0xff]
        %v3842 = vld [vmem:[%s418 + $0x42c] sm:$0xff]
        %v3843 = vld [vmem:[%s418 + $0x434] sm:$0xff]
        %v3844 = vld [vmem:[%s418 + $0x43c] sm:$0xf]
        %v3845 = vld [vmem:[%s418 + $0x440] sm:$0xff]
        %v3846 = vld [vmem:[%s418 + $0x448] sm:$0xff]
        %v3847 = vld [vmem:[%s418 + $0x450] sm:$0xff]
        %v3848 = vld [vmem:[%s418 + $0x458] sm:$0xff]
        %v3849 = vld [vmem:[%s418 + $0x460] sm:$0xff]
        %v3850 = vld [vmem:[%s418 + $0x468] sm:$0xff]
        %v3851 = vld [vmem:[%s418 + $0x470] sm:$0xff]
        %v3852 = vld [vmem:[%s418 + $0x478] sm:$0xff]
        %v3853 = vld [vmem:[%s418 + $0x480] sm:$0xf]
        %v3854 = vld [vmem:[%s418 + $0x484] sm:$0xff]
        %v3855 = vld [vmem:[%s418 + $0x48c] sm:$0xff]
        %v3856 = vld [vmem:[%s418 + $0x494] sm:$0xff]
        %v3857 = vld [vmem:[%s418 + $0x49c] sm:$0xff]
        %v3858 = vld [vmem:[%s418 + $0x4a4] sm:$0xff]
        %v3859 = vld [vmem:[%s418 + $0x4ac] sm:$0xff]
        %v3860 = vld [vmem:[%s418 + $0x4b4] sm:$0xff]
        %v3861 = vld [vmem:[%s418 + $0x4bc] sm:$0xff]
        %v3862 = vld [vmem:[%s418 + $0x4c4] sm:$0xf]
        %v3863 = vld [vmem:[%s418 + $0x4c8] sm:$0xff]
        %v3864 = vld [vmem:[%s418 + $0x4d0] sm:$0xff]
        %v3865 = vld [vmem:[%s418 + $0x4d8] sm:$0xff]
        %v3866 = vld [vmem:[%s418 + $0x4e0] sm:$0xff]
        %v3867 = vld [vmem:[%s418 + $0x4e8] sm:$0xff]
        %v3868 = vld [vmem:[%s418 + $0x4f0] sm:$0xff]
        %v3869 = vld [vmem:[%s418 + $0x4f8] sm:$0xff]
        %v3870 = vld [vmem:[%s418 + $0x500] sm:$0xff]
        %v3871 = vld [vmem:[%s418 + $0x508] sm:$0xf]
        %v3872 = vld [vmem:[%s418 + $0x50c] sm:$0xff]
        %v3873 = vld [vmem:[%s418 + $0x514] sm:$0xff]
        %v3874 = vld [vmem:[%s418 + $0x51c] sm:$0xff]
        %v3875 = vld [vmem:[%s418 + $0x524] sm:$0xff]
        %v3876 = vld [vmem:[%s418 + $0x52c] sm:$0xff]
        %v3877 = vld [vmem:[%s418 + $0x534] sm:$0xff]
        %v3878 = vld [vmem:[%s418 + $0x53c] sm:$0xff]
        %v3879 = vld [vmem:[%s418 + $0x544] sm:$0xff]
        %v3880 = vld [vmem:[%s418 + $0x54c] sm:$0xf]
        %v3881 = vld [vmem:[%s418 + $0x550] sm:$0xff]
        %v3882 = vld [vmem:[%s418 + $0x558] sm:$0xff]
        %v3883 = vld [vmem:[%s418 + $0x560] sm:$0xff]
        %v3884 = vld [vmem:[%s418 + $0x568] sm:$0xff]
        %v3885 = vld [vmem:[%s418 + $0x570] sm:$0xff]
        %v3886 = vld [vmem:[%s418 + $0x578] sm:$0xff]
        %v3887 = vld [vmem:[%s418 + $0x580] sm:$0xff]
        %v3888 = vld [vmem:[%s418 + $0x588] sm:$0xff]
        %v3889 = vld [vmem:[%s418 + $0x590] sm:$0xf]
        %v3890 = vld [vmem:[%s418 + $0x594] sm:$0xff]
        %v3891 = vld [vmem:[%s418 + $0x59c] sm:$0xff]
        %v3892 = vld [vmem:[%s418 + $0x5a4] sm:$0xff]
        %v3893 = vld [vmem:[%s418 + $0x5ac] sm:$0xff]
        %v3894 = vld [vmem:[%s418 + $0x5b4] sm:$0xff]
        %v3895 = vld [vmem:[%s418 + $0x5bc] sm:$0xff]
        %v3896 = vld [vmem:[%s418 + $0x5c4] sm:$0xff]
        %v3897 = vld [vmem:[%s418 + $0x5cc] sm:$0xff]
        %v3898 = vld [vmem:[%s418 + $0x5d4] sm:$0xf]
        %v3899 = vld [vmem:[%s418 + $0x5d8] sm:$0xff]
        %v3900 = vld [vmem:[%s418 + $0x5e0] sm:$0xff]
        %v3901 = vld [vmem:[%s418 + $0x5e8] sm:$0xff]
        %v3902 = vld [vmem:[%s418 + $0x5f0] sm:$0xff]
        %v3903 = vld [vmem:[%s418 + $0x5f8] sm:$0xff]
        %v3904 = vld [vmem:[%s418 + $0x600] sm:$0xff]
        %v3905 = vld [vmem:[%s418 + $0x608] sm:$0xff]
        %v3906 = vld [vmem:[%s418 + $0x610] sm:$0xff]
        %v3907 = vld [vmem:[%s418 + $0x618] sm:$0xf]
        %v3908 = vld [vmem:[%s418 + $0x61c] sm:$0xff]
        %v3909 = vld [vmem:[%s418 + $0x624] sm:$0xff]
        %v3910 = vld [vmem:[%s418 + $0x62c] sm:$0xff]
        %v3911 = vld [vmem:[%s418 + $0x634] sm:$0xff]
        %v3912 = vld [vmem:[%s418 + $0x63c] sm:$0xff]
        %v3913 = vld [vmem:[%s418 + $0x644] sm:$0xff]
        %v3914 = vld [vmem:[%s418 + $0x64c] sm:$0xff]
        %v3915 = vld [vmem:[%s418 + $0x654] sm:$0xff]
        %v3916 = vld [vmem:[%s418 + $0x65c] sm:$0xf]
        %v3917 = vld [vmem:[%s418 + $0x660] sm:$0xff]
        %v3918 = vld [vmem:[%s418 + $0x668] sm:$0xff]
        %v3919 = vld [vmem:[%s418 + $0x670] sm:$0xff]
        %v3920 = vld [vmem:[%s418 + $0x678] sm:$0xff]
        %v3921 = vld [vmem:[%s418 + $0x680] sm:$0xff]
        %v3922 = vld [vmem:[%s418 + $0x688] sm:$0xff]
        %v3923 = vld [vmem:[%s418 + $0x690] sm:$0xff]
        %v3924 = vld [vmem:[%s418 + $0x698] sm:$0xff]
        %v3925 = vld [vmem:[%s418 + $0x6a0] sm:$0xf]
        %v3926 = vld [vmem:[%s418 + $0x6a4] sm:$0xff]
        %v3927 = vld [vmem:[%s418 + $0x6ac] sm:$0xff]
        %v3928 = vld [vmem:[%s418 + $0x6b4] sm:$0xff]
        %v3929 = vld [vmem:[%s418 + $0x6bc] sm:$0xff]
        %v3930 = vld [vmem:[%s418 + $0x6c4] sm:$0xff]
        %v3931 = vld [vmem:[%s418 + $0x6cc] sm:$0xff]
        %v3932 = vld [vmem:[%s418 + $0x6d4] sm:$0xff]
        %v3933 = vld [vmem:[%s418 + $0x6dc] sm:$0xff]
        %v3934 = vld [vmem:[%s418 + $0x6e4] sm:$0xf]
        %v3935 = vld [vmem:[%s418 + $0x6e8] sm:$0xff]
        %v3936 = vld [vmem:[%s418 + $0x6f0] sm:$0xff]
        %v3937 = vld [vmem:[%s418 + $0x6f8] sm:$0xff]
        %v3938 = vld [vmem:[%s418 + $0x700] sm:$0xff]
        %v3939 = vld [vmem:[%s418 + $0x708] sm:$0xff]
        %v3940 = vld [vmem:[%s418 + $0x710] sm:$0xff]
        %v3941 = vld [vmem:[%s418 + $0x718] sm:$0xff]
        %v3942 = vld [vmem:[%s418 + $0x720] sm:$0xff]
        %v3943 = vld [vmem:[%s418 + $0x728] sm:$0xf]
        %v3944 = vld [vmem:[%s418 + $0x72c] sm:$0xff]
        %v3945 = vld [vmem:[%s418 + $0x734] sm:$0xff]
        %v3946 = vld [vmem:[%s418 + $0x73c] sm:$0xff]
        %v3947 = vld [vmem:[%s418 + $0x744] sm:$0xff]
        %v3948 = vld [vmem:[%s418 + $0x74c] sm:$0xff]
        %v3949 = vld [vmem:[%s418 + $0x754] sm:$0xff]
        %v3950 = vld [vmem:[%s418 + $0x75c] sm:$0xff]
        %v3951 = vld [vmem:[%s418 + $0x764] sm:$0xff]
        %v3952 = vld [vmem:[%s418 + $0x76c] sm:$0xf]
        %v3953 = vld [vmem:[%s418 + $0x770] sm:$0xff]
        %v3954 = vld [vmem:[%s418 + $0x778] sm:$0xff]
        %v3955 = vld [vmem:[%s418 + $0x780] sm:$0xff]
        %v3956 = vld [vmem:[%s418 + $0x788] sm:$0xff]
        %v3957 = vld [vmem:[%s418 + $0x790] sm:$0xff]
        %v3958 = vld [vmem:[%s418 + $0x798] sm:$0xff]
        %v3959 = vld [vmem:[%s418 + $0x7a0] sm:$0xff]
        %v3960 = vld [vmem:[%s418 + $0x7a8] sm:$0xff]
        %v3961 = vld [vmem:[%s418 + $0x7b0] sm:$0xf]
        %v3962 = vld [vmem:[%s418 + $0x7b4] sm:$0xff]
        %v3963 = vld [vmem:[%s418 + $0x7bc] sm:$0xff]
        %v3964 = vld [vmem:[%s418 + $0x7c4] sm:$0xff]
        %v3965 = vld [vmem:[%s418 + $0x7cc] sm:$0xff]
        %v3966 = vld [vmem:[%s418 + $0x7d4] sm:$0xff]
        %v3967 = vld [vmem:[%s418 + $0x7dc] sm:$0xff]
        %v3968 = vld [vmem:[%s418 + $0x7e4] sm:$0xff]
        %v3969 = vld [vmem:[%s418 + $0x7ec] sm:$0xff]
        %v3970 = vld [vmem:[%s418 + $0x7f4] sm:$0xf]
        %v3971 = vld [vmem:[%s418 + $0x7f8] sm:$0xff]
        %v3972 = vld [vmem:[%s418 + $0x800] sm:$0xff]
        %v3973 = vld [vmem:[%s418 + $0x808] sm:$0xff]
        %v3974 = vld [vmem:[%s418 + $0x810] sm:$0xff]
        %v3975 = vld [vmem:[%s418 + $0x818] sm:$0xff]
        %v3976 = vld [vmem:[%s418 + $0x820] sm:$0xff]
        %v3977 = vld [vmem:[%s418 + $0x828] sm:$0xff]
        %v3978 = vld [vmem:[%s418 + $0x830] sm:$0xff]
        %v3979 = vld [vmem:[%s418 + $0x838] sm:$0xf]
        %v3980 = vld [vmem:[%s418 + $0x83c] sm:$0xff]
        %v3981 = vld [vmem:[%s418 + $0x844] sm:$0xff]
        %v3982 = vld [vmem:[%s418 + $0x84c] sm:$0xff]
        %v3983 = vld [vmem:[%s418 + $0x854] sm:$0xff]
        %v3984 = vld [vmem:[%s418 + $0x85c] sm:$0xff]
        %v3985 = vld [vmem:[%s418 + $0x864] sm:$0xff]
        %v3986 = vld [vmem:[%s418 + $0x86c] sm:$0xff]
        %v3987 = vld [vmem:[%s418 + $0x874] sm:$0xff]
        %v3988 = vld [vmem:[%s418 + $0x87c] sm:$0xf]
        %v3989 = vld [vmem:[%s418 + $0x880] sm:$0xff]
        %v3990 = vld [vmem:[%s418 + $0x888] sm:$0xff]
        %v3991 = vld [vmem:[%s418 + $0x890] sm:$0xff]
        %v3992 = vld [vmem:[%s418 + $0x898] sm:$0xff]
        %v3993 = vld [vmem:[%s418 + $0x8a0] sm:$0xff]
        %v3994 = vld [vmem:[%s418 + $0x8a8] sm:$0xff]
        %v3995 = vld [vmem:[%s418 + $0x8b0] sm:$0xff]
        %v3996 = vld [vmem:[%s418 + $0x8b8] sm:$0xff]
        %v3997 = vld [vmem:[%s418 + $0x8c0] sm:$0xf]
        %v3998 = vld [vmem:[%s418 + $0x8c4] sm:$0xff]
        %v3999 = vld [vmem:[%s418 + $0x8cc] sm:$0xff]
        %v4000 = vld [vmem:[%s418 + $0x8d4] sm:$0xff]
        %v4001 = vld [vmem:[%s418 + $0x8dc] sm:$0xff]
        %v4002 = vld [vmem:[%s418 + $0x8e4] sm:$0xff]
        %v4003 = vld [vmem:[%s418 + $0x8ec] sm:$0xff]
        %v4004 = vld [vmem:[%s418 + $0x8f4] sm:$0xff]
        %v4005 = vld [vmem:[%s418 + $0x8fc] sm:$0xff]
        %v4006 = vld [vmem:[%s418 + $0x904] sm:$0xf]
        %v4007 = vld [vmem:[%s418 + $0x908] sm:$0xff]
        %v4008 = vld [vmem:[%s418 + $0x910] sm:$0xff]
        %v4009 = vld [vmem:[%s418 + $0x918] sm:$0xff]
        %v4010 = vld [vmem:[%s418 + $0x920] sm:$0xff]
        %v4011 = vld [vmem:[%s418 + $0x928] sm:$0xff]
        %v4012 = vld [vmem:[%s418 + $0x930] sm:$0xff]
        %v4013 = vld [vmem:[%s418 + $0x938] sm:$0xff]
        %v4014 = vld [vmem:[%s418 + $0x940] sm:$0xff]
        %v4015 = vld [vmem:[%s418 + $0x948] sm:$0xf]
        %v4016 = vld [vmem:[%s418 + $0x94c] sm:$0xff]
        %v4017 = vld [vmem:[%s418 + $0x954] sm:$0xff]
        %v4018 = vld [vmem:[%s418 + $0x95c] sm:$0xff]
        %v4019 = vld [vmem:[%s418 + $0x964] sm:$0xff]
        %v4020 = vld [vmem:[%s418 + $0x96c] sm:$0xff]
        %v4021 = vld [vmem:[%s418 + $0x974] sm:$0xff]
        %v4022 = vld [vmem:[%s418 + $0x97c] sm:$0xff]
        %v4023 = vld [vmem:[%s418 + $0x984] sm:$0xff]
        %v4024 = vld [vmem:[%s418 + $0x98c] sm:$0xf]
        %v4025 = vld [vmem:[%s418 + $0x990] sm:$0xff]
        %v4026 = vld [vmem:[%s418 + $0x998] sm:$0xff]
        %v4027 = vld [vmem:[%s418 + $0x9a0] sm:$0xff]
        %v4028 = vld [vmem:[%s418 + $0x9a8] sm:$0xff]
        %v4029 = vld [vmem:[%s418 + $0x9b0] sm:$0xff]
        %v4030 = vld [vmem:[%s418 + $0x9b8] sm:$0xff]
        %v4031 = vld [vmem:[%s418 + $0x9c0] sm:$0xff]
        %v4032 = vld [vmem:[%s418 + $0x9c8] sm:$0xff]
        %v4033 = vld [vmem:[%s418 + $0x9d0] sm:$0xf]
        %v4034 = vld [vmem:[%s418 + $0x9d4] sm:$0xff]
        %v4035 = vld [vmem:[%s418 + $0x9dc] sm:$0xff]
        %v4036 = vld [vmem:[%s418 + $0x9e4] sm:$0xff]
        %v4037 = vld [vmem:[%s418 + $0x9ec] sm:$0xff]
        %v4038 = vld [vmem:[%s418 + $0x9f4] sm:$0xff]
        %v4039 = vld [vmem:[%s418 + $0x9fc] sm:$0xff]
        %v4040 = vld [vmem:[%s418 + $0xa04] sm:$0xff]
        %v4041 = vld [vmem:[%s418 + $0xa0c] sm:$0xff]
        %v4042 = vld [vmem:[%s418 + $0xa14] sm:$0xf]
        %v4043 = vld [vmem:[%s418 + $0xa18] sm:$0xff]
        %v4044 = vld [vmem:[%s418 + $0xa20] sm:$0xff]
        %v4045 = vld [vmem:[%s418 + $0xa28] sm:$0xff]
        %v4046 = vld [vmem:[%s418 + $0xa30] sm:$0xff]
        %v4047 = vld [vmem:[%s418 + $0xa38] sm:$0xff]
        %v4048 = vld [vmem:[%s418 + $0xa40] sm:$0xff]
        %v4049 = vld [vmem:[%s418 + $0xa48] sm:$0xff]
        %v4050 = vld [vmem:[%s418 + $0xa50] sm:$0xff]
        %v4051 = vld [vmem:[%s418 + $0xa58] sm:$0xf]
        %v4052 = vld [vmem:[%s418 + $0xa5c] sm:$0xff]
        %v4053 = vld [vmem:[%s418 + $0xa64] sm:$0xff]
        %v4054 = vld [vmem:[%s418 + $0xa6c] sm:$0xff]
        %v4055 = vld [vmem:[%s418 + $0xa74] sm:$0xff]
        %v4056 = vld [vmem:[%s418 + $0xa7c] sm:$0xff]
        %v4057 = vld [vmem:[%s418 + $0xa84] sm:$0xff]
        %v4058 = vld [vmem:[%s418 + $0xa8c] sm:$0xff]
        %v4059 = vld [vmem:[%s418 + $0xa94] sm:$0xff]
        %v4060 = vld [vmem:[%s418 + $0xa9c] sm:$0xf]
        %v4061 = vld [vmem:[%s418 + $0xaa0] sm:$0xff]
        %v4062 = vld [vmem:[%s418 + $0xaa8] sm:$0xff]
        %v4063 = vld [vmem:[%s418 + $0xab0] sm:$0xff]
        %v4064 = vld [vmem:[%s418 + $0xab8] sm:$0xff]
        %v4065 = vld [vmem:[%s418 + $0xac0] sm:$0xff]
        %v4066 = vld [vmem:[%s418 + $0xac8] sm:$0xff]
        %v4067 = vld [vmem:[%s418 + $0xad0] sm:$0xff]
        %v4068 = vld [vmem:[%s418 + $0xad8] sm:$0xff]
        %v4069 = vld [vmem:[%s418 + $0xae0] sm:$0xf]
        %v4070 = vld [vmem:[%s418 + $0xae4] sm:$0xff]
        %v4071 = vld [vmem:[%s418 + $0xaec] sm:$0xff]
        %v4072 = vld [vmem:[%s418 + $0xaf4] sm:$0xff]
        %v4073 = vld [vmem:[%s418 + $0xafc] sm:$0xff]
        %v4074 = vld [vmem:[%s418 + $0xb04] sm:$0xff]
        %v4075 = vld [vmem:[%s418 + $0xb0c] sm:$0xff]
        %v4076 = vld [vmem:[%s418 + $0xb14] sm:$0xff]
        %v4077 = vld [vmem:[%s418 + $0xb1c] sm:$0xff]
        %v4078 = vld [vmem:[%s418 + $0xb24] sm:$0xf]
        %v4079 = vld [vmem:[%s418 + $0xb28] sm:$0xff]
        %v4080 = vld [vmem:[%s418 + $0xb30] sm:$0xff]
        %v4081 = vld [vmem:[%s418 + $0xb38] sm:$0xff]
        %v4082 = vld [vmem:[%s418 + $0xb40] sm:$0xff]
        %v4083 = vld [vmem:[%s418 + $0xb48] sm:$0xff]
        %v4084 = vld [vmem:[%s418 + $0xb50] sm:$0xff]
        %v4085 = vld [vmem:[%s418 + $0xb58] sm:$0xff]
        %v4086 = vld [vmem:[%s418 + $0xb60] sm:$0xff]
        %v4087 = vld [vmem:[%s418 + $0xb68] sm:$0xf]
        %v4088 = vld [vmem:[%s418 + $0xb6c] sm:$0xff]
        %v4089 = vld [vmem:[%s418 + $0xb74] sm:$0xff]
        %v4090 = vld [vmem:[%s418 + $0xb7c] sm:$0xff]
        %v4091 = vld [vmem:[%s418 + $0xb84] sm:$0xff]
        %v4092 = vld [vmem:[%s418 + $0xb8c] sm:$0xff]
        %v4093 = vld [vmem:[%s418 + $0xb94] sm:$0xff]
        %v4094 = vld [vmem:[%s418 + $0xb9c] sm:$0xff]
        %v4095 = vld [vmem:[%s418 + $0xba4] sm:$0xff]
        %v4096 = vld [vmem:[%s418 + $0xbac] sm:$0xf]
        %v4097 = vld [vmem:[#allocation2] sm:$0xff]
        %v4098 = vld [vmem:[#allocation2 + $0x8] sm:$0xff]
        %v4099 = vld [vmem:[#allocation2 + $0x10] sm:$0xff]
        %v4100 = vld [vmem:[#allocation2 + $0x18] sm:$0xff]
        %v4101 = vld [vmem:[#allocation2 + $0x20] sm:$0xff]
        %v4102 = vld [vmem:[#allocation2 + $0x28] sm:$0xff]
        %v4103 = vld [vmem:[#allocation2 + $0x30] sm:$0xff]
        %v4104 = vld [vmem:[#allocation2 + $0x38] sm:$0xff]
        %v4105 = vld [vmem:[#allocation2 + $0x40] sm:$0xff]
        %v4106 = vld [vmem:[#allocation2 + $0x48] sm:$0xff]
        %v4107 = vld [vmem:[#allocation2 + $0x50] sm:$0xff]
        %v4108 = vld [vmem:[#allocation2 + $0x58] sm:$0xff]
        %v4109 = vld [vmem:[#allocation2 + $0x60] sm:$0xff]
        %v4110 = vld [vmem:[#allocation2 + $0x68] sm:$0xff]
        %v4111 = vld [vmem:[#allocation2 + $0x70] sm:$0xff]
        %v4112 = vld [vmem:[#allocation2 + $0x78] sm:$0xff]
        %v4113 = vld [vmem:[#allocation2 + $0x80] sm:$0xff]
        %v4114 = vld [vmem:[#allocation2 + $0x88] sm:$0xff]
        %v4115 = vld [vmem:[#allocation2 + $0x90] sm:$0xff]
        %v4116 = vld [vmem:[#allocation2 + $0x98] sm:$0xff]
        %v4117 = vld [vmem:[#allocation2 + $0xa0] sm:$0xff]
        %v4118 = vld [vmem:[#allocation2 + $0xa8] sm:$0xff]
        %v4119 = vld [vmem:[#allocation2 + $0xb0] sm:$0xff]
        %v4120 = vld [vmem:[#allocation2 + $0xb8] sm:$0xff]
        %v4121 = vld [vmem:[#allocation2 + $0xc0] sm:$0xff]
        %v4122 = vld [vmem:[#allocation2 + $0xc8] sm:$0xff]
        %v4123 = vld [vmem:[#allocation2 + $0xd0] sm:$0xff]
        %v4124 = vld [vmem:[#allocation2 + $0xd8] sm:$0xff]
        %v4125 = vld [vmem:[#allocation2 + $0xe0] sm:$0xff]
        %v4126 = vld [vmem:[#allocation2 + $0xe8] sm:$0xff]
        %v4127 = vld [vmem:[#allocation2 + $0xf0] sm:$0xff]
        %v4128 = vld [vmem:[#allocation2 + $0xf8] sm:$0xff]
        %v4129 = vld [vmem:[#allocation2 + $0x100] sm:$0xff]
        %v4130 = vld [vmem:[#allocation2 + $0x108] sm:$0xff]
        %v4131 = vld [vmem:[#allocation2 + $0x110] sm:$0xff]
        %v4132 = vld [vmem:[#allocation2 + $0x118] sm:$0xff]
        %v4133 = vld [vmem:[#allocation2 + $0x120] sm:$0xff]
        %v4134 = vld [vmem:[#allocation2 + $0x128] sm:$0xff]
        %v4135 = vld [vmem:[#allocation2 + $0x130] sm:$0xff]
        %v4136 = vld [vmem:[#allocation2 + $0x138] sm:$0xff]
        %v4137 = vld [vmem:[#allocation2 + $0x140] sm:$0xff]
        %v4138 = vld [vmem:[#allocation2 + $0x148] sm:$0xff]
        %v4139 = vld [vmem:[#allocation2 + $0x150] sm:$0xff]
        %v4140 = vld [vmem:[#allocation2 + $0x158] sm:$0xff]
        %v4141 = vld [vmem:[#allocation2 + $0x160] sm:$0xff]
        %v4142 = vld [vmem:[#allocation2 + $0x168] sm:$0xff]
        %v4143 = vld [vmem:[#allocation2 + $0x170] sm:$0xff]
        %v4144 = vld [vmem:[#allocation2 + $0x178] sm:$0xff]
        %v4145 = vld [vmem:[#allocation2 + $0x180] sm:$0xff]
        %v4146 = vld [vmem:[#allocation2 + $0x188] sm:$0xff]
        %v4147 = vld [vmem:[#allocation2 + $0x190] sm:$0xff]
        %v4148 = vld [vmem:[#allocation2 + $0x198] sm:$0xff]
        %v4149 = vld [vmem:[#allocation2 + $0x1a0] sm:$0xff]
        %v4150 = vld [vmem:[#allocation2 + $0x1a8] sm:$0xff]
        %v4151 = vld [vmem:[#allocation2 + $0x1b0] sm:$0xff]
        %v4152 = vld [vmem:[#allocation2 + $0x1b8] sm:$0xff]
        %v4153 = vld [vmem:[#allocation2 + $0x1c0] sm:$0xff]
        %v4154 = vld [vmem:[#allocation2 + $0x1c8] sm:$0xff]
        %v4155 = vld [vmem:[#allocation2 + $0x1d0] sm:$0xff]
        %v4156 = vld [vmem:[#allocation2 + $0x1d8] sm:$0xff]
        %v4157 = vld [vmem:[#allocation2 + $0x1e0] sm:$0xff]
        %v4158 = vld [vmem:[#allocation2 + $0x1e8] sm:$0xff]
        %v4159 = vld [vmem:[#allocation2 + $0x1f0] sm:$0xff]
        %v4160 = vld [vmem:[#allocation2 + $0x1f8] sm:$0xff]
        %v4161 = vld [vmem:[#allocation2 + $0x200] sm:$0xff]
        %v4162 = vld [vmem:[#allocation2 + $0x208] sm:$0xff]
        %v4163 = vld [vmem:[#allocation2 + $0x210] sm:$0xff]
        %v4164 = vld [vmem:[#allocation2 + $0x218] sm:$0xff]
        %v4165 = vld [vmem:[#allocation2 + $0x220] sm:$0xff]
        %v4166 = vld [vmem:[#allocation2 + $0x228] sm:$0xff]
        %v4167 = vld [vmem:[#allocation2 + $0x230] sm:$0xff]
        %v4168 = vld [vmem:[#allocation2 + $0x238] sm:$0xff]
        %v4169 = vld [vmem:[#allocation2 + $0x240] sm:$0xff]
        %v4170 = vld [vmem:[#allocation2 + $0x248] sm:$0xff]
        %v4171 = vld [vmem:[#allocation2 + $0x250] sm:$0xff]
        %v4172 = vld [vmem:[#allocation2 + $0x258] sm:$0xff]
        %v4173 = vld [vmem:[#allocation2 + $0x260] sm:$0xff]
        %v4174 = vld [vmem:[#allocation2 + $0x268] sm:$0xff]
        %v4175 = vld [vmem:[#allocation2 + $0x270] sm:$0xff]
        %v4176 = vld [vmem:[#allocation2 + $0x278] sm:$0xff]
        %v4177 = vld [vmem:[#allocation2 + $0x280] sm:$0xff]
        %v4178 = vld [vmem:[#allocation2 + $0x288] sm:$0xff]
        %v4179 = vld [vmem:[#allocation2 + $0x290] sm:$0xff]
        %v4180 = vld [vmem:[#allocation2 + $0x298] sm:$0xff]
        %v4181 = vld [vmem:[#allocation2 + $0x2a0] sm:$0xff]
        %v4182 = vld [vmem:[#allocation2 + $0x2a8] sm:$0xff]
        %v4183 = vld [vmem:[#allocation2 + $0x2b0] sm:$0xff]
        %v4184 = vld [vmem:[#allocation2 + $0x2b8] sm:$0xff]
        %v4185 = vld [vmem:[#allocation2 + $0x2c0] sm:$0xff]
        %v4186 = vld [vmem:[#allocation2 + $0x2c8] sm:$0xff]
        %v4187 = vld [vmem:[#allocation2 + $0x2d0] sm:$0xff]
        %v4188 = vld [vmem:[#allocation2 + $0x2d8] sm:$0xff]
        %v4189 = vld [vmem:[#allocation2 + $0x2e0] sm:$0xff]
        %v4190 = vld [vmem:[#allocation2 + $0x2e8] sm:$0xff]
        %v4191 = vld [vmem:[#allocation2 + $0x2f0] sm:$0xff]
        %v4192 = vld [vmem:[#allocation2 + $0x2f8] sm:$0xff]
        %v4193 = vld [vmem:[#allocation2 + $0x300] sm:$0xff]
        %v4194 = vld [vmem:[#allocation2 + $0x308] sm:$0xff]
        %v4195 = vld [vmem:[#allocation2 + $0x310] sm:$0xff]
        %v4196 = vld [vmem:[#allocation2 + $0x318] sm:$0xff]
        %v4197 = vld [vmem:[#allocation2 + $0x320] sm:$0xff]
        %v4198 = vld [vmem:[#allocation2 + $0x328] sm:$0xff]
        %v4199 = vld [vmem:[#allocation2 + $0x330] sm:$0xff]
        %v4200 = vld [vmem:[#allocation2 + $0x338] sm:$0xff]
        %v4201 = vld [vmem:[#allocation2 + $0x340] sm:$0xff]
        %v4202 = vld [vmem:[#allocation2 + $0x348] sm:$0xff]
        %v4203 = vld [vmem:[#allocation2 + $0x350] sm:$0xff]
        %v4204 = vld [vmem:[#allocation2 + $0x358] sm:$0xff]
        %v4205 = vld [vmem:[#allocation2 + $0x360] sm:$0xff]
        %v4206 = vld [vmem:[#allocation2 + $0x368] sm:$0xff]
        %v4207 = vld [vmem:[#allocation2 + $0x370] sm:$0xff]
        %v4208 = vld [vmem:[#allocation2 + $0x378] sm:$0xff]
        %v4209 = vld [vmem:[#allocation2 + $0x380] sm:$0xff]
        %v4210 = vld [vmem:[#allocation2 + $0x388] sm:$0xff]
        %v4211 = vld [vmem:[#allocation2 + $0x390] sm:$0xff]
        %v4212 = vld [vmem:[#allocation2 + $0x398] sm:$0xff]
        %v4213 = vld [vmem:[#allocation2 + $0x3a0] sm:$0xff]
        %v4214 = vld [vmem:[#allocation2 + $0x3a8] sm:$0xff]
        %v4215 = vld [vmem:[#allocation2 + $0x3b0] sm:$0xff]
        %v4216 = vld [vmem:[#allocation2 + $0x3b8] sm:$0xff]
        %v4217 = vld [vmem:[#allocation2 + $0x3c0] sm:$0xff]
        %v4218 = vld [vmem:[#allocation2 + $0x3c8] sm:$0xff]
        %v4219 = vld [vmem:[#allocation2 + $0x3d0] sm:$0xff]
        %v4220 = vld [vmem:[#allocation2 + $0x3d8] sm:$0xff]
        %v4221 = vld [vmem:[#allocation2 + $0x3e0] sm:$0xff]
        %v4222 = vld [vmem:[#allocation2 + $0x3e8] sm:$0xff]
        %v4223 = vld [vmem:[#allocation2 + $0x3f0] sm:$0xff]
        %v4224 = vld [vmem:[#allocation2 + $0x3f8] sm:$0xff]
        %v4225 = vld [vmem:[#allocation2 + $0x400] sm:$0xff]
        %v4226 = vld [vmem:[#allocation2 + $0x408] sm:$0xff]
        %v4227 = vld [vmem:[#allocation2 + $0x410] sm:$0xff]
        %v4228 = vld [vmem:[#allocation2 + $0x418] sm:$0xff]
        %v4625 = vunpack.c.l.b16 %v3701
        %v4626 = vunpack.c.h.b16 %v3701
        %v4627 = vunpack.c.l.b16 %v3702
        %v4628 = vunpack.c.h.b16 %v3702
        %v4629 = vunpack.c.l.b16 %v3703
        %v4630 = vunpack.c.h.b16 %v3703
        %v4631 = vunpack.c.l.b16 %v3704
        %v4632 = vunpack.c.h.b16 %v3704
        %v4633 = vunpack.c.l.b16 %v3705
        %v4634 = vunpack.c.h.b16 %v3705
        %v4635 = vunpack.c.l.b16 %v3706
        %v4636 = vunpack.c.h.b16 %v3706
        %v4637 = vunpack.c.l.b16 %v3707
        %v4638 = vunpack.c.h.b16 %v3707
        %v4639 = vunpack.c.l.b16 %v3708
        %v4640 = vunpack.c.h.b16 %v3708
        %v4641 = vunpack.c.l.b16 %v3709
        %v4642 = vunpack.c.l.b16 %v3710
        %v4643 = vunpack.c.h.b16 %v3710
        %v4644 = vunpack.c.l.b16 %v3711
        %v4645 = vunpack.c.h.b16 %v3711
        %v4646 = vunpack.c.l.b16 %v3712
        %v4647 = vunpack.c.h.b16 %v3712
        %v4648 = vunpack.c.l.b16 %v3713
        %v4649 = vunpack.c.h.b16 %v3713
        %v4650 = vunpack.c.l.b16 %v3714
        %v4651 = vunpack.c.h.b16 %v3714
        %v4652 = vunpack.c.l.b16 %v3715
        %v4653 = vunpack.c.h.b16 %v3715
        %v4654 = vunpack.c.l.b16 %v3716
        %v4655 = vunpack.c.h.b16 %v3716
        %v4656 = vunpack.c.l.b16 %v3717
        %v4657 = vunpack.c.h.b16 %v3717
        %v4658 = vunpack.c.l.b16 %v3718
        %v4659 = vunpack.c.l.b16 %v3719
        %v4660 = vunpack.c.h.b16 %v3719
        %v4661 = vunpack.c.l.b16 %v3720
        %v4662 = vunpack.c.h.b16 %v3720
        %v4663 = vunpack.c.l.b16 %v3721
        %v4664 = vunpack.c.h.b16 %v3721
        %v4665 = vunpack.c.l.b16 %v3722
        %v4666 = vunpack.c.h.b16 %v3722
        %v4667 = vunpack.c.l.b16 %v3723
        %v4668 = vunpack.c.h.b16 %v3723
        %v4669 = vunpack.c.l.b16 %v3724
        %v4670 = vunpack.c.h.b16 %v3724
        %v4671 = vunpack.c.l.b16 %v3725
        %v4672 = vunpack.c.h.b16 %v3725
        %v4673 = vunpack.c.l.b16 %v3726
        %v4674 = vunpack.c.h.b16 %v3726
        %v4675 = vunpack.c.l.b16 %v3727
        %v4676 = vunpack.c.l.b16 %v3728
        %v4677 = vunpack.c.h.b16 %v3728
        %v4678 = vunpack.c.l.b16 %v3729
        %v4679 = vunpack.c.h.b16 %v3729
        %v4680 = vunpack.c.l.b16 %v3730
        %v4681 = vunpack.c.h.b16 %v3730
        %v4682 = vunpack.c.l.b16 %v3731
        %v4683 = vunpack.c.h.b16 %v3731
        %v4684 = vunpack.c.l.b16 %v3732
        %v4685 = vunpack.c.h.b16 %v3732
        %v4686 = vunpack.c.l.b16 %v3733
        %v4687 = vunpack.c.h.b16 %v3733
        %v4688 = vunpack.c.l.b16 %v3734
        %v4689 = vunpack.c.h.b16 %v3734
        %v4690 = vunpack.c.l.b16 %v3735
        %v4691 = vunpack.c.h.b16 %v3735
        %v4692 = vunpack.c.l.b16 %v3736
        %v4693 = vunpack.c.l.b16 %v3737
        %v4694 = vunpack.c.h.b16 %v3737
        %v4695 = vunpack.c.l.b16 %v3738
        %v4696 = vunpack.c.h.b16 %v3738
        %v4697 = vunpack.c.l.b16 %v3739
        %v4698 = vunpack.c.h.b16 %v3739
        %v4699 = vunpack.c.l.b16 %v3740
        %v4700 = vunpack.c.h.b16 %v3740
        %v4701 = vunpack.c.l.b16 %v3741
        %v4702 = vunpack.c.h.b16 %v3741
        %v4703 = vunpack.c.l.b16 %v3742
        %v4704 = vunpack.c.h.b16 %v3742
        %v4705 = vunpack.c.l.b16 %v3743
        %v4706 = vunpack.c.h.b16 %v3743
        %v4707 = vunpack.c.l.b16 %v3744
        %v4708 = vunpack.c.h.b16 %v3744
        %v4709 = vunpack.c.l.b16 %v3745
        %v4710 = vunpack.c.l.b16 %v3746
        %v4711 = vunpack.c.h.b16 %v3746
        %v4712 = vunpack.c.l.b16 %v3747
        %v4713 = vunpack.c.h.b16 %v3747
        %v4714 = vunpack.c.l.b16 %v3748
        %v4715 = vunpack.c.h.b16 %v3748
        %v4716 = vunpack.c.l.b16 %v3749
        %v4717 = vunpack.c.h.b16 %v3749
        %v4718 = vunpack.c.l.b16 %v3750
        %v4719 = vunpack.c.h.b16 %v3750
        %v4720 = vunpack.c.l.b16 %v3751
        %v4721 = vunpack.c.h.b16 %v3751
        %v4722 = vunpack.c.l.b16 %v3752
        %v4723 = vunpack.c.h.b16 %v3752
        %v4724 = vunpack.c.l.b16 %v3753
        %v4725 = vunpack.c.h.b16 %v3753
        %v4726 = vunpack.c.l.b16 %v3754
        %v4727 = vunpack.c.l.b16 %v3755
        %v4728 = vunpack.c.h.b16 %v3755
        %v4729 = vunpack.c.l.b16 %v3756
        %v4730 = vunpack.c.h.b16 %v3756
        %v4731 = vunpack.c.l.b16 %v3757
        %v4732 = vunpack.c.h.b16 %v3757
        %v4733 = vunpack.c.l.b16 %v3758
        %v4734 = vunpack.c.h.b16 %v3758
        %v4735 = vunpack.c.l.b16 %v3759
        %v4736 = vunpack.c.h.b16 %v3759
        %v4737 = vunpack.c.l.b16 %v3760
        %v4738 = vunpack.c.h.b16 %v3760
        %v4739 = vunpack.c.l.b16 %v3761
        %v4740 = vunpack.c.h.b16 %v3761
        %v4741 = vunpack.c.l.b16 %v3762
        %v4742 = vunpack.c.h.b16 %v3762
        %v4743 = vunpack.c.l.b16 %v3763
        %v4744 = vunpack.c.l.b16 %v3764
        %v4745 = vunpack.c.h.b16 %v3764
        %v4746 = vunpack.c.l.b16 %v3765
        %v4747 = vunpack.c.h.b16 %v3765
        %v4748 = vunpack.c.l.b16 %v3766
        %v4749 = vunpack.c.h.b16 %v3766
        %v4750 = vunpack.c.l.b16 %v3767
        %v4751 = vunpack.c.h.b16 %v3767
        %v4752 = vunpack.c.l.b16 %v3768
        %v4753 = vunpack.c.h.b16 %v3768
        %v4754 = vunpack.c.l.b16 %v3769
        %v4755 = vunpack.c.h.b16 %v3769
        %v4756 = vunpack.c.l.b16 %v3770
        %v4757 = vunpack.c.h.b16 %v3770
        %v4758 = vunpack.c.l.b16 %v3771
        %v4759 = vunpack.c.h.b16 %v3771
        %v4760 = vunpack.c.l.b16 %v3772
        %v4761 = vunpack.c.l.b16 %v3773
        %v4762 = vunpack.c.h.b16 %v3773
        %v4763 = vunpack.c.l.b16 %v3774
        %v4764 = vunpack.c.h.b16 %v3774
        %v4765 = vunpack.c.l.b16 %v3775
        %v4766 = vunpack.c.h.b16 %v3775
        %v4767 = vunpack.c.l.b16 %v3776
        %v4768 = vunpack.c.h.b16 %v3776
        %v4769 = vunpack.c.l.b16 %v3777
        %v4770 = vunpack.c.h.b16 %v3777
        %v4771 = vunpack.c.l.b16 %v3778
        %v4772 = vunpack.c.h.b16 %v3778
        %v4773 = vunpack.c.l.b16 %v3779
        %v4774 = vunpack.c.h.b16 %v3779
        %v4775 = vunpack.c.l.b16 %v3780
        %v4776 = vunpack.c.h.b16 %v3780
        %v4777 = vunpack.c.l.b16 %v3781
        %v4778 = vunpack.c.l.b16 %v3782
        %v4779 = vunpack.c.h.b16 %v3782
        %v4780 = vunpack.c.l.b16 %v3783
        %v4781 = vunpack.c.h.b16 %v3783
        %v4782 = vunpack.c.l.b16 %v3784
        %v4783 = vunpack.c.h.b16 %v3784
        %v4784 = vunpack.c.l.b16 %v3785
        %v4785 = vunpack.c.h.b16 %v3785
        %v4786 = vunpack.c.l.b16 %v3786
        %v4787 = vunpack.c.h.b16 %v3786
        %v4788 = vunpack.c.l.b16 %v3787
        %v4789 = vunpack.c.h.b16 %v3787
        %v4790 = vunpack.c.l.b16 %v3788
        %v4791 = vunpack.c.h.b16 %v3788
        %v4792 = vunpack.c.l.b16 %v3789
        %v4793 = vunpack.c.h.b16 %v3789
        %v4794 = vunpack.c.l.b16 %v3790
        %v4795 = vunpack.c.l.b16 %v3791
        %v4796 = vunpack.c.h.b16 %v3791
        %v4797 = vunpack.c.l.b16 %v3792
        %v4798 = vunpack.c.h.b16 %v3792
        %v4799 = vunpack.c.l.b16 %v3793
        %v4800 = vunpack.c.h.b16 %v3793
        %v4801 = vunpack.c.l.b16 %v3794
        %v4802 = vunpack.c.h.b16 %v3794
        %v4803 = vunpack.c.l.b16 %v3795
        %v4804 = vunpack.c.h.b16 %v3795
        %v4805 = vunpack.c.l.b16 %v3796
        %v4806 = vunpack.c.h.b16 %v3796
        %v4807 = vunpack.c.l.b16 %v3797
        %v4808 = vunpack.c.h.b16 %v3797
        %v4809 = vunpack.c.l.b16 %v3798
        %v4810 = vunpack.c.h.b16 %v3798
        %v4811 = vunpack.c.l.b16 %v3799
        %v4812 = vunpack.c.l.b16 %v3800
        %v4813 = vunpack.c.h.b16 %v3800
        %v4814 = vunpack.c.l.b16 %v3801
        %v4815 = vunpack.c.h.b16 %v3801
        %v4816 = vunpack.c.l.b16 %v3802
        %v4817 = vunpack.c.h.b16 %v3802
        %v4818 = vunpack.c.l.b16 %v3803
        %v4819 = vunpack.c.h.b16 %v3803
        %v4820 = vunpack.c.l.b16 %v3804
        %v4821 = vunpack.c.h.b16 %v3804
        %v4822 = vunpack.c.l.b16 %v3805
        %v4823 = vunpack.c.h.b16 %v3805
        %v4824 = vunpack.c.l.b16 %v3806
        %v4825 = vunpack.c.h.b16 %v3806
        %v4826 = vunpack.c.l.b16 %v3807
        %v4827 = vunpack.c.h.b16 %v3807
        %v4828 = vunpack.c.l.b16 %v3808
        %v4829 = vunpack.c.l.b16 %v3809
        %v4830 = vunpack.c.h.b16 %v3809
        %v4831 = vunpack.c.l.b16 %v3810
        %v4832 = vunpack.c.h.b16 %v3810
        %v4833 = vunpack.c.l.b16 %v3811
        %v4834 = vunpack.c.h.b16 %v3811
        %v4835 = vunpack.c.l.b16 %v3812
        %v4836 = vunpack.c.h.b16 %v3812
        %v4837 = vunpack.c.l.b16 %v3813
        %v4838 = vunpack.c.h.b16 %v3813
        %v4839 = vunpack.c.l.b16 %v3814
        %v4840 = vunpack.c.h.b16 %v3814
        %v4841 = vunpack.c.l.b16 %v3815
        %v4842 = vunpack.c.h.b16 %v3815
        %v4843 = vunpack.c.l.b16 %v3816
        %v4844 = vunpack.c.h.b16 %v3816
        %v4845 = vunpack.c.l.b16 %v3817
        %v4846 = vunpack.c.l.b16 %v3818
        %v4847 = vunpack.c.h.b16 %v3818
        %v4848 = vunpack.c.l.b16 %v3819
        %v4849 = vunpack.c.h.b16 %v3819
        %v4850 = vunpack.c.l.b16 %v3820
        %v4851 = vunpack.c.h.b16 %v3820
        %v4852 = vunpack.c.l.b16 %v3821
        %v4853 = vunpack.c.h.b16 %v3821
        %v4854 = vunpack.c.l.b16 %v3822
        %v4855 = vunpack.c.h.b16 %v3822
        %v4856 = vunpack.c.l.b16 %v3823
        %v4857 = vunpack.c.h.b16 %v3823
        %v4858 = vunpack.c.l.b16 %v3824
        %v4859 = vunpack.c.h.b16 %v3824
        %v4860 = vunpack.c.l.b16 %v3825
        %v4861 = vunpack.c.h.b16 %v3825
        %v4862 = vunpack.c.l.b16 %v3826
        %v4863 = vunpack.c.l.b16 %v3827
        %v4864 = vunpack.c.h.b16 %v3827
        %v4865 = vunpack.c.l.b16 %v3828
        %v4866 = vunpack.c.h.b16 %v3828
        %v4867 = vunpack.c.l.b16 %v3829
        %v4868 = vunpack.c.h.b16 %v3829
        %v4869 = vunpack.c.l.b16 %v3830
        %v4870 = vunpack.c.h.b16 %v3830
        %v4871 = vunpack.c.l.b16 %v3831
        %v4872 = vunpack.c.h.b16 %v3831
        %v4873 = vunpack.c.l.b16 %v3832
        %v4874 = vunpack.c.h.b16 %v3832
        %v4875 = vunpack.c.l.b16 %v3833
        %v4876 = vunpack.c.h.b16 %v3833
        %v4877 = vunpack.c.l.b16 %v3834
        %v4878 = vunpack.c.h.b16 %v3834
        %v4879 = vunpack.c.l.b16 %v3835
        %v4880 = vunpack.c.l.b16 %v3836
        %v4881 = vunpack.c.h.b16 %v3836
        %v4882 = vunpack.c.l.b16 %v3837
        %v4883 = vunpack.c.h.b16 %v3837
        %v4884 = vunpack.c.l.b16 %v3838
        %v4885 = vunpack.c.h.b16 %v3838
        %v4886 = vunpack.c.l.b16 %v3839
        %v4887 = vunpack.c.h.b16 %v3839
        %v4888 = vunpack.c.l.b16 %v3840
        %v4889 = vunpack.c.h.b16 %v3840
        %v4890 = vunpack.c.l.b16 %v3841
        %v4891 = vunpack.c.h.b16 %v3841
        %v4892 = vunpack.c.l.b16 %v3842
        %v4893 = vunpack.c.h.b16 %v3842
        %v4894 = vunpack.c.l.b16 %v3843
        %v4895 = vunpack.c.h.b16 %v3843
        %v4896 = vunpack.c.l.b16 %v3844
        %v4897 = vunpack.c.l.b16 %v3845
        %v4898 = vunpack.c.h.b16 %v3845
        %v4899 = vunpack.c.l.b16 %v3846
        %v4900 = vunpack.c.h.b16 %v3846
        %v4901 = vunpack.c.l.b16 %v3847
        %v4902 = vunpack.c.h.b16 %v3847
        %v4903 = vunpack.c.l.b16 %v3848
        %v4904 = vunpack.c.h.b16 %v3848
        %v4905 = vunpack.c.l.b16 %v3849
        %v4906 = vunpack.c.h.b16 %v3849
        %v4907 = vunpack.c.l.b16 %v3850
        %v4908 = vunpack.c.h.b16 %v3850
        %v4909 = vunpack.c.l.b16 %v3851
        %v4910 = vunpack.c.h.b16 %v3851
        %v4911 = vunpack.c.l.b16 %v3852
        %v4912 = vunpack.c.h.b16 %v3852
        %v4913 = vunpack.c.l.b16 %v3853
        %v4914 = vunpack.c.l.b16 %v3854
        %v4915 = vunpack.c.h.b16 %v3854
        %v4916 = vunpack.c.l.b16 %v3855
        %v4917 = vunpack.c.h.b16 %v3855
        %v4918 = vunpack.c.l.b16 %v3856
        %v4919 = vunpack.c.h.b16 %v3856
        %v4920 = vunpack.c.l.b16 %v3857
        %v4921 = vunpack.c.h.b16 %v3857
        %v4922 = vunpack.c.l.b16 %v3858
        %v4923 = vunpack.c.h.b16 %v3858
        %v4924 = vunpack.c.l.b16 %v3859
        %v4925 = vunpack.c.h.b16 %v3859
        %v4926 = vunpack.c.l.b16 %v3860
        %v4927 = vunpack.c.h.b16 %v3860
        %v4928 = vunpack.c.l.b16 %v3861
        %v4929 = vunpack.c.h.b16 %v3861
        %v4930 = vunpack.c.l.b16 %v3862
        %v4931 = vunpack.c.l.b16 %v3863
        %v4932 = vunpack.c.h.b16 %v3863
        %v4933 = vunpack.c.l.b16 %v3864
        %v4934 = vunpack.c.h.b16 %v3864
        %v4935 = vunpack.c.l.b16 %v3865
        %v4936 = vunpack.c.h.b16 %v3865
        %v4937 = vunpack.c.l.b16 %v3866
        %v4938 = vunpack.c.h.b16 %v3866
        %v4939 = vunpack.c.l.b16 %v3867
        %v4940 = vunpack.c.h.b16 %v3867
        %v4941 = vunpack.c.l.b16 %v3868
        %v4942 = vunpack.c.h.b16 %v3868
        %v4943 = vunpack.c.l.b16 %v3869
        %v4944 = vunpack.c.h.b16 %v3869
        %v4945 = vunpack.c.l.b16 %v3870
        %v4946 = vunpack.c.h.b16 %v3870
        %v4947 = vunpack.c.l.b16 %v3871
        %v4948 = vunpack.c.l.b16 %v3872
        %v4949 = vunpack.c.h.b16 %v3872
        %v4950 = vunpack.c.l.b16 %v3873
        %v4951 = vunpack.c.h.b16 %v3873
        %v4952 = vunpack.c.l.b16 %v3874
        %v4953 = vunpack.c.h.b16 %v3874
        %v4954 = vunpack.c.l.b16 %v3875
        %v4955 = vunpack.c.h.b16 %v3875
        %v4956 = vunpack.c.l.b16 %v3876
        %v4957 = vunpack.c.h.b16 %v3876
        %v4958 = vunpack.c.l.b16 %v3877
        %v4959 = vunpack.c.h.b16 %v3877
        %v4960 = vunpack.c.l.b16 %v3878
        %v4961 = vunpack.c.h.b16 %v3878
        %v4962 = vunpack.c.l.b16 %v3879
        %v4963 = vunpack.c.h.b16 %v3879
        %v4964 = vunpack.c.l.b16 %v3880
        %v4965 = vunpack.c.l.b16 %v3881
        %v4966 = vunpack.c.h.b16 %v3881
        %v4967 = vunpack.c.l.b16 %v3882
        %v4968 = vunpack.c.h.b16 %v3882
        %v4969 = vunpack.c.l.b16 %v3883
        %v4970 = vunpack.c.h.b16 %v3883
        %v4971 = vunpack.c.l.b16 %v3884
        %v4972 = vunpack.c.h.b16 %v3884
        %v4973 = vunpack.c.l.b16 %v3885
        %v4974 = vunpack.c.h.b16 %v3885
        %v4975 = vunpack.c.l.b16 %v3886
        %v4976 = vunpack.c.h.b16 %v3886
        %v4977 = vunpack.c.l.b16 %v3887
        %v4978 = vunpack.c.h.b16 %v3887
        %v4979 = vunpack.c.l.b16 %v3888
        %v4980 = vunpack.c.h.b16 %v3888
        %v4981 = vunpack.c.l.b16 %v3889
        %v4982 = vunpack.c.l.b16 %v3890
        %v4983 = vunpack.c.h.b16 %v3890
        %v4984 = vunpack.c.l.b16 %v3891
        %v4985 = vunpack.c.h.b16 %v3891
        %v4986 = vunpack.c.l.b16 %v3892
        %v4987 = vunpack.c.h.b16 %v3892
        %v4988 = vunpack.c.l.b16 %v3893
        %v4989 = vunpack.c.h.b16 %v3893
        %v4990 = vunpack.c.l.b16 %v3894
        %v4991 = vunpack.c.h.b16 %v3894
        %v4992 = vunpack.c.l.b16 %v3895
        %v4993 = vunpack.c.h.b16 %v3895
        %v4994 = vunpack.c.l.b16 %v3896
        %v4995 = vunpack.c.h.b16 %v3896
        %v4996 = vunpack.c.l.b16 %v3897
        %v4997 = vunpack.c.h.b16 %v3897
        %v4998 = vunpack.c.l.b16 %v3898
        %v4999 = vunpack.c.l.b16 %v3899
        %v5000 = vunpack.c.h.b16 %v3899
        %v5001 = vunpack.c.l.b16 %v3900
        %v5002 = vunpack.c.h.b16 %v3900
        %v5003 = vunpack.c.l.b16 %v3901
        %v5004 = vunpack.c.h.b16 %v3901
        %v5005 = vunpack.c.l.b16 %v3902
        %v5006 = vunpack.c.h.b16 %v3902
        %v5007 = vunpack.c.l.b16 %v3903
        %v5008 = vunpack.c.h.b16 %v3903
        %v5009 = vunpack.c.l.b16 %v3904
        %v5010 = vunpack.c.h.b16 %v3904
        %v5011 = vunpack.c.l.b16 %v3905
        %v5012 = vunpack.c.h.b16 %v3905
        %v5013 = vunpack.c.l.b16 %v3906
        %v5014 = vunpack.c.h.b16 %v3906
        %v5015 = vunpack.c.l.b16 %v3907
        %v5016 = vunpack.c.l.b16 %v3908
        %v5017 = vunpack.c.h.b16 %v3908
        %v5018 = vunpack.c.l.b16 %v3909
        %v5019 = vunpack.c.h.b16 %v3909
        %v5020 = vunpack.c.l.b16 %v3910
        %v5021 = vunpack.c.h.b16 %v3910
        %v5022 = vunpack.c.l.b16 %v3911
        %v5023 = vunpack.c.h.b16 %v3911
        %v5024 = vunpack.c.l.b16 %v3912
        %v5025 = vunpack.c.h.b16 %v3912
        %v5026 = vunpack.c.l.b16 %v3913
        %v5027 = vunpack.c.h.b16 %v3913
        %v5028 = vunpack.c.l.b16 %v3914
        %v5029 = vunpack.c.h.b16 %v3914
        %v5030 = vunpack.c.l.b16 %v3915
        %v5031 = vunpack.c.h.b16 %v3915
        %v5032 = vunpack.c.l.b16 %v3916
        %v5033 = vunpack.c.l.b16 %v3917
        %v5034 = vunpack.c.h.b16 %v3917
        %v5035 = vunpack.c.l.b16 %v3918
        %v5036 = vunpack.c.h.b16 %v3918
        %v5037 = vunpack.c.l.b16 %v3919
        %v5038 = vunpack.c.h.b16 %v3919
        %v5039 = vunpack.c.l.b16 %v3920
        %v5040 = vunpack.c.h.b16 %v3920
        %v5041 = vunpack.c.l.b16 %v3921
        %v5042 = vunpack.c.h.b16 %v3921
        %v5043 = vunpack.c.l.b16 %v3922
        %v5044 = vunpack.c.h.b16 %v3922
        %v5045 = vunpack.c.l.b16 %v3923
        %v5046 = vunpack.c.h.b16 %v3923
        %v5047 = vunpack.c.l.b16 %v3924
        %v5048 = vunpack.c.h.b16 %v3924
        %v5049 = vunpack.c.l.b16 %v3925
        %v5050 = vunpack.c.l.b16 %v3926
        %v5051 = vunpack.c.h.b16 %v3926
        %v5052 = vunpack.c.l.b16 %v3927
        %v5053 = vunpack.c.h.b16 %v3927
        %v5054 = vunpack.c.l.b16 %v3928
        %v5055 = vunpack.c.h.b16 %v3928
        %v5056 = vunpack.c.l.b16 %v3929
        %v5057 = vunpack.c.h.b16 %v3929
        %v5058 = vunpack.c.l.b16 %v3930
        %v5059 = vunpack.c.h.b16 %v3930
        %v5060 = vunpack.c.l.b16 %v3931
        %v5061 = vunpack.c.h.b16 %v3931
        %v5062 = vunpack.c.l.b16 %v3932
        %v5063 = vunpack.c.h.b16 %v3932
        %v5064 = vunpack.c.l.b16 %v3933
        %v5065 = vunpack.c.h.b16 %v3933
        %v5066 = vunpack.c.l.b16 %v3934
        %v5067 = vunpack.c.l.b16 %v3935
        %v5068 = vunpack.c.h.b16 %v3935
        %v5069 = vunpack.c.l.b16 %v3936
        %v5070 = vunpack.c.h.b16 %v3936
        %v5071 = vunpack.c.l.b16 %v3937
        %v5072 = vunpack.c.h.b16 %v3937
        %v5073 = vunpack.c.l.b16 %v3938
        %v5074 = vunpack.c.h.b16 %v3938
        %v5075 = vunpack.c.l.b16 %v3939
        %v5076 = vunpack.c.h.b16 %v3939
        %v5077 = vunpack.c.l.b16 %v3940
        %v5078 = vunpack.c.h.b16 %v3940
        %v5079 = vunpack.c.l.b16 %v3941
        %v5080 = vunpack.c.h.b16 %v3941
        %v5081 = vunpack.c.l.b16 %v3942
        %v5082 = vunpack.c.h.b16 %v3942
        %v5083 = vunpack.c.l.b16 %v3943
        %v5084 = vunpack.c.l.b16 %v3944
        %v5085 = vunpack.c.h.b16 %v3944
        %v5086 = vunpack.c.l.b16 %v3945
        %v5087 = vunpack.c.h.b16 %v3945
        %v5088 = vunpack.c.l.b16 %v3946
        %v5089 = vunpack.c.h.b16 %v3946
        %v5090 = vunpack.c.l.b16 %v3947
        %v5091 = vunpack.c.h.b16 %v3947
        %v5092 = vunpack.c.l.b16 %v3948
        %v5093 = vunpack.c.h.b16 %v3948
        %v5094 = vunpack.c.l.b16 %v3949
        %v5095 = vunpack.c.h.b16 %v3949
        %v5096 = vunpack.c.l.b16 %v3950
        %v5097 = vunpack.c.h.b16 %v3950
        %v5098 = vunpack.c.l.b16 %v3951
        %v5099 = vunpack.c.h.b16 %v3951
        %v5100 = vunpack.c.l.b16 %v3952
        %v5101 = vunpack.c.l.b16 %v3953
        %v5102 = vunpack.c.h.b16 %v3953
        %v5103 = vunpack.c.l.b16 %v3954
        %v5104 = vunpack.c.h.b16 %v3954
        %v5105 = vunpack.c.l.b16 %v3955
        %v5106 = vunpack.c.h.b16 %v3955
        %v5107 = vunpack.c.l.b16 %v3956
        %v5108 = vunpack.c.h.b16 %v3956
        %v5109 = vunpack.c.l.b16 %v3957
        %v5110 = vunpack.c.h.b16 %v3957
        %v5111 = vunpack.c.l.b16 %v3958
        %v5112 = vunpack.c.h.b16 %v3958
        %v5113 = vunpack.c.l.b16 %v3959
        %v5114 = vunpack.c.h.b16 %v3959
        %v5115 = vunpack.c.l.b16 %v3960
        %v5116 = vunpack.c.h.b16 %v3960
        %v5117 = vunpack.c.l.b16 %v3961
        %v5118 = vunpack.c.l.b16 %v3962
        %v5119 = vunpack.c.h.b16 %v3962
        %v5120 = vunpack.c.l.b16 %v3963
        %v5121 = vunpack.c.h.b16 %v3963
        %v5122 = vunpack.c.l.b16 %v3964
        %v5123 = vunpack.c.h.b16 %v3964
        %v5124 = vunpack.c.l.b16 %v3965
        %v5125 = vunpack.c.h.b16 %v3965
        %v5126 = vunpack.c.l.b16 %v3966
        %v5127 = vunpack.c.h.b16 %v3966
        %v5128 = vunpack.c.l.b16 %v3967
        %v5129 = vunpack.c.h.b16 %v3967
        %v5130 = vunpack.c.l.b16 %v3968
        %v5131 = vunpack.c.h.b16 %v3968
        %v5132 = vunpack.c.l.b16 %v3969
        %v5133 = vunpack.c.h.b16 %v3969
        %v5134 = vunpack.c.l.b16 %v3970
        %v5135 = vunpack.c.l.b16 %v3971
        %v5136 = vunpack.c.h.b16 %v3971
        %v5137 = vunpack.c.l.b16 %v3972
        %v5138 = vunpack.c.h.b16 %v3972
        %v5139 = vunpack.c.l.b16 %v3973
        %v5140 = vunpack.c.h.b16 %v3973
        %v5141 = vunpack.c.l.b16 %v3974
        %v5142 = vunpack.c.h.b16 %v3974
        %v5143 = vunpack.c.l.b16 %v3975
        %v5144 = vunpack.c.h.b16 %v3975
        %v5145 = vunpack.c.l.b16 %v3976
        %v5146 = vunpack.c.h.b16 %v3976
        %v5147 = vunpack.c.l.b16 %v3977
        %v5148 = vunpack.c.h.b16 %v3977
        %v5149 = vunpack.c.l.b16 %v3978
        %v5150 = vunpack.c.h.b16 %v3978
        %v5151 = vunpack.c.l.b16 %v3979
        %v5152 = vunpack.c.l.b16 %v3980
        %v5153 = vunpack.c.h.b16 %v3980
        %v5154 = vunpack.c.l.b16 %v3981
        %v5155 = vunpack.c.h.b16 %v3981
        %v5156 = vunpack.c.l.b16 %v3982
        %v5157 = vunpack.c.h.b16 %v3982
        %v5158 = vunpack.c.l.b16 %v3983
        %v5159 = vunpack.c.h.b16 %v3983
        %v5160 = vunpack.c.l.b16 %v3984
        %v5161 = vunpack.c.h.b16 %v3984
        %v5162 = vunpack.c.l.b16 %v3985
        %v5163 = vunpack.c.h.b16 %v3985
        %v5164 = vunpack.c.l.b16 %v3986
        %v5165 = vunpack.c.h.b16 %v3986
        %v5166 = vunpack.c.l.b16 %v3987
        %v5167 = vunpack.c.h.b16 %v3987
        %v5168 = vunpack.c.l.b16 %v3988
        %v5169 = vunpack.c.l.b16 %v3989
        %v5170 = vunpack.c.h.b16 %v3989
        %v5171 = vunpack.c.l.b16 %v3990
        %v5172 = vunpack.c.h.b16 %v3990
        %v5173 = vunpack.c.l.b16 %v3991
        %v5174 = vunpack.c.h.b16 %v3991
        %v5175 = vunpack.c.l.b16 %v3992
        %v5176 = vunpack.c.h.b16 %v3992
        %v5177 = vunpack.c.l.b16 %v3993
        %v5178 = vunpack.c.h.b16 %v3993
        %v5179 = vunpack.c.l.b16 %v3994
        %v5180 = vunpack.c.h.b16 %v3994
        %v5181 = vunpack.c.l.b16 %v3995
        %v5182 = vunpack.c.h.b16 %v3995
        %v5183 = vunpack.c.l.b16 %v3996
        %v5184 = vunpack.c.h.b16 %v3996
        %v5185 = vunpack.c.l.b16 %v3997
        %v5186 = vunpack.c.l.b16 %v3998
        %v5187 = vunpack.c.h.b16 %v3998
        %v5188 = vunpack.c.l.b16 %v3999
        %v5189 = vunpack.c.h.b16 %v3999
        %v5190 = vunpack.c.l.b16 %v4000
        %v5191 = vunpack.c.h.b16 %v4000
        %v5192 = vunpack.c.l.b16 %v4001
        %v5193 = vunpack.c.h.b16 %v4001
        %v5194 = vunpack.c.l.b16 %v4002
        %v5195 = vunpack.c.h.b16 %v4002
        %v5196 = vunpack.c.l.b16 %v4003
        %v5197 = vunpack.c.h.b16 %v4003
        %v5198 = vunpack.c.l.b16 %v4004
        %v5199 = vunpack.c.h.b16 %v4004
        %v5200 = vunpack.c.l.b16 %v4005
        %v5201 = vunpack.c.h.b16 %v4005
        %v5202 = vunpack.c.l.b16 %v4006
        %v5203 = vunpack.c.l.b16 %v4007
        %v5204 = vunpack.c.h.b16 %v4007
        %v5205 = vunpack.c.l.b16 %v4008
        %v5206 = vunpack.c.h.b16 %v4008
        %v5207 = vunpack.c.l.b16 %v4009
        %v5208 = vunpack.c.h.b16 %v4009
        %v5209 = vunpack.c.l.b16 %v4010
        %v5210 = vunpack.c.h.b16 %v4010
        %v5211 = vunpack.c.l.b16 %v4011
        %v5212 = vunpack.c.h.b16 %v4011
        %v5213 = vunpack.c.l.b16 %v4012
        %v5214 = vunpack.c.h.b16 %v4012
        %v5215 = vunpack.c.l.b16 %v4013
        %v5216 = vunpack.c.h.b16 %v4013
        %v5217 = vunpack.c.l.b16 %v4014
        %v5218 = vunpack.c.h.b16 %v4014
        %v5219 = vunpack.c.l.b16 %v4015
        %v5220 = vunpack.c.l.b16 %v4016
        %v5221 = vunpack.c.h.b16 %v4016
        %v5222 = vunpack.c.l.b16 %v4017
        %v5223 = vunpack.c.h.b16 %v4017
        %v5224 = vunpack.c.l.b16 %v4018
        %v5225 = vunpack.c.h.b16 %v4018
        %v5226 = vunpack.c.l.b16 %v4019
        %v5227 = vunpack.c.h.b16 %v4019
        %v5228 = vunpack.c.l.b16 %v4020
        %v5229 = vunpack.c.h.b16 %v4020
        %v5230 = vunpack.c.l.b16 %v4021
        %v5231 = vunpack.c.h.b16 %v4021
        %v5232 = vunpack.c.l.b16 %v4022
        %v5233 = vunpack.c.h.b16 %v4022
        %v5234 = vunpack.c.l.b16 %v4023
        %v5235 = vunpack.c.h.b16 %v4023
        %v5236 = vunpack.c.l.b16 %v4024
        %v5237 = vunpack.c.l.b16 %v4025
        %v5238 = vunpack.c.h.b16 %v4025
        %v5239 = vunpack.c.l.b16 %v4026
        %v5240 = vunpack.c.h.b16 %v4026
        %v5241 = vunpack.c.l.b16 %v4027
        %v5242 = vunpack.c.h.b16 %v4027
        %v5243 = vunpack.c.l.b16 %v4028
        %v5244 = vunpack.c.h.b16 %v4028
        %v5245 = vunpack.c.l.b16 %v4029
        %v5246 = vunpack.c.h.b16 %v4029
        %v5247 = vunpack.c.l.b16 %v4030
        %v5248 = vunpack.c.h.b16 %v4030
        %v5249 = vunpack.c.l.b16 %v4031
        %v5250 = vunpack.c.h.b16 %v4031
        %v5251 = vunpack.c.l.b16 %v4032
        %v5252 = vunpack.c.h.b16 %v4032
        %v5253 = vunpack.c.l.b16 %v4033
        %v5254 = vunpack.c.l.b16 %v4034
        %v5255 = vunpack.c.h.b16 %v4034
        %v5256 = vunpack.c.l.b16 %v4035
        %v5257 = vunpack.c.h.b16 %v4035
        %v5258 = vunpack.c.l.b16 %v4036
        %v5259 = vunpack.c.h.b16 %v4036
        %v5260 = vunpack.c.l.b16 %v4037
        %v5261 = vunpack.c.h.b16 %v4037
        %v5262 = vunpack.c.l.b16 %v4038
        %v5263 = vunpack.c.h.b16 %v4038
        %v5264 = vunpack.c.l.b16 %v4039
        %v5265 = vunpack.c.h.b16 %v4039
        %v5266 = vunpack.c.l.b16 %v4040
        %v5267 = vunpack.c.h.b16 %v4040
        %v5268 = vunpack.c.l.b16 %v4041
        %v5269 = vunpack.c.h.b16 %v4041
        %v5270 = vunpack.c.l.b16 %v4042
        %v5271 = vunpack.c.l.b16 %v4043
        %v5272 = vunpack.c.h.b16 %v4043
        %v5273 = vunpack.c.l.b16 %v4044
        %v5274 = vunpack.c.h.b16 %v4044
        %v5275 = vunpack.c.l.b16 %v4045
        %v5276 = vunpack.c.h.b16 %v4045
        %v5277 = vunpack.c.l.b16 %v4046
        %v5278 = vunpack.c.h.b16 %v4046
        %v5279 = vunpack.c.l.b16 %v4047
        %v5280 = vunpack.c.h.b16 %v4047
        %v5281 = vunpack.c.l.b16 %v4048
        %v5282 = vunpack.c.h.b16 %v4048
        %v5283 = vunpack.c.l.b16 %v4049
        %v5284 = vunpack.c.h.b16 %v4049
        %v5285 = vunpack.c.l.b16 %v4050
        %v5286 = vunpack.c.h.b16 %v4050
        %v5287 = vunpack.c.l.b16 %v4051
        %v5288 = vunpack.c.l.b16 %v4052
        %v5289 = vunpack.c.h.b16 %v4052
        %v5290 = vunpack.c.l.b16 %v4053
        %v5291 = vunpack.c.h.b16 %v4053
        %v5292 = vunpack.c.l.b16 %v4054
        %v5293 = vunpack.c.h.b16 %v4054
        %v5294 = vunpack.c.l.b16 %v4055
        %v5295 = vunpack.c.h.b16 %v4055
        %v5296 = vunpack.c.l.b16 %v4056
        %v5297 = vunpack.c.h.b16 %v4056
        %v5298 = vunpack.c.l.b16 %v4057
        %v5299 = vunpack.c.h.b16 %v4057
        %v5300 = vunpack.c.l.b16 %v4058
        %v5301 = vunpack.c.h.b16 %v4058
        %v5302 = vunpack.c.l.b16 %v4059
        %v5303 = vunpack.c.h.b16 %v4059
        %v5304 = vunpack.c.l.b16 %v4060
        %v5305 = vunpack.c.l.b16 %v4061
        %v5306 = vunpack.c.h.b16 %v4061
        %v5307 = vunpack.c.l.b16 %v4062
        %v5308 = vunpack.c.h.b16 %v4062
        %v5309 = vunpack.c.l.b16 %v4063
        %v5310 = vunpack.c.h.b16 %v4063
        %v5311 = vunpack.c.l.b16 %v4064
        %v5312 = vunpack.c.h.b16 %v4064
        %v5313 = vunpack.c.l.b16 %v4065
        %v5314 = vunpack.c.h.b16 %v4065
        %v5315 = vunpack.c.l.b16 %v4066
        %v5316 = vunpack.c.h.b16 %v4066
        %v5317 = vunpack.c.l.b16 %v4067
        %v5318 = vunpack.c.h.b16 %v4067
        %v5319 = vunpack.c.l.b16 %v4068
        %v5320 = vunpack.c.h.b16 %v4068
        %v5321 = vunpack.c.l.b16 %v4069
        %v5322 = vunpack.c.l.b16 %v4070
        %v5323 = vunpack.c.h.b16 %v4070
        %v5324 = vunpack.c.l.b16 %v4071
        %v5325 = vunpack.c.h.b16 %v4071
        %v5326 = vunpack.c.l.b16 %v4072
        %v5327 = vunpack.c.h.b16 %v4072
        %v5328 = vunpack.c.l.b16 %v4073
        %v5329 = vunpack.c.h.b16 %v4073
        %v5330 = vunpack.c.l.b16 %v4074
        %v5331 = vunpack.c.h.b16 %v4074
        %v5332 = vunpack.c.l.b16 %v4075
        %v5333 = vunpack.c.h.b16 %v4075
        %v5334 = vunpack.c.l.b16 %v4076
        %v5335 = vunpack.c.h.b16 %v4076
        %v5336 = vunpack.c.l.b16 %v4077
        %v5337 = vunpack.c.h.b16 %v4077
        %v5338 = vunpack.c.l.b16 %v4078
        %v5339 = vunpack.c.l.b16 %v4079
        %v5340 = vunpack.c.h.b16 %v4079
        %v5341 = vunpack.c.l.b16 %v4080
        %v5342 = vunpack.c.h.b16 %v4080
        %v5343 = vunpack.c.l.b16 %v4081
        %v5344 = vunpack.c.h.b16 %v4081
        %v5345 = vunpack.c.l.b16 %v4082
        %v5346 = vunpack.c.h.b16 %v4082
        %v5347 = vunpack.c.l.b16 %v4083
        %v5348 = vunpack.c.h.b16 %v4083
        %v5349 = vunpack.c.l.b16 %v4084
        %v5350 = vunpack.c.h.b16 %v4084
        %v5351 = vunpack.c.l.b16 %v4085
        %v5352 = vunpack.c.h.b16 %v4085
        %v5353 = vunpack.c.l.b16 %v4086
        %v5354 = vunpack.c.h.b16 %v4086
        %v5355 = vunpack.c.l.b16 %v4087
        %v5356 = vunpack.c.l.b16 %v4088
        %v5357 = vunpack.c.h.b16 %v4088
        %v5358 = vunpack.c.l.b16 %v4089
        %v5359 = vunpack.c.h.b16 %v4089
        %v5360 = vunpack.c.l.b16 %v4090
        %v5361 = vunpack.c.h.b16 %v4090
        %v5362 = vunpack.c.l.b16 %v4091
        %v5363 = vunpack.c.h.b16 %v4091
        %v5364 = vunpack.c.l.b16 %v4092
        %v5365 = vunpack.c.h.b16 %v4092
        %v5366 = vunpack.c.l.b16 %v4093
        %v5367 = vunpack.c.h.b16 %v4093
        %v5368 = vunpack.c.l.b16 %v4094
        %v5369 = vunpack.c.h.b16 %v4094
        %v5370 = vunpack.c.l.b16 %v4095
        %v5371 = vunpack.c.h.b16 %v4095
        %v5372 = vunpack.c.l.b16 %v4096
        %v5373 = vpack.c.b16 %v4642, %v4625
        %v5374 = vpack.c.b16 %v4643, %v4626
        %v5375 = vpack.c.b16 %v4644, %v4627
        %v5376 = vpack.c.b16 %v4645, %v4628
        %v5377 = vpack.c.b16 %v4646, %v4629
        %v5378 = vpack.c.b16 %v4647, %v4630
        %v5379 = vpack.c.b16 %v4648, %v4631
        %v5380 = vpack.c.b16 %v4649, %v4632
        %v5381 = vpack.c.b16 %v4650, %v4633
        %v5382 = vpack.c.b16 %v4651, %v4634
        %v5383 = vpack.c.b16 %v4652, %v4635
        %v5384 = vpack.c.b16 %v4653, %v4636
        %v5385 = vpack.c.b16 %v4654, %v4637
        %v5386 = vpack.c.b16 %v4655, %v4638
        %v5387 = vpack.c.b16 %v4656, %v4639
        %v5388 = vpack.c.b16 %v4657, %v4640
        %v5389 = vpack.c.b16 %v4658, %v4641
        %v5390 = vpack.c.b16 %v4676, %v4659
        %v5391 = vpack.c.b16 %v4677, %v4660
        %v5392 = vpack.c.b16 %v4678, %v4661
        %v5393 = vpack.c.b16 %v4679, %v4662
        %v5394 = vpack.c.b16 %v4680, %v4663
        %v5395 = vpack.c.b16 %v4681, %v4664
        %v5396 = vpack.c.b16 %v4682, %v4665
        %v5397 = vpack.c.b16 %v4683, %v4666
        %v5398 = vpack.c.b16 %v4684, %v4667
        %v5399 = vpack.c.b16 %v4685, %v4668
        %v5400 = vpack.c.b16 %v4686, %v4669
        %v5401 = vpack.c.b16 %v4687, %v4670
        %v5402 = vpack.c.b16 %v4688, %v4671
        %v5403 = vpack.c.b16 %v4689, %v4672
        %v5404 = vpack.c.b16 %v4690, %v4673
        %v5405 = vpack.c.b16 %v4691, %v4674
        %v5406 = vpack.c.b16 %v4692, %v4675
        %v5407 = vpack.c.b16 %v4710, %v4693
        %v5408 = vpack.c.b16 %v4711, %v4694
        %v5409 = vpack.c.b16 %v4712, %v4695
        %v5410 = vpack.c.b16 %v4713, %v4696
        %v5411 = vpack.c.b16 %v4714, %v4697
        %v5412 = vpack.c.b16 %v4715, %v4698
        %v5413 = vpack.c.b16 %v4716, %v4699
        %v5414 = vpack.c.b16 %v4717, %v4700
        %v5415 = vpack.c.b16 %v4718, %v4701
        %v5416 = vpack.c.b16 %v4719, %v4702
        %v5417 = vpack.c.b16 %v4720, %v4703
        %v5418 = vpack.c.b16 %v4721, %v4704
        %v5419 = vpack.c.b16 %v4722, %v4705
        %v5420 = vpack.c.b16 %v4723, %v4706
        %v5421 = vpack.c.b16 %v4724, %v4707
        %v5422 = vpack.c.b16 %v4725, %v4708
        %v5423 = vpack.c.b16 %v4726, %v4709
        %v5424 = vpack.c.b16 %v4744, %v4727
        %v5425 = vpack.c.b16 %v4745, %v4728
        %v5426 = vpack.c.b16 %v4746, %v4729
        %v5427 = vpack.c.b16 %v4747, %v4730
        %v5428 = vpack.c.b16 %v4748, %v4731
        %v5429 = vpack.c.b16 %v4749, %v4732
        %v5430 = vpack.c.b16 %v4750, %v4733
        %v5431 = vpack.c.b16 %v4751, %v4734
        %v5432 = vpack.c.b16 %v4752, %v4735
        %v5433 = vpack.c.b16 %v4753, %v4736
        %v5434 = vpack.c.b16 %v4754, %v4737
        %v5435 = vpack.c.b16 %v4755, %v4738
        %v5436 = vpack.c.b16 %v4756, %v4739
        %v5437 = vpack.c.b16 %v4757, %v4740
        %v5438 = vpack.c.b16 %v4758, %v4741
        %v5439 = vpack.c.b16 %v4759, %v4742
        %v5440 = vpack.c.b16 %v4760, %v4743
        %v5441 = vpack.c.b16 %v4778, %v4761
        %v5442 = vpack.c.b16 %v4779, %v4762
        %v5443 = vpack.c.b16 %v4780, %v4763
        %v5444 = vpack.c.b16 %v4781, %v4764
        %v5445 = vpack.c.b16 %v4782, %v4765
        %v5446 = vpack.c.b16 %v4783, %v4766
        %v5447 = vpack.c.b16 %v4784, %v4767
        %v5448 = vpack.c.b16 %v4785, %v4768
        %v5449 = vpack.c.b16 %v4786, %v4769
        %v5450 = vpack.c.b16 %v4787, %v4770
        %v5451 = vpack.c.b16 %v4788, %v4771
        %v5452 = vpack.c.b16 %v4789, %v4772
        %v5453 = vpack.c.b16 %v4790, %v4773
        %v5454 = vpack.c.b16 %v4791, %v4774
        %v5455 = vpack.c.b16 %v4792, %v4775
        %v5456 = vpack.c.b16 %v4793, %v4776
        %v5457 = vpack.c.b16 %v4794, %v4777
        %v5458 = vpack.c.b16 %v4812, %v4795
        %v5459 = vpack.c.b16 %v4813, %v4796
        %v5460 = vpack.c.b16 %v4814, %v4797
        %v5461 = vpack.c.b16 %v4815, %v4798
        %v5462 = vpack.c.b16 %v4816, %v4799
        %v5463 = vpack.c.b16 %v4817, %v4800
        %v5464 = vpack.c.b16 %v4818, %v4801
        %v5465 = vpack.c.b16 %v4819, %v4802
        %v5466 = vpack.c.b16 %v4820, %v4803
        %v5467 = vpack.c.b16 %v4821, %v4804
        %v5468 = vpack.c.b16 %v4822, %v4805
        %v5469 = vpack.c.b16 %v4823, %v4806
        %v5470 = vpack.c.b16 %v4824, %v4807
        %v5471 = vpack.c.b16 %v4825, %v4808
        %v5472 = vpack.c.b16 %v4826, %v4809
        %v5473 = vpack.c.b16 %v4827, %v4810
        %v5474 = vpack.c.b16 %v4828, %v4811
        %v5475 = vpack.c.b16 %v4846, %v4829
        %v5476 = vpack.c.b16 %v4847, %v4830
        %v5477 = vpack.c.b16 %v4848, %v4831
        %v5478 = vpack.c.b16 %v4849, %v4832
        %v5479 = vpack.c.b16 %v4850, %v4833
        %v5480 = vpack.c.b16 %v4851, %v4834
        %v5481 = vpack.c.b16 %v4852, %v4835
        %v5482 = vpack.c.b16 %v4853, %v4836
        %v5483 = vpack.c.b16 %v4854, %v4837
        %v5484 = vpack.c.b16 %v4855, %v4838
        %v5485 = vpack.c.b16 %v4856, %v4839
        %v5486 = vpack.c.b16 %v4857, %v4840
        %v5487 = vpack.c.b16 %v4858, %v4841
        %v5488 = vpack.c.b16 %v4859, %v4842
        %v5489 = vpack.c.b16 %v4860, %v4843
        %v5490 = vpack.c.b16 %v4861, %v4844
        %v5491 = vpack.c.b16 %v4862, %v4845
        %v5492 = vpack.c.b16 %v4880, %v4863
        %v5493 = vpack.c.b16 %v4881, %v4864
        %v5494 = vpack.c.b16 %v4882, %v4865
        %v5495 = vpack.c.b16 %v4883, %v4866
        %v5496 = vpack.c.b16 %v4884, %v4867
        %v5497 = vpack.c.b16 %v4885, %v4868
        %v5498 = vpack.c.b16 %v4886, %v4869
        %v5499 = vpack.c.b16 %v4887, %v4870
        %v5500 = vpack.c.b16 %v4888, %v4871
        %v5501 = vpack.c.b16 %v4889, %v4872
        %v5502 = vpack.c.b16 %v4890, %v4873
        %v5503 = vpack.c.b16 %v4891, %v4874
        %v5504 = vpack.c.b16 %v4892, %v4875
        %v5505 = vpack.c.b16 %v4893, %v4876
        %v5506 = vpack.c.b16 %v4894, %v4877
        %v5507 = vpack.c.b16 %v4895, %v4878
        %v5508 = vpack.c.b16 %v4896, %v4879
        %v5509 = vpack.c.b16 %v4914, %v4897
        %v5510 = vpack.c.b16 %v4915, %v4898
        %v5511 = vpack.c.b16 %v4916, %v4899
        %v5512 = vpack.c.b16 %v4917, %v4900
        %v5513 = vpack.c.b16 %v4918, %v4901
        %v5514 = vpack.c.b16 %v4919, %v4902
        %v5515 = vpack.c.b16 %v4920, %v4903
        %v5516 = vpack.c.b16 %v4921, %v4904
        %v5517 = vpack.c.b16 %v4922, %v4905
        %v5518 = vpack.c.b16 %v4923, %v4906
        %v5519 = vpack.c.b16 %v4924, %v4907
        %v5520 = vpack.c.b16 %v4925, %v4908
        %v5521 = vpack.c.b16 %v4926, %v4909
        %v5522 = vpack.c.b16 %v4927, %v4910
        %v5523 = vpack.c.b16 %v4928, %v4911
        %v5524 = vpack.c.b16 %v4929, %v4912
        %v5525 = vpack.c.b16 %v4930, %v4913
        %v5526 = vpack.c.b16 %v4948, %v4931
        %v5527 = vpack.c.b16 %v4949, %v4932
        %v5528 = vpack.c.b16 %v4950, %v4933
        %v5529 = vpack.c.b16 %v4951, %v4934
        %v5530 = vpack.c.b16 %v4952, %v4935
        %v5531 = vpack.c.b16 %v4953, %v4936
        %v5532 = vpack.c.b16 %v4954, %v4937
        %v5533 = vpack.c.b16 %v4955, %v4938
        %v5534 = vpack.c.b16 %v4956, %v4939
        %v5535 = vpack.c.b16 %v4957, %v4940
        %v5536 = vpack.c.b16 %v4958, %v4941
        %v5537 = vpack.c.b16 %v4959, %v4942
        %v5538 = vpack.c.b16 %v4960, %v4943
        %v5539 = vpack.c.b16 %v4961, %v4944
        %v5540 = vpack.c.b16 %v4962, %v4945
        %v5541 = vpack.c.b16 %v4963, %v4946
        %v5542 = vpack.c.b16 %v4964, %v4947
        %v5543 = vpack.c.b16 %v4982, %v4965
        %v5544 = vpack.c.b16 %v4983, %v4966
        %v5545 = vpack.c.b16 %v4984, %v4967
        %v5546 = vpack.c.b16 %v4985, %v4968
        %v5547 = vpack.c.b16 %v4986, %v4969
        %v5548 = vpack.c.b16 %v4987, %v4970
        %v5549 = vpack.c.b16 %v4988, %v4971
        %v5550 = vpack.c.b16 %v4989, %v4972
        %v5551 = vpack.c.b16 %v4990, %v4973
        %v5552 = vpack.c.b16 %v4991, %v4974
        %v5553 = vpack.c.b16 %v4992, %v4975
        %v5554 = vpack.c.b16 %v4993, %v4976
        %v5555 = vpack.c.b16 %v4994, %v4977
        %v5556 = vpack.c.b16 %v4995, %v4978
        %v5557 = vpack.c.b16 %v4996, %v4979
        %v5558 = vpack.c.b16 %v4997, %v4980
        %v5559 = vpack.c.b16 %v4998, %v4981
        %v5560 = vpack.c.b16 %v5016, %v4999
        %v5561 = vpack.c.b16 %v5017, %v5000
        %v5562 = vpack.c.b16 %v5018, %v5001
        %v5563 = vpack.c.b16 %v5019, %v5002
        %v5564 = vpack.c.b16 %v5020, %v5003
        %v5565 = vpack.c.b16 %v5021, %v5004
        %v5566 = vpack.c.b16 %v5022, %v5005
        %v5567 = vpack.c.b16 %v5023, %v5006
        %v5568 = vpack.c.b16 %v5024, %v5007
        %v5569 = vpack.c.b16 %v5025, %v5008
        %v5570 = vpack.c.b16 %v5026, %v5009
        %v5571 = vpack.c.b16 %v5027, %v5010
        %v5572 = vpack.c.b16 %v5028, %v5011
        %v5573 = vpack.c.b16 %v5029, %v5012
        %v5574 = vpack.c.b16 %v5030, %v5013
        %v5575 = vpack.c.b16 %v5031, %v5014
        %v5576 = vpack.c.b16 %v5032, %v5015
        %v5577 = vpack.c.b16 %v5050, %v5033
        %v5578 = vpack.c.b16 %v5051, %v5034
        %v5579 = vpack.c.b16 %v5052, %v5035
        %v5580 = vpack.c.b16 %v5053, %v5036
        %v5581 = vpack.c.b16 %v5054, %v5037
        %v5582 = vpack.c.b16 %v5055, %v5038
        %v5583 = vpack.c.b16 %v5056, %v5039
        %v5584 = vpack.c.b16 %v5057, %v5040
        %v5585 = vpack.c.b16 %v5058, %v5041
        %v5586 = vpack.c.b16 %v5059, %v5042
        %v5587 = vpack.c.b16 %v5060, %v5043
        %v5588 = vpack.c.b16 %v5061, %v5044
        %v5589 = vpack.c.b16 %v5062, %v5045
        %v5590 = vpack.c.b16 %v5063, %v5046
        %v5591 = vpack.c.b16 %v5064, %v5047
        %v5592 = vpack.c.b16 %v5065, %v5048
        %v5593 = vpack.c.b16 %v5066, %v5049
        %v5594 = vpack.c.b16 %v5084, %v5067
        %v5595 = vpack.c.b16 %v5085, %v5068
        %v5596 = vpack.c.b16 %v5086, %v5069
        %v5597 = vpack.c.b16 %v5087, %v5070
        %v5598 = vpack.c.b16 %v5088, %v5071
        %v5599 = vpack.c.b16 %v5089, %v5072
        %v5600 = vpack.c.b16 %v5090, %v5073
        %v5601 = vpack.c.b16 %v5091, %v5074
        %v5602 = vpack.c.b16 %v5092, %v5075
        %v5603 = vpack.c.b16 %v5093, %v5076
        %v5604 = vpack.c.b16 %v5094, %v5077
        %v5605 = vpack.c.b16 %v5095, %v5078
        %v5606 = vpack.c.b16 %v5096, %v5079
        %v5607 = vpack.c.b16 %v5097, %v5080
        %v5608 = vpack.c.b16 %v5098, %v5081
        %v5609 = vpack.c.b16 %v5099, %v5082
        %v5610 = vpack.c.b16 %v5100, %v5083
        %v5611 = vpack.c.b16 %v5118, %v5101
        %v5612 = vpack.c.b16 %v5119, %v5102
        %v5613 = vpack.c.b16 %v5120, %v5103
        %v5614 = vpack.c.b16 %v5121, %v5104
        %v5615 = vpack.c.b16 %v5122, %v5105
        %v5616 = vpack.c.b16 %v5123, %v5106
        %v5617 = vpack.c.b16 %v5124, %v5107
        %v5618 = vpack.c.b16 %v5125, %v5108
        %v5619 = vpack.c.b16 %v5126, %v5109
        %v5620 = vpack.c.b16 %v5127, %v5110
        %v5621 = vpack.c.b16 %v5128, %v5111
        %v5622 = vpack.c.b16 %v5129, %v5112
        %v5623 = vpack.c.b16 %v5130, %v5113
        %v5624 = vpack.c.b16 %v5131, %v5114
        %v5625 = vpack.c.b16 %v5132, %v5115
        %v5626 = vpack.c.b16 %v5133, %v5116
        %v5627 = vpack.c.b16 %v5134, %v5117
        %v5628 = vpack.c.b16 %v5152, %v5135
        %v5629 = vpack.c.b16 %v5153, %v5136
        %v5630 = vpack.c.b16 %v5154, %v5137
        %v5631 = vpack.c.b16 %v5155, %v5138
        %v5632 = vpack.c.b16 %v5156, %v5139
        %v5633 = vpack.c.b16 %v5157, %v5140
        %v5634 = vpack.c.b16 %v5158, %v5141
        %v5635 = vpack.c.b16 %v5159, %v5142
        %v5636 = vpack.c.b16 %v5160, %v5143
        %v5637 = vpack.c.b16 %v5161, %v5144
        %v5638 = vpack.c.b16 %v5162, %v5145
        %v5639 = vpack.c.b16 %v5163, %v5146
        %v5640 = vpack.c.b16 %v5164, %v5147
        %v5641 = vpack.c.b16 %v5165, %v5148
        %v5642 = vpack.c.b16 %v5166, %v5149
        %v5643 = vpack.c.b16 %v5167, %v5150
        %v5644 = vpack.c.b16 %v5168, %v5151
        %v5645 = vpack.c.b16 %v5186, %v5169
        %v5646 = vpack.c.b16 %v5187, %v5170
        %v5647 = vpack.c.b16 %v5188, %v5171
        %v5648 = vpack.c.b16 %v5189, %v5172
        %v5649 = vpack.c.b16 %v5190, %v5173
        %v5650 = vpack.c.b16 %v5191, %v5174
        %v5651 = vpack.c.b16 %v5192, %v5175
        %v5652 = vpack.c.b16 %v5193, %v5176
        %v5653 = vpack.c.b16 %v5194, %v5177
        %v5654 = vpack.c.b16 %v5195, %v5178
        %v5655 = vpack.c.b16 %v5196, %v5179
        %v5656 = vpack.c.b16 %v5197, %v5180
        %v5657 = vpack.c.b16 %v5198, %v5181
        %v5658 = vpack.c.b16 %v5199, %v5182
        %v5659 = vpack.c.b16 %v5200, %v5183
        %v5660 = vpack.c.b16 %v5201, %v5184
        %v5661 = vpack.c.b16 %v5202, %v5185
        %v5662 = vpack.c.b16 %v5220, %v5203
        %v5663 = vpack.c.b16 %v5221, %v5204
        %v5664 = vpack.c.b16 %v5222, %v5205
        %v5665 = vpack.c.b16 %v5223, %v5206
        %v5666 = vpack.c.b16 %v5224, %v5207
        %v5667 = vpack.c.b16 %v5225, %v5208
        %v5668 = vpack.c.b16 %v5226, %v5209
        %v5669 = vpack.c.b16 %v5227, %v5210
        %v5670 = vpack.c.b16 %v5228, %v5211
        %v5671 = vpack.c.b16 %v5229, %v5212
        %v5672 = vpack.c.b16 %v5230, %v5213
        %v5673 = vpack.c.b16 %v5231, %v5214
        %v5674 = vpack.c.b16 %v5232, %v5215
        %v5675 = vpack.c.b16 %v5233, %v5216
        %v5676 = vpack.c.b16 %v5234, %v5217
        %v5677 = vpack.c.b16 %v5235, %v5218
        %v5678 = vpack.c.b16 %v5236, %v5219
        %v5679 = vpack.c.b16 %v5254, %v5237
        %v5680 = vpack.c.b16 %v5255, %v5238
        %v5681 = vpack.c.b16 %v5256, %v5239
        %v5682 = vpack.c.b16 %v5257, %v5240
        %v5683 = vpack.c.b16 %v5258, %v5241
        %v5684 = vpack.c.b16 %v5259, %v5242
        %v5685 = vpack.c.b16 %v5260, %v5243
        %v5686 = vpack.c.b16 %v5261, %v5244
        %v5687 = vpack.c.b16 %v5262, %v5245
        %v5688 = vpack.c.b16 %v5263, %v5246
        %v5689 = vpack.c.b16 %v5264, %v5247
        %v5690 = vpack.c.b16 %v5265, %v5248
        %v5691 = vpack.c.b16 %v5266, %v5249
        %v5692 = vpack.c.b16 %v5267, %v5250
        %v5693 = vpack.c.b16 %v5268, %v5251
        %v5694 = vpack.c.b16 %v5269, %v5252
        %v5695 = vpack.c.b16 %v5270, %v5253
        %v5696 = vpack.c.b16 %v5288, %v5271
        %v5697 = vpack.c.b16 %v5289, %v5272
        %v5698 = vpack.c.b16 %v5290, %v5273
        %v5699 = vpack.c.b16 %v5291, %v5274
        %v5700 = vpack.c.b16 %v5292, %v5275
        %v5701 = vpack.c.b16 %v5293, %v5276
        %v5702 = vpack.c.b16 %v5294, %v5277
        %v5703 = vpack.c.b16 %v5295, %v5278
        %v5704 = vpack.c.b16 %v5296, %v5279
        %v5705 = vpack.c.b16 %v5297, %v5280
        %v5706 = vpack.c.b16 %v5298, %v5281
        %v5707 = vpack.c.b16 %v5299, %v5282
        %v5708 = vpack.c.b16 %v5300, %v5283
        %v5709 = vpack.c.b16 %v5301, %v5284
        %v5710 = vpack.c.b16 %v5302, %v5285
        %v5711 = vpack.c.b16 %v5303, %v5286
        %v5712 = vpack.c.b16 %v5304, %v5287
        %v5713 = vpack.c.b16 %v5322, %v5305
        %v5714 = vpack.c.b16 %v5323, %v5306
        %v5715 = vpack.c.b16 %v5324, %v5307
        %v5716 = vpack.c.b16 %v5325, %v5308
        %v5717 = vpack.c.b16 %v5326, %v5309
        %v5718 = vpack.c.b16 %v5327, %v5310
        %v5719 = vpack.c.b16 %v5328, %v5311
        %v5720 = vpack.c.b16 %v5329, %v5312
        %v5721 = vpack.c.b16 %v5330, %v5313
        %v5722 = vpack.c.b16 %v5331, %v5314
        %v5723 = vpack.c.b16 %v5332, %v5315
        %v5724 = vpack.c.b16 %v5333, %v5316
        %v5725 = vpack.c.b16 %v5334, %v5317
        %v5726 = vpack.c.b16 %v5335, %v5318
        %v5727 = vpack.c.b16 %v5336, %v5319
        %v5728 = vpack.c.b16 %v5337, %v5320
        %v5729 = vpack.c.b16 %v5338, %v5321
        %v5730 = vpack.c.b16 %v5356, %v5339
        %v5731 = vpack.c.b16 %v5357, %v5340
        %v5732 = vpack.c.b16 %v5358, %v5341
        %v5733 = vpack.c.b16 %v5359, %v5342
        %v5734 = vpack.c.b16 %v5360, %v5343
        %v5735 = vpack.c.b16 %v5361, %v5344
        %v5736 = vpack.c.b16 %v5362, %v5345
        %v5737 = vpack.c.b16 %v5363, %v5346
        %v5738 = vpack.c.b16 %v5364, %v5347
        %v5739 = vpack.c.b16 %v5365, %v5348
        %v5740 = vpack.c.b16 %v5366, %v5349
        %v5741 = vpack.c.b16 %v5367, %v5350
        %v5742 = vpack.c.b16 %v5368, %v5351
        %v5743 = vpack.c.b16 %v5369, %v5352
        %v5744 = vpack.c.b16 %v5370, %v5353
        %v5745 = vpack.c.b16 %v5371, %v5354
        %v5746 = vpack.c.b16 %v5372, %v5355
        %vm6099 = vcmask 523264
        %v6101 = vsel %vm6099, %v5389, 0
        %v6104 = vsel %vm6099, %v5406, 0
        %v6107 = vsel %vm6099, %v5423, 0
        %v6110 = vsel %vm6099, %v5440, 0
        %v6113 = vsel %vm6099, %v5457, 0
        %v6116 = vsel %vm6099, %v5474, 0
        %v6119 = vsel %vm6099, %v5491, 0
        %v6122 = vsel %vm6099, %v5508, 0
        %v6125 = vsel %vm6099, %v5525, 0
        %v6128 = vsel %vm6099, %v5542, 0
        %v6131 = vsel %vm6099, %v5559, 0
        %v6134 = vsel %vm6099, %v5576, 0
        %v6137 = vsel %vm6099, %v5593, 0
        %v6140 = vsel %vm6099, %v5610, 0
        %v6143 = vsel %vm6099, %v5627, 0
        %v6146 = vsel %vm6099, %v5644, 0
        %v6149 = vsel %vm6099, %v5661, 0
        %v6152 = vsel %vm6099, %v5678, 0
        %v6155 = vsel %vm6099, %v5695, 0
        %v6158 = vsel %vm6099, %v5712, 0
        %v6161 = vsel %vm6099, %v5729, 0
        %v6164 = vsel %vm6099, %v5746, 0
        %6166 = vmatprep.subr.bf16.mxu0 0
        %6167 = vmatpush1.bf16.msra.mxu0 %v4097
        %6168 = vmatprep.subr.bf16.mxu0 0
        %6169 = vmatpush1.bf16.msra.mxu0 %v4098
        %6170 = vmatprep.subr.bf16.mxu0 0
        %6171 = vmatpush1.bf16.msra.mxu0 %v4099
        %6172 = vmatprep.subr.bf16.mxu0 0
        %6173 = vmatpush1.bf16.msra.mxu0 %v4100
        %6174 = vmatprep.subr.bf16.mxu0 0
        %6175 = vmatpush1.bf16.msra.mxu0 %v4101
        %6176 = vmatprep.subr.bf16.mxu0 0
        %6177 = vmatpush1.bf16.msra.mxu0 %v4102
        %6178 = vmatprep.subr.bf16.mxu0 0
        %6179 = vmatpush1.bf16.msra.mxu0 %v4103
        %6180 = vmatprep.subr.bf16.mxu0 0
        %6181 = vmatpush1.bf16.msra.mxu0 %v4104
        %6182 = vmatprep.subr.bf16.mxu0 0
        %6183 = vmatpush1.bf16.msra.mxu0 %v4105
        %6184 = vmatprep.subr.bf16.mxu0 0
        %6185 = vmatpush1.bf16.msra.mxu0 %v4106
        %6186 = vmatprep.subr.bf16.mxu0 0
        %6187 = vmatpush1.bf16.msra.mxu0 %v4107
        %6188 = vmatprep.subr.bf16.mxu0 0
        %6189 = vmatpush1.bf16.msra.mxu0 %v4108
        %6190 = vmatprep.subr.bf16.mxu0 0
        %6191 = vmatpush1.bf16.msra.mxu0 %v4109
        %6192 = vmatprep.subr.bf16.mxu0 0
        %6193 = vmatpush1.bf16.msra.mxu0 %v4110
        %6194 = vmatprep.subr.bf16.mxu0 0
        %6195 = vmatpush1.bf16.msra.mxu0 %v4111
        %6196 = vmatprep.subr.bf16.mxu0 0
        %6197 = vmatpush1.bf16.msra.mxu0 %v4112
        %6198 = vmatprep.mubr.bf16.mxu0 %v5374
        %6199 = vmatmul.mubr.bf16.gmra.mrb[0].mxu0 %v5373
        %v6200 = vpop.f32.mrb[0].mxu0
        %v6201 = vadd.f32 0.0, %v6200
        %v6202 = vpop.f32.mrb[0].mxu0
        %v6203 = vpop.f32.mrb[0].mxu0
        %v6204 = vadd.f32 0.0, %v6203
        %v6205 = vpop.f32.mrb[0].mxu0
        %6206 = vmatprep.mubr.bf16.mxu0 %v5391
        %6207 = vmatmul.mubr.bf16.gmra.mrb[0].mxu0 %v5390
        %v6208 = vpop.f32.mrb[0].mxu0
        %v6209 = vadd.f32 0.0, %v6208
        %v6210 = vpop.f32.mrb[0].mxu0
        %v6211 = vpop.f32.mrb[0].mxu0
        %v6212 = vadd.f32 0.0, %v6211
        %v6213 = vpop.f32.mrb[0].mxu0
        %6214 = vmatprep.mubr.bf16.mxu0 %v5408
        %6215 = vmatmul.mubr.bf16.gmra.mrb[0].mxu0 %v5407
        %v6216 = vpop.f32.mrb[0].mxu0
        %v6217 = vadd.f32 0.0, %v6216
        %v6218 = vpop.f32.mrb[0].mxu0
        %v6219 = vpop.f32.mrb[0].mxu0
        %v6220 = vadd.f32 0.0, %v6219
        %v6221 = vpop.f32.mrb[0].mxu0
        %6222 = vmatprep.mubr.bf16.mxu0 %v5425
        %6223 = vmatmul.mubr.bf16.gmra.mrb[0].mxu0 %v5424
        %v6224 = vpop.f32.mrb[0].mxu0
        %v6225 = vadd.f32 0.0, %v6224
        %v6226 = vpop.f32.mrb[0].mxu0
        %v6227 = vpop.f32.mrb[0].mxu0
        %v6228 = vadd.f32 0.0, %v6227
        %v6229 = vpop.f32.mrb[0].mxu0
        %6230 = vmatprep.mubr.bf16.mxu0 %v5442
        %6231 = vmatmul.mubr.bf16.gmra.mrb[0].mxu0 %v5441
        %v6232 = vpop.f32.mrb[0].mxu0
        %v6233 = vadd.f32 0.0, %v6232
        %v6234 = vpop.f32.mrb[0].mxu0
        %v6235 = vpop.f32.mrb[0].mxu0
        %v6236 = vadd.f32 0.0, %v6235
        %v6237 = vpop.f32.mrb[0].mxu0
        %6238 = vmatprep.mubr.bf16.mxu0 %v5459
        %6239 = vmatmul.mubr.bf16.gmra.mrb[0].mxu0 %v5458
        %v6240 = vpop.f32.mrb[0].mxu0
        %v6241 = vadd.f32 0.0, %v6240
        %v6242 = vpop.f32.mrb[0].mxu0
        %v6243 = vpop.f32.mrb[0].mxu0
        %v6244 = vadd.f32 0.0, %v6243
        %v6245 = vpop.f32.mrb[0].mxu0
        %6246 = vmatprep.mubr.bf16.mxu0 %v5476
        %6247 = vmatmul.mubr.bf16.gmra.mrb[0].mxu0 %v5475
        %v6248 = vpop.f32.mrb[0].mxu0
        %v6249 = vadd.f32 0.0, %v6248
        %v6250 = vpop.f32.mrb[0].mxu0
        %v6251 = vpop.f32.mrb[0].mxu0
        %v6252 = vadd.f32 0.0, %v6251
        %v6253 = vpop.f32.mrb[0].mxu0
        %6254 = vmatprep.mubr.bf16.mxu0 %v5493
        %6255 = vmatmul.mubr.bf16.gmra.mrb[0].mxu0 %v5492
        %v6256 = vpop.f32.mrb[0].mxu0
        %v6257 = vadd.f32 0.0, %v6256
        %v6258 = vpop.f32.mrb[0].mxu0
        %v6259 = vpop.f32.mrb[0].mxu0
        %v6260 = vadd.f32 0.0, %v6259
        %v6261 = vpop.f32.mrb[0].mxu0
        %6262 = vmatprep.mubr.bf16.mxu0 %v5510
        %6263 = vmatmul.mubr.bf16.gmra.mrb[0].mxu0 %v5509
        %v6264 = vpop.f32.mrb[0].mxu0
        %v6265 = vadd.f32 0.0, %v6264
        %v6266 = vpop.f32.mrb[0].mxu0
        %v6267 = vpop.f32.mrb[0].mxu0
        %v6268 = vadd.f32 0.0, %v6267
        %v6269 = vpop.f32.mrb[0].mxu0
        %6270 = vmatprep.mubr.bf16.mxu0 %v5527
        %6271 = vmatmul.mubr.bf16.gmra.mrb[0].mxu0 %v5526
        %v6272 = vpop.f32.mrb[0].mxu0
        %v6273 = vadd.f32 0.0, %v6272
        %v6274 = vpop.f32.mrb[0].mxu0
        %v6275 = vpop.f32.mrb[0].mxu0
        %v6276 = vadd.f32 0.0, %v6275
        %v6277 = vpop.f32.mrb[0].mxu0
        %6278 = vmatprep.mubr.bf16.mxu0 %v5544
        %6279 = vmatmul.mubr.bf16.gmra.mrb[0].mxu0 %v5543
        %v6280 = vpop.f32.mrb[0].mxu0
        %v6281 = vadd.f32 0.0, %v6280
        %v6282 = vpop.f32.mrb[0].mxu0
        %v6283 = vpop.f32.mrb[0].mxu0
        %v6284 = vadd.f32 0.0, %v6283
        %v6285 = vpop.f32.mrb[0].mxu0
        %6286 = vmatprep.mubr.bf16.mxu0 %v5561
        %6287 = vmatmul.mubr.bf16.gmra.mrb[0].mxu0 %v5560
        %v6288 = vpop.f32.mrb[0].mxu0
        %v6289 = vadd.f32 0.0, %v6288
        %v6290 = vpop.f32.mrb[0].mxu0
        %v6291 = vpop.f32.mrb[0].mxu0
        %v6292 = vadd.f32 0.0, %v6291
        %v6293 = vpop.f32.mrb[0].mxu0
        %6294 = vmatprep.mubr.bf16.mxu0 %v5578
        %6295 = vmatmul.mubr.bf16.gmra.mrb[0].mxu0 %v5577
        %v6296 = vpop.f32.mrb[0].mxu0
        %v6297 = vadd.f32 0.0, %v6296
        %v6298 = vpop.f32.mrb[0].mxu0
        %v6299 = vpop.f32.mrb[0].mxu0
        %v6300 = vadd.f32 0.0, %v6299
        %v6301 = vpop.f32.mrb[0].mxu0
        %6302 = vmatprep.mubr.bf16.mxu0 %v5595
        %6303 = vmatmul.mubr.bf16.gmra.mrb[0].mxu0 %v5594
        %v6304 = vpop.f32.mrb[0].mxu0
        %v6305 = vadd.f32 0.0, %v6304
        %v6306 = vpop.f32.mrb[0].mxu0
        %v6307 = vpop.f32.mrb[0].mxu0
        %v6308 = vadd.f32 0.0, %v6307
        %v6309 = vpop.f32.mrb[0].mxu0
        %6310 = vmatprep.mubr.bf16.mxu0 %v5612
        %6311 = vmatmul.mubr.bf16.gmra.mrb[0].mxu0 %v5611
        %v6312 = vpop.f32.mrb[0].mxu0
        %v6313 = vadd.f32 0.0, %v6312
        %v6314 = vpop.f32.mrb[0].mxu0
        %v6315 = vpop.f32.mrb[0].mxu0
        %v6316 = vadd.f32 0.0, %v6315
        %v6317 = vpop.f32.mrb[0].mxu0
        %6318 = vmatprep.mubr.bf16.mxu0 %v5629
        %6319 = vmatmul.mubr.bf16.gmra.mrb[0].mxu0 %v5628
        %v6320 = vpop.f32.mrb[0].mxu0
        %v6321 = vadd.f32 0.0, %v6320
        %v6322 = vpop.f32.mrb[0].mxu0
        %v6323 = vpop.f32.mrb[0].mxu0
        %v6324 = vadd.f32 0.0, %v6323
        %v6325 = vpop.f32.mrb[0].mxu0
        %6326 = vmatprep.mubr.bf16.mxu0 %v5646
        %6327 = vmatmul.mubr.bf16.gmra.mrb[0].mxu0 %v5645
        %v6328 = vpop.f32.mrb[0].mxu0
        %v6329 = vadd.f32 0.0, %v6328
        %v6330 = vpop.f32.mrb[0].mxu0
        %v6331 = vpop.f32.mrb[0].mxu0
        %v6332 = vadd.f32 0.0, %v6331
        %v6333 = vpop.f32.mrb[0].mxu0
        %6334 = vmatprep.mubr.bf16.mxu0 %v5663
        %6335 = vmatmul.mubr.bf16.gmra.mrb[0].mxu0 %v5662
        %v6336 = vpop.f32.mrb[0].mxu0
        %v6337 = vadd.f32 0.0, %v6336
        %v6338 = vpop.f32.mrb[0].mxu0
        %v6339 = vpop.f32.mrb[0].mxu0
        %v6340 = vadd.f32 0.0, %v6339
        %v6341 = vpop.f32.mrb[0].mxu0
        %6342 = vmatprep.mubr.bf16.mxu0 %v5680
        %6343 = vmatmul.mubr.bf16.gmra.mrb[0].mxu0 %v5679
        %v6344 = vpop.f32.mrb[0].mxu0
        %v6345 = vadd.f32 0.0, %v6344
        %v6346 = vpop.f32.mrb[0].mxu0
        %v6347 = vpop.f32.mrb[0].mxu0
        %v6348 = vadd.f32 0.0, %v6347
        %v6349 = vpop.f32.mrb[0].mxu0
        %6350 = vmatprep.mubr.bf16.mxu0 %v5697
        %6351 = vmatmul.mubr.bf16.gmra.mrb[0].mxu0 %v5696
        %v6352 = vpop.f32.mrb[0].mxu0
        %v6353 = vadd.f32 0.0, %v6352
        %v6354 = vpop.f32.mrb[0].mxu0
        %v6355 = vpop.f32.mrb[0].mxu0
        %v6356 = vadd.f32 0.0, %v6355
        %v6357 = vpop.f32.mrb[0].mxu0
        %6358 = vmatprep.mubr.bf16.mxu0 %v5714
        %6359 = vmatmul.mubr.bf16.gmra.mrb[0].mxu0 %v5713
        %v6360 = vpop.f32.mrb[0].mxu0
        %v6361 = vadd.f32 0.0, %v6360
        %v6362 = vpop.f32.mrb[0].mxu0
        %v6363 = vpop.f32.mrb[0].mxu0
        %v6364 = vadd.f32 0.0, %v6363
        %v6365 = vpop.f32.mrb[0].mxu0
        %6366 = vmatprep.mubr.bf16.mxu0 %v5731
        %6367 = vmatmul.mubr.bf16.gmra.mrb[0].mxu0 %v5730
        %v6368 = vpop.f32.mrb[0].mxu0
        %v6369 = vadd.f32 0.0, %v6368
        %v6370 = vpop.f32.mrb[0].mxu0
        %v6371 = vpop.f32.mrb[0].mxu0
        %v6372 = vadd.f32 0.0, %v6371
        %v6373 = vpop.f32.mrb[0].mxu0
        %6374 = vdwg.mxu0
        %6375 = vmatprep.subr.bf16.mxu0 0
        %6376 = vmatpush1.bf16.msra.mxu0 %v4113
        %6377 = vmatprep.subr.bf16.mxu0 0
        %6378 = vmatpush1.bf16.msra.mxu0 %v4114
        %6379 = vmatprep.subr.bf16.mxu0 0
        %6380 = vmatpush1.bf16.msra.mxu0 %v4115
        %6381 = vmatprep.subr.bf16.mxu0 0
        %6382 = vmatpush1.bf16.msra.mxu0 %v4116
        %6383 = vmatprep.subr.bf16.mxu0 0
        %6384 = vmatpush1.bf16.msra.mxu0 %v4117
        %6385 = vmatprep.subr.bf16.mxu0 0
        %6386 = vmatpush1.bf16.msra.mxu0 %v4118
        %6387 = vmatprep.subr.bf16.mxu0 0
        %6388 = vmatpush1.bf16.msra.mxu0 %v4119
        %6389 = vmatprep.subr.bf16.mxu0 0
        %6390 = vmatpush1.bf16.msra.mxu0 %v4120
        %6391 = vmatprep.subr.bf16.mxu0 0
        %6392 = vmatpush1.bf16.msra.mxu0 %v4121
        %6393 = vmatprep.subr.bf16.mxu0 0
        %6394 = vmatpush1.bf16.msra.mxu0 %v4122
        %6395 = vmatprep.subr.bf16.mxu0 0
        %6396 = vmatpush1.bf16.msra.mxu0 %v4123
        %6397 = vmatprep.subr.bf16.mxu0 0
        %6398 = vmatpush1.bf16.msra.mxu0 %v4124
        %6399 = vmatprep.subr.bf16.mxu0 0
        %6400 = vmatpush1.bf16.msra.mxu0 %v4125
        %6401 = vmatprep.subr.bf16.mxu0 0
        %6402 = vmatpush1.bf16.msra.mxu0 %v4126
        %6403 = vmatprep.subr.bf16.mxu0 0
        %6404 = vmatpush1.bf16.msra.mxu0 %v4127
        %6405 = vmatprep.subr.bf16.mxu0 0
        %6406 = vmatpush1.bf16.msra.mxu0 %v4128
        %6407 = vmatprep.mubr.bf16.mxu0 %v5376
        %6408 = vmatmul.mubr.bf16.gmra.mrb[0].mxu0 %v5375
        %v6409 = vpop.f32.mrb[0].mxu0
        %v6410 = vadd.f32 %v6201, %v6409
        %v6411 = vpop.f32.mrb[0].mxu0
        %v6412 = vpop.f32.mrb[0].mxu0
        %v6413 = vadd.f32 %v6204, %v6412
        %v6414 = vpop.f32.mrb[0].mxu0
        %6415 = vmatprep.mubr.bf16.mxu0 %v5393
        %6416 = vmatmul.mubr.bf16.gmra.mrb[0].mxu0 %v5392
        %v6417 = vpop.f32.mrb[0].mxu0
        %v6418 = vadd.f32 %v6209, %v6417
        %v6419 = vpop.f32.mrb[0].mxu0
        %v6420 = vpop.f32.mrb[0].mxu0
        %v6421 = vadd.f32 %v6212, %v6420
        %v6422 = vpop.f32.mrb[0].mxu0
        %6423 = vmatprep.mubr.bf16.mxu0 %v5410
        %6424 = vmatmul.mubr.bf16.gmra.mrb[0].mxu0 %v5409
        %v6425 = vpop.f32.mrb[0].mxu0
        %v6426 = vadd.f32 %v6217, %v6425
        %v6427 = vpop.f32.mrb[0].mxu0
        %v6428 = vpop.f32.mrb[0].mxu0
        %v6429 = vadd.f32 %v6220, %v6428
        %v6430 = vpop.f32.mrb[0].mxu0
        %6431 = vmatprep.mubr.bf16.mxu0 %v5427
        %6432 = vmatmul.mubr.bf16.gmra.mrb[0].mxu0 %v5426
        %v6433 = vpop.f32.mrb[0].mxu0
        %v6434 = vadd.f32 %v6225, %v6433
        %v6435 = vpop.f32.mrb[0].mxu0
        %v6436 = vpop.f32.mrb[0].mxu0
        %v6437 = vadd.f32 %v6228, %v6436
        %v6438 = vpop.f32.mrb[0].mxu0
        %6439 = vmatprep.mubr.bf16.mxu0 %v5444
        %6440 = vmatmul.mubr.bf16.gmra.mrb[0].mxu0 %v5443
        %v6441 = vpop.f32.mrb[0].mxu0
        %v6442 = vadd.f32 %v6233, %v6441
        %v6443 = vpop.f32.mrb[0].mxu0
        %v6444 = vpop.f32.mrb[0].mxu0
        %v6445 = vadd.f32 %v6236, %v6444
        %v6446 = vpop.f32.mrb[0].mxu0
        %6447 = vmatprep.mubr.bf16.mxu0 %v5461
        %6448 = vmatmul.mubr.bf16.gmra.mrb[0].mxu0 %v5460
        %v6449 = vpop.f32.mrb[0].mxu0
        %v6450 = vadd.f32 %v6241, %v6449
        %v6451 = vpop.f32.mrb[0].mxu0
        %v6452 = vpop.f32.mrb[0].mxu0
        %v6453 = vadd.f32 %v6244, %v6452
        %v6454 = vpop.f32.mrb[0].mxu0
        %6455 = vmatprep.mubr.bf16.mxu0 %v5478
        %6456 = vmatmul.mubr.bf16.gmra.mrb[0].mxu0 %v5477
        %v6457 = vpop.f32.mrb[0].mxu0
        %v6458 = vadd.f32 %v6249, %v6457
        %v6459 = vpop.f32.mrb[0].mxu0
        %v6460 = vpop.f32.mrb[0].mxu0
        %v6461 = vadd.f32 %v6252, %v6460
        %v6462 = vpop.f32.mrb[0].mxu0
        %6463 = vmatprep.mubr.bf16.mxu0 %v5495
        %6464 = vmatmul.mubr.bf16.gmra.mrb[0].mxu0 %v5494
        %v6465 = vpop.f32.mrb[0].mxu0
        %v6466 = vadd.f32 %v6257, %v6465
        %v6467 = vpop.f32.mrb[0].mxu0
        %v6468 = vpop.f32.mrb[0].mxu0
        %v6469 = vadd.f32 %v6260, %v6468
        %v6470 = vpop.f32.mrb[0].mxu0
        %6471 = vmatprep.mubr.bf16.mxu0 %v5512
        %6472 = vmatmul.mubr.bf16.gmra.mrb[0].mxu0 %v5511
        %v6473 = vpop.f32.mrb[0].mxu0
        %v6474 = vadd.f32 %v6265, %v6473
        %v6475 = vpop.f32.mrb[0].mxu0
        %v6476 = vpop.f32.mrb[0].mxu0
        %v6477 = vadd.f32 %v6268, %v6476
        %v6478 = vpop.f32.mrb[0].mxu0
        %6479 = vmatprep.mubr.bf16.mxu0 %v5529
        %6480 = vmatmul.mubr.bf16.gmra.mrb[0].mxu0 %v5528
        %v6481 = vpop.f32.mrb[0].mxu0
        %v6482 = vadd.f32 %v6273, %v6481
        %v6483 = vpop.f32.mrb[0].mxu0
        %v6484 = vpop.f32.mrb[0].mxu0
        %v6485 = vadd.f32 %v6276, %v6484
        %v6486 = vpop.f32.mrb[0].mxu0
        %6487 = vmatprep.mubr.bf16.mxu0 %v5546
        %6488 = vmatmul.mubr.bf16.gmra.mrb[0].mxu0 %v5545
        %v6489 = vpop.f32.mrb[0].mxu0
        %v6490 = vadd.f32 %v6281, %v6489
        %v6491 = vpop.f32.mrb[0].mxu0
        %v6492 = vpop.f32.mrb[0].mxu0
        %v6493 = vadd.f32 %v6284, %v6492
        %v6494 = vpop.f32.mrb[0].mxu0
        %6495 = vmatprep.mubr.bf16.mxu0 %v5563
        %6496 = vmatmul.mubr.bf16.gmra.mrb[0].mxu0 %v5562
        %v6497 = vpop.f32.mrb[0].mxu0
        %v6498 = vadd.f32 %v6289, %v6497
        %v6499 = vpop.f32.mrb[0].mxu0
        %v6500 = vpop.f32.mrb[0].mxu0
        %v6501 = vadd.f32 %v6292, %v6500
        %v6502 = vpop.f32.mrb[0].mxu0
        %6503 = vmatprep.mubr.bf16.mxu0 %v5580
        %6504 = vmatmul.mubr.bf16.gmra.mrb[0].mxu0 %v5579
        %v6505 = vpop.f32.mrb[0].mxu0
        %v6506 = vadd.f32 %v6297, %v6505
        %v6507 = vpop.f32.mrb[0].mxu0
        %v6508 = vpop.f32.mrb[0].mxu0
        %v6509 = vadd.f32 %v6300, %v6508
        %v6510 = vpop.f32.mrb[0].mxu0
        %6511 = vmatprep.mubr.bf16.mxu0 %v5597
        %6512 = vmatmul.mubr.bf16.gmra.mrb[0].mxu0 %v5596
        %v6513 = vpop.f32.mrb[0].mxu0
        %v6514 = vadd.f32 %v6305, %v6513
        %v6515 = vpop.f32.mrb[0].mxu0
        %v6516 = vpop.f32.mrb[0].mxu0
        %v6517 = vadd.f32 %v6308, %v6516
        %v6518 = vpop.f32.mrb[0].mxu0
        %6519 = vmatprep.mubr.bf16.mxu0 %v5614
        %6520 = vmatmul.mubr.bf16.gmra.mrb[0].mxu0 %v5613
        %v6521 = vpop.f32.mrb[0].mxu0
        %v6522 = vadd.f32 %v6313, %v6521
        %v6523 = vpop.f32.mrb[0].mxu0
        %v6524 = vpop.f32.mrb[0].mxu0
        %v6525 = vadd.f32 %v6316, %v6524
        %v6526 = vpop.f32.mrb[0].mxu0
        %6527 = vmatprep.mubr.bf16.mxu0 %v5631
        %6528 = vmatmul.mubr.bf16.gmra.mrb[0].mxu0 %v5630
        %v6529 = vpop.f32.mrb[0].mxu0
        %v6530 = vadd.f32 %v6321, %v6529
        %v6531 = vpop.f32.mrb[0].mxu0
        %v6532 = vpop.f32.mrb[0].mxu0
        %v6533 = vadd.f32 %v6324, %v6532
        %v6534 = vpop.f32.mrb[0].mxu0
        %6535 = vmatprep.mubr.bf16.mxu0 %v5648
        %6536 = vmatmul.mubr.bf16.gmra.mrb[0].mxu0 %v5647
        %v6537 = vpop.f32.mrb[0].mxu0
        %v6538 = vadd.f32 %v6329, %v6537
        %v6539 = vpop.f32.mrb[0].mxu0
        %v6540 = vpop.f32.mrb[0].mxu0
        %v6541 = vadd.f32 %v6332, %v6540
        %v6542 = vpop.f32.mrb[0].mxu0
        %6543 = vmatprep.mubr.bf16.mxu0 %v5665
        %6544 = vmatmul.mubr.bf16.gmra.mrb[0].mxu0 %v5664
        %v6545 = vpop.f32.mrb[0].mxu0
        %v6546 = vadd.f32 %v6337, %v6545
        %v6547 = vpop.f32.mrb[0].mxu0
        %v6548 = vpop.f32.mrb[0].mxu0
        %v6549 = vadd.f32 %v6340, %v6548
        %v6550 = vpop.f32.mrb[0].mxu0
        %6551 = vmatprep.mubr.bf16.mxu0 %v5682
        %6552 = vmatmul.mubr.bf16.gmra.mrb[0].mxu0 %v5681
        %v6553 = vpop.f32.mrb[0].mxu0
        %v6554 = vadd.f32 %v6345, %v6553
        %v6555 = vpop.f32.mrb[0].mxu0
        %v6556 = vpop.f32.mrb[0].mxu0
        %v6557 = vadd.f32 %v6348, %v6556
        %v6558 = vpop.f32.mrb[0].mxu0
        %6559 = vmatprep.mubr.bf16.mxu0 %v5699
        %6560 = vmatmul.mubr.bf16.gmra.mrb[0].mxu0 %v5698
        %v6561 = vpop.f32.mrb[0].mxu0
        %v6562 = vadd.f32 %v6353, %v6561
        %v6563 = vpop.f32.mrb[0].mxu0
        %v6564 = vpop.f32.mrb[0].mxu0
        %v6565 = vadd.f32 %v6356, %v6564
        %v6566 = vpop.f32.mrb[0].mxu0
        %6567 = vmatprep.mubr.bf16.mxu0 %v5716
        %6568 = vmatmul.mubr.bf16.gmra.mrb[0].mxu0 %v5715
        %v6569 = vpop.f32.mrb[0].mxu0
        %v6570 = vadd.f32 %v6361, %v6569
        %v6571 = vpop.f32.mrb[0].mxu0
        %v6572 = vpop.f32.mrb[0].mxu0
        %v6573 = vadd.f32 %v6364, %v6572
        %v6574 = vpop.f32.mrb[0].mxu0
        %6575 = vmatprep.mubr.bf16.mxu0 %v5733
        %6576 = vmatmul.mubr.bf16.gmra.mrb[0].mxu0 %v5732
        %v6577 = vpop.f32.mrb[0].mxu0
        %v6578 = vadd.f32 %v6369, %v6577
        %v6579 = vpop.f32.mrb[0].mxu0
        %v6580 = vpop.f32.mrb[0].mxu0
        %v6581 = vadd.f32 %v6372, %v6580
        %v6582 = vpop.f32.mrb[0].mxu0
        %6583 = vdwg.mxu0
        %6584 = vmatprep.subr.bf16.mxu0 0
        %6585 = vmatpush1.bf16.msra.mxu0 %v4129
        %6586 = vmatprep.subr.bf16.mxu0 0
        %6587 = vmatpush1.bf16.msra.mxu0 %v4130
        %6588 = vmatprep.subr.bf16.mxu0 0
        %6589 = vmatpush1.bf16.msra.mxu0 %v4131
        %6590 = vmatprep.subr.bf16.mxu0 0
        %6591 = vmatpush1.bf16.msra.mxu0 %v4132
        %6592 = vmatprep.subr.bf16.mxu0 0
        %6593 = vmatpush1.bf16.msra.mxu0 %v4133
        %6594 = vmatprep.subr.bf16.mxu0 0
        %6595 = vmatpush1.bf16.msra.mxu0 %v4134
        %6596 = vmatprep.subr.bf16.mxu0 0
        %6597 = vmatpush1.bf16.msra.mxu0 %v4135
        %6598 = vmatprep.subr.bf16.mxu0 0
        %6599 = vmatpush1.bf16.msra.mxu0 %v4136
        %6600 = vmatprep.subr.bf16.mxu0 0
        %6601 = vmatpush1.bf16.msra.mxu0 %v4137
        %6602 = vmatprep.subr.bf16.mxu0 0
        %6603 = vmatpush1.bf16.msra.mxu0 %v4138
        %6604 = vmatprep.subr.bf16.mxu0 0
        %6605 = vmatpush1.bf16.msra.mxu0 %v4139
        %6606 = vmatprep.subr.bf16.mxu0 0
        %6607 = vmatpush1.bf16.msra.mxu0 %v4140
        %6608 = vmatprep.subr.bf16.mxu0 0
        %6609 = vmatpush1.bf16.msra.mxu0 %v4141
        %6610 = vmatprep.subr.bf16.mxu0 0
        %6611 = vmatpush1.bf16.msra.mxu0 %v4142
        %6612 = vmatprep.subr.bf16.mxu0 0
        %6613 = vmatpush1.bf16.msra.mxu0 %v4143
        %6614 = vmatprep.subr.bf16.mxu0 0
        %6615 = vmatpush1.bf16.msra.mxu0 %v4144
        %6616 = vmatprep.mubr.bf16.mxu0 %v5378
        %6617 = vmatmul.mubr.bf16.gmra.mrb[0].mxu0 %v5377
        %v6618 = vpop.f32.mrb[0].mxu0
        %v6619 = vadd.f32 %v6410, %v6618
        %v6620 = vpop.f32.mrb[0].mxu0
        %v6621 = vpop.f32.mrb[0].mxu0
        %v6622 = vadd.f32 %v6413, %v6621
        %v6623 = vpop.f32.mrb[0].mxu0
        %6624 = vmatprep.mubr.bf16.mxu0 %v5395
        %6625 = vmatmul.mubr.bf16.gmra.mrb[0].mxu0 %v5394
        %v6626 = vpop.f32.mrb[0].mxu0
        %v6627 = vadd.f32 %v6418, %v6626
        %v6628 = vpop.f32.mrb[0].mxu0
        %v6629 = vpop.f32.mrb[0].mxu0
        %v6630 = vadd.f32 %v6421, %v6629
        %v6631 = vpop.f32.mrb[0].mxu0
        %6632 = vmatprep.mubr.bf16.mxu0 %v5412
        %6633 = vmatmul.mubr.bf16.gmra.mrb[0].mxu0 %v5411
        %v6634 = vpop.f32.mrb[0].mxu0
        %v6635 = vadd.f32 %v6426, %v6634
        %v6636 = vpop.f32.mrb[0].mxu0
        %v6637 = vpop.f32.mrb[0].mxu0
        %v6638 = vadd.f32 %v6429, %v6637
        %v6639 = vpop.f32.mrb[0].mxu0
        %6640 = vmatprep.mubr.bf16.mxu0 %v5429
        %6641 = vmatmul.mubr.bf16.gmra.mrb[0].mxu0 %v5428
        %v6642 = vpop.f32.mrb[0].mxu0
        %v6643 = vadd.f32 %v6434, %v6642
        %v6644 = vpop.f32.mrb[0].mxu0
        %v6645 = vpop.f32.mrb[0].mxu0
        %v6646 = vadd.f32 %v6437, %v6645
        %v6647 = vpop.f32.mrb[0].mxu0
        %6648 = vmatprep.mubr.bf16.mxu0 %v5446
        %6649 = vmatmul.mubr.bf16.gmra.mrb[0].mxu0 %v5445
        %v6650 = vpop.f32.mrb[0].mxu0
        %v6651 = vadd.f32 %v6442, %v6650
        %v6652 = vpop.f32.mrb[0].mxu0
        %v6653 = vpop.f32.mrb[0].mxu0
        %v6654 = vadd.f32 %v6445, %v6653
        %v6655 = vpop.f32.mrb[0].mxu0
        %6656 = vmatprep.mubr.bf16.mxu0 %v5463
        %6657 = vmatmul.mubr.bf16.gmra.mrb[0].mxu0 %v5462
        %v6658 = vpop.f32.mrb[0].mxu0
        %v6659 = vadd.f32 %v6450, %v6658
        %v6660 = vpop.f32.mrb[0].mxu0
        %v6661 = vpop.f32.mrb[0].mxu0
        %v6662 = vadd.f32 %v6453, %v6661
        %v6663 = vpop.f32.mrb[0].mxu0
        %6664 = vmatprep.mubr.bf16.mxu0 %v5480
        %6665 = vmatmul.mubr.bf16.gmra.mrb[0].mxu0 %v5479
        %v6666 = vpop.f32.mrb[0].mxu0
        %v6667 = vadd.f32 %v6458, %v6666
        %v6668 = vpop.f32.mrb[0].mxu0
        %v6669 = vpop.f32.mrb[0].mxu0
        %v6670 = vadd.f32 %v6461, %v6669
        %v6671 = vpop.f32.mrb[0].mxu0
        %6672 = vmatprep.mubr.bf16.mxu0 %v5497
        %6673 = vmatmul.mubr.bf16.gmra.mrb[0].mxu0 %v5496
        %v6674 = vpop.f32.mrb[0].mxu0
        %v6675 = vadd.f32 %v6466, %v6674
        %v6676 = vpop.f32.mrb[0].mxu0
        %v6677 = vpop.f32.mrb[0].mxu0
        %v6678 = vadd.f32 %v6469, %v6677
        %v6679 = vpop.f32.mrb[0].mxu0
        %6680 = vmatprep.mubr.bf16.mxu0 %v5514
        %6681 = vmatmul.mubr.bf16.gmra.mrb[0].mxu0 %v5513
        %v6682 = vpop.f32.mrb[0].mxu0
        %v6683 = vadd.f32 %v6474, %v6682
        %v6684 = vpop.f32.mrb[0].mxu0
        %v6685 = vpop.f32.mrb[0].mxu0
        %v6686 = vadd.f32 %v6477, %v6685
        %v6687 = vpop.f32.mrb[0].mxu0
        %6688 = vmatprep.mubr.bf16.mxu0 %v5531
        %6689 = vmatmul.mubr.bf16.gmra.mrb[0].mxu0 %v5530
        %v6690 = vpop.f32.mrb[0].mxu0
        %v6691 = vadd.f32 %v6482, %v6690
        %v6692 = vpop.f32.mrb[0].mxu0
        %v6693 = vpop.f32.mrb[0].mxu0
        %v6694 = vadd.f32 %v6485, %v6693
        %v6695 = vpop.f32.mrb[0].mxu0
        %6696 = vmatprep.mubr.bf16.mxu0 %v5548
        %6697 = vmatmul.mubr.bf16.gmra.mrb[0].mxu0 %v5547
        %v6698 = vpop.f32.mrb[0].mxu0
        %v6699 = vadd.f32 %v6490, %v6698
        %v6700 = vpop.f32.mrb[0].mxu0
        %v6701 = vpop.f32.mrb[0].mxu0
        %v6702 = vadd.f32 %v6493, %v6701
        %v6703 = vpop.f32.mrb[0].mxu0
        %6704 = vmatprep.mubr.bf16.mxu0 %v5565
        %6705 = vmatmul.mubr.bf16.gmra.mrb[0].mxu0 %v5564
        %v6706 = vpop.f32.mrb[0].mxu0
        %v6707 = vadd.f32 %v6498, %v6706
        %v6708 = vpop.f32.mrb[0].mxu0
        %v6709 = vpop.f32.mrb[0].mxu0
        %v6710 = vadd.f32 %v6501, %v6709
        %v6711 = vpop.f32.mrb[0].mxu0
        %6712 = vmatprep.mubr.bf16.mxu0 %v5582
        %6713 = vmatmul.mubr.bf16.gmra.mrb[0].mxu0 %v5581
        %v6714 = vpop.f32.mrb[0].mxu0
        %v6715 = vadd.f32 %v6506, %v6714
        %v6716 = vpop.f32.mrb[0].mxu0
        %v6717 = vpop.f32.mrb[0].mxu0
        %v6718 = vadd.f32 %v6509, %v6717
        %v6719 = vpop.f32.mrb[0].mxu0
        %6720 = vmatprep.mubr.bf16.mxu0 %v5599
        %6721 = vmatmul.mubr.bf16.gmra.mrb[0].mxu0 %v5598
        %v6722 = vpop.f32.mrb[0].mxu0
        %v6723 = vadd.f32 %v6514, %v6722
        %v6724 = vpop.f32.mrb[0].mxu0
        %v6725 = vpop.f32.mrb[0].mxu0
        %v6726 = vadd.f32 %v6517, %v6725
        %v6727 = vpop.f32.mrb[0].mxu0
        %6728 = vmatprep.mubr.bf16.mxu0 %v5616
        %6729 = vmatmul.mubr.bf16.gmra.mrb[0].mxu0 %v5615
        %v6730 = vpop.f32.mrb[0].mxu0
        %v6731 = vadd.f32 %v6522, %v6730
        %v6732 = vpop.f32.mrb[0].mxu0
        %v6733 = vpop.f32.mrb[0].mxu0
        %v6734 = vadd.f32 %v6525, %v6733
        %v6735 = vpop.f32.mrb[0].mxu0
        %6736 = vmatprep.mubr.bf16.mxu0 %v5633
        %6737 = vmatmul.mubr.bf16.gmra.mrb[0].mxu0 %v5632
        %v6738 = vpop.f32.mrb[0].mxu0
        %v6739 = vadd.f32 %v6530, %v6738
        %v6740 = vpop.f32.mrb[0].mxu0
        %v6741 = vpop.f32.mrb[0].mxu0
        %v6742 = vadd.f32 %v6533, %v6741
        %v6743 = vpop.f32.mrb[0].mxu0
        %6744 = vmatprep.mubr.bf16.mxu0 %v5650
        %6745 = vmatmul.mubr.bf16.gmra.mrb[0].mxu0 %v5649
        %v6746 = vpop.f32.mrb[0].mxu0
        %v6747 = vadd.f32 %v6538, %v6746
        %v6748 = vpop.f32.mrb[0].mxu0
        %v6749 = vpop.f32.mrb[0].mxu0
        %v6750 = vadd.f32 %v6541, %v6749
        %v6751 = vpop.f32.mrb[0].mxu0
        %6752 = vmatprep.mubr.bf16.mxu0 %v5667
        %6753 = vmatmul.mubr.bf16.gmra.mrb[0].mxu0 %v5666
        %v6754 = vpop.f32.mrb[0].mxu0
        %v6755 = vadd.f32 %v6546, %v6754
        %v6756 = vpop.f32.mrb[0].mxu0
        %v6757 = vpop.f32.mrb[0].mxu0
        %v6758 = vadd.f32 %v6549, %v6757
        %v6759 = vpop.f32.mrb[0].mxu0
        %6760 = vmatprep.mubr.bf16.mxu0 %v5684
        %6761 = vmatmul.mubr.bf16.gmra.mrb[0].mxu0 %v5683
        %v6762 = vpop.f32.mrb[0].mxu0
        %v6763 = vadd.f32 %v6554, %v6762
        %v6764 = vpop.f32.mrb[0].mxu0
        %v6765 = vpop.f32.mrb[0].mxu0
        %v6766 = vadd.f32 %v6557, %v6765
        %v6767 = vpop.f32.mrb[0].mxu0
        %6768 = vmatprep.mubr.bf16.mxu0 %v5701
        %6769 = vmatmul.mubr.bf16.gmra.mrb[0].mxu0 %v5700
        %v6770 = vpop.f32.mrb[0].mxu0
        %v6771 = vadd.f32 %v6562, %v6770
        %v6772 = vpop.f32.mrb[0].mxu0
        %v6773 = vpop.f32.mrb[0].mxu0
        %v6774 = vadd.f32 %v6565, %v6773
        %v6775 = vpop.f32.mrb[0].mxu0
        %6776 = vmatprep.mubr.bf16.mxu0 %v5718
        %6777 = vmatmul.mubr.bf16.gmra.mrb[0].mxu0 %v5717
        %v6778 = vpop.f32.mrb[0].mxu0
        %v6779 = vadd.f32 %v6570, %v6778
        %v6780 = vpop.f32.mrb[0].mxu0
        %v6781 = vpop.f32.mrb[0].mxu0
        %v6782 = vadd.f32 %v6573, %v6781
        %v6783 = vpop.f32.mrb[0].mxu0
        %6784 = vmatprep.mubr.bf16.mxu0 %v5735
        %6785 = vmatmul.mubr.bf16.gmra.mrb[0].mxu0 %v5734
        %v6786 = vpop.f32.mrb[0].mxu0
        %v6787 = vadd.f32 %v6578, %v6786
        %v6788 = vpop.f32.mrb[0].mxu0
        %v6789 = vpop.f32.mrb[0].mxu0
        %v6790 = vadd.f32 %v6581, %v6789
        %v6791 = vpop.f32.mrb[0].mxu0
        %6792 = vdwg.mxu0
        %6793 = vmatprep.subr.bf16.mxu0 0
        %6794 = vmatpush1.bf16.msra.mxu0 %v4145
        %6795 = vmatprep.subr.bf16.mxu0 0
        %6796 = vmatpush1.bf16.msra.mxu0 %v4146
        %6797 = vmatprep.subr.bf16.mxu0 0
        %6798 = vmatpush1.bf16.msra.mxu0 %v4147
        %6799 = vmatprep.subr.bf16.mxu0 0
        %6800 = vmatpush1.bf16.msra.mxu0 %v4148
        %6801 = vmatprep.subr.bf16.mxu0 0
        %6802 = vmatpush1.bf16.msra.mxu0 %v4149
        %6803 = vmatprep.subr.bf16.mxu0 0
        %6804 = vmatpush1.bf16.msra.mxu0 %v4150
        %6805 = vmatprep.subr.bf16.mxu0 0
        %6806 = vmatpush1.bf16.msra.mxu0 %v4151
        %6807 = vmatprep.subr.bf16.mxu0 0
        %6808 = vmatpush1.bf16.msra.mxu0 %v4152
        %6809 = vmatprep.subr.bf16.mxu0 0
        %6810 = vmatpush1.bf16.msra.mxu0 %v4153
        %6811 = vmatprep.subr.bf16.mxu0 0
        %6812 = vmatpush1.bf16.msra.mxu0 %v4154
        %6813 = vmatprep.subr.bf16.mxu0 0
        %6814 = vmatpush1.bf16.msra.mxu0 %v4155
        %6815 = vmatprep.subr.bf16.mxu0 0
        %6816 = vmatpush1.bf16.msra.mxu0 %v4156
        %6817 = vmatprep.subr.bf16.mxu0 0
        %6818 = vmatpush1.bf16.msra.mxu0 %v4157
        %6819 = vmatprep.subr.bf16.mxu0 0
        %6820 = vmatpush1.bf16.msra.mxu0 %v4158
        %6821 = vmatprep.subr.bf16.mxu0 0
        %6822 = vmatpush1.bf16.msra.mxu0 %v4159
        %6823 = vmatprep.subr.bf16.mxu0 0
        %6824 = vmatpush1.bf16.msra.mxu0 %v4160
        %6825 = vmatprep.mubr.bf16.mxu0 %v5380
        %6826 = vmatmul.mubr.bf16.gmra.mrb[0].mxu0 %v5379
        %v6827 = vpop.f32.mrb[0].mxu0
        %v6828 = vadd.f32 %v6619, %v6827
        %v6829 = vpop.f32.mrb[0].mxu0
        %v6830 = vpop.f32.mrb[0].mxu0
        %v6831 = vadd.f32 %v6622, %v6830
        %v6832 = vpop.f32.mrb[0].mxu0
        %6833 = vmatprep.mubr.bf16.mxu0 %v5397
        %6834 = vmatmul.mubr.bf16.gmra.mrb[0].mxu0 %v5396
        %v6835 = vpop.f32.mrb[0].mxu0
        %v6836 = vadd.f32 %v6627, %v6835
        %v6837 = vpop.f32.mrb[0].mxu0
        %v6838 = vpop.f32.mrb[0].mxu0
        %v6839 = vadd.f32 %v6630, %v6838
        %v6840 = vpop.f32.mrb[0].mxu0
        %6841 = vmatprep.mubr.bf16.mxu0 %v5414
        %6842 = vmatmul.mubr.bf16.gmra.mrb[0].mxu0 %v5413
        %v6843 = vpop.f32.mrb[0].mxu0
        %v6844 = vadd.f32 %v6635, %v6843
        %v6845 = vpop.f32.mrb[0].mxu0
        %v6846 = vpop.f32.mrb[0].mxu0
        %v6847 = vadd.f32 %v6638, %v6846
        %v6848 = vpop.f32.mrb[0].mxu0
        %6849 = vmatprep.mubr.bf16.mxu0 %v5431
        %6850 = vmatmul.mubr.bf16.gmra.mrb[0].mxu0 %v5430
        %v6851 = vpop.f32.mrb[0].mxu0
        %v6852 = vadd.f32 %v6643, %v6851
        %v6853 = vpop.f32.mrb[0].mxu0
        %v6854 = vpop.f32.mrb[0].mxu0
        %v6855 = vadd.f32 %v6646, %v6854
        %v6856 = vpop.f32.mrb[0].mxu0
        %6857 = vmatprep.mubr.bf16.mxu0 %v5448
        %6858 = vmatmul.mubr.bf16.gmra.mrb[0].mxu0 %v5447
        %v6859 = vpop.f32.mrb[0].mxu0
        %v6860 = vadd.f32 %v6651, %v6859
        %v6861 = vpop.f32.mrb[0].mxu0
        %v6862 = vpop.f32.mrb[0].mxu0
        %v6863 = vadd.f32 %v6654, %v6862
        %v6864 = vpop.f32.mrb[0].mxu0
        %6865 = vmatprep.mubr.bf16.mxu0 %v5465
        %6866 = vmatmul.mubr.bf16.gmra.mrb[0].mxu0 %v5464
        %v6867 = vpop.f32.mrb[0].mxu0
        %v6868 = vadd.f32 %v6659, %v6867
        %v6869 = vpop.f32.mrb[0].mxu0
        %v6870 = vpop.f32.mrb[0].mxu0
        %v6871 = vadd.f32 %v6662, %v6870
        %v6872 = vpop.f32.mrb[0].mxu0
        %6873 = vmatprep.mubr.bf16.mxu0 %v5482
        %6874 = vmatmul.mubr.bf16.gmra.mrb[0].mxu0 %v5481
        %v6875 = vpop.f32.mrb[0].mxu0
        %v6876 = vadd.f32 %v6667, %v6875
        %v6877 = vpop.f32.mrb[0].mxu0
        %v6878 = vpop.f32.mrb[0].mxu0
        %v6879 = vadd.f32 %v6670, %v6878
        %v6880 = vpop.f32.mrb[0].mxu0
        %6881 = vmatprep.mubr.bf16.mxu0 %v5499
        %6882 = vmatmul.mubr.bf16.gmra.mrb[0].mxu0 %v5498
        %v6883 = vpop.f32.mrb[0].mxu0
        %v6884 = vadd.f32 %v6675, %v6883
        %v6885 = vpop.f32.mrb[0].mxu0
        %v6886 = vpop.f32.mrb[0].mxu0
        %v6887 = vadd.f32 %v6678, %v6886
        %v6888 = vpop.f32.mrb[0].mxu0
        %6889 = vmatprep.mubr.bf16.mxu0 %v5516
        %6890 = vmatmul.mubr.bf16.gmra.mrb[0].mxu0 %v5515
        %v6891 = vpop.f32.mrb[0].mxu0
        %v6892 = vadd.f32 %v6683, %v6891
        %v6893 = vpop.f32.mrb[0].mxu0
        %v6894 = vpop.f32.mrb[0].mxu0
        %v6895 = vadd.f32 %v6686, %v6894
        %v6896 = vpop.f32.mrb[0].mxu0
        %6897 = vmatprep.mubr.bf16.mxu0 %v5533
        %6898 = vmatmul.mubr.bf16.gmra.mrb[0].mxu0 %v5532
        %v6899 = vpop.f32.mrb[0].mxu0
        %v6900 = vadd.f32 %v6691, %v6899
        %v6901 = vpop.f32.mrb[0].mxu0
        %v6902 = vpop.f32.mrb[0].mxu0
        %v6903 = vadd.f32 %v6694, %v6902
        %v6904 = vpop.f32.mrb[0].mxu0
        %6905 = vmatprep.mubr.bf16.mxu0 %v5550
        %6906 = vmatmul.mubr.bf16.gmra.mrb[0].mxu0 %v5549
        %v6907 = vpop.f32.mrb[0].mxu0
        %v6908 = vadd.f32 %v6699, %v6907
        %v6909 = vpop.f32.mrb[0].mxu0
        %v6910 = vpop.f32.mrb[0].mxu0
        %v6911 = vadd.f32 %v6702, %v6910
        %v6912 = vpop.f32.mrb[0].mxu0
        %6913 = vmatprep.mubr.bf16.mxu0 %v5567
        %6914 = vmatmul.mubr.bf16.gmra.mrb[0].mxu0 %v5566
        %v6915 = vpop.f32.mrb[0].mxu0
        %v6916 = vadd.f32 %v6707, %v6915
        %v6917 = vpop.f32.mrb[0].mxu0
        %v6918 = vpop.f32.mrb[0].mxu0
        %v6919 = vadd.f32 %v6710, %v6918
        %v6920 = vpop.f32.mrb[0].mxu0
        %6921 = vmatprep.mubr.bf16.mxu0 %v5584
        %6922 = vmatmul.mubr.bf16.gmra.mrb[0].mxu0 %v5583
        %v6923 = vpop.f32.mrb[0].mxu0
        %v6924 = vadd.f32 %v6715, %v6923
        %v6925 = vpop.f32.mrb[0].mxu0
        %v6926 = vpop.f32.mrb[0].mxu0
        %v6927 = vadd.f32 %v6718, %v6926
        %v6928 = vpop.f32.mrb[0].mxu0
        %6929 = vmatprep.mubr.bf16.mxu0 %v5601
        %6930 = vmatmul.mubr.bf16.gmra.mrb[0].mxu0 %v5600
        %v6931 = vpop.f32.mrb[0].mxu0
        %v6932 = vadd.f32 %v6723, %v6931
        %v6933 = vpop.f32.mrb[0].mxu0
        %v6934 = vpop.f32.mrb[0].mxu0
        %v6935 = vadd.f32 %v6726, %v6934
        %v6936 = vpop.f32.mrb[0].mxu0
        %6937 = vmatprep.mubr.bf16.mxu0 %v5618
        %6938 = vmatmul.mubr.bf16.gmra.mrb[0].mxu0 %v5617
        %v6939 = vpop.f32.mrb[0].mxu0
        %v6940 = vadd.f32 %v6731, %v6939
        %v6941 = vpop.f32.mrb[0].mxu0
        %v6942 = vpop.f32.mrb[0].mxu0
        %v6943 = vadd.f32 %v6734, %v6942
        %v6944 = vpop.f32.mrb[0].mxu0
        %6945 = vmatprep.mubr.bf16.mxu0 %v5635
        %6946 = vmatmul.mubr.bf16.gmra.mrb[0].mxu0 %v5634
        %v6947 = vpop.f32.mrb[0].mxu0
        %v6948 = vadd.f32 %v6739, %v6947
        %v6949 = vpop.f32.mrb[0].mxu0
        %v6950 = vpop.f32.mrb[0].mxu0
        %v6951 = vadd.f32 %v6742, %v6950
        %v6952 = vpop.f32.mrb[0].mxu0
        %6953 = vmatprep.mubr.bf16.mxu0 %v5652
        %6954 = vmatmul.mubr.bf16.gmra.mrb[0].mxu0 %v5651
        %v6955 = vpop.f32.mrb[0].mxu0
        %v6956 = vadd.f32 %v6747, %v6955
        %v6957 = vpop.f32.mrb[0].mxu0
        %v6958 = vpop.f32.mrb[0].mxu0
        %v6959 = vadd.f32 %v6750, %v6958
        %v6960 = vpop.f32.mrb[0].mxu0
        %6961 = vmatprep.mubr.bf16.mxu0 %v5669
        %6962 = vmatmul.mubr.bf16.gmra.mrb[0].mxu0 %v5668
        %v6963 = vpop.f32.mrb[0].mxu0
        %v6964 = vadd.f32 %v6755, %v6963
        %v6965 = vpop.f32.mrb[0].mxu0
        %v6966 = vpop.f32.mrb[0].mxu0
        %v6967 = vadd.f32 %v6758, %v6966
        %v6968 = vpop.f32.mrb[0].mxu0
        %6969 = vmatprep.mubr.bf16.mxu0 %v5686
        %6970 = vmatmul.mubr.bf16.gmra.mrb[0].mxu0 %v5685
        %v6971 = vpop.f32.mrb[0].mxu0
        %v6972 = vadd.f32 %v6763, %v6971
        %v6973 = vpop.f32.mrb[0].mxu0
        %v6974 = vpop.f32.mrb[0].mxu0
        %v6975 = vadd.f32 %v6766, %v6974
        %v6976 = vpop.f32.mrb[0].mxu0
        %6977 = vmatprep.mubr.bf16.mxu0 %v5703
        %6978 = vmatmul.mubr.bf16.gmra.mrb[0].mxu0 %v5702
        %v6979 = vpop.f32.mrb[0].mxu0
        %v6980 = vadd.f32 %v6771, %v6979
        %v6981 = vpop.f32.mrb[0].mxu0
        %v6982 = vpop.f32.mrb[0].mxu0
        %v6983 = vadd.f32 %v6774, %v6982
        %v6984 = vpop.f32.mrb[0].mxu0
        %6985 = vmatprep.mubr.bf16.mxu0 %v5720
        %6986 = vmatmul.mubr.bf16.gmra.mrb[0].mxu0 %v5719
        %v6987 = vpop.f32.mrb[0].mxu0
        %v6988 = vadd.f32 %v6779, %v6987
        %v6989 = vpop.f32.mrb[0].mxu0
        %v6990 = vpop.f32.mrb[0].mxu0
        %v6991 = vadd.f32 %v6782, %v6990
        %v6992 = vpop.f32.mrb[0].mxu0
        %6993 = vmatprep.mubr.bf16.mxu0 %v5737
        %6994 = vmatmul.mubr.bf16.gmra.mrb[0].mxu0 %v5736
        %v6995 = vpop.f32.mrb[0].mxu0
        %v6996 = vadd.f32 %v6787, %v6995
        %v6997 = vpop.f32.mrb[0].mxu0
        %v6998 = vpop.f32.mrb[0].mxu0
        %v6999 = vadd.f32 %v6790, %v6998
        %v7000 = vpop.f32.mrb[0].mxu0
        %7001 = vdwg.mxu0
        %7002 = vmatprep.subr.bf16.mxu0 0
        %7003 = vmatpush1.bf16.msra.mxu0 %v4161
        %7004 = vmatprep.subr.bf16.mxu0 0
        %7005 = vmatpush1.bf16.msra.mxu0 %v4162
        %7006 = vmatprep.subr.bf16.mxu0 0
        %7007 = vmatpush1.bf16.msra.mxu0 %v4163
        %7008 = vmatprep.subr.bf16.mxu0 0
        %7009 = vmatpush1.bf16.msra.mxu0 %v4164
        %7010 = vmatprep.subr.bf16.mxu0 0
        %7011 = vmatpush1.bf16.msra.mxu0 %v4165
        %7012 = vmatprep.subr.bf16.mxu0 0
        %7013 = vmatpush1.bf16.msra.mxu0 %v4166
        %7014 = vmatprep.subr.bf16.mxu0 0
        %7015 = vmatpush1.bf16.msra.mxu0 %v4167
        %7016 = vmatprep.subr.bf16.mxu0 0
        %7017 = vmatpush1.bf16.msra.mxu0 %v4168
        %7018 = vmatprep.subr.bf16.mxu0 0
        %7019 = vmatpush1.bf16.msra.mxu0 %v4169
        %7020 = vmatprep.subr.bf16.mxu0 0
        %7021 = vmatpush1.bf16.msra.mxu0 %v4170
        %7022 = vmatprep.subr.bf16.mxu0 0
        %7023 = vmatpush1.bf16.msra.mxu0 %v4171
        %7024 = vmatprep.subr.bf16.mxu0 0
        %7025 = vmatpush1.bf16.msra.mxu0 %v4172
        %7026 = vmatprep.subr.bf16.mxu0 0
        %7027 = vmatpush1.bf16.msra.mxu0 %v4173
        %7028 = vmatprep.subr.bf16.mxu0 0
        %7029 = vmatpush1.bf16.msra.mxu0 %v4174
        %7030 = vmatprep.subr.bf16.mxu0 0
        %7031 = vmatpush1.bf16.msra.mxu0 %v4175
        %7032 = vmatprep.subr.bf16.mxu0 0
        %7033 = vmatpush1.bf16.msra.mxu0 %v4176
        %7034 = vmatprep.mubr.bf16.mxu0 %v5382
        %7035 = vmatmul.mubr.bf16.gmra.mrb[0].mxu0 %v5381
        %v7036 = vpop.f32.mrb[0].mxu0
        %v7037 = vadd.f32 %v6828, %v7036
        %v7038 = vpop.f32.mrb[0].mxu0
        %v7039 = vpop.f32.mrb[0].mxu0
        %v7040 = vadd.f32 %v6831, %v7039
        %v7041 = vpop.f32.mrb[0].mxu0
        %7042 = vmatprep.mubr.bf16.mxu0 %v5399
        %7043 = vmatmul.mubr.bf16.gmra.mrb[0].mxu0 %v5398
        %v7044 = vpop.f32.mrb[0].mxu0
        %v7045 = vadd.f32 %v6836, %v7044
        %v7046 = vpop.f32.mrb[0].mxu0
        %v7047 = vpop.f32.mrb[0].mxu0
        %v7048 = vadd.f32 %v6839, %v7047
        %v7049 = vpop.f32.mrb[0].mxu0
        %7050 = vmatprep.mubr.bf16.mxu0 %v5416
        %7051 = vmatmul.mubr.bf16.gmra.mrb[0].mxu0 %v5415
        %v7052 = vpop.f32.mrb[0].mxu0
        %v7053 = vadd.f32 %v6844, %v7052
        %v7054 = vpop.f32.mrb[0].mxu0
        %v7055 = vpop.f32.mrb[0].mxu0
        %v7056 = vadd.f32 %v6847, %v7055
        %v7057 = vpop.f32.mrb[0].mxu0
        %7058 = vmatprep.mubr.bf16.mxu0 %v5433
        %7059 = vmatmul.mubr.bf16.gmra.mrb[0].mxu0 %v5432
        %v7060 = vpop.f32.mrb[0].mxu0
        %v7061 = vadd.f32 %v6852, %v7060
        %v7062 = vpop.f32.mrb[0].mxu0
        %v7063 = vpop.f32.mrb[0].mxu0
        %v7064 = vadd.f32 %v6855, %v7063
        %v7065 = vpop.f32.mrb[0].mxu0
        %7066 = vmatprep.mubr.bf16.mxu0 %v5450
        %7067 = vmatmul.mubr.bf16.gmra.mrb[0].mxu0 %v5449
        %v7068 = vpop.f32.mrb[0].mxu0
        %v7069 = vadd.f32 %v6860, %v7068
        %v7070 = vpop.f32.mrb[0].mxu0
        %v7071 = vpop.f32.mrb[0].mxu0
        %v7072 = vadd.f32 %v6863, %v7071
        %v7073 = vpop.f32.mrb[0].mxu0
        %7074 = vmatprep.mubr.bf16.mxu0 %v5467
        %7075 = vmatmul.mubr.bf16.gmra.mrb[0].mxu0 %v5466
        %v7076 = vpop.f32.mrb[0].mxu0
        %v7077 = vadd.f32 %v6868, %v7076
        %v7078 = vpop.f32.mrb[0].mxu0
        %v7079 = vpop.f32.mrb[0].mxu0
        %v7080 = vadd.f32 %v6871, %v7079
        %v7081 = vpop.f32.mrb[0].mxu0
        %7082 = vmatprep.mubr.bf16.mxu0 %v5484
        %7083 = vmatmul.mubr.bf16.gmra.mrb[0].mxu0 %v5483
        %v7084 = vpop.f32.mrb[0].mxu0
        %v7085 = vadd.f32 %v6876, %v7084
        %v7086 = vpop.f32.mrb[0].mxu0
        %v7087 = vpop.f32.mrb[0].mxu0
        %v7088 = vadd.f32 %v6879, %v7087
        %v7089 = vpop.f32.mrb[0].mxu0
        %7090 = vmatprep.mubr.bf16.mxu0 %v5501
        %7091 = vmatmul.mubr.bf16.gmra.mrb[0].mxu0 %v5500
        %v7092 = vpop.f32.mrb[0].mxu0
        %v7093 = vadd.f32 %v6884, %v7092
        %v7094 = vpop.f32.mrb[0].mxu0
        %v7095 = vpop.f32.mrb[0].mxu0
        %v7096 = vadd.f32 %v6887, %v7095
        %v7097 = vpop.f32.mrb[0].mxu0
        %7098 = vmatprep.mubr.bf16.mxu0 %v5518
        %7099 = vmatmul.mubr.bf16.gmra.mrb[0].mxu0 %v5517
        %v7100 = vpop.f32.mrb[0].mxu0
        %v7101 = vadd.f32 %v6892, %v7100
        %v7102 = vpop.f32.mrb[0].mxu0
        %v7103 = vpop.f32.mrb[0].mxu0
        %v7104 = vadd.f32 %v6895, %v7103
        %v7105 = vpop.f32.mrb[0].mxu0
        %7106 = vmatprep.mubr.bf16.mxu0 %v5535
        %7107 = vmatmul.mubr.bf16.gmra.mrb[0].mxu0 %v5534
        %v7108 = vpop.f32.mrb[0].mxu0
        %v7109 = vadd.f32 %v6900, %v7108
        %v7110 = vpop.f32.mrb[0].mxu0
        %v7111 = vpop.f32.mrb[0].mxu0
        %v7112 = vadd.f32 %v6903, %v7111
        %v7113 = vpop.f32.mrb[0].mxu0
        %7114 = vmatprep.mubr.bf16.mxu0 %v5552
        %7115 = vmatmul.mubr.bf16.gmra.mrb[0].mxu0 %v5551
        %v7116 = vpop.f32.mrb[0].mxu0
        %v7117 = vadd.f32 %v6908, %v7116
        %v7118 = vpop.f32.mrb[0].mxu0
        %v7119 = vpop.f32.mrb[0].mxu0
        %v7120 = vadd.f32 %v6911, %v7119
        %v7121 = vpop.f32.mrb[0].mxu0
        %7122 = vmatprep.mubr.bf16.mxu0 %v5569
        %7123 = vmatmul.mubr.bf16.gmra.mrb[0].mxu0 %v5568
        %v7124 = vpop.f32.mrb[0].mxu0
        %v7125 = vadd.f32 %v6916, %v7124
        %v7126 = vpop.f32.mrb[0].mxu0
        %v7127 = vpop.f32.mrb[0].mxu0
        %v7128 = vadd.f32 %v6919, %v7127
        %v7129 = vpop.f32.mrb[0].mxu0
        %7130 = vmatprep.mubr.bf16.mxu0 %v5586
        %7131 = vmatmul.mubr.bf16.gmra.mrb[0].mxu0 %v5585
        %v7132 = vpop.f32.mrb[0].mxu0
        %v7133 = vadd.f32 %v6924, %v7132
        %v7134 = vpop.f32.mrb[0].mxu0
        %v7135 = vpop.f32.mrb[0].mxu0
        %v7136 = vadd.f32 %v6927, %v7135
        %v7137 = vpop.f32.mrb[0].mxu0
        %7138 = vmatprep.mubr.bf16.mxu0 %v5603
        %7139 = vmatmul.mubr.bf16.gmra.mrb[0].mxu0 %v5602
        %v7140 = vpop.f32.mrb[0].mxu0
        %v7141 = vadd.f32 %v6932, %v7140
        %v7142 = vpop.f32.mrb[0].mxu0
        %v7143 = vpop.f32.mrb[0].mxu0
        %v7144 = vadd.f32 %v6935, %v7143
        %v7145 = vpop.f32.mrb[0].mxu0
        %7146 = vmatprep.mubr.bf16.mxu0 %v5620
        %7147 = vmatmul.mubr.bf16.gmra.mrb[0].mxu0 %v5619
        %v7148 = vpop.f32.mrb[0].mxu0
        %v7149 = vadd.f32 %v6940, %v7148
        %v7150 = vpop.f32.mrb[0].mxu0
        %v7151 = vpop.f32.mrb[0].mxu0
        %v7152 = vadd.f32 %v6943, %v7151
        %v7153 = vpop.f32.mrb[0].mxu0
        %7154 = vmatprep.mubr.bf16.mxu0 %v5637
        %7155 = vmatmul.mubr.bf16.gmra.mrb[0].mxu0 %v5636
        %v7156 = vpop.f32.mrb[0].mxu0
        %v7157 = vadd.f32 %v6948, %v7156
        %v7158 = vpop.f32.mrb[0].mxu0
        %v7159 = vpop.f32.mrb[0].mxu0
        %v7160 = vadd.f32 %v6951, %v7159
        %v7161 = vpop.f32.mrb[0].mxu0
        %7162 = vmatprep.mubr.bf16.mxu0 %v5654
        %7163 = vmatmul.mubr.bf16.gmra.mrb[0].mxu0 %v5653
        %v7164 = vpop.f32.mrb[0].mxu0
        %v7165 = vadd.f32 %v6956, %v7164
        %v7166 = vpop.f32.mrb[0].mxu0
        %v7167 = vpop.f32.mrb[0].mxu0
        %v7168 = vadd.f32 %v6959, %v7167
        %v7169 = vpop.f32.mrb[0].mxu0
        %7170 = vmatprep.mubr.bf16.mxu0 %v5671
        %7171 = vmatmul.mubr.bf16.gmra.mrb[0].mxu0 %v5670
        %v7172 = vpop.f32.mrb[0].mxu0
        %v7173 = vadd.f32 %v6964, %v7172
        %v7174 = vpop.f32.mrb[0].mxu0
        %v7175 = vpop.f32.mrb[0].mxu0
        %v7176 = vadd.f32 %v6967, %v7175
        %v7177 = vpop.f32.mrb[0].mxu0
        %7178 = vmatprep.mubr.bf16.mxu0 %v5688
        %7179 = vmatmul.mubr.bf16.gmra.mrb[0].mxu0 %v5687
        %v7180 = vpop.f32.mrb[0].mxu0
        %v7181 = vadd.f32 %v6972, %v7180
        %v7182 = vpop.f32.mrb[0].mxu0
        %v7183 = vpop.f32.mrb[0].mxu0
        %v7184 = vadd.f32 %v6975, %v7183
        %v7185 = vpop.f32.mrb[0].mxu0
        %7186 = vmatprep.mubr.bf16.mxu0 %v5705
        %7187 = vmatmul.mubr.bf16.gmra.mrb[0].mxu0 %v5704
        %v7188 = vpop.f32.mrb[0].mxu0
        %v7189 = vadd.f32 %v6980, %v7188
        %v7190 = vpop.f32.mrb[0].mxu0
        %v7191 = vpop.f32.mrb[0].mxu0
        %v7192 = vadd.f32 %v6983, %v7191
        %v7193 = vpop.f32.mrb[0].mxu0
        %7194 = vmatprep.mubr.bf16.mxu0 %v5722
        %7195 = vmatmul.mubr.bf16.gmra.mrb[0].mxu0 %v5721
        %v7196 = vpop.f32.mrb[0].mxu0
        %v7197 = vadd.f32 %v6988, %v7196
        %v7198 = vpop.f32.mrb[0].mxu0
        %v7199 = vpop.f32.mrb[0].mxu0
        %v7200 = vadd.f32 %v6991, %v7199
        %v7201 = vpop.f32.mrb[0].mxu0
        %7202 = vmatprep.mubr.bf16.mxu0 %v5739
        %7203 = vmatmul.mubr.bf16.gmra.mrb[0].mxu0 %v5738
        %v7204 = vpop.f32.mrb[0].mxu0
        %v7205 = vadd.f32 %v6996, %v7204
        %v7206 = vpop.f32.mrb[0].mxu0
        %v7207 = vpop.f32.mrb[0].mxu0
        %v7208 = vadd.f32 %v6999, %v7207
        %v7209 = vpop.f32.mrb[0].mxu0
        %7210 = vdwg.mxu0
        %7211 = vmatprep.subr.bf16.mxu0 0
        %7212 = vmatpush1.bf16.msra.mxu0 %v4177
        %7213 = vmatprep.subr.bf16.mxu0 0
        %7214 = vmatpush1.bf16.msra.mxu0 %v4178
        %7215 = vmatprep.subr.bf16.mxu0 0
        %7216 = vmatpush1.bf16.msra.mxu0 %v4179
        %7217 = vmatprep.subr.bf16.mxu0 0
        %7218 = vmatpush1.bf16.msra.mxu0 %v4180
        %7219 = vmatprep.subr.bf16.mxu0 0
        %7220 = vmatpush1.bf16.msra.mxu0 %v4181
        %7221 = vmatprep.subr.bf16.mxu0 0
        %7222 = vmatpush1.bf16.msra.mxu0 %v4182
        %7223 = vmatprep.subr.bf16.mxu0 0
        %7224 = vmatpush1.bf16.msra.mxu0 %v4183
        %7225 = vmatprep.subr.bf16.mxu0 0
        %7226 = vmatpush1.bf16.msra.mxu0 %v4184
        %7227 = vmatprep.subr.bf16.mxu0 0
        %7228 = vmatpush1.bf16.msra.mxu0 %v4185
        %7229 = vmatprep.subr.bf16.mxu0 0
        %7230 = vmatpush1.bf16.msra.mxu0 %v4186
        %7231 = vmatprep.subr.bf16.mxu0 0
        %7232 = vmatpush1.bf16.msra.mxu0 %v4187
        %7233 = vmatprep.subr.bf16.mxu0 0
        %7234 = vmatpush1.bf16.msra.mxu0 %v4188
        %7235 = vmatprep.subr.bf16.mxu0 0
        %7236 = vmatpush1.bf16.msra.mxu0 %v4189
        %7237 = vmatprep.subr.bf16.mxu0 0
        %7238 = vmatpush1.bf16.msra.mxu0 %v4190
        %7239 = vmatprep.subr.bf16.mxu0 0
        %7240 = vmatpush1.bf16.msra.mxu0 %v4191
        %7241 = vmatprep.subr.bf16.mxu0 0
        %7242 = vmatpush1.bf16.msra.mxu0 %v4192
        %7243 = vmatprep.mubr.bf16.mxu0 %v5384
        %7244 = vmatmul.mubr.bf16.gmra.mrb[0].mxu0 %v5383
        %v7245 = vpop.f32.mrb[0].mxu0
        %v7246 = vadd.f32 %v7037, %v7245
        %v7247 = vpop.f32.mrb[0].mxu0
        %v7248 = vpop.f32.mrb[0].mxu0
        %v7249 = vadd.f32 %v7040, %v7248
        %v7250 = vpop.f32.mrb[0].mxu0
        %7251 = vmatprep.mubr.bf16.mxu0 %v5401
        %7252 = vmatmul.mubr.bf16.gmra.mrb[0].mxu0 %v5400
        %v7253 = vpop.f32.mrb[0].mxu0
        %v7254 = vadd.f32 %v7045, %v7253
        %v7255 = vpop.f32.mrb[0].mxu0
        %v7256 = vpop.f32.mrb[0].mxu0
        %v7257 = vadd.f32 %v7048, %v7256
        %v7258 = vpop.f32.mrb[0].mxu0
        %7259 = vmatprep.mubr.bf16.mxu0 %v5418
        %7260 = vmatmul.mubr.bf16.gmra.mrb[0].mxu0 %v5417
        %v7261 = vpop.f32.mrb[0].mxu0
        %v7262 = vadd.f32 %v7053, %v7261
        %v7263 = vpop.f32.mrb[0].mxu0
        %v7264 = vpop.f32.mrb[0].mxu0
        %v7265 = vadd.f32 %v7056, %v7264
        %v7266 = vpop.f32.mrb[0].mxu0
        %7267 = vmatprep.mubr.bf16.mxu0 %v5435
        %7268 = vmatmul.mubr.bf16.gmra.mrb[0].mxu0 %v5434
        %v7269 = vpop.f32.mrb[0].mxu0
        %v7270 = vadd.f32 %v7061, %v7269
        %v7271 = vpop.f32.mrb[0].mxu0
        %v7272 = vpop.f32.mrb[0].mxu0
        %v7273 = vadd.f32 %v7064, %v7272
        %v7274 = vpop.f32.mrb[0].mxu0
        %7275 = vmatprep.mubr.bf16.mxu0 %v5452
        %7276 = vmatmul.mubr.bf16.gmra.mrb[0].mxu0 %v5451
        %v7277 = vpop.f32.mrb[0].mxu0
        %v7278 = vadd.f32 %v7069, %v7277
        %v7279 = vpop.f32.mrb[0].mxu0
        %v7280 = vpop.f32.mrb[0].mxu0
        %v7281 = vadd.f32 %v7072, %v7280
        %v7282 = vpop.f32.mrb[0].mxu0
        %7283 = vmatprep.mubr.bf16.mxu0 %v5469
        %7284 = vmatmul.mubr.bf16.gmra.mrb[0].mxu0 %v5468
        %v7285 = vpop.f32.mrb[0].mxu0
        %v7286 = vadd.f32 %v7077, %v7285
        %v7287 = vpop.f32.mrb[0].mxu0
        %v7288 = vpop.f32.mrb[0].mxu0
        %v7289 = vadd.f32 %v7080, %v7288
        %v7290 = vpop.f32.mrb[0].mxu0
        %7291 = vmatprep.mubr.bf16.mxu0 %v5486
        %7292 = vmatmul.mubr.bf16.gmra.mrb[0].mxu0 %v5485
        %v7293 = vpop.f32.mrb[0].mxu0
        %v7294 = vadd.f32 %v7085, %v7293
        %v7295 = vpop.f32.mrb[0].mxu0
        %v7296 = vpop.f32.mrb[0].mxu0
        %v7297 = vadd.f32 %v7088, %v7296
        %v7298 = vpop.f32.mrb[0].mxu0
        %7299 = vmatprep.mubr.bf16.mxu0 %v5503
        %7300 = vmatmul.mubr.bf16.gmra.mrb[0].mxu0 %v5502
        %v7301 = vpop.f32.mrb[0].mxu0
        %v7302 = vadd.f32 %v7093, %v7301
        %v7303 = vpop.f32.mrb[0].mxu0
        %v7304 = vpop.f32.mrb[0].mxu0
        %v7305 = vadd.f32 %v7096, %v7304
        %v7306 = vpop.f32.mrb[0].mxu0
        %7307 = vmatprep.mubr.bf16.mxu0 %v5520
        %7308 = vmatmul.mubr.bf16.gmra.mrb[0].mxu0 %v5519
        %v7309 = vpop.f32.mrb[0].mxu0
        %v7310 = vadd.f32 %v7101, %v7309
        %v7311 = vpop.f32.mrb[0].mxu0
        %v7312 = vpop.f32.mrb[0].mxu0
        %v7313 = vadd.f32 %v7104, %v7312
        %v7314 = vpop.f32.mrb[0].mxu0
        %7315 = vmatprep.mubr.bf16.mxu0 %v5537
        %7316 = vmatmul.mubr.bf16.gmra.mrb[0].mxu0 %v5536
        %v7317 = vpop.f32.mrb[0].mxu0
        %v7318 = vadd.f32 %v7109, %v7317
        %v7319 = vpop.f32.mrb[0].mxu0
        %v7320 = vpop.f32.mrb[0].mxu0
        %v7321 = vadd.f32 %v7112, %v7320
        %v7322 = vpop.f32.mrb[0].mxu0
        %7323 = vmatprep.mubr.bf16.mxu0 %v5554
        %7324 = vmatmul.mubr.bf16.gmra.mrb[0].mxu0 %v5553
        %v7325 = vpop.f32.mrb[0].mxu0
        %v7326 = vadd.f32 %v7117, %v7325
        %v7327 = vpop.f32.mrb[0].mxu0
        %v7328 = vpop.f32.mrb[0].mxu0
        %v7329 = vadd.f32 %v7120, %v7328
        %v7330 = vpop.f32.mrb[0].mxu0
        %7331 = vmatprep.mubr.bf16.mxu0 %v5571
        %7332 = vmatmul.mubr.bf16.gmra.mrb[0].mxu0 %v5570
        %v7333 = vpop.f32.mrb[0].mxu0
        %v7334 = vadd.f32 %v7125, %v7333
        %v7335 = vpop.f32.mrb[0].mxu0
        %v7336 = vpop.f32.mrb[0].mxu0
        %v7337 = vadd.f32 %v7128, %v7336
        %v7338 = vpop.f32.mrb[0].mxu0
        %7339 = vmatprep.mubr.bf16.mxu0 %v5588
        %7340 = vmatmul.mubr.bf16.gmra.mrb[0].mxu0 %v5587
        %v7341 = vpop.f32.mrb[0].mxu0
        %v7342 = vadd.f32 %v7133, %v7341
        %v7343 = vpop.f32.mrb[0].mxu0
        %v7344 = vpop.f32.mrb[0].mxu0
        %v7345 = vadd.f32 %v7136, %v7344
        %v7346 = vpop.f32.mrb[0].mxu0
        %7347 = vmatprep.mubr.bf16.mxu0 %v5605
        %7348 = vmatmul.mubr.bf16.gmra.mrb[0].mxu0 %v5604
        %v7349 = vpop.f32.mrb[0].mxu0
        %v7350 = vadd.f32 %v7141, %v7349
        %v7351 = vpop.f32.mrb[0].mxu0
        %v7352 = vpop.f32.mrb[0].mxu0
        %v7353 = vadd.f32 %v7144, %v7352
        %v7354 = vpop.f32.mrb[0].mxu0
        %7355 = vmatprep.mubr.bf16.mxu0 %v5622
        %7356 = vmatmul.mubr.bf16.gmra.mrb[0].mxu0 %v5621
        %v7357 = vpop.f32.mrb[0].mxu0
        %v7358 = vadd.f32 %v7149, %v7357
        %v7359 = vpop.f32.mrb[0].mxu0
        %v7360 = vpop.f32.mrb[0].mxu0
        %v7361 = vadd.f32 %v7152, %v7360
        %v7362 = vpop.f32.mrb[0].mxu0
        %7363 = vmatprep.mubr.bf16.mxu0 %v5639
        %7364 = vmatmul.mubr.bf16.gmra.mrb[0].mxu0 %v5638
        %v7365 = vpop.f32.mrb[0].mxu0
        %v7366 = vadd.f32 %v7157, %v7365
        %v7367 = vpop.f32.mrb[0].mxu0
        %v7368 = vpop.f32.mrb[0].mxu0
        %v7369 = vadd.f32 %v7160, %v7368
        %v7370 = vpop.f32.mrb[0].mxu0
        %7371 = vmatprep.mubr.bf16.mxu0 %v5656
        %7372 = vmatmul.mubr.bf16.gmra.mrb[0].mxu0 %v5655
        %v7373 = vpop.f32.mrb[0].mxu0
        %v7374 = vadd.f32 %v7165, %v7373
        %v7375 = vpop.f32.mrb[0].mxu0
        %v7376 = vpop.f32.mrb[0].mxu0
        %v7377 = vadd.f32 %v7168, %v7376
        %v7378 = vpop.f32.mrb[0].mxu0
        %7379 = vmatprep.mubr.bf16.mxu0 %v5673
        %7380 = vmatmul.mubr.bf16.gmra.mrb[0].mxu0 %v5672
        %v7381 = vpop.f32.mrb[0].mxu0
        %v7382 = vadd.f32 %v7173, %v7381
        %v7383 = vpop.f32.mrb[0].mxu0
        %v7384 = vpop.f32.mrb[0].mxu0
        %v7385 = vadd.f32 %v7176, %v7384
        %v7386 = vpop.f32.mrb[0].mxu0
        %7387 = vmatprep.mubr.bf16.mxu0 %v5690
        %7388 = vmatmul.mubr.bf16.gmra.mrb[0].mxu0 %v5689
        %v7389 = vpop.f32.mrb[0].mxu0
        %v7390 = vadd.f32 %v7181, %v7389
        %v7391 = vpop.f32.mrb[0].mxu0
        %v7392 = vpop.f32.mrb[0].mxu0
        %v7393 = vadd.f32 %v7184, %v7392
        %v7394 = vpop.f32.mrb[0].mxu0
        %7395 = vmatprep.mubr.bf16.mxu0 %v5707
        %7396 = vmatmul.mubr.bf16.gmra.mrb[0].mxu0 %v5706
        %v7397 = vpop.f32.mrb[0].mxu0
        %v7398 = vadd.f32 %v7189, %v7397
        %v7399 = vpop.f32.mrb[0].mxu0
        %v7400 = vpop.f32.mrb[0].mxu0
        %v7401 = vadd.f32 %v7192, %v7400
        %v7402 = vpop.f32.mrb[0].mxu0
        %7403 = vmatprep.mubr.bf16.mxu0 %v5724
        %7404 = vmatmul.mubr.bf16.gmra.mrb[0].mxu0 %v5723
        %v7405 = vpop.f32.mrb[0].mxu0
        %v7406 = vadd.f32 %v7197, %v7405
        %v7407 = vpop.f32.mrb[0].mxu0
        %v7408 = vpop.f32.mrb[0].mxu0
        %v7409 = vadd.f32 %v7200, %v7408
        %v7410 = vpop.f32.mrb[0].mxu0
        %7411 = vmatprep.mubr.bf16.mxu0 %v5741
        %7412 = vmatmul.mubr.bf16.gmra.mrb[0].mxu0 %v5740
        %v7413 = vpop.f32.mrb[0].mxu0
        %v7414 = vadd.f32 %v7205, %v7413
        %v7415 = vpop.f32.mrb[0].mxu0
        %v7416 = vpop.f32.mrb[0].mxu0
        %v7417 = vadd.f32 %v7208, %v7416
        %v7418 = vpop.f32.mrb[0].mxu0
        %7419 = vdwg.mxu0
        %7420 = vmatprep.subr.bf16.mxu0 0
        %7421 = vmatpush1.bf16.msra.mxu0 %v4193
        %7422 = vmatprep.subr.bf16.mxu0 0
        %7423 = vmatpush1.bf16.msra.mxu0 %v4194
        %7424 = vmatprep.subr.bf16.mxu0 0
        %7425 = vmatpush1.bf16.msra.mxu0 %v4195
        %7426 = vmatprep.subr.bf16.mxu0 0
        %7427 = vmatpush1.bf16.msra.mxu0 %v4196
        %7428 = vmatprep.subr.bf16.mxu0 0
        %7429 = vmatpush1.bf16.msra.mxu0 %v4197
        %7430 = vmatprep.subr.bf16.mxu0 0
        %7431 = vmatpush1.bf16.msra.mxu0 %v4198
        %7432 = vmatprep.subr.bf16.mxu0 0
        %7433 = vmatpush1.bf16.msra.mxu0 %v4199
        %7434 = vmatprep.subr.bf16.mxu0 0
        %7435 = vmatpush1.bf16.msra.mxu0 %v4200
        %7436 = vmatprep.subr.bf16.mxu0 0
        %7437 = vmatpush1.bf16.msra.mxu0 %v4201
        %7438 = vmatprep.subr.bf16.mxu0 0
        %7439 = vmatpush1.bf16.msra.mxu0 %v4202
        %7440 = vmatprep.subr.bf16.mxu0 0
        %7441 = vmatpush1.bf16.msra.mxu0 %v4203
        %7442 = vmatprep.subr.bf16.mxu0 0
        %7443 = vmatpush1.bf16.msra.mxu0 %v4204
        %7444 = vmatprep.subr.bf16.mxu0 0
        %7445 = vmatpush1.bf16.msra.mxu0 %v4205
        %7446 = vmatprep.subr.bf16.mxu0 0
        %7447 = vmatpush1.bf16.msra.mxu0 %v4206
        %7448 = vmatprep.subr.bf16.mxu0 0
        %7449 = vmatpush1.bf16.msra.mxu0 %v4207
        %7450 = vmatprep.subr.bf16.mxu0 0
        %7451 = vmatpush1.bf16.msra.mxu0 %v4208
        %7452 = vmatprep.mubr.bf16.mxu0 %v5386
        %7453 = vmatmul.mubr.bf16.gmra.mrb[0].mxu0 %v5385
        %v7454 = vpop.f32.mrb[0].mxu0
        %v7455 = vadd.f32 %v7246, %v7454
        %v7456 = vpop.f32.mrb[0].mxu0
        %v7457 = vpop.f32.mrb[0].mxu0
        %v7458 = vadd.f32 %v7249, %v7457
        %v7459 = vpop.f32.mrb[0].mxu0
        %7460 = vmatprep.mubr.bf16.mxu0 %v5403
        %7461 = vmatmul.mubr.bf16.gmra.mrb[0].mxu0 %v5402
        %v7462 = vpop.f32.mrb[0].mxu0
        %v7463 = vadd.f32 %v7254, %v7462
        %v7464 = vpop.f32.mrb[0].mxu0
        %v7465 = vpop.f32.mrb[0].mxu0
        %v7466 = vadd.f32 %v7257, %v7465
        %v7467 = vpop.f32.mrb[0].mxu0
        %7468 = vmatprep.mubr.bf16.mxu0 %v5420
        %7469 = vmatmul.mubr.bf16.gmra.mrb[0].mxu0 %v5419
        %v7470 = vpop.f32.mrb[0].mxu0
        %v7471 = vadd.f32 %v7262, %v7470
        %v7472 = vpop.f32.mrb[0].mxu0
        %v7473 = vpop.f32.mrb[0].mxu0
        %v7474 = vadd.f32 %v7265, %v7473
        %v7475 = vpop.f32.mrb[0].mxu0
        %7476 = vmatprep.mubr.bf16.mxu0 %v5437
        %7477 = vmatmul.mubr.bf16.gmra.mrb[0].mxu0 %v5436
        %v7478 = vpop.f32.mrb[0].mxu0
        %v7479 = vadd.f32 %v7270, %v7478
        %v7480 = vpop.f32.mrb[0].mxu0
        %v7481 = vpop.f32.mrb[0].mxu0
        %v7482 = vadd.f32 %v7273, %v7481
        %v7483 = vpop.f32.mrb[0].mxu0
        %7484 = vmatprep.mubr.bf16.mxu0 %v5454
        %7485 = vmatmul.mubr.bf16.gmra.mrb[0].mxu0 %v5453
        %v7486 = vpop.f32.mrb[0].mxu0
        %v7487 = vadd.f32 %v7278, %v7486
        %v7488 = vpop.f32.mrb[0].mxu0
        %v7489 = vpop.f32.mrb[0].mxu0
        %v7490 = vadd.f32 %v7281, %v7489
        %v7491 = vpop.f32.mrb[0].mxu0
        %7492 = vmatprep.mubr.bf16.mxu0 %v5471
        %7493 = vmatmul.mubr.bf16.gmra.mrb[0].mxu0 %v5470
        %v7494 = vpop.f32.mrb[0].mxu0
        %v7495 = vadd.f32 %v7286, %v7494
        %v7496 = vpop.f32.mrb[0].mxu0
        %v7497 = vpop.f32.mrb[0].mxu0
        %v7498 = vadd.f32 %v7289, %v7497
        %v7499 = vpop.f32.mrb[0].mxu0
        %7500 = vmatprep.mubr.bf16.mxu0 %v5488
        %7501 = vmatmul.mubr.bf16.gmra.mrb[0].mxu0 %v5487
        %v7502 = vpop.f32.mrb[0].mxu0
        %v7503 = vadd.f32 %v7294, %v7502
        %v7504 = vpop.f32.mrb[0].mxu0
        %v7505 = vpop.f32.mrb[0].mxu0
        %v7506 = vadd.f32 %v7297, %v7505
        %v7507 = vpop.f32.mrb[0].mxu0
        %7508 = vmatprep.mubr.bf16.mxu0 %v5505
        %7509 = vmatmul.mubr.bf16.gmra.mrb[0].mxu0 %v5504
        %v7510 = vpop.f32.mrb[0].mxu0
        %v7511 = vadd.f32 %v7302, %v7510
        %v7512 = vpop.f32.mrb[0].mxu0
        %v7513 = vpop.f32.mrb[0].mxu0
        %v7514 = vadd.f32 %v7305, %v7513
        %v7515 = vpop.f32.mrb[0].mxu0
        %7516 = vmatprep.mubr.bf16.mxu0 %v5522
        %7517 = vmatmul.mubr.bf16.gmra.mrb[0].mxu0 %v5521
        %v7518 = vpop.f32.mrb[0].mxu0
        %v7519 = vadd.f32 %v7310, %v7518
        %v7520 = vpop.f32.mrb[0].mxu0
        %v7521 = vpop.f32.mrb[0].mxu0
        %v7522 = vadd.f32 %v7313, %v7521
        %v7523 = vpop.f32.mrb[0].mxu0
        %7524 = vmatprep.mubr.bf16.mxu0 %v5539
        %7525 = vmatmul.mubr.bf16.gmra.mrb[0].mxu0 %v5538
        %v7526 = vpop.f32.mrb[0].mxu0
        %v7527 = vadd.f32 %v7318, %v7526
        %v7528 = vpop.f32.mrb[0].mxu0
        %v7529 = vpop.f32.mrb[0].mxu0
        %v7530 = vadd.f32 %v7321, %v7529
        %v7531 = vpop.f32.mrb[0].mxu0
        %7532 = vmatprep.mubr.bf16.mxu0 %v5556
        %7533 = vmatmul.mubr.bf16.gmra.mrb[0].mxu0 %v5555
        %v7534 = vpop.f32.mrb[0].mxu0
        %v7535 = vadd.f32 %v7326, %v7534
        %v7536 = vpop.f32.mrb[0].mxu0
        %v7537 = vpop.f32.mrb[0].mxu0
        %v7538 = vadd.f32 %v7329, %v7537
        %v7539 = vpop.f32.mrb[0].mxu0
        %7540 = vmatprep.mubr.bf16.mxu0 %v5573
        %7541 = vmatmul.mubr.bf16.gmra.mrb[0].mxu0 %v5572
        %v7542 = vpop.f32.mrb[0].mxu0
        %v7543 = vadd.f32 %v7334, %v7542
        %v7544 = vpop.f32.mrb[0].mxu0
        %v7545 = vpop.f32.mrb[0].mxu0
        %v7546 = vadd.f32 %v7337, %v7545
        %v7547 = vpop.f32.mrb[0].mxu0
        %7548 = vmatprep.mubr.bf16.mxu0 %v5590
        %7549 = vmatmul.mubr.bf16.gmra.mrb[0].mxu0 %v5589
        %v7550 = vpop.f32.mrb[0].mxu0
        %v7551 = vadd.f32 %v7342, %v7550
        %v7552 = vpop.f32.mrb[0].mxu0
        %v7553 = vpop.f32.mrb[0].mxu0
        %v7554 = vadd.f32 %v7345, %v7553
        %v7555 = vpop.f32.mrb[0].mxu0
        %7556 = vmatprep.mubr.bf16.mxu0 %v5607
        %7557 = vmatmul.mubr.bf16.gmra.mrb[0].mxu0 %v5606
        %v7558 = vpop.f32.mrb[0].mxu0
        %v7559 = vadd.f32 %v7350, %v7558
        %v7560 = vpop.f32.mrb[0].mxu0
        %v7561 = vpop.f32.mrb[0].mxu0
        %v7562 = vadd.f32 %v7353, %v7561
        %v7563 = vpop.f32.mrb[0].mxu0
        %7564 = vmatprep.mubr.bf16.mxu0 %v5624
        %7565 = vmatmul.mubr.bf16.gmra.mrb[0].mxu0 %v5623
        %v7566 = vpop.f32.mrb[0].mxu0
        %v7567 = vadd.f32 %v7358, %v7566
        %v7568 = vpop.f32.mrb[0].mxu0
        %v7569 = vpop.f32.mrb[0].mxu0
        %v7570 = vadd.f32 %v7361, %v7569
        %v7571 = vpop.f32.mrb[0].mxu0
        %7572 = vmatprep.mubr.bf16.mxu0 %v5641
        %7573 = vmatmul.mubr.bf16.gmra.mrb[0].mxu0 %v5640
        %v7574 = vpop.f32.mrb[0].mxu0
        %v7575 = vadd.f32 %v7366, %v7574
        %v7576 = vpop.f32.mrb[0].mxu0
        %v7577 = vpop.f32.mrb[0].mxu0
        %v7578 = vadd.f32 %v7369, %v7577
        %v7579 = vpop.f32.mrb[0].mxu0
        %7580 = vmatprep.mubr.bf16.mxu0 %v5658
        %7581 = vmatmul.mubr.bf16.gmra.mrb[0].mxu0 %v5657
        %v7582 = vpop.f32.mrb[0].mxu0
        %v7583 = vadd.f32 %v7374, %v7582
        %v7584 = vpop.f32.mrb[0].mxu0
        %v7585 = vpop.f32.mrb[0].mxu0
        %v7586 = vadd.f32 %v7377, %v7585
        %v7587 = vpop.f32.mrb[0].mxu0
        %7588 = vmatprep.mubr.bf16.mxu0 %v5675
        %7589 = vmatmul.mubr.bf16.gmra.mrb[0].mxu0 %v5674
        %v7590 = vpop.f32.mrb[0].mxu0
        %v7591 = vadd.f32 %v7382, %v7590
        %v7592 = vpop.f32.mrb[0].mxu0
        %v7593 = vpop.f32.mrb[0].mxu0
        %v7594 = vadd.f32 %v7385, %v7593
        %v7595 = vpop.f32.mrb[0].mxu0
        %7596 = vmatprep.mubr.bf16.mxu0 %v5692
        %7597 = vmatmul.mubr.bf16.gmra.mrb[0].mxu0 %v5691
        %v7598 = vpop.f32.mrb[0].mxu0
        %v7599 = vadd.f32 %v7390, %v7598
        %v7600 = vpop.f32.mrb[0].mxu0
        %v7601 = vpop.f32.mrb[0].mxu0
        %v7602 = vadd.f32 %v7393, %v7601
        %v7603 = vpop.f32.mrb[0].mxu0
        %7604 = vmatprep.mubr.bf16.mxu0 %v5709
        %7605 = vmatmul.mubr.bf16.gmra.mrb[0].mxu0 %v5708
        %v7606 = vpop.f32.mrb[0].mxu0
        %v7607 = vadd.f32 %v7398, %v7606
        %v7608 = vpop.f32.mrb[0].mxu0
        %v7609 = vpop.f32.mrb[0].mxu0
        %v7610 = vadd.f32 %v7401, %v7609
        %v7611 = vpop.f32.mrb[0].mxu0
        %7612 = vmatprep.mubr.bf16.mxu0 %v5726
        %7613 = vmatmul.mubr.bf16.gmra.mrb[0].mxu0 %v5725
        %v7614 = vpop.f32.mrb[0].mxu0
        %v7615 = vadd.f32 %v7406, %v7614
        %v7616 = vpop.f32.mrb[0].mxu0
        %v7617 = vpop.f32.mrb[0].mxu0
        %v7618 = vadd.f32 %v7409, %v7617
        %v7619 = vpop.f32.mrb[0].mxu0
        %7620 = vmatprep.mubr.bf16.mxu0 %v5743
        %7621 = vmatmul.mubr.bf16.gmra.mrb[0].mxu0 %v5742
        %v7622 = vpop.f32.mrb[0].mxu0
        %v7623 = vadd.f32 %v7414, %v7622
        %v7624 = vpop.f32.mrb[0].mxu0
        %v7625 = vpop.f32.mrb[0].mxu0
        %v7626 = vadd.f32 %v7417, %v7625
        %v7627 = vpop.f32.mrb[0].mxu0
        %7628 = vdwg.mxu0
        %7629 = vmatprep.subr.bf16.mxu0 0
        %7630 = vmatpush1.bf16.msra.mxu0 %v4209
        %7631 = vmatprep.subr.bf16.mxu0 0
        %7632 = vmatpush1.bf16.msra.mxu0 %v4210
        %7633 = vmatprep.subr.bf16.mxu0 0
        %7634 = vmatpush1.bf16.msra.mxu0 %v4211
        %7635 = vmatprep.subr.bf16.mxu0 0
        %7636 = vmatpush1.bf16.msra.mxu0 %v4212
        %7637 = vmatprep.subr.bf16.mxu0 0
        %7638 = vmatpush1.bf16.msra.mxu0 %v4213
        %7639 = vmatprep.subr.bf16.mxu0 0
        %7640 = vmatpush1.bf16.msra.mxu0 %v4214
        %7641 = vmatprep.subr.bf16.mxu0 0
        %7642 = vmatpush1.bf16.msra.mxu0 %v4215
        %7643 = vmatprep.subr.bf16.mxu0 0
        %7644 = vmatpush1.bf16.msra.mxu0 %v4216
        %7645 = vmatprep.subr.bf16.mxu0 0
        %7646 = vmatpush1.bf16.msra.mxu0 %v4217
        %7647 = vmatprep.subr.bf16.mxu0 0
        %7648 = vmatpush1.bf16.msra.mxu0 %v4218
        %7649 = vmatprep.subr.bf16.mxu0 0
        %7650 = vmatpush1.bf16.msra.mxu0 %v4219
        %7651 = vmatprep.subr.bf16.mxu0 0
        %7652 = vmatpush1.bf16.msra.mxu0 %v4220
        %7653 = vmatprep.subr.bf16.mxu0 0
        %7654 = vmatpush1.bf16.msra.mxu0 %v4221
        %7655 = vmatprep.subr.bf16.mxu0 0
        %7656 = vmatpush1.bf16.msra.mxu0 %v4222
        %7657 = vmatprep.subr.bf16.mxu0 0
        %7658 = vmatpush1.bf16.msra.mxu0 %v4223
        %7659 = vmatprep.subr.bf16.mxu0 0
        %7660 = vmatpush1.bf16.msra.mxu0 %v4224
        %7661 = vmatprep.mubr.bf16.mxu0 %v5388
        %7662 = vmatmul.mubr.bf16.gmra.mrb[0].mxu0 %v5387
        %v7663 = vpop.f32.mrb[0].mxu0
        %v7664 = vadd.f32 %v7455, %v7663
        %v7665 = vpop.f32.mrb[0].mxu0
        %v7666 = vpop.f32.mrb[0].mxu0
        %v7667 = vadd.f32 %v7458, %v7666
        %v7668 = vpop.f32.mrb[0].mxu0
        %7669 = vmatprep.mubr.bf16.mxu0 %v5405
        %7670 = vmatmul.mubr.bf16.gmra.mrb[0].mxu0 %v5404
        %v7671 = vpop.f32.mrb[0].mxu0
        %v7672 = vadd.f32 %v7463, %v7671
        %v7673 = vpop.f32.mrb[0].mxu0
        %v7674 = vpop.f32.mrb[0].mxu0
        %v7675 = vadd.f32 %v7466, %v7674
        %v7676 = vpop.f32.mrb[0].mxu0
        %7677 = vmatprep.mubr.bf16.mxu0 %v5422
        %7678 = vmatmul.mubr.bf16.gmra.mrb[0].mxu0 %v5421
        %v7679 = vpop.f32.mrb[0].mxu0
        %v7680 = vadd.f32 %v7471, %v7679
        %v7681 = vpop.f32.mrb[0].mxu0
        %v7682 = vpop.f32.mrb[0].mxu0
        %v7683 = vadd.f32 %v7474, %v7682
        %v7684 = vpop.f32.mrb[0].mxu0
        %7685 = vmatprep.mubr.bf16.mxu0 %v5439
        %7686 = vmatmul.mubr.bf16.gmra.mrb[0].mxu0 %v5438
        %v7687 = vpop.f32.mrb[0].mxu0
        %v7688 = vadd.f32 %v7479, %v7687
        %v7689 = vpop.f32.mrb[0].mxu0
        %v7690 = vpop.f32.mrb[0].mxu0
        %v7691 = vadd.f32 %v7482, %v7690
        %v7692 = vpop.f32.mrb[0].mxu0
        %7693 = vmatprep.mubr.bf16.mxu0 %v5456
        %7694 = vmatmul.mubr.bf16.gmra.mrb[0].mxu0 %v5455
        %v7695 = vpop.f32.mrb[0].mxu0
        %v7696 = vadd.f32 %v7487, %v7695
        %v7697 = vpop.f32.mrb[0].mxu0
        %v7698 = vpop.f32.mrb[0].mxu0
        %v7699 = vadd.f32 %v7490, %v7698
        %v7700 = vpop.f32.mrb[0].mxu0
        %7701 = vmatprep.mubr.bf16.mxu0 %v5473
        %7702 = vmatmul.mubr.bf16.gmra.mrb[0].mxu0 %v5472
        %v7703 = vpop.f32.mrb[0].mxu0
        %v7704 = vadd.f32 %v7495, %v7703
        %v7705 = vpop.f32.mrb[0].mxu0
        %v7706 = vpop.f32.mrb[0].mxu0
        %v7707 = vadd.f32 %v7498, %v7706
        %v7708 = vpop.f32.mrb[0].mxu0
        %7709 = vmatprep.mubr.bf16.mxu0 %v5490
        %7710 = vmatmul.mubr.bf16.gmra.mrb[0].mxu0 %v5489
        %v7711 = vpop.f32.mrb[0].mxu0
        %v7712 = vadd.f32 %v7503, %v7711
        %v7713 = vpop.f32.mrb[0].mxu0
        %v7714 = vpop.f32.mrb[0].mxu0
        %v7715 = vadd.f32 %v7506, %v7714
        %v7716 = vpop.f32.mrb[0].mxu0
        %7717 = vmatprep.mubr.bf16.mxu0 %v5507
        %7718 = vmatmul.mubr.bf16.gmra.mrb[0].mxu0 %v5506
        %v7719 = vpop.f32.mrb[0].mxu0
        %v7720 = vadd.f32 %v7511, %v7719
        %v7721 = vpop.f32.mrb[0].mxu0
        %v7722 = vpop.f32.mrb[0].mxu0
        %v7723 = vadd.f32 %v7514, %v7722
        %v7724 = vpop.f32.mrb[0].mxu0
        %7725 = vmatprep.mubr.bf16.mxu0 %v5524
        %7726 = vmatmul.mubr.bf16.gmra.mrb[0].mxu0 %v5523
        %v7727 = vpop.f32.mrb[0].mxu0
        %v7728 = vadd.f32 %v7519, %v7727
        %v7729 = vpop.f32.mrb[0].mxu0
        %v7730 = vpop.f32.mrb[0].mxu0
        %v7731 = vadd.f32 %v7522, %v7730
        %v7732 = vpop.f32.mrb[0].mxu0
        %7733 = vmatprep.mubr.bf16.mxu0 %v5541
        %7734 = vmatmul.mubr.bf16.gmra.mrb[0].mxu0 %v5540
        %v7735 = vpop.f32.mrb[0].mxu0
        %v7736 = vadd.f32 %v7527, %v7735
        %v7737 = vpop.f32.mrb[0].mxu0
        %v7738 = vpop.f32.mrb[0].mxu0
        %v7739 = vadd.f32 %v7530, %v7738
        %v7740 = vpop.f32.mrb[0].mxu0
        %7741 = vmatprep.mubr.bf16.mxu0 %v5558
        %7742 = vmatmul.mubr.bf16.gmra.mrb[0].mxu0 %v5557
        %v7743 = vpop.f32.mrb[0].mxu0
        %v7744 = vadd.f32 %v7535, %v7743
        %v7745 = vpop.f32.mrb[0].mxu0
        %v7746 = vpop.f32.mrb[0].mxu0
        %v7747 = vadd.f32 %v7538, %v7746
        %v7748 = vpop.f32.mrb[0].mxu0
        %7749 = vmatprep.mubr.bf16.mxu0 %v5575
        %7750 = vmatmul.mubr.bf16.gmra.mrb[0].mxu0 %v5574
        %v7751 = vpop.f32.mrb[0].mxu0
        %v7752 = vadd.f32 %v7543, %v7751
        %v7753 = vpop.f32.mrb[0].mxu0
        %v7754 = vpop.f32.mrb[0].mxu0
        %v7755 = vadd.f32 %v7546, %v7754
        %v7756 = vpop.f32.mrb[0].mxu0
        %7757 = vmatprep.mubr.bf16.mxu0 %v5592
        %7758 = vmatmul.mubr.bf16.gmra.mrb[0].mxu0 %v5591
        %v7759 = vpop.f32.mrb[0].mxu0
        %v7760 = vadd.f32 %v7551, %v7759
        %v7761 = vpop.f32.mrb[0].mxu0
        %v7762 = vpop.f32.mrb[0].mxu0
        %v7763 = vadd.f32 %v7554, %v7762
        %v7764 = vpop.f32.mrb[0].mxu0
        %7765 = vmatprep.mubr.bf16.mxu0 %v5609
        %7766 = vmatmul.mubr.bf16.gmra.mrb[0].mxu0 %v5608
        %v7767 = vpop.f32.mrb[0].mxu0
        %v7768 = vadd.f32 %v7559, %v7767
        %v7769 = vpop.f32.mrb[0].mxu0
        %v7770 = vpop.f32.mrb[0].mxu0
        %v7771 = vadd.f32 %v7562, %v7770
        %v7772 = vpop.f32.mrb[0].mxu0
        %7773 = vmatprep.mubr.bf16.mxu0 %v5626
        %7774 = vmatmul.mubr.bf16.gmra.mrb[0].mxu0 %v5625
        %v7775 = vpop.f32.mrb[0].mxu0
        %v7776 = vadd.f32 %v7567, %v7775
        %v7777 = vpop.f32.mrb[0].mxu0
        %v7778 = vpop.f32.mrb[0].mxu0
        %v7779 = vadd.f32 %v7570, %v7778
        %v7780 = vpop.f32.mrb[0].mxu0
        %7781 = vmatprep.mubr.bf16.mxu0 %v5643
        %7782 = vmatmul.mubr.bf16.gmra.mrb[0].mxu0 %v5642
        %v7783 = vpop.f32.mrb[0].mxu0
        %v7784 = vadd.f32 %v7575, %v7783
        %v7785 = vpop.f32.mrb[0].mxu0
        %v7786 = vpop.f32.mrb[0].mxu0
        %v7787 = vadd.f32 %v7578, %v7786
        %v7788 = vpop.f32.mrb[0].mxu0
        %7789 = vmatprep.mubr.bf16.mxu0 %v5660
        %7790 = vmatmul.mubr.bf16.gmra.mrb[0].mxu0 %v5659
        %v7791 = vpop.f32.mrb[0].mxu0
        %v7792 = vadd.f32 %v7583, %v7791
        %v7793 = vpop.f32.mrb[0].mxu0
        %v7794 = vpop.f32.mrb[0].mxu0
        %v7795 = vadd.f32 %v7586, %v7794
        %v7796 = vpop.f32.mrb[0].mxu0
        %7797 = vmatprep.mubr.bf16.mxu0 %v5677
        %7798 = vmatmul.mubr.bf16.gmra.mrb[0].mxu0 %v5676
        %v7799 = vpop.f32.mrb[0].mxu0
        %v7800 = vadd.f32 %v7591, %v7799
        %v7801 = vpop.f32.mrb[0].mxu0
        %v7802 = vpop.f32.mrb[0].mxu0
        %v7803 = vadd.f32 %v7594, %v7802
        %v7804 = vpop.f32.mrb[0].mxu0
        %7805 = vmatprep.mubr.bf16.mxu0 %v5694
        %7806 = vmatmul.mubr.bf16.gmra.mrb[0].mxu0 %v5693
        %v7807 = vpop.f32.mrb[0].mxu0
        %v7808 = vadd.f32 %v7599, %v7807
        %v7809 = vpop.f32.mrb[0].mxu0
        %v7810 = vpop.f32.mrb[0].mxu0
        %v7811 = vadd.f32 %v7602, %v7810
        %v7812 = vpop.f32.mrb[0].mxu0
        %7813 = vmatprep.mubr.bf16.mxu0 %v5711
        %7814 = vmatmul.mubr.bf16.gmra.mrb[0].mxu0 %v5710
        %v7815 = vpop.f32.mrb[0].mxu0
        %v7816 = vadd.f32 %v7607, %v7815
        %v7817 = vpop.f32.mrb[0].mxu0
        %v7818 = vpop.f32.mrb[0].mxu0
        %v7819 = vadd.f32 %v7610, %v7818
        %v7820 = vpop.f32.mrb[0].mxu0
        %7821 = vmatprep.mubr.bf16.mxu0 %v5728
        %7822 = vmatmul.mubr.bf16.gmra.mrb[0].mxu0 %v5727
        %v7823 = vpop.f32.mrb[0].mxu0
        %v7824 = vadd.f32 %v7615, %v7823
        %v7825 = vpop.f32.mrb[0].mxu0
        %v7826 = vpop.f32.mrb[0].mxu0
        %v7827 = vadd.f32 %v7618, %v7826
        %v7828 = vpop.f32.mrb[0].mxu0
        %7829 = vmatprep.mubr.bf16.mxu0 %v5745
        %7830 = vmatmul.mubr.bf16.gmra.mrb[0].mxu0 %v5744
        %v7831 = vpop.f32.mrb[0].mxu0
        %v7832 = vadd.f32 %v7623, %v7831
        %v7833 = vpop.f32.mrb[0].mxu0
        %v7834 = vpop.f32.mrb[0].mxu0
        %v7835 = vadd.f32 %v7626, %v7834
        %v7836 = vpop.f32.mrb[0].mxu0
        %7837 = vdwg.mxu0
        %7838 = vmatprep.subr.bf16.mxu0 0
        %7839 = vmatpush1.bf16.msra.mxu0 %v4225
        %7840 = vmatprep.subr.bf16.mxu0 0
        %7841 = vmatpush1.bf16.msra.mxu0 %v4226
        %7842 = vmatprep.subr.bf16.mxu0 0
        %7843 = vmatpush1.bf16.msra.mxu0 %v4227
        %7844 = vmatprep.subr.bf16.mxu0 0
        %7845 = vmatpush1.bf16.msra.mxu0 %v4228
        %7846 = vmatprep.subr.bf16.mxu0 0
        %7847 = vmatpush1.bf16.msra.mxu0 0
        %7848 = vmatprep.subr.bf16.mxu0 0
        %7849 = vmatpush1.bf16.msra.mxu0 0
        %7850 = vmatprep.subr.bf16.mxu0 0
        %7851 = vmatpush1.bf16.msra.mxu0 0
        %7852 = vmatprep.subr.bf16.mxu0 0
        %7853 = vmatpush1.bf16.msra.mxu0 0
        %7854 = vmatprep.subr.bf16.mxu0 0
        %7855 = vmatpush1.bf16.msra.mxu0 0
        %7856 = vmatprep.subr.bf16.mxu0 0
        %7857 = vmatpush1.bf16.msra.mxu0 0
        %7858 = vmatprep.subr.bf16.mxu0 0
        %7859 = vmatpush1.bf16.msra.mxu0 0
        %7860 = vmatprep.subr.bf16.mxu0 0
        %7861 = vmatpush1.bf16.msra.mxu0 0
        %7862 = vmatprep.subr.bf16.mxu0 0
        %7863 = vmatpush1.bf16.msra.mxu0 0
        %7864 = vmatprep.subr.bf16.mxu0 0
        %7865 = vmatpush1.bf16.msra.mxu0 0
        %7866 = vmatprep.subr.bf16.mxu0 0
        %7867 = vmatpush1.bf16.msra.mxu0 0
        %7868 = vmatprep.subr.bf16.mxu0 0
        %7869 = vmatpush1.bf16.msra.mxu0 0
        %7870 = vmatprep.mubr.bf16.mxu0 0
        %7871 = vmatmul.mubr.bf16.gmra.mrb[0].mxu0 %v6101
        %v7872 = vpop.f32.mrb[0].mxu0
        %v7873 = vadd.f32 %v7664, %v7872
        %v7874 = vpop.f32.mrb[0].mxu0
        %v7875 = vpop.f32.mrb[0].mxu0
        %v7876 = vadd.f32 %v7667, %v7875
        %v7877 = vpop.f32.mrb[0].mxu0
        %7878 = vmatprep.mubr.bf16.mxu0 0
        %7879 = vmatmul.mubr.bf16.gmra.mrb[0].mxu0 %v6104
        %v7880 = vpop.f32.mrb[0].mxu0
        %v7881 = vadd.f32 %v7672, %v7880
        %v7882 = vpop.f32.mrb[0].mxu0
        %v7883 = vpop.f32.mrb[0].mxu0
        %v7884 = vadd.f32 %v7675, %v7883
        %v7885 = vpop.f32.mrb[0].mxu0
        %7886 = vmatprep.mubr.bf16.mxu0 0
        %7887 = vmatmul.mubr.bf16.gmra.mrb[0].mxu0 %v6107
        %v7888 = vpop.f32.mrb[0].mxu0
        %v7889 = vadd.f32 %v7680, %v7888
        %v7890 = vpop.f32.mrb[0].mxu0
        %v7891 = vpop.f32.mrb[0].mxu0
        %v7892 = vadd.f32 %v7683, %v7891
        %v7893 = vpop.f32.mrb[0].mxu0
        %7894 = vmatprep.mubr.bf16.mxu0 0
        %7895 = vmatmul.mubr.bf16.gmra.mrb[0].mxu0 %v6110
        %v7896 = vpop.f32.mrb[0].mxu0
        %v7897 = vadd.f32 %v7688, %v7896
        %v7898 = vpop.f32.mrb[0].mxu0
        %v7899 = vpop.f32.mrb[0].mxu0
        %v7900 = vadd.f32 %v7691, %v7899
        %v7901 = vpop.f32.mrb[0].mxu0
        %7902 = vmatprep.mubr.bf16.mxu0 0
        %7903 = vmatmul.mubr.bf16.gmra.mrb[0].mxu0 %v6113
        %v7904 = vpop.f32.mrb[0].mxu0
        %v7905 = vadd.f32 %v7696, %v7904
        %v7906 = vpop.f32.mrb[0].mxu0
        %v7907 = vpop.f32.mrb[0].mxu0
        %v7908 = vadd.f32 %v7699, %v7907
        %v7909 = vpop.f32.mrb[0].mxu0
        %7910 = vmatprep.mubr.bf16.mxu0 0
        %7911 = vmatmul.mubr.bf16.gmra.mrb[0].mxu0 %v6116
        %v7912 = vpop.f32.mrb[0].mxu0
        %v7913 = vadd.f32 %v7704, %v7912
        %v7914 = vpop.f32.mrb[0].mxu0
        %v7915 = vpop.f32.mrb[0].mxu0
        %v7916 = vadd.f32 %v7707, %v7915
        %v7917 = vpop.f32.mrb[0].mxu0
        %7918 = vmatprep.mubr.bf16.mxu0 0
        %7919 = vmatmul.mubr.bf16.gmra.mrb[0].mxu0 %v6119
        %v7920 = vpop.f32.mrb[0].mxu0
        %v7921 = vadd.f32 %v7712, %v7920
        %v7922 = vpop.f32.mrb[0].mxu0
        %v7923 = vpop.f32.mrb[0].mxu0
        %v7924 = vadd.f32 %v7715, %v7923
        %v7925 = vpop.f32.mrb[0].mxu0
        %7926 = vmatprep.mubr.bf16.mxu0 0
        %7927 = vmatmul.mubr.bf16.gmra.mrb[0].mxu0 %v6122
        %v7928 = vpop.f32.mrb[0].mxu0
        %v7929 = vadd.f32 %v7720, %v7928
        %v7930 = vpop.f32.mrb[0].mxu0
        %v7931 = vpop.f32.mrb[0].mxu0
        %v7932 = vadd.f32 %v7723, %v7931
        %v7933 = vpop.f32.mrb[0].mxu0
        %7934 = vmatprep.mubr.bf16.mxu0 0
        %7935 = vmatmul.mubr.bf16.gmra.mrb[0].mxu0 %v6125
        %v7936 = vpop.f32.mrb[0].mxu0
        %v7937 = vadd.f32 %v7728, %v7936
        %v7938 = vpop.f32.mrb[0].mxu0
        %v7939 = vpop.f32.mrb[0].mxu0
        %v7940 = vadd.f32 %v7731, %v7939
        %v7941 = vpop.f32.mrb[0].mxu0
        %7942 = vmatprep.mubr.bf16.mxu0 0
        %7943 = vmatmul.mubr.bf16.gmra.mrb[0].mxu0 %v6128
        %v7944 = vpop.f32.mrb[0].mxu0
        %v7945 = vadd.f32 %v7736, %v7944
        %v7946 = vpop.f32.mrb[0].mxu0
        %v7947 = vpop.f32.mrb[0].mxu0
        %v7948 = vadd.f32 %v7739, %v7947
        %v7949 = vpop.f32.mrb[0].mxu0
        %7950 = vmatprep.mubr.bf16.mxu0 0
        %7951 = vmatmul.mubr.bf16.gmra.mrb[0].mxu0 %v6131
        %v7952 = vpop.f32.mrb[0].mxu0
        %v7953 = vadd.f32 %v7744, %v7952
        %v7954 = vpop.f32.mrb[0].mxu0
        %v7955 = vpop.f32.mrb[0].mxu0
        %v7956 = vadd.f32 %v7747, %v7955
        %v7957 = vpop.f32.mrb[0].mxu0
        %7958 = vmatprep.mubr.bf16.mxu0 0
        %7959 = vmatmul.mubr.bf16.gmra.mrb[0].mxu0 %v6134
        %v7960 = vpop.f32.mrb[0].mxu0
        %v7961 = vadd.f32 %v7752, %v7960
        %v7962 = vpop.f32.mrb[0].mxu0
        %v7963 = vpop.f32.mrb[0].mxu0
        %v7964 = vadd.f32 %v7755, %v7963
        %v7965 = vpop.f32.mrb[0].mxu0
        %7966 = vmatprep.mubr.bf16.mxu0 0
        %7967 = vmatmul.mubr.bf16.gmra.mrb[0].mxu0 %v6137
        %v7968 = vpop.f32.mrb[0].mxu0
        %v7969 = vadd.f32 %v7760, %v7968
        %v7970 = vpop.f32.mrb[0].mxu0
        %v7971 = vpop.f32.mrb[0].mxu0
        %v7972 = vadd.f32 %v7763, %v7971
        %v7973 = vpop.f32.mrb[0].mxu0
        %7974 = vmatprep.mubr.bf16.mxu0 0
        %7975 = vmatmul.mubr.bf16.gmra.mrb[0].mxu0 %v6140
        %v7976 = vpop.f32.mrb[0].mxu0
        %v7977 = vadd.f32 %v7768, %v7976
        %v7978 = vpop.f32.mrb[0].mxu0
        %v7979 = vpop.f32.mrb[0].mxu0
        %v7980 = vadd.f32 %v7771, %v7979
        %v7981 = vpop.f32.mrb[0].mxu0
        %7982 = vmatprep.mubr.bf16.mxu0 0
        %7983 = vmatmul.mubr.bf16.gmra.mrb[0].mxu0 %v6143
        %v7984 = vpop.f32.mrb[0].mxu0
        %v7985 = vadd.f32 %v7776, %v7984
        %v7986 = vpop.f32.mrb[0].mxu0
        %v7987 = vpop.f32.mrb[0].mxu0
        %v7988 = vadd.f32 %v7779, %v7987
        %v7989 = vpop.f32.mrb[0].mxu0
        %7990 = vmatprep.mubr.bf16.mxu0 0
        %7991 = vmatmul.mubr.bf16.gmra.mrb[0].mxu0 %v6146
        %v7992 = vpop.f32.mrb[0].mxu0
        %v7993 = vadd.f32 %v7784, %v7992
        %v7994 = vpop.f32.mrb[0].mxu0
        %v7995 = vpop.f32.mrb[0].mxu0
        %v7996 = vadd.f32 %v7787, %v7995
        %v7997 = vpop.f32.mrb[0].mxu0
        %7998 = vmatprep.mubr.bf16.mxu0 0
        %7999 = vmatmul.mubr.bf16.gmra.mrb[0].mxu0 %v6149
        %v8000 = vpop.f32.mrb[0].mxu0
        %v8001 = vadd.f32 %v7792, %v8000
        %v8002 = vpop.f32.mrb[0].mxu0
        %v8003 = vpop.f32.mrb[0].mxu0
        %v8004 = vadd.f32 %v7795, %v8003
        %v8005 = vpop.f32.mrb[0].mxu0
        %8006 = vmatprep.mubr.bf16.mxu0 0
        %8007 = vmatmul.mubr.bf16.gmra.mrb[0].mxu0 %v6152
        %v8008 = vpop.f32.mrb[0].mxu0
        %v8009 = vadd.f32 %v7800, %v8008
        %v8010 = vpop.f32.mrb[0].mxu0
        %v8011 = vpop.f32.mrb[0].mxu0
        %v8012 = vadd.f32 %v7803, %v8011
        %v8013 = vpop.f32.mrb[0].mxu0
        %8014 = vmatprep.mubr.bf16.mxu0 0
        %8015 = vmatmul.mubr.bf16.gmra.mrb[0].mxu0 %v6155
        %v8016 = vpop.f32.mrb[0].mxu0
        %v8017 = vadd.f32 %v7808, %v8016
        %v8018 = vpop.f32.mrb[0].mxu0
        %v8019 = vpop.f32.mrb[0].mxu0
        %v8020 = vadd.f32 %v7811, %v8019
        %v8021 = vpop.f32.mrb[0].mxu0
        %8022 = vmatprep.mubr.bf16.mxu0 0
        %8023 = vmatmul.mubr.bf16.gmra.mrb[0].mxu0 %v6158
        %v8024 = vpop.f32.mrb[0].mxu0
        %v8025 = vadd.f32 %v7816, %v8024
        %v8026 = vpop.f32.mrb[0].mxu0
        %v8027 = vpop.f32.mrb[0].mxu0
        %v8028 = vadd.f32 %v7819, %v8027
        %v8029 = vpop.f32.mrb[0].mxu0
        %8030 = vmatprep.mubr.bf16.mxu0 0
        %8031 = vmatmul.mubr.bf16.gmra.mrb[0].mxu0 %v6161
        %v8032 = vpop.f32.mrb[0].mxu0
        %v8033 = vadd.f32 %v7824, %v8032
        %v8034 = vpop.f32.mrb[0].mxu0
        %v8035 = vpop.f32.mrb[0].mxu0
        %v8036 = vadd.f32 %v7827, %v8035
        %v8037 = vpop.f32.mrb[0].mxu0
        %8038 = vmatprep.mubr.bf16.mxu0 0
        %8039 = vmatmul.mubr.bf16.gmra.mrb[0].mxu0 %v6164
        %v8040 = vpop.f32.mrb[0].mxu0
        %v8041 = vadd.f32 %v7832, %v8040
        %v8042 = vpop.f32.mrb[0].mxu0
        %v8043 = vpop.f32.mrb[0].mxu0
        %v8044 = vadd.f32 %v7835, %v8043
        %v8045 = vpop.f32.mrb[0].mxu0
        %8046 = vdwg.mxu0
        %v8047 = vld [vmem:[#allocation3] sm:$0xff]
        %v8048 = vld [vmem:[#allocation3 + $0x8] sm:$0xff]
        %v8049 = vld [vmem:[#allocation3 + $0x10] sm:$0xff]
        %v8050 = vld [vmem:[#allocation3 + $0x18] sm:$0xff]
        %v8051 = vld [vmem:[#allocation3 + $0x20] sm:$0xff]
        %v8052 = vld [vmem:[#allocation3 + $0x28] sm:$0xff]
        %v8053 = vld [vmem:[#allocation3 + $0x30] sm:$0xff]
        %v8054 = vld [vmem:[#allocation3 + $0x38] sm:$0xff]
        %v8055 = vld [vmem:[#allocation3 + $0x40] sm:$0xff]
        %v8056 = vld [vmem:[#allocation3 + $0x48] sm:$0xff]
        %v8057 = vld [vmem:[#allocation3 + $0x50] sm:$0xff]
        %v8058 = vld [vmem:[#allocation3 + $0x58] sm:$0xff]
        %v8059 = vld [vmem:[#allocation3 + $0x60] sm:$0xff]
        %v8060 = vld [vmem:[#allocation3 + $0x68] sm:$0xff]
        %v8061 = vld [vmem:[#allocation3 + $0x70] sm:$0xff]
        %v8062 = vld [vmem:[#allocation3 + $0x78] sm:$0xff]
        %v8063 = vld [vmem:[#allocation3 + $0x80] sm:$0xff]
        %v8064 = vld [vmem:[#allocation3 + $0x88] sm:$0xff]
        %v8065 = vld [vmem:[#allocation3 + $0x90] sm:$0xff]
        %v8066 = vld [vmem:[#allocation3 + $0x98] sm:$0xff]
        %v8067 = vld [vmem:[#allocation3 + $0xa0] sm:$0xff]
        %v8068 = vld [vmem:[#allocation3 + $0xa8] sm:$0xff]
        %v8069 = vld [vmem:[#allocation3 + $0xb0] sm:$0xff]
        %v8070 = vld [vmem:[#allocation3 + $0xb8] sm:$0xff]
        %v8071 = vld [vmem:[#allocation3 + $0xc0] sm:$0xff]
        %v8072 = vld [vmem:[#allocation3 + $0xc8] sm:$0xff]
        %v8073 = vld [vmem:[#allocation3 + $0xd0] sm:$0xff]
        %v8074 = vld [vmem:[#allocation3 + $0xd8] sm:$0xff]
        %v8075 = vld [vmem:[#allocation3 + $0xe0] sm:$0xff]
        %v8076 = vld [vmem:[#allocation3 + $0xe8] sm:$0xff]
        %v8077 = vld [vmem:[#allocation3 + $0xf0] sm:$0xff]
        %v8078 = vld [vmem:[#allocation3 + $0xf8] sm:$0xff]
        %v8079 = vld [vmem:[#allocation3 + $0x100] sm:$0xff]
        %v8080 = vld [vmem:[#allocation3 + $0x108] sm:$0xff]
        %v8081 = vld [vmem:[#allocation3 + $0x110] sm:$0xff]
        %v8082 = vld [vmem:[#allocation3 + $0x118] sm:$0xff]
        %v8083 = vld [vmem:[#allocation3 + $0x120] sm:$0xff]
        %v8084 = vld [vmem:[#allocation3 + $0x128] sm:$0xff]
        %v8085 = vld [vmem:[#allocation3 + $0x130] sm:$0xff]
        %v8086 = vld [vmem:[#allocation3 + $0x138] sm:$0xff]
        %v8087 = vld [vmem:[#allocation3 + $0x140] sm:$0xff]
        %v8088 = vld [vmem:[#allocation3 + $0x148] sm:$0xff]
        %v8089 = vld [vmem:[#allocation3 + $0x150] sm:$0xff]
        %v8090 = vld [vmem:[#allocation3 + $0x158] sm:$0xff]
        %v8091 = vld [vmem:[#allocation3 + $0x160] sm:$0xff]
        %v8092 = vld [vmem:[#allocation3 + $0x168] sm:$0xff]
        %v8093 = vld [vmem:[#allocation3 + $0x170] sm:$0xff]
        %v8094 = vld [vmem:[#allocation3 + $0x178] sm:$0xff]
        %v8095 = vld [vmem:[#allocation3 + $0x180] sm:$0xff]
        %v8096 = vld [vmem:[#allocation3 + $0x188] sm:$0xff]
        %v8097 = vld [vmem:[#allocation3 + $0x190] sm:$0xff]
        %v8098 = vld [vmem:[#allocation3 + $0x198] sm:$0xff]
        %v8099 = vld [vmem:[#allocation3 + $0x1a0] sm:$0xff]
        %v8100 = vld [vmem:[#allocation3 + $0x1a8] sm:$0xff]
        %v8101 = vld [vmem:[#allocation3 + $0x1b0] sm:$0xff]
        %v8102 = vld [vmem:[#allocation3 + $0x1b8] sm:$0xff]
        %v8103 = vld [vmem:[#allocation3 + $0x1c0] sm:$0xff]
        %v8104 = vld [vmem:[#allocation3 + $0x1c8] sm:$0xff]
        %v8105 = vld [vmem:[#allocation3 + $0x1d0] sm:$0xff]
        %v8106 = vld [vmem:[#allocation3 + $0x1d8] sm:$0xff]
        %v8107 = vld [vmem:[#allocation3 + $0x1e0] sm:$0xff]
        %v8108 = vld [vmem:[#allocation3 + $0x1e8] sm:$0xff]
        %v8109 = vld [vmem:[#allocation3 + $0x1f0] sm:$0xff]
        %v8110 = vld [vmem:[#allocation3 + $0x1f8] sm:$0xff]
        %v8111 = vld [vmem:[%s427] sm:$0xff]
        %v8112 = vld [vmem:[%s427 + $0x8] sm:$0xff]
        %v8113 = vld [vmem:[%s427 + $0x10] sm:$0xff]
        %v8114 = vld [vmem:[%s427 + $0x18] sm:$0xff]
        %v8115 = vld [vmem:[%s427 + $0x20] sm:$0xff]
        %v8116 = vld [vmem:[%s427 + $0x28] sm:$0xff]
        %v8117 = vld [vmem:[%s427 + $0x30] sm:$0xff]
        %v8118 = vld [vmem:[%s427 + $0x38] sm:$0xff]
        %v8119 = vld [vmem:[%s427 + $0x40] sm:$0xff]
        %v8120 = vld [vmem:[%s427 + $0x48] sm:$0xff]
        %v8121 = vld [vmem:[%s427 + $0x50] sm:$0xff]
        %v8122 = vld [vmem:[%s427 + $0x58] sm:$0xff]
        %v8123 = vld [vmem:[%s427 + $0x60] sm:$0xff]
        %v8124 = vld [vmem:[%s427 + $0x68] sm:$0xff]
        %v8125 = vld [vmem:[%s427 + $0x70] sm:$0xff]
        %v8126 = vld [vmem:[%s427 + $0x78] sm:$0xff]
        %v8127 = vld [vmem:[%s427 + $0x80] sm:$0xff]
        %v8128 = vld [vmem:[%s427 + $0x88] sm:$0xff]
        %v8129 = vld [vmem:[%s427 + $0x90] sm:$0xff]
        %v8130 = vld [vmem:[%s427 + $0x98] sm:$0xff]
        %v8131 = vld [vmem:[%s427 + $0xa0] sm:$0xff]
        %v8132 = vld [vmem:[%s427 + $0xa8] sm:$0xff]
        %v8133 = vld [vmem:[%s427 + $0xb0] sm:$0xff]
        %v8134 = vld [vmem:[%s427 + $0xb8] sm:$0xff]
        %v8135 = vld [vmem:[%s427 + $0xc0] sm:$0xff]
        %v8136 = vld [vmem:[%s427 + $0xc8] sm:$0xff]
        %v8137 = vld [vmem:[%s427 + $0xd0] sm:$0xff]
        %v8138 = vld [vmem:[%s427 + $0xd8] sm:$0xff]
        %v8139 = vld [vmem:[%s427 + $0xe0] sm:$0xff]
        %v8140 = vld [vmem:[%s427 + $0xe8] sm:$0xff]
        %v8141 = vld [vmem:[%s427 + $0xf0] sm:$0xff]
        %v8142 = vld [vmem:[%s427 + $0xf8] sm:$0xff]
        %v8143 = vld [vmem:[%s427 + $0x100] sm:$0xff]
        %v8144 = vld [vmem:[%s427 + $0x108] sm:$0xff]
        %v8145 = vld [vmem:[%s427 + $0x110] sm:$0xff]
        %v8146 = vld [vmem:[%s427 + $0x118] sm:$0xff]
        %v8147 = vld [vmem:[%s427 + $0x120] sm:$0xff]
        %v8148 = vld [vmem:[%s427 + $0x128] sm:$0xff]
        %v8149 = vld [vmem:[%s427 + $0x130] sm:$0xff]
        %v8150 = vld [vmem:[%s427 + $0x138] sm:$0xff]
        %v8151 = vld [vmem:[%s427 + $0x140] sm:$0xff]
        %v8152 = vld [vmem:[%s427 + $0x148] sm:$0xff]
        %v8153 = vld [vmem:[%s427 + $0x150] sm:$0xff]
        %v8154 = vld [vmem:[%s427 + $0x158] sm:$0xff]
        %v8155 = vld [vmem:[%s427 + $0x160] sm:$0xff]
        %v8156 = vld [vmem:[%s427 + $0x168] sm:$0xff]
        %v8157 = vld [vmem:[%s427 + $0x170] sm:$0xff]
        %v8158 = vld [vmem:[%s427 + $0x178] sm:$0xff]
        %v8159 = vld [vmem:[%s427 + $0x180] sm:$0xff]
        %v8160 = vld [vmem:[%s427 + $0x188] sm:$0xff]
        %v8161 = vld [vmem:[%s427 + $0x190] sm:$0xff]
        %v8162 = vld [vmem:[%s427 + $0x198] sm:$0xff]
        %v8163 = vld [vmem:[%s427 + $0x1a0] sm:$0xff]
        %v8164 = vld [vmem:[%s427 + $0x1a8] sm:$0xff]
        %v8165 = vld [vmem:[%s427 + $0x1b0] sm:$0xff]
        %v8166 = vld [vmem:[%s427 + $0x1b8] sm:$0xff]
        %v8167 = vld [vmem:[%s427 + $0x1c0] sm:$0xff]
        %v8168 = vld [vmem:[%s427 + $0x1c8] sm:$0xff]
        %v8169 = vld [vmem:[%s427 + $0x1d0] sm:$0xff]
        %v8170 = vld [vmem:[%s427 + $0x1d8] sm:$0xff]
        %v8171 = vld [vmem:[%s427 + $0x1e0] sm:$0xff]
        %v8172 = vld [vmem:[%s427 + $0x1e8] sm:$0xff]
        %v8173 = vld [vmem:[%s427 + $0x1f0] sm:$0xff]
        %v8174 = vld [vmem:[%s427 + $0x1f8] sm:$0xff]
        %v8175 = vld [vmem:[%s427 + $0x200] sm:$0xff]
        %v8176 = vld [vmem:[%s427 + $0x208] sm:$0xff]
        %v8177 = vld [vmem:[%s427 + $0x210] sm:$0xff]
        %v8178 = vld [vmem:[%s427 + $0x218] sm:$0xff]
        %v8179 = vld [vmem:[%s427 + $0x220] sm:$0xff]
        %v8180 = vld [vmem:[%s427 + $0x228] sm:$0xff]
        %v8181 = vld [vmem:[%s427 + $0x230] sm:$0xff]
        %v8182 = vld [vmem:[%s427 + $0x238] sm:$0xff]
        %v8183 = vld [vmem:[%s427 + $0x240] sm:$0xff]
        %v8184 = vld [vmem:[%s427 + $0x248] sm:$0xff]
        %v8185 = vld [vmem:[%s427 + $0x250] sm:$0xff]
        %v8186 = vld [vmem:[%s427 + $0x258] sm:$0xff]
        %v8187 = vld [vmem:[%s427 + $0x260] sm:$0xff]
        %v8188 = vld [vmem:[%s427 + $0x268] sm:$0xff]
        %v8189 = vld [vmem:[%s427 + $0x270] sm:$0xff]
        %v8190 = vld [vmem:[%s427 + $0x278] sm:$0xff]
        %v8191 = vld [vmem:[%s427 + $0x280] sm:$0xff]
        %v8192 = vld [vmem:[%s427 + $0x288] sm:$0xff]
        %v8193 = vld [vmem:[%s427 + $0x290] sm:$0xff]
        %v8194 = vld [vmem:[%s427 + $0x298] sm:$0xff]
        %v8195 = vld [vmem:[%s427 + $0x2a0] sm:$0xff]
        %v8196 = vld [vmem:[%s427 + $0x2a8] sm:$0xff]
        %v8197 = vld [vmem:[%s427 + $0x2b0] sm:$0xff]
        %v8198 = vld [vmem:[%s427 + $0x2b8] sm:$0xff]
        %v8199 = vpack.c.bf16 %v7876, %v7873
        %v8200 = vpack.c.bf16 %v7884, %v7881
        %v8201 = vpack.c.bf16 %v7892, %v7889
        %v8202 = vpack.c.bf16 %v7900, %v7897
        %v8203 = vpack.c.bf16 %v7908, %v7905
        %v8204 = vpack.c.bf16 %v7916, %v7913
        %v8205 = vpack.c.bf16 %v7924, %v7921
        %v8206 = vpack.c.bf16 %v7932, %v7929
        %v8207 = vpack.c.bf16 %v7940, %v7937
        %v8208 = vpack.c.bf16 %v7948, %v7945
        %v8209 = vpack.c.bf16 %v7956, %v7953
        %v8210 = vpack.c.bf16 %v7964, %v7961
        %v8211 = vpack.c.bf16 %v7972, %v7969
        %v8212 = vpack.c.bf16 %v7980, %v7977
        %v8213 = vpack.c.bf16 %v7988, %v7985
        %v8214 = vpack.c.bf16 %v7996, %v7993
        %v8215 = vpack.c.bf16 %v8004, %v8001
        %v8216 = vpack.c.bf16 %v8012, %v8009
        %v8217 = vpack.c.bf16 %v8020, %v8017
        %v8218 = vpack.c.bf16 %v8028, %v8025
        %v8219 = vpack.c.bf16 %v8036, %v8033
        %v8220 = vpack.c.bf16 %v8044, %v8041
        %v8309 = vunpack.c.l.b16 %v8111
        %v8310 = vunpack.c.h.b16 %v8111
        %v8311 = vunpack.c.l.b16 %v8112
        %v8312 = vunpack.c.h.b16 %v8112
        %v8313 = vunpack.c.l.b16 %v8113
        %v8314 = vunpack.c.h.b16 %v8113
        %v8315 = vunpack.c.l.b16 %v8114
        %v8316 = vunpack.c.h.b16 %v8114
        %v8317 = vunpack.c.l.b16 %v8115
        %v8318 = vunpack.c.h.b16 %v8115
        %v8319 = vunpack.c.l.b16 %v8116
        %v8320 = vunpack.c.h.b16 %v8116
        %v8321 = vunpack.c.l.b16 %v8117
        %v8322 = vunpack.c.h.b16 %v8117
        %v8323 = vunpack.c.l.b16 %v8118
        %v8324 = vunpack.c.h.b16 %v8118
        %v8325 = vunpack.c.l.b16 %v8119
        %v8326 = vunpack.c.h.b16 %v8119
        %v8327 = vunpack.c.l.b16 %v8120
        %v8328 = vunpack.c.h.b16 %v8120
        %v8329 = vunpack.c.l.b16 %v8121
        %v8330 = vunpack.c.h.b16 %v8121
        %v8331 = vunpack.c.l.b16 %v8122
        %v8332 = vunpack.c.h.b16 %v8122
        %v8333 = vunpack.c.l.b16 %v8123
        %v8334 = vunpack.c.h.b16 %v8123
        %v8335 = vunpack.c.l.b16 %v8124
        %v8336 = vunpack.c.h.b16 %v8124
        %v8337 = vunpack.c.l.b16 %v8125
        %v8338 = vunpack.c.h.b16 %v8125
        %v8339 = vunpack.c.l.b16 %v8126
        %v8340 = vunpack.c.h.b16 %v8126
        %v8341 = vunpack.c.l.b16 %v8127
        %v8342 = vunpack.c.h.b16 %v8127
        %v8343 = vunpack.c.l.b16 %v8128
        %v8344 = vunpack.c.h.b16 %v8128
        %v8345 = vunpack.c.l.b16 %v8129
        %v8346 = vunpack.c.h.b16 %v8129
        %v8347 = vunpack.c.l.b16 %v8130
        %v8348 = vunpack.c.h.b16 %v8130
        %v8349 = vunpack.c.l.b16 %v8131
        %v8350 = vunpack.c.h.b16 %v8131
        %v8351 = vunpack.c.l.b16 %v8132
        %v8352 = vunpack.c.h.b16 %v8132
        %v8353 = vunpack.c.l.b16 %v8133
        %v8354 = vunpack.c.h.b16 %v8133
        %v8355 = vunpack.c.l.b16 %v8134
        %v8356 = vunpack.c.h.b16 %v8134
        %v8357 = vunpack.c.l.b16 %v8135
        %v8358 = vunpack.c.h.b16 %v8135
        %v8359 = vunpack.c.l.b16 %v8136
        %v8360 = vunpack.c.h.b16 %v8136
        %v8361 = vunpack.c.l.b16 %v8137
        %v8362 = vunpack.c.h.b16 %v8137
        %v8363 = vunpack.c.l.b16 %v8138
        %v8364 = vunpack.c.h.b16 %v8138
        %v8365 = vunpack.c.l.b16 %v8139
        %v8366 = vunpack.c.h.b16 %v8139
        %v8367 = vunpack.c.l.b16 %v8140
        %v8368 = vunpack.c.h.b16 %v8140
        %v8369 = vunpack.c.l.b16 %v8141
        %v8370 = vunpack.c.h.b16 %v8141
        %v8371 = vunpack.c.l.b16 %v8142
        %v8372 = vunpack.c.h.b16 %v8142
        %v8373 = vunpack.c.l.b16 %v8143
        %v8374 = vunpack.c.h.b16 %v8143
        %v8375 = vunpack.c.l.b16 %v8144
        %v8376 = vunpack.c.h.b16 %v8144
        %v8377 = vunpack.c.l.b16 %v8145
        %v8378 = vunpack.c.h.b16 %v8145
        %v8379 = vunpack.c.l.b16 %v8146
        %v8380 = vunpack.c.h.b16 %v8146
        %v8381 = vunpack.c.l.b16 %v8147
        %v8382 = vunpack.c.h.b16 %v8147
        %v8383 = vunpack.c.l.b16 %v8148
        %v8384 = vunpack.c.h.b16 %v8148
        %v8385 = vunpack.c.l.b16 %v8149
        %v8386 = vunpack.c.h.b16 %v8149
        %v8387 = vunpack.c.l.b16 %v8150
        %v8388 = vunpack.c.h.b16 %v8150
        %v8389 = vunpack.c.l.b16 %v8151
        %v8390 = vunpack.c.h.b16 %v8151
        %v8391 = vunpack.c.l.b16 %v8152
        %v8392 = vunpack.c.h.b16 %v8152
        %v8393 = vunpack.c.l.b16 %v8153
        %v8394 = vunpack.c.h.b16 %v8153
        %v8395 = vunpack.c.l.b16 %v8154
        %v8396 = vunpack.c.h.b16 %v8154
        %v8397 = vunpack.c.l.b16 %v8155
        %v8398 = vunpack.c.h.b16 %v8155
        %v8399 = vunpack.c.l.b16 %v8156
        %v8400 = vunpack.c.h.b16 %v8156
        %v8401 = vunpack.c.l.b16 %v8157
        %v8402 = vunpack.c.h.b16 %v8157
        %v8403 = vunpack.c.l.b16 %v8158
        %v8404 = vunpack.c.h.b16 %v8158
        %v8405 = vunpack.c.l.b16 %v8159
        %v8406 = vunpack.c.h.b16 %v8159
        %v8407 = vunpack.c.l.b16 %v8160
        %v8408 = vunpack.c.h.b16 %v8160
        %v8409 = vunpack.c.l.b16 %v8161
        %v8410 = vunpack.c.h.b16 %v8161
        %v8411 = vunpack.c.l.b16 %v8162
        %v8412 = vunpack.c.h.b16 %v8162
        %v8413 = vunpack.c.l.b16 %v8163
        %v8414 = vunpack.c.h.b16 %v8163
        %v8415 = vunpack.c.l.b16 %v8164
        %v8416 = vunpack.c.h.b16 %v8164
        %v8417 = vunpack.c.l.b16 %v8165
        %v8418 = vunpack.c.h.b16 %v8165
        %v8419 = vunpack.c.l.b16 %v8166
        %v8420 = vunpack.c.h.b16 %v8166
        %v8421 = vunpack.c.l.b16 %v8167
        %v8422 = vunpack.c.h.b16 %v8167
        %v8423 = vunpack.c.l.b16 %v8168
        %v8424 = vunpack.c.h.b16 %v8168
        %v8425 = vunpack.c.l.b16 %v8169
        %v8426 = vunpack.c.h.b16 %v8169
        %v8427 = vunpack.c.l.b16 %v8170
        %v8428 = vunpack.c.h.b16 %v8170
        %v8429 = vunpack.c.l.b16 %v8171
        %v8430 = vunpack.c.h.b16 %v8171
        %v8431 = vunpack.c.l.b16 %v8172
        %v8432 = vunpack.c.h.b16 %v8172
        %v8433 = vunpack.c.l.b16 %v8173
        %v8434 = vunpack.c.h.b16 %v8173
        %v8435 = vunpack.c.l.b16 %v8174
        %v8436 = vunpack.c.h.b16 %v8174
        %v8437 = vunpack.c.l.b16 %v8175
        %v8438 = vunpack.c.h.b16 %v8175
        %v8439 = vunpack.c.l.b16 %v8176
        %v8440 = vunpack.c.h.b16 %v8176
        %v8441 = vunpack.c.l.b16 %v8177
        %v8442 = vunpack.c.h.b16 %v8177
        %v8443 = vunpack.c.l.b16 %v8178
        %v8444 = vunpack.c.h.b16 %v8178
        %v8445 = vunpack.c.l.b16 %v8179
        %v8446 = vunpack.c.h.b16 %v8179
        %v8447 = vunpack.c.l.b16 %v8180
        %v8448 = vunpack.c.h.b16 %v8180
        %v8449 = vunpack.c.l.b16 %v8181
        %v8450 = vunpack.c.h.b16 %v8181
        %v8451 = vunpack.c.l.b16 %v8182
        %v8452 = vunpack.c.h.b16 %v8182
        %v8453 = vunpack.c.l.b16 %v8183
        %v8454 = vunpack.c.h.b16 %v8183
        %v8455 = vunpack.c.l.b16 %v8184
        %v8456 = vunpack.c.h.b16 %v8184
        %v8457 = vunpack.c.l.b16 %v8185
        %v8458 = vunpack.c.h.b16 %v8185
        %v8459 = vunpack.c.l.b16 %v8186
        %v8460 = vunpack.c.h.b16 %v8186
        %v8461 = vunpack.c.l.b16 %v8187
        %v8462 = vunpack.c.h.b16 %v8187
        %v8463 = vunpack.c.l.b16 %v8188
        %v8464 = vunpack.c.h.b16 %v8188
        %v8465 = vunpack.c.l.b16 %v8189
        %v8466 = vunpack.c.h.b16 %v8189
        %v8467 = vunpack.c.l.b16 %v8190
        %v8468 = vunpack.c.h.b16 %v8190
        %v8469 = vunpack.c.l.b16 %v8191
        %v8470 = vunpack.c.h.b16 %v8191
        %v8471 = vunpack.c.l.b16 %v8192
        %v8472 = vunpack.c.h.b16 %v8192
        %v8473 = vunpack.c.l.b16 %v8193
        %v8474 = vunpack.c.h.b16 %v8193
        %v8475 = vunpack.c.l.b16 %v8194
        %v8476 = vunpack.c.h.b16 %v8194
        %v8477 = vunpack.c.l.b16 %v8195
        %v8478 = vunpack.c.h.b16 %v8195
        %v8479 = vunpack.c.l.b16 %v8196
        %v8480 = vunpack.c.h.b16 %v8196
        %v8481 = vunpack.c.l.b16 %v8197
        %v8482 = vunpack.c.h.b16 %v8197
        %v8483 = vunpack.c.l.b16 %v8198
        %v8484 = vunpack.c.h.b16 %v8198
        %v8485 = vpack.c.b16 %v8313, %v8309
        %v8486 = vpack.c.b16 %v8314, %v8310
        %v8487 = vpack.c.b16 %v8315, %v8311
        %v8488 = vpack.c.b16 %v8316, %v8312
        %v8489 = vpack.c.b16 %v8321, %v8317
        %v8490 = vpack.c.b16 %v8322, %v8318
        %v8491 = vpack.c.b16 %v8323, %v8319
        %v8492 = vpack.c.b16 %v8324, %v8320
        %v8493 = vpack.c.b16 %v8329, %v8325
        %v8494 = vpack.c.b16 %v8330, %v8326
        %v8495 = vpack.c.b16 %v8331, %v8327
        %v8496 = vpack.c.b16 %v8332, %v8328
        %v8497 = vpack.c.b16 %v8337, %v8333
        %v8498 = vpack.c.b16 %v8338, %v8334
        %v8499 = vpack.c.b16 %v8339, %v8335
        %v8500 = vpack.c.b16 %v8340, %v8336
        %v8501 = vpack.c.b16 %v8345, %v8341
        %v8502 = vpack.c.b16 %v8346, %v8342
        %v8503 = vpack.c.b16 %v8347, %v8343
        %v8504 = vpack.c.b16 %v8348, %v8344
        %v8505 = vpack.c.b16 %v8353, %v8349
        %v8506 = vpack.c.b16 %v8354, %v8350
        %v8507 = vpack.c.b16 %v8355, %v8351
        %v8508 = vpack.c.b16 %v8356, %v8352
        %v8509 = vpack.c.b16 %v8361, %v8357
        %v8510 = vpack.c.b16 %v8362, %v8358
        %v8511 = vpack.c.b16 %v8363, %v8359
        %v8512 = vpack.c.b16 %v8364, %v8360
        %v8513 = vpack.c.b16 %v8369, %v8365
        %v8514 = vpack.c.b16 %v8370, %v8366
        %v8515 = vpack.c.b16 %v8371, %v8367
        %v8516 = vpack.c.b16 %v8372, %v8368
        %v8517 = vpack.c.b16 %v8377, %v8373
        %v8518 = vpack.c.b16 %v8378, %v8374
        %v8519 = vpack.c.b16 %v8379, %v8375
        %v8520 = vpack.c.b16 %v8380, %v8376
        %v8521 = vpack.c.b16 %v8385, %v8381
        %v8522 = vpack.c.b16 %v8386, %v8382
        %v8523 = vpack.c.b16 %v8387, %v8383
        %v8524 = vpack.c.b16 %v8388, %v8384
        %v8525 = vpack.c.b16 %v8393, %v8389
        %v8526 = vpack.c.b16 %v8394, %v8390
        %v8527 = vpack.c.b16 %v8395, %v8391
        %v8528 = vpack.c.b16 %v8396, %v8392
        %v8529 = vpack.c.b16 %v8401, %v8397
        %v8530 = vpack.c.b16 %v8402, %v8398
        %v8531 = vpack.c.b16 %v8403, %v8399
        %v8532 = vpack.c.b16 %v8404, %v8400
        %v8533 = vpack.c.b16 %v8409, %v8405
        %v8534 = vpack.c.b16 %v8410, %v8406
        %v8535 = vpack.c.b16 %v8411, %v8407
        %v8536 = vpack.c.b16 %v8412, %v8408
        %v8537 = vpack.c.b16 %v8417, %v8413
        %v8538 = vpack.c.b16 %v8418, %v8414
        %v8539 = vpack.c.b16 %v8419, %v8415
        %v8540 = vpack.c.b16 %v8420, %v8416
        %v8541 = vpack.c.b16 %v8425, %v8421
        %v8542 = vpack.c.b16 %v8426, %v8422
        %v8543 = vpack.c.b16 %v8427, %v8423
        %v8544 = vpack.c.b16 %v8428, %v8424
        %v8545 = vpack.c.b16 %v8433, %v8429
        %v8546 = vpack.c.b16 %v8434, %v8430
        %v8547 = vpack.c.b16 %v8435, %v8431
        %v8548 = vpack.c.b16 %v8436, %v8432
        %v8549 = vpack.c.b16 %v8441, %v8437
        %v8550 = vpack.c.b16 %v8442, %v8438
        %v8551 = vpack.c.b16 %v8443, %v8439
        %v8552 = vpack.c.b16 %v8444, %v8440
        %v8553 = vpack.c.b16 %v8449, %v8445
        %v8554 = vpack.c.b16 %v8450, %v8446
        %v8555 = vpack.c.b16 %v8451, %v8447
        %v8556 = vpack.c.b16 %v8452, %v8448
        %v8557 = vpack.c.b16 %v8457, %v8453
        %v8558 = vpack.c.b16 %v8458, %v8454
        %v8559 = vpack.c.b16 %v8459, %v8455
        %v8560 = vpack.c.b16 %v8460, %v8456
        %v8561 = vpack.c.b16 %v8465, %v8461
        %v8562 = vpack.c.b16 %v8466, %v8462
        %v8563 = vpack.c.b16 %v8467, %v8463
        %v8564 = vpack.c.b16 %v8468, %v8464
        %v8565 = vpack.c.b16 %v8473, %v8469
        %v8566 = vpack.c.b16 %v8474, %v8470
        %v8567 = vpack.c.b16 %v8475, %v8471
        %v8568 = vpack.c.b16 %v8476, %v8472
        %v8569 = vpack.c.b16 %v8481, %v8477
        %v8570 = vpack.c.b16 %v8482, %v8478
        %v8571 = vpack.c.b16 %v8483, %v8479
        %v8572 = vpack.c.b16 %v8484, %v8480
        %8661 = vxpose.xlu0.c.b16.start [1/8] %v8485, 128
        %8662 = vxpose.xlu0.c.b16.cont [2/8] %v8489, 128
        %8663 = vxpose.xlu0.c.b16.cont [3/8] %v8493, 128
        %8664 = vxpose.xlu0.c.b16.cont [4/8] %v8497, 128
        %8665 = vxpose.xlu0.c.b16.cont [5/8] %v8501, 128
        %8666 = vxpose.xlu0.c.b16.cont [6/8] %v8505, 128
        %8667 = vxpose.xlu0.c.b16.cont [7/8] %v8509, 128
        %8668 = vxpose.xlu0.c.b16.end [8/8] %v8513, 128
        %v8669 = vpop.trf.xlu0
        %v8670 = vpop.trf.xlu0
        %v8671 = vpop.trf.xlu0
        %v8672 = vpop.trf.xlu0
        %v8673 = vpop.trf.xlu0
        %v8674 = vpop.trf.xlu0
        %v8675 = vpop.trf.xlu0
        %v8676 = vpop.trf.xlu0
        %8677 = vxpose.xlu0.c.b16.start [1/8] %v8486, 128
        %8678 = vxpose.xlu0.c.b16.cont [2/8] %v8490, 128
        %8679 = vxpose.xlu0.c.b16.cont [3/8] %v8494, 128
        %8680 = vxpose.xlu0.c.b16.cont [4/8] %v8498, 128
        %8681 = vxpose.xlu0.c.b16.cont [5/8] %v8502, 128
        %8682 = vxpose.xlu0.c.b16.cont [6/8] %v8506, 128
        %8683 = vxpose.xlu0.c.b16.cont [7/8] %v8510, 128
        %8684 = vxpose.xlu0.c.b16.end [8/8] %v8514, 128
        %v8685 = vpop.trf.xlu0
        %v8686 = vpop.trf.xlu0
        %v8687 = vpop.trf.xlu0
        %v8688 = vpop.trf.xlu0
        %v8689 = vpop.trf.xlu0
        %v8690 = vpop.trf.xlu0
        %v8691 = vpop.trf.xlu0
        %v8692 = vpop.trf.xlu0
        %8693 = vxpose.xlu0.c.b16.start [1/8] %v8487, 128
        %8694 = vxpose.xlu0.c.b16.cont [2/8] %v8491, 128
        %8695 = vxpose.xlu0.c.b16.cont [3/8] %v8495, 128
        %8696 = vxpose.xlu0.c.b16.cont [4/8] %v8499, 128
        %8697 = vxpose.xlu0.c.b16.cont [5/8] %v8503, 128
        %8698 = vxpose.xlu0.c.b16.cont [6/8] %v8507, 128
        %8699 = vxpose.xlu0.c.b16.cont [7/8] %v8511, 128
        %8700 = vxpose.xlu0.c.b16.end [8/8] %v8515, 128
        %v8701 = vpop.trf.xlu0
        %v8702 = vpop.trf.xlu0
        %v8703 = vpop.trf.xlu0
        %v8704 = vpop.trf.xlu0
        %v8705 = vpop.trf.xlu0
        %v8706 = vpop.trf.xlu0
        %v8707 = vpop.trf.xlu0
        %v8708 = vpop.trf.xlu0
        %8709 = vxpose.xlu0.c.b16.start [1/8] %v8488, 128
        %8710 = vxpose.xlu0.c.b16.cont [2/8] %v8492, 128
        %8711 = vxpose.xlu0.c.b16.cont [3/8] %v8496, 128
        %8712 = vxpose.xlu0.c.b16.cont [4/8] %v8500, 128
        %8713 = vxpose.xlu0.c.b16.cont [5/8] %v8504, 128
        %8714 = vxpose.xlu0.c.b16.cont [6/8] %v8508, 128
        %8715 = vxpose.xlu0.c.b16.cont [7/8] %v8512, 128
        %8716 = vxpose.xlu0.c.b16.end [8/8] %v8516, 128
        %v8717 = vpop.trf.xlu0
        %v8718 = vpop.trf.xlu0
        %v8719 = vpop.trf.xlu0
        %v8720 = vpop.trf.xlu0
        %v8721 = vpop.trf.xlu0
        %v8722 = vpop.trf.xlu0
        %v8723 = vpop.trf.xlu0
        %v8724 = vpop.trf.xlu0
        %8725 = vxpose.xlu0.c.b16.start [1/8] %v8517, 128
        %8726 = vxpose.xlu0.c.b16.cont [2/8] %v8521, 128
        %8727 = vxpose.xlu0.c.b16.cont [3/8] %v8525, 128
        %8728 = vxpose.xlu0.c.b16.cont [4/8] %v8529, 128
        %8729 = vxpose.xlu0.c.b16.cont [5/8] %v8533, 128
        %8730 = vxpose.xlu0.c.b16.cont [6/8] %v8537, 128
        %8731 = vxpose.xlu0.c.b16.cont [7/8] %v8541, 128
        %8732 = vxpose.xlu0.c.b16.end [8/8] %v8545, 128
        %v8733 = vpop.trf.xlu0
        %v8734 = vpop.trf.xlu0
        %v8735 = vpop.trf.xlu0
        %v8736 = vpop.trf.xlu0
        %v8737 = vpop.trf.xlu0
        %v8738 = vpop.trf.xlu0
        %v8739 = vpop.trf.xlu0
        %v8740 = vpop.trf.xlu0
        %8741 = vxpose.xlu0.c.b16.start [1/8] %v8518, 128
        %8742 = vxpose.xlu0.c.b16.cont [2/8] %v8522, 128
        %8743 = vxpose.xlu0.c.b16.cont [3/8] %v8526, 128
        %8744 = vxpose.xlu0.c.b16.cont [4/8] %v8530, 128
        %8745 = vxpose.xlu0.c.b16.cont [5/8] %v8534, 128
        %8746 = vxpose.xlu0.c.b16.cont [6/8] %v8538, 128
        %8747 = vxpose.xlu0.c.b16.cont [7/8] %v8542, 128
        %8748 = vxpose.xlu0.c.b16.end [8/8] %v8546, 128
        %v8749 = vpop.trf.xlu0
        %v8750 = vpop.trf.xlu0
        %v8751 = vpop.trf.xlu0
        %v8752 = vpop.trf.xlu0
        %v8753 = vpop.trf.xlu0
        %v8754 = vpop.trf.xlu0
        %v8755 = vpop.trf.xlu0
        %v8756 = vpop.trf.xlu0
        %8757 = vxpose.xlu0.c.b16.start [1/8] %v8519, 128
        %8758 = vxpose.xlu0.c.b16.cont [2/8] %v8523, 128
        %8759 = vxpose.xlu0.c.b16.cont [3/8] %v8527, 128
        %8760 = vxpose.xlu0.c.b16.cont [4/8] %v8531, 128
        %8761 = vxpose.xlu0.c.b16.cont [5/8] %v8535, 128
        %8762 = vxpose.xlu0.c.b16.cont [6/8] %v8539, 128
        %8763 = vxpose.xlu0.c.b16.cont [7/8] %v8543, 128
        %8764 = vxpose.xlu0.c.b16.end [8/8] %v8547, 128
        %v8765 = vpop.trf.xlu0
        %v8766 = vpop.trf.xlu0
        %v8767 = vpop.trf.xlu0
        %v8768 = vpop.trf.xlu0
        %v8769 = vpop.trf.xlu0
        %v8770 = vpop.trf.xlu0
        %v8771 = vpop.trf.xlu0
        %v8772 = vpop.trf.xlu0
        %8773 = vxpose.xlu0.c.b16.start [1/8] %v8520, 128
        %8774 = vxpose.xlu0.c.b16.cont [2/8] %v8524, 128
        %8775 = vxpose.xlu0.c.b16.cont [3/8] %v8528, 128
        %8776 = vxpose.xlu0.c.b16.cont [4/8] %v8532, 128
        %8777 = vxpose.xlu0.c.b16.cont [5/8] %v8536, 128
        %8778 = vxpose.xlu0.c.b16.cont [6/8] %v8540, 128
        %8779 = vxpose.xlu0.c.b16.cont [7/8] %v8544, 128
        %8780 = vxpose.xlu0.c.b16.end [8/8] %v8548, 128
        %v8781 = vpop.trf.xlu0
        %v8782 = vpop.trf.xlu0
        %v8783 = vpop.trf.xlu0
        %v8784 = vpop.trf.xlu0
        %v8785 = vpop.trf.xlu0
        %v8786 = vpop.trf.xlu0
        %v8787 = vpop.trf.xlu0
        %v8788 = vpop.trf.xlu0
        %8789 = vxpose.xlu0.c.b16.start [1/8] %v8549, 128
        %8790 = vxpose.xlu0.c.b16.cont [2/8] %v8553, 128
        %8791 = vxpose.xlu0.c.b16.cont [3/8] %v8557, 128
        %8792 = vxpose.xlu0.c.b16.cont [4/8] %v8561, 128
        %8793 = vxpose.xlu0.c.b16.cont [5/8] %v8565, 128
        %8794 = vxpose.xlu0.c.b16.cont [6/8] %v8569, 128
        %8795 = vxpose.xlu0.c.b16.cont [7/8] 0, 128
        %8796 = vxpose.xlu0.c.b16.end [8/8] 0, 128
        %v8797 = vpop.trf.xlu0
        %v8798 = vpop.trf.xlu0
        %v8799 = vpop.trf.xlu0
        %v8800 = vpop.trf.xlu0
        %v8801 = vpop.trf.xlu0
        %v8802 = vpop.trf.xlu0
        %v8803 = vpop.trf.xlu0
        %v8804 = vpop.trf.xlu0
        %8805 = vxpose.xlu0.c.b16.start [1/8] %v8550, 128
        %8806 = vxpose.xlu0.c.b16.cont [2/8] %v8554, 128
        %8807 = vxpose.xlu0.c.b16.cont [3/8] %v8558, 128
        %8808 = vxpose.xlu0.c.b16.cont [4/8] %v8562, 128
        %8809 = vxpose.xlu0.c.b16.cont [5/8] %v8566, 128
        %8810 = vxpose.xlu0.c.b16.cont [6/8] %v8570, 128
        %8811 = vxpose.xlu0.c.b16.cont [7/8] 0, 128
        %8812 = vxpose.xlu0.c.b16.end [8/8] 0, 128
        %v8813 = vpop.trf.xlu0
        %v8814 = vpop.trf.xlu0
        %v8815 = vpop.trf.xlu0
        %v8816 = vpop.trf.xlu0
        %v8817 = vpop.trf.xlu0
        %v8818 = vpop.trf.xlu0
        %v8819 = vpop.trf.xlu0
        %v8820 = vpop.trf.xlu0
        %8821 = vxpose.xlu0.c.b16.start [1/8] %v8551, 128
        %8822 = vxpose.xlu0.c.b16.cont [2/8] %v8555, 128
        %8823 = vxpose.xlu0.c.b16.cont [3/8] %v8559, 128
        %8824 = vxpose.xlu0.c.b16.cont [4/8] %v8563, 128
        %8825 = vxpose.xlu0.c.b16.cont [5/8] %v8567, 128
        %8826 = vxpose.xlu0.c.b16.cont [6/8] %v8571, 128
        %8827 = vxpose.xlu0.c.b16.cont [7/8] 0, 128
        %8828 = vxpose.xlu0.c.b16.end [8/8] 0, 128
        %v8829 = vpop.trf.xlu0
        %v8830 = vpop.trf.xlu0
        %v8831 = vpop.trf.xlu0
        %v8832 = vpop.trf.xlu0
        %v8833 = vpop.trf.xlu0
        %v8834 = vpop.trf.xlu0
        %v8835 = vpop.trf.xlu0
        %v8836 = vpop.trf.xlu0
        %8837 = vxpose.xlu0.c.b16.start [1/8] %v8552, 128
        %8838 = vxpose.xlu0.c.b16.cont [2/8] %v8556, 128
        %8839 = vxpose.xlu0.c.b16.cont [3/8] %v8560, 128
        %8840 = vxpose.xlu0.c.b16.cont [4/8] %v8564, 128
        %8841 = vxpose.xlu0.c.b16.cont [5/8] %v8568, 128
        %8842 = vxpose.xlu0.c.b16.cont [6/8] %v8572, 128
        %8843 = vxpose.xlu0.c.b16.cont [7/8] 0, 128
        %8844 = vxpose.xlu0.c.b16.end [8/8] 0, 128
        %v8845 = vpop.trf.xlu0
        %v8846 = vpop.trf.xlu0
        %v8847 = vpop.trf.xlu0
        %v8848 = vpop.trf.xlu0
        %v8849 = vpop.trf.xlu0
        %v8850 = vpop.trf.xlu0
        %v8851 = vpop.trf.xlu0
        %v8852 = vpop.trf.xlu0
        %vm8853 = vcmask 785408
        %v8855 = vsel %vm8853, %v8797, 0
        %v8858 = vsel %vm8853, %v8798, 0
        %v8861 = vsel %vm8853, %v8799, 0
        %v8864 = vsel %vm8853, %v8800, 0
        %v8867 = vsel %vm8853, %v8801, 0
        %v8870 = vsel %vm8853, %v8802, 0
        %v8873 = vsel %vm8853, %v8803, 0
        %v8876 = vsel %vm8853, %v8804, 0
        %v8879 = vsel %vm8853, %v8813, 0
        %v8882 = vsel %vm8853, %v8814, 0
        %v8885 = vsel %vm8853, %v8815, 0
        %v8888 = vsel %vm8853, %v8816, 0
        %v8891 = vsel %vm8853, %v8817, 0
        %v8894 = vsel %vm8853, %v8818, 0
        %v8897 = vsel %vm8853, %v8819, 0
        %v8900 = vsel %vm8853, %v8820, 0
        %v8903 = vsel %vm8853, %v8829, 0
        %v8906 = vsel %vm8853, %v8830, 0
        %v8909 = vsel %vm8853, %v8831, 0
        %v8912 = vsel %vm8853, %v8832, 0
        %v8915 = vsel %vm8853, %v8833, 0
        %v8918 = vsel %vm8853, %v8834, 0
        %v8921 = vsel %vm8853, %v8835, 0
        %v8924 = vsel %vm8853, %v8836, 0
        %v8927 = vsel %vm8853, %v8845, 0
        %v8930 = vsel %vm8853, %v8846, 0
        %v8933 = vsel %vm8853, %v8847, 0
        %v8936 = vsel %vm8853, %v8848, 0
        %v8939 = vsel %vm8853, %v8849, 0
        %v8942 = vsel %vm8853, %v8850, 0
        %v8945 = vsel %vm8853, %v8851, 0
        %v8948 = vsel %vm8853, %v8852, 0
        %8950 = vmatprep.subr.bf16.mxu0 0
        %8951 = vmatpush1.bf16.msra.mxu0 %v8199
        %8952 = vmatprep.subr.bf16.mxu0 0
        %8953 = vmatpush1.bf16.msra.mxu0 %v8200
        %8954 = vmatprep.subr.bf16.mxu0 0
        %8955 = vmatpush1.bf16.msra.mxu0 %v8201
        %8956 = vmatprep.subr.bf16.mxu0 0
        %8957 = vmatpush1.bf16.msra.mxu0 %v8202
        %8958 = vmatprep.subr.bf16.mxu0 0
        %8959 = vmatpush1.bf16.msra.mxu0 %v8203
        %8960 = vmatprep.subr.bf16.mxu0 0
        %8961 = vmatpush1.bf16.msra.mxu0 %v8204
        %8962 = vmatprep.subr.bf16.mxu0 0
        %8963 = vmatpush1.bf16.msra.mxu0 %v8205
        %8964 = vmatprep.subr.bf16.mxu0 0
        %8965 = vmatpush1.bf16.msra.mxu0 %v8206
        %8966 = vmatprep.subr.bf16.mxu0 0
        %8967 = vmatpush1.bf16.msra.mxu0 %v8207
        %8968 = vmatprep.subr.bf16.mxu0 0
        %8969 = vmatpush1.bf16.msra.mxu0 %v8208
        %8970 = vmatprep.subr.bf16.mxu0 0
        %8971 = vmatpush1.bf16.msra.mxu0 %v8209
        %8972 = vmatprep.subr.bf16.mxu0 0
        %8973 = vmatpush1.bf16.msra.mxu0 %v8210
        %8974 = vmatprep.subr.bf16.mxu0 0
        %8975 = vmatpush1.bf16.msra.mxu0 %v8211
        %8976 = vmatprep.subr.bf16.mxu0 0
        %8977 = vmatpush1.bf16.msra.mxu0 %v8212
        %8978 = vmatprep.subr.bf16.mxu0 0
        %8979 = vmatpush1.bf16.msra.mxu0 %v8213
        %8980 = vmatprep.subr.bf16.mxu0 0
        %8981 = vmatpush1.bf16.msra.mxu0 %v8214
        %8982 = vmatprep.mubr.bf16.mxu0 %v8733
        %8983 = vmatmul.mubr.bf16.gmra.mrb[0].mxu0 %v8669
        %v8984 = vpop.f32.mrb[0].mxu0
        %v8985 = vadd.f32 0.0, %v8984
        %v8986 = vpop.f32.mrb[0].mxu0
        %v8987 = vpop.f32.mrb[0].mxu0
        %v8988 = vadd.f32 0.0, %v8987
        %v8989 = vpop.f32.mrb[0].mxu0
        %8990 = vmatprep.mubr.bf16.mxu0 %v8734
        %8991 = vmatmul.mubr.bf16.gmra.mrb[0].mxu0 %v8670
        %v8992 = vpop.f32.mrb[0].mxu0
        %v8993 = vadd.f32 0.0, %v8992
        %v8994 = vpop.f32.mrb[0].mxu0
        %v8995 = vpop.f32.mrb[0].mxu0
        %v8996 = vadd.f32 0.0, %v8995
        %v8997 = vpop.f32.mrb[0].mxu0
        %8998 = vmatprep.mubr.bf16.mxu0 %v8735
        %8999 = vmatmul.mubr.bf16.gmra.mrb[0].mxu0 %v8671
        %v9000 = vpop.f32.mrb[0].mxu0
        %v9001 = vadd.f32 0.0, %v9000
        %v9002 = vpop.f32.mrb[0].mxu0
        %v9003 = vpop.f32.mrb[0].mxu0
        %v9004 = vadd.f32 0.0, %v9003
        %v9005 = vpop.f32.mrb[0].mxu0
        %9006 = vmatprep.mubr.bf16.mxu0 %v8736
        %9007 = vmatmul.mubr.bf16.gmra.mrb[0].mxu0 %v8672
        %v9008 = vpop.f32.mrb[0].mxu0
        %v9009 = vadd.f32 0.0, %v9008
        %v9010 = vpop.f32.mrb[0].mxu0
        %v9011 = vpop.f32.mrb[0].mxu0
        %v9012 = vadd.f32 0.0, %v9011
        %v9013 = vpop.f32.mrb[0].mxu0
        %9014 = vmatprep.mubr.bf16.mxu0 %v8737
        %9015 = vmatmul.mubr.bf16.gmra.mrb[0].mxu0 %v8673
        %v9016 = vpop.f32.mrb[0].mxu0
        %v9017 = vadd.f32 0.0, %v9016
        %v9018 = vpop.f32.mrb[0].mxu0
        %v9019 = vpop.f32.mrb[0].mxu0
        %v9020 = vadd.f32 0.0, %v9019
        %v9021 = vpop.f32.mrb[0].mxu0
        %9022 = vmatprep.mubr.bf16.mxu0 %v8738
        %9023 = vmatmul.mubr.bf16.gmra.mrb[0].mxu0 %v8674
        %v9024 = vpop.f32.mrb[0].mxu0
        %v9025 = vadd.f32 0.0, %v9024
        %v9026 = vpop.f32.mrb[0].mxu0
        %v9027 = vpop.f32.mrb[0].mxu0
        %v9028 = vadd.f32 0.0, %v9027
        %v9029 = vpop.f32.mrb[0].mxu0
        %9030 = vmatprep.mubr.bf16.mxu0 %v8739
        %9031 = vmatmul.mubr.bf16.gmra.mrb[0].mxu0 %v8675
        %v9032 = vpop.f32.mrb[0].mxu0
        %v9033 = vadd.f32 0.0, %v9032
        %v9034 = vpop.f32.mrb[0].mxu0
        %v9035 = vpop.f32.mrb[0].mxu0
        %v9036 = vadd.f32 0.0, %v9035
        %v9037 = vpop.f32.mrb[0].mxu0
        %9038 = vmatprep.mubr.bf16.mxu0 %v8740
        %9039 = vmatmul.mubr.bf16.gmra.mrb[0].mxu0 %v8676
        %v9040 = vpop.f32.mrb[0].mxu0
        %v9041 = vadd.f32 0.0, %v9040
        %v9042 = vpop.f32.mrb[0].mxu0
        %v9043 = vpop.f32.mrb[0].mxu0
        %v9044 = vadd.f32 0.0, %v9043
        %v9045 = vpop.f32.mrb[0].mxu0
        %9046 = vmatprep.mubr.bf16.mxu0 %v8749
        %9047 = vmatmul.mubr.bf16.gmra.mrb[0].mxu0 %v8685
        %v9048 = vpop.f32.mrb[0].mxu0
        %v9049 = vadd.f32 0.0, %v9048
        %v9050 = vpop.f32.mrb[0].mxu0
        %v9051 = vpop.f32.mrb[0].mxu0
        %v9052 = vadd.f32 0.0, %v9051
        %v9053 = vpop.f32.mrb[0].mxu0
        %9054 = vmatprep.mubr.bf16.mxu0 %v8750
        %9055 = vmatmul.mubr.bf16.gmra.mrb[0].mxu0 %v8686
        %v9056 = vpop.f32.mrb[0].mxu0
        %v9057 = vadd.f32 0.0, %v9056
        %v9058 = vpop.f32.mrb[0].mxu0
        %v9059 = vpop.f32.mrb[0].mxu0
        %v9060 = vadd.f32 0.0, %v9059
        %v9061 = vpop.f32.mrb[0].mxu0
        %9062 = vmatprep.mubr.bf16.mxu0 %v8751
        %9063 = vmatmul.mubr.bf16.gmra.mrb[0].mxu0 %v8687
        %v9064 = vpop.f32.mrb[0].mxu0
        %v9065 = vadd.f32 0.0, %v9064
        %v9066 = vpop.f32.mrb[0].mxu0
        %v9067 = vpop.f32.mrb[0].mxu0
        %v9068 = vadd.f32 0.0, %v9067
        %v9069 = vpop.f32.mrb[0].mxu0
        %9070 = vmatprep.mubr.bf16.mxu0 %v8752
        %9071 = vmatmul.mubr.bf16.gmra.mrb[0].mxu0 %v8688
        %v9072 = vpop.f32.mrb[0].mxu0
        %v9073 = vadd.f32 0.0, %v9072
        %v9074 = vpop.f32.mrb[0].mxu0
        %v9075 = vpop.f32.mrb[0].mxu0
        %v9076 = vadd.f32 0.0, %v9075
        %v9077 = vpop.f32.mrb[0].mxu0
        %9078 = vmatprep.mubr.bf16.mxu0 %v8753
        %9079 = vmatmul.mubr.bf16.gmra.mrb[0].mxu0 %v8689
        %v9080 = vpop.f32.mrb[0].mxu0
        %v9081 = vadd.f32 0.0, %v9080
        %v9082 = vpop.f32.mrb[0].mxu0
        %v9083 = vpop.f32.mrb[0].mxu0
        %v9084 = vadd.f32 0.0, %v9083
        %v9085 = vpop.f32.mrb[0].mxu0
        %9086 = vmatprep.mubr.bf16.mxu0 %v8754
        %9087 = vmatmul.mubr.bf16.gmra.mrb[0].mxu0 %v8690
        %v9088 = vpop.f32.mrb[0].mxu0
        %v9089 = vadd.f32 0.0, %v9088
        %v9090 = vpop.f32.mrb[0].mxu0
        %v9091 = vpop.f32.mrb[0].mxu0
        %v9092 = vadd.f32 0.0, %v9091
        %v9093 = vpop.f32.mrb[0].mxu0
        %9094 = vmatprep.mubr.bf16.mxu0 %v8755
        %9095 = vmatmul.mubr.bf16.gmra.mrb[0].mxu0 %v8691
        %v9096 = vpop.f32.mrb[0].mxu0
        %v9097 = vadd.f32 0.0, %v9096
        %v9098 = vpop.f32.mrb[0].mxu0
        %v9099 = vpop.f32.mrb[0].mxu0
        %v9100 = vadd.f32 0.0, %v9099
        %v9101 = vpop.f32.mrb[0].mxu0
        %9102 = vmatprep.mubr.bf16.mxu0 %v8756
        %9103 = vmatmul.mubr.bf16.gmra.mrb[0].mxu0 %v8692
        %v9104 = vpop.f32.mrb[0].mxu0
        %v9105 = vadd.f32 0.0, %v9104
        %v9106 = vpop.f32.mrb[0].mxu0
        %v9107 = vpop.f32.mrb[0].mxu0
        %v9108 = vadd.f32 0.0, %v9107
        %v9109 = vpop.f32.mrb[0].mxu0
        %9110 = vmatprep.mubr.bf16.mxu0 %v8765
        %9111 = vmatmul.mubr.bf16.gmra.mrb[0].mxu0 %v8701
        %v9112 = vpop.f32.mrb[0].mxu0
        %v9113 = vadd.f32 0.0, %v9112
        %v9114 = vpop.f32.mrb[0].mxu0
        %v9115 = vpop.f32.mrb[0].mxu0
        %v9116 = vadd.f32 0.0, %v9115
        %v9117 = vpop.f32.mrb[0].mxu0
        %9118 = vmatprep.mubr.bf16.mxu0 %v8766
        %9119 = vmatmul.mubr.bf16.gmra.mrb[0].mxu0 %v8702
        %v9120 = vpop.f32.mrb[0].mxu0
        %v9121 = vadd.f32 0.0, %v9120
        %v9122 = vpop.f32.mrb[0].mxu0
        %v9123 = vpop.f32.mrb[0].mxu0
        %v9124 = vadd.f32 0.0, %v9123
        %v9125 = vpop.f32.mrb[0].mxu0
        %9126 = vmatprep.mubr.bf16.mxu0 %v8767
        %9127 = vmatmul.mubr.bf16.gmra.mrb[0].mxu0 %v8703
        %v9128 = vpop.f32.mrb[0].mxu0
        %v9129 = vadd.f32 0.0, %v9128
        %v9130 = vpop.f32.mrb[0].mxu0
        %v9131 = vpop.f32.mrb[0].mxu0
        %v9132 = vadd.f32 0.0, %v9131
        %v9133 = vpop.f32.mrb[0].mxu0
        %9134 = vmatprep.mubr.bf16.mxu0 %v8768
        %9135 = vmatmul.mubr.bf16.gmra.mrb[0].mxu0 %v8704
        %v9136 = vpop.f32.mrb[0].mxu0
        %v9137 = vadd.f32 0.0, %v9136
        %v9138 = vpop.f32.mrb[0].mxu0
        %v9139 = vpop.f32.mrb[0].mxu0
        %v9140 = vadd.f32 0.0, %v9139
        %v9141 = vpop.f32.mrb[0].mxu0
        %9142 = vmatprep.mubr.bf16.mxu0 %v8769
        %9143 = vmatmul.mubr.bf16.gmra.mrb[0].mxu0 %v8705
        %v9144 = vpop.f32.mrb[0].mxu0
        %v9145 = vadd.f32 0.0, %v9144
        %v9146 = vpop.f32.mrb[0].mxu0
        %v9147 = vpop.f32.mrb[0].mxu0
        %v9148 = vadd.f32 0.0, %v9147
        %v9149 = vpop.f32.mrb[0].mxu0
        %9150 = vmatprep.mubr.bf16.mxu0 %v8770
        %9151 = vmatmul.mubr.bf16.gmra.mrb[0].mxu0 %v8706
        %v9152 = vpop.f32.mrb[0].mxu0
        %v9153 = vadd.f32 0.0, %v9152
        %v9154 = vpop.f32.mrb[0].mxu0
        %v9155 = vpop.f32.mrb[0].mxu0
        %v9156 = vadd.f32 0.0, %v9155
        %v9157 = vpop.f32.mrb[0].mxu0
        %9158 = vmatprep.mubr.bf16.mxu0 %v8771
        %9159 = vmatmul.mubr.bf16.gmra.mrb[0].mxu0 %v8707
        %v9160 = vpop.f32.mrb[0].mxu0
        %v9161 = vadd.f32 0.0, %v9160
        %v9162 = vpop.f32.mrb[0].mxu0
        %v9163 = vpop.f32.mrb[0].mxu0
        %v9164 = vadd.f32 0.0, %v9163
        %v9165 = vpop.f32.mrb[0].mxu0
        %9166 = vmatprep.mubr.bf16.mxu0 %v8772
        %9167 = vmatmul.mubr.bf16.gmra.mrb[0].mxu0 %v8708
        %v9168 = vpop.f32.mrb[0].mxu0
        %v9169 = vadd.f32 0.0, %v9168
        %v9170 = vpop.f32.mrb[0].mxu0
        %v9171 = vpop.f32.mrb[0].mxu0
        %v9172 = vadd.f32 0.0, %v9171
        %v9173 = vpop.f32.mrb[0].mxu0
        %9174 = vmatprep.mubr.bf16.mxu0 %v8781
        %9175 = vmatmul.mubr.bf16.gmra.mrb[0].mxu0 %v8717
        %v9176 = vpop.f32.mrb[0].mxu0
        %v9177 = vadd.f32 0.0, %v9176
        %v9178 = vpop.f32.mrb[0].mxu0
        %v9179 = vpop.f32.mrb[0].mxu0
        %v9180 = vadd.f32 0.0, %v9179
        %v9181 = vpop.f32.mrb[0].mxu0
        %9182 = vmatprep.mubr.bf16.mxu0 %v8782
        %9183 = vmatmul.mubr.bf16.gmra.mrb[0].mxu0 %v8718
        %v9184 = vpop.f32.mrb[0].mxu0
        %v9185 = vadd.f32 0.0, %v9184
        %v9186 = vpop.f32.mrb[0].mxu0
        %v9187 = vpop.f32.mrb[0].mxu0
        %v9188 = vadd.f32 0.0, %v9187
        %v9189 = vpop.f32.mrb[0].mxu0
        %9190 = vmatprep.mubr.bf16.mxu0 %v8783
        %9191 = vmatmul.mubr.bf16.gmra.mrb[0].mxu0 %v8719
        %v9192 = vpop.f32.mrb[0].mxu0
        %v9193 = vadd.f32 0.0, %v9192
        %v9194 = vpop.f32.mrb[0].mxu0
        %v9195 = vpop.f32.mrb[0].mxu0
        %v9196 = vadd.f32 0.0, %v9195
        %v9197 = vpop.f32.mrb[0].mxu0
        %9198 = vmatprep.mubr.bf16.mxu0 %v8784
        %9199 = vmatmul.mubr.bf16.gmra.mrb[0].mxu0 %v8720
        %v9200 = vpop.f32.mrb[0].mxu0
        %v9201 = vadd.f32 0.0, %v9200
        %v9202 = vpop.f32.mrb[0].mxu0
        %v9203 = vpop.f32.mrb[0].mxu0
        %v9204 = vadd.f32 0.0, %v9203
        %v9205 = vpop.f32.mrb[0].mxu0
        %9206 = vmatprep.mubr.bf16.mxu0 %v8785
        %9207 = vmatmul.mubr.bf16.gmra.mrb[0].mxu0 %v8721
        %v9208 = vpop.f32.mrb[0].mxu0
        %v9209 = vadd.f32 0.0, %v9208
        %v9210 = vpop.f32.mrb[0].mxu0
        %v9211 = vpop.f32.mrb[0].mxu0
        %v9212 = vadd.f32 0.0, %v9211
        %v9213 = vpop.f32.mrb[0].mxu0
        %9214 = vmatprep.mubr.bf16.mxu0 %v8786
        %9215 = vmatmul.mubr.bf16.gmra.mrb[0].mxu0 %v8722
        %v9216 = vpop.f32.mrb[0].mxu0
        %v9217 = vadd.f32 0.0, %v9216
        %v9218 = vpop.f32.mrb[0].mxu0
        %v9219 = vpop.f32.mrb[0].mxu0
        %v9220 = vadd.f32 0.0, %v9219
        %v9221 = vpop.f32.mrb[0].mxu0
        %9222 = vmatprep.mubr.bf16.mxu0 %v8787
        %9223 = vmatmul.mubr.bf16.gmra.mrb[0].mxu0 %v8723
        %v9224 = vpop.f32.mrb[0].mxu0
        %v9225 = vadd.f32 0.0, %v9224
        %v9226 = vpop.f32.mrb[0].mxu0
        %v9227 = vpop.f32.mrb[0].mxu0
        %v9228 = vadd.f32 0.0, %v9227
        %v9229 = vpop.f32.mrb[0].mxu0
        %9230 = vmatprep.mubr.bf16.mxu0 %v8788
        %9231 = vmatmul.mubr.bf16.gmra.mrb[0].mxu0 %v8724
        %v9232 = vpop.f32.mrb[0].mxu0
        %v9233 = vadd.f32 0.0, %v9232
        %v9234 = vpop.f32.mrb[0].mxu0
        %v9235 = vpop.f32.mrb[0].mxu0
        %v9236 = vadd.f32 0.0, %v9235
        %v9237 = vpop.f32.mrb[0].mxu0
        %9238 = vdwg.mxu0
        %9239 = vmatprep.subr.bf16.mxu0 0
        %9240 = vmatpush1.bf16.msra.mxu0 %v8215
        %9241 = vmatprep.subr.bf16.mxu0 0
        %9242 = vmatpush1.bf16.msra.mxu0 %v8216
        %9243 = vmatprep.subr.bf16.mxu0 0
        %9244 = vmatpush1.bf16.msra.mxu0 %v8217
        %9245 = vmatprep.subr.bf16.mxu0 0
        %9246 = vmatpush1.bf16.msra.mxu0 %v8218
        %9247 = vmatprep.subr.bf16.mxu0 0
        %9248 = vmatpush1.bf16.msra.mxu0 %v8219
        %9249 = vmatprep.subr.bf16.mxu0 0
        %9250 = vmatpush1.bf16.msra.mxu0 %v8220
        %9251 = vmatprep.subr.bf16.mxu0 0
        %9252 = vmatpush1.bf16.msra.mxu0 0
        %9253 = vmatprep.subr.bf16.mxu0 0
        %9254 = vmatpush1.bf16.msra.mxu0 0
        %9255 = vmatprep.subr.bf16.mxu0 0
        %9256 = vmatpush1.bf16.msra.mxu0 0
        %9257 = vmatprep.subr.bf16.mxu0 0
        %9258 = vmatpush1.bf16.msra.mxu0 0
        %9259 = vmatprep.subr.bf16.mxu0 0
        %9260 = vmatpush1.bf16.msra.mxu0 0
        %9261 = vmatprep.subr.bf16.mxu0 0
        %9262 = vmatpush1.bf16.msra.mxu0 0
        %9263 = vmatprep.subr.bf16.mxu0 0
        %9264 = vmatpush1.bf16.msra.mxu0 0
        %9265 = vmatprep.subr.bf16.mxu0 0
        %9266 = vmatpush1.bf16.msra.mxu0 0
        %9267 = vmatprep.subr.bf16.mxu0 0
        %9268 = vmatpush1.bf16.msra.mxu0 0
        %9269 = vmatprep.subr.bf16.mxu0 0
        %9270 = vmatpush1.bf16.msra.mxu0 0
        %9271 = vmatprep.mubr.bf16.mxu0 0
        %9272 = vmatmul.mubr.bf16.gmra.mrb[0].mxu0 %v8855
        %v9273 = vpop.f32.mrb[0].mxu0
        %v9274 = vadd.f32 %v8985, %v9273
        %v9275 = vpop.f32.mrb[0].mxu0
        %v9276 = vpop.f32.mrb[0].mxu0
        %v9277 = vadd.f32 %v8988, %v9276
        %v9278 = vpop.f32.mrb[0].mxu0
        %9279 = vmatprep.mubr.bf16.mxu0 0
        %9280 = vmatmul.mubr.bf16.gmra.mrb[0].mxu0 %v8858
        %v9281 = vpop.f32.mrb[0].mxu0
        %v9282 = vadd.f32 %v8993, %v9281
        %v9283 = vpop.f32.mrb[0].mxu0
        %v9284 = vpop.f32.mrb[0].mxu0
        %v9285 = vadd.f32 %v8996, %v9284
        %v9286 = vpop.f32.mrb[0].mxu0
        %9287 = vmatprep.mubr.bf16.mxu0 0
        %9288 = vmatmul.mubr.bf16.gmra.mrb[0].mxu0 %v8861
        %v9289 = vpop.f32.mrb[0].mxu0
        %v9290 = vadd.f32 %v9001, %v9289
        %v9291 = vpop.f32.mrb[0].mxu0
        %v9292 = vpop.f32.mrb[0].mxu0
        %v9293 = vadd.f32 %v9004, %v9292
        %v9294 = vpop.f32.mrb[0].mxu0
        %9295 = vmatprep.mubr.bf16.mxu0 0
        %9296 = vmatmul.mubr.bf16.gmra.mrb[0].mxu0 %v8864
        %v9297 = vpop.f32.mrb[0].mxu0
        %v9298 = vadd.f32 %v9009, %v9297
        %v9299 = vpop.f32.mrb[0].mxu0
        %v9300 = vpop.f32.mrb[0].mxu0
        %v9301 = vadd.f32 %v9012, %v9300
        %v9302 = vpop.f32.mrb[0].mxu0
        %9303 = vmatprep.mubr.bf16.mxu0 0
        %9304 = vmatmul.mubr.bf16.gmra.mrb[0].mxu0 %v8867
        %v9305 = vpop.f32.mrb[0].mxu0
        %v9306 = vadd.f32 %v9017, %v9305
        %v9307 = vpop.f32.mrb[0].mxu0
        %v9308 = vpop.f32.mrb[0].mxu0
        %v9309 = vadd.f32 %v9020, %v9308
        %v9310 = vpop.f32.mrb[0].mxu0
        %9311 = vmatprep.mubr.bf16.mxu0 0
        %9312 = vmatmul.mubr.bf16.gmra.mrb[0].mxu0 %v8870
        %v9313 = vpop.f32.mrb[0].mxu0
        %v9314 = vadd.f32 %v9025, %v9313
        %v9315 = vpop.f32.mrb[0].mxu0
        %v9316 = vpop.f32.mrb[0].mxu0
        %v9317 = vadd.f32 %v9028, %v9316
        %v9318 = vpop.f32.mrb[0].mxu0
        %9319 = vmatprep.mubr.bf16.mxu0 0
        %9320 = vmatmul.mubr.bf16.gmra.mrb[0].mxu0 %v8873
        %v9321 = vpop.f32.mrb[0].mxu0
        %v9322 = vadd.f32 %v9033, %v9321
        %v9323 = vpop.f32.mrb[0].mxu0
        %v9324 = vpop.f32.mrb[0].mxu0
        %v9325 = vadd.f32 %v9036, %v9324
        %v9326 = vpop.f32.mrb[0].mxu0
        %9327 = vmatprep.mubr.bf16.mxu0 0
        %9328 = vmatmul.mubr.bf16.gmra.mrb[0].mxu0 %v8876
        %v9329 = vpop.f32.mrb[0].mxu0
        %v9330 = vadd.f32 %v9041, %v9329
        %v9331 = vpop.f32.mrb[0].mxu0
        %v9332 = vpop.f32.mrb[0].mxu0
        %v9333 = vadd.f32 %v9044, %v9332
        %v9334 = vpop.f32.mrb[0].mxu0
        %9335 = vmatprep.mubr.bf16.mxu0 0
        %9336 = vmatmul.mubr.bf16.gmra.mrb[0].mxu0 %v8879
        %v9337 = vpop.f32.mrb[0].mxu0
        %v9338 = vadd.f32 %v9049, %v9337
        %v9339 = vpop.f32.mrb[0].mxu0
        %v9340 = vpop.f32.mrb[0].mxu0
        %v9341 = vadd.f32 %v9052, %v9340
        %v9342 = vpop.f32.mrb[0].mxu0
        %9343 = vmatprep.mubr.bf16.mxu0 0
        %9344 = vmatmul.mubr.bf16.gmra.mrb[0].mxu0 %v8882
        %v9345 = vpop.f32.mrb[0].mxu0
        %v9346 = vadd.f32 %v9057, %v9345
        %v9347 = vpop.f32.mrb[0].mxu0
        %v9348 = vpop.f32.mrb[0].mxu0
        %v9349 = vadd.f32 %v9060, %v9348
        %v9350 = vpop.f32.mrb[0].mxu0
        %9351 = vmatprep.mubr.bf16.mxu0 0
        %9352 = vmatmul.mubr.bf16.gmra.mrb[0].mxu0 %v8885
        %v9353 = vpop.f32.mrb[0].mxu0
        %v9354 = vadd.f32 %v9065, %v9353
        %v9355 = vpop.f32.mrb[0].mxu0
        %v9356 = vpop.f32.mrb[0].mxu0
        %v9357 = vadd.f32 %v9068, %v9356
        %v9358 = vpop.f32.mrb[0].mxu0
        %9359 = vmatprep.mubr.bf16.mxu0 0
        %9360 = vmatmul.mubr.bf16.gmra.mrb[0].mxu0 %v8888
        %v9361 = vpop.f32.mrb[0].mxu0
        %v9362 = vadd.f32 %v9073, %v9361
        %v9363 = vpop.f32.mrb[0].mxu0
        %v9364 = vpop.f32.mrb[0].mxu0
        %v9365 = vadd.f32 %v9076, %v9364
        %v9366 = vpop.f32.mrb[0].mxu0
        %9367 = vmatprep.mubr.bf16.mxu0 0
        %9368 = vmatmul.mubr.bf16.gmra.mrb[0].mxu0 %v8891
        %v9369 = vpop.f32.mrb[0].mxu0
        %v9370 = vadd.f32 %v9081, %v9369
        %v9371 = vpop.f32.mrb[0].mxu0
        %v9372 = vpop.f32.mrb[0].mxu0
        %v9373 = vadd.f32 %v9084, %v9372
        %v9374 = vpop.f32.mrb[0].mxu0
        %9375 = vmatprep.mubr.bf16.mxu0 0
        %9376 = vmatmul.mubr.bf16.gmra.mrb[0].mxu0 %v8894
        %v9377 = vpop.f32.mrb[0].mxu0
        %v9378 = vadd.f32 %v9089, %v9377
        %v9379 = vpop.f32.mrb[0].mxu0
        %v9380 = vpop.f32.mrb[0].mxu0
        %v9381 = vadd.f32 %v9092, %v9380
        %v9382 = vpop.f32.mrb[0].mxu0
        %9383 = vmatprep.mubr.bf16.mxu0 0
        %9384 = vmatmul.mubr.bf16.gmra.mrb[0].mxu0 %v8897
        %v9385 = vpop.f32.mrb[0].mxu0
        %v9386 = vadd.f32 %v9097, %v9385
        %v9387 = vpop.f32.mrb[0].mxu0
        %v9388 = vpop.f32.mrb[0].mxu0
        %v9389 = vadd.f32 %v9100, %v9388
        %v9390 = vpop.f32.mrb[0].mxu0
        %9391 = vmatprep.mubr.bf16.mxu0 0
        %9392 = vmatmul.mubr.bf16.gmra.mrb[0].mxu0 %v8900
        %v9393 = vpop.f32.mrb[0].mxu0
        %v9394 = vadd.f32 %v9105, %v9393
        %v9395 = vpop.f32.mrb[0].mxu0
        %v9396 = vpop.f32.mrb[0].mxu0
        %v9397 = vadd.f32 %v9108, %v9396
        %v9398 = vpop.f32.mrb[0].mxu0
        %9399 = vmatprep.mubr.bf16.mxu0 0
        %9400 = vmatmul.mubr.bf16.gmra.mrb[0].mxu0 %v8903
        %v9401 = vpop.f32.mrb[0].mxu0
        %v9402 = vadd.f32 %v9113, %v9401
        %v9403 = vpop.f32.mrb[0].mxu0
        %v9404 = vpop.f32.mrb[0].mxu0
        %v9405 = vadd.f32 %v9116, %v9404
        %v9406 = vpop.f32.mrb[0].mxu0
        %9407 = vmatprep.mubr.bf16.mxu0 0
        %9408 = vmatmul.mubr.bf16.gmra.mrb[0].mxu0 %v8906
        %v9409 = vpop.f32.mrb[0].mxu0
        %v9410 = vadd.f32 %v9121, %v9409
        %v9411 = vpop.f32.mrb[0].mxu0
        %v9412 = vpop.f32.mrb[0].mxu0
        %v9413 = vadd.f32 %v9124, %v9412
        %v9414 = vpop.f32.mrb[0].mxu0
        %9415 = vmatprep.mubr.bf16.mxu0 0
        %9416 = vmatmul.mubr.bf16.gmra.mrb[0].mxu0 %v8909
        %v9417 = vpop.f32.mrb[0].mxu0
        %v9418 = vadd.f32 %v9129, %v9417
        %v9419 = vpop.f32.mrb[0].mxu0
        %v9420 = vpop.f32.mrb[0].mxu0
        %v9421 = vadd.f32 %v9132, %v9420
        %v9422 = vpop.f32.mrb[0].mxu0
        %9423 = vmatprep.mubr.bf16.mxu0 0
        %9424 = vmatmul.mubr.bf16.gmra.mrb[0].mxu0 %v8912
        %v9425 = vpop.f32.mrb[0].mxu0
        %v9426 = vadd.f32 %v9137, %v9425
        %v9427 = vpop.f32.mrb[0].mxu0
        %v9428 = vpop.f32.mrb[0].mxu0
        %v9429 = vadd.f32 %v9140, %v9428
        %v9430 = vpop.f32.mrb[0].mxu0
        %9431 = vmatprep.mubr.bf16.mxu0 0
        %9432 = vmatmul.mubr.bf16.gmra.mrb[0].mxu0 %v8915
        %v9433 = vpop.f32.mrb[0].mxu0
        %v9434 = vadd.f32 %v9145, %v9433
        %v9435 = vpop.f32.mrb[0].mxu0
        %v9436 = vpop.f32.mrb[0].mxu0
        %v9437 = vadd.f32 %v9148, %v9436
        %v9438 = vpop.f32.mrb[0].mxu0
        %9439 = vmatprep.mubr.bf16.mxu0 0
        %9440 = vmatmul.mubr.bf16.gmra.mrb[0].mxu0 %v8918
        %v9441 = vpop.f32.mrb[0].mxu0
        %v9442 = vadd.f32 %v9153, %v9441
        %v9443 = vpop.f32.mrb[0].mxu0
        %v9444 = vpop.f32.mrb[0].mxu0
        %v9445 = vadd.f32 %v9156, %v9444
        %v9446 = vpop.f32.mrb[0].mxu0
        %9447 = vmatprep.mubr.bf16.mxu0 0
        %9448 = vmatmul.mubr.bf16.gmra.mrb[0].mxu0 %v8921
        %v9449 = vpop.f32.mrb[0].mxu0
        %v9450 = vadd.f32 %v9161, %v9449
        %v9451 = vpop.f32.mrb[0].mxu0
        %v9452 = vpop.f32.mrb[0].mxu0
        %v9453 = vadd.f32 %v9164, %v9452
        %v9454 = vpop.f32.mrb[0].mxu0
        %9455 = vmatprep.mubr.bf16.mxu0 0
        %9456 = vmatmul.mubr.bf16.gmra.mrb[0].mxu0 %v8924
        %v9457 = vpop.f32.mrb[0].mxu0
        %v9458 = vadd.f32 %v9169, %v9457
        %v9459 = vpop.f32.mrb[0].mxu0
        %v9460 = vpop.f32.mrb[0].mxu0
        %v9461 = vadd.f32 %v9172, %v9460
        %v9462 = vpop.f32.mrb[0].mxu0
        %9463 = vmatprep.mubr.bf16.mxu0 0
        %9464 = vmatmul.mubr.bf16.gmra.mrb[0].mxu0 %v8927
        %v9465 = vpop.f32.mrb[0].mxu0
        %v9466 = vadd.f32 %v9177, %v9465
        %v9467 = vpop.f32.mrb[0].mxu0
        %v9468 = vpop.f32.mrb[0].mxu0
        %v9469 = vadd.f32 %v9180, %v9468
        %v9470 = vpop.f32.mrb[0].mxu0
        %9471 = vmatprep.mubr.bf16.mxu0 0
        %9472 = vmatmul.mubr.bf16.gmra.mrb[0].mxu0 %v8930
        %v9473 = vpop.f32.mrb[0].mxu0
        %v9474 = vadd.f32 %v9185, %v9473
        %v9475 = vpop.f32.mrb[0].mxu0
        %v9476 = vpop.f32.mrb[0].mxu0
        %v9477 = vadd.f32 %v9188, %v9476
        %v9478 = vpop.f32.mrb[0].mxu0
        %9479 = vmatprep.mubr.bf16.mxu0 0
        %9480 = vmatmul.mubr.bf16.gmra.mrb[0].mxu0 %v8933
        %v9481 = vpop.f32.mrb[0].mxu0
        %v9482 = vadd.f32 %v9193, %v9481
        %v9483 = vpop.f32.mrb[0].mxu0
        %v9484 = vpop.f32.mrb[0].mxu0
        %v9485 = vadd.f32 %v9196, %v9484
        %v9486 = vpop.f32.mrb[0].mxu0
        %9487 = vmatprep.mubr.bf16.mxu0 0
        %9488 = vmatmul.mubr.bf16.gmra.mrb[0].mxu0 %v8936
        %v9489 = vpop.f32.mrb[0].mxu0
        %v9490 = vadd.f32 %v9201, %v9489
        %v9491 = vpop.f32.mrb[0].mxu0
        %v9492 = vpop.f32.mrb[0].mxu0
        %v9493 = vadd.f32 %v9204, %v9492
        %v9494 = vpop.f32.mrb[0].mxu0
        %9495 = vmatprep.mubr.bf16.mxu0 0
        %9496 = vmatmul.mubr.bf16.gmra.mrb[0].mxu0 %v8939
        %v9497 = vpop.f32.mrb[0].mxu0
        %v9498 = vadd.f32 %v9209, %v9497
        %v9499 = vpop.f32.mrb[0].mxu0
        %v9500 = vpop.f32.mrb[0].mxu0
        %v9501 = vadd.f32 %v9212, %v9500
        %v9502 = vpop.f32.mrb[0].mxu0
        %9503 = vmatprep.mubr.bf16.mxu0 0
        %9504 = vmatmul.mubr.bf16.gmra.mrb[0].mxu0 %v8942
        %v9505 = vpop.f32.mrb[0].mxu0
        %v9506 = vadd.f32 %v9217, %v9505
        %v9507 = vpop.f32.mrb[0].mxu0
        %v9508 = vpop.f32.mrb[0].mxu0
        %v9509 = vadd.f32 %v9220, %v9508
        %v9510 = vpop.f32.mrb[0].mxu0
        %9511 = vmatprep.mubr.bf16.mxu0 0
        %9512 = vmatmul.mubr.bf16.gmra.mrb[0].mxu0 %v8945
        %v9513 = vpop.f32.mrb[0].mxu0
        %v9514 = vadd.f32 %v9225, %v9513
        %v9515 = vpop.f32.mrb[0].mxu0
        %v9516 = vpop.f32.mrb[0].mxu0
        %v9517 = vadd.f32 %v9228, %v9516
        %v9518 = vpop.f32.mrb[0].mxu0
        %9519 = vmatprep.mubr.bf16.mxu0 0
        %9520 = vmatmul.mubr.bf16.gmra.mrb[0].mxu0 %v8948
        %v9521 = vpop.f32.mrb[0].mxu0
        %v9522 = vadd.f32 %v9233, %v9521
        %v9523 = vpop.f32.mrb[0].mxu0
        %v9524 = vpop.f32.mrb[0].mxu0
        %v9525 = vadd.f32 %v9236, %v9524
        %v9526 = vpop.f32.mrb[0].mxu0
        %9527 = vdwg.mxu0
        %v9528 = vadd.f32 %v8047, %v9274
        %v9529 = vadd.f32 %v8048, %v9277
        %v9530 = vadd.f32 %v8049, %v9282
        %v9531 = vadd.f32 %v8050, %v9285
        %v9532 = vadd.f32 %v8051, %v9290
        %v9533 = vadd.f32 %v8052, %v9293
        %v9534 = vadd.f32 %v8053, %v9298
        %v9535 = vadd.f32 %v8054, %v9301
        %v9536 = vadd.f32 %v8055, %v9306
        %v9537 = vadd.f32 %v8056, %v9309
        %v9538 = vadd.f32 %v8057, %v9314
        %v9539 = vadd.f32 %v8058, %v9317
        %v9540 = vadd.f32 %v8059, %v9322
        %v9541 = vadd.f32 %v8060, %v9325
        %v9542 = vadd.f32 %v8061, %v9330
        %v9543 = vadd.f32 %v8062, %v9333
        %v9544 = vadd.f32 %v8063, %v9338
        %v9545 = vadd.f32 %v8064, %v9341
        %v9546 = vadd.f32 %v8065, %v9346
        %v9547 = vadd.f32 %v8066, %v9349
        %v9548 = vadd.f32 %v8067, %v9354
        %v9549 = vadd.f32 %v8068, %v9357
        %v9550 = vadd.f32 %v8069, %v9362
        %v9551 = vadd.f32 %v8070, %v9365
        %v9552 = vadd.f32 %v8071, %v9370
        %v9553 = vadd.f32 %v8072, %v9373
        %v9554 = vadd.f32 %v8073, %v9378
        %v9555 = vadd.f32 %v8074, %v9381
        %v9556 = vadd.f32 %v8075, %v9386
        %v9557 = vadd.f32 %v8076, %v9389
        %v9558 = vadd.f32 %v8077, %v9394
        %v9559 = vadd.f32 %v8078, %v9397
        %v9560 = vadd.f32 %v8079, %v9402
        %v9561 = vadd.f32 %v8080, %v9405
        %v9562 = vadd.f32 %v8081, %v9410
        %v9563 = vadd.f32 %v8082, %v9413
        %v9564 = vadd.f32 %v8083, %v9418
        %v9565 = vadd.f32 %v8084, %v9421
        %v9566 = vadd.f32 %v8085, %v9426
        %v9567 = vadd.f32 %v8086, %v9429
        %v9568 = vadd.f32 %v8087, %v9434
        %v9569 = vadd.f32 %v8088, %v9437
        %v9570 = vadd.f32 %v8089, %v9442
        %v9571 = vadd.f32 %v8090, %v9445
        %v9572 = vadd.f32 %v8091, %v9450
        %v9573 = vadd.f32 %v8092, %v9453
        %v9574 = vadd.f32 %v8093, %v9458
        %v9575 = vadd.f32 %v8094, %v9461
        %v9576 = vadd.f32 %v8095, %v9466
        %v9577 = vadd.f32 %v8096, %v9469
        %v9578 = vadd.f32 %v8097, %v9474
        %v9579 = vadd.f32 %v8098, %v9477
        %v9580 = vadd.f32 %v8099, %v9482
        %v9581 = vadd.f32 %v8100, %v9485
        %v9582 = vadd.f32 %v8101, %v9490
        %v9583 = vadd.f32 %v8102, %v9493
        %v9584 = vadd.f32 %v8103, %v9498
        %v9585 = vadd.f32 %v8104, %v9501
        %v9586 = vadd.f32 %v8105, %v9506
        %v9587 = vadd.f32 %v8106, %v9509
        %v9588 = vadd.f32 %v8107, %v9514
        %v9589 = vadd.f32 %v8108, %v9517
        %v9590 = vadd.f32 %v8109, %v9522
        %v9591 = vadd.f32 %v8110, %v9525
        %vm9592 = vcmask 15360
        %9593 = vst.msk [vmem:[#allocation3] sm:$0xff] %vm9592, %v9528
        %9594 = vst.msk [vmem:[#allocation3 + $0x8] sm:$0xff] %vm9592, %v9529
        %9595 = vst.msk [vmem:[#allocation3 + $0x10] sm:$0xff] %vm9592, %v9530
        %9596 = vst.msk [vmem:[#allocation3 + $0x18] sm:$0xff] %vm9592, %v9531
        %9597 = vst.msk [vmem:[#allocation3 + $0x20] sm:$0xff] %vm9592, %v9532
        %9598 = vst.msk [vmem:[#allocation3 + $0x28] sm:$0xff] %vm9592, %v9533
        %9599 = vst.msk [vmem:[#allocation3 + $0x30] sm:$0xff] %vm9592, %v9534
        %9600 = vst.msk [vmem:[#allocation3 + $0x38] sm:$0xff] %vm9592, %v9535
        %9601 = vst.msk [vmem:[#allocation3 + $0x40] sm:$0xff] %vm9592, %v9536
        %9602 = vst.msk [vmem:[#allocation3 + $0x48] sm:$0xff] %vm9592, %v9537
        %9603 = vst.msk [vmem:[#allocation3 + $0x50] sm:$0xff] %vm9592, %v9538
        %9604 = vst.msk [vmem:[#allocation3 + $0x58] sm:$0xff] %vm9592, %v9539
        %9605 = vst.msk [vmem:[#allocation3 + $0x60] sm:$0xff] %vm9592, %v9540
        %9606 = vst.msk [vmem:[#allocation3 + $0x68] sm:$0xff] %vm9592, %v9541
        %9607 = vst.msk [vmem:[#allocation3 + $0x70] sm:$0xff] %vm9592, %v9542
        %9608 = vst.msk [vmem:[#allocation3 + $0x78] sm:$0xff] %vm9592, %v9543
        %9609 = vst.msk [vmem:[#allocation3 + $0x80] sm:$0xff] %vm9592, %v9544
        %9610 = vst.msk [vmem:[#allocation3 + $0x88] sm:$0xff] %vm9592, %v9545
        %9611 = vst.msk [vmem:[#allocation3 + $0x90] sm:$0xff] %vm9592, %v9546
        %9612 = vst.msk [vmem:[#allocation3 + $0x98] sm:$0xff] %vm9592, %v9547
        %9613 = vst.msk [vmem:[#allocation3 + $0xa0] sm:$0xff] %vm9592, %v9548
        %9614 = vst.msk [vmem:[#allocation3 + $0xa8] sm:$0xff] %vm9592, %v9549
        %9615 = vst.msk [vmem:[#allocation3 + $0xb0] sm:$0xff] %vm9592, %v9550
        %9616 = vst.msk [vmem:[#allocation3 + $0xb8] sm:$0xff] %vm9592, %v9551
        %9617 = vst.msk [vmem:[#allocation3 + $0xc0] sm:$0xff] %vm9592, %v9552
        %9618 = vst.msk [vmem:[#allocation3 + $0xc8] sm:$0xff] %vm9592, %v9553
        %9619 = vst.msk [vmem:[#allocation3 + $0xd0] sm:$0xff] %vm9592, %v9554
        %9620 = vst.msk [vmem:[#allocation3 + $0xd8] sm:$0xff] %vm9592, %v9555
        %9621 = vst.msk [vmem:[#allocation3 + $0xe0] sm:$0xff] %vm9592, %v9556
        %9622 = vst.msk [vmem:[#allocation3 + $0xe8] sm:$0xff] %vm9592, %v9557
        %9623 = vst.msk [vmem:[#allocation3 + $0xf0] sm:$0xff] %vm9592, %v9558
        %9624 = vst.msk [vmem:[#allocation3 + $0xf8] sm:$0xff] %vm9592, %v9559
        %9625 = vst.msk [vmem:[#allocation3 + $0x100] sm:$0xff] %vm9592, %v9560
        %9626 = vst.msk [vmem:[#allocation3 + $0x108] sm:$0xff] %vm9592, %v9561
        %9627 = vst.msk [vmem:[#allocation3 + $0x110] sm:$0xff] %vm9592, %v9562
        %9628 = vst.msk [vmem:[#allocation3 + $0x118] sm:$0xff] %vm9592, %v9563
        %9629 = vst.msk [vmem:[#allocation3 + $0x120] sm:$0xff] %vm9592, %v9564
        %9630 = vst.msk [vmem:[#allocation3 + $0x128] sm:$0xff] %vm9592, %v9565
        %9631 = vst.msk [vmem:[#allocation3 + $0x130] sm:$0xff] %vm9592, %v9566
        %9632 = vst.msk [vmem:[#allocation3 + $0x138] sm:$0xff] %vm9592, %v9567
        %9633 = vst.msk [vmem:[#allocation3 + $0x140] sm:$0xff] %vm9592, %v9568
        %9634 = vst.msk [vmem:[#allocation3 + $0x148] sm:$0xff] %vm9592, %v9569
        %9635 = vst.msk [vmem:[#allocation3 + $0x150] sm:$0xff] %vm9592, %v9570
        %9636 = vst.msk [vmem:[#allocation3 + $0x158] sm:$0xff] %vm9592, %v9571
        %9637 = vst.msk [vmem:[#allocation3 + $0x160] sm:$0xff] %vm9592, %v9572
        %9638 = vst.msk [vmem:[#allocation3 + $0x168] sm:$0xff] %vm9592, %v9573
        %9639 = vst.msk [vmem:[#allocation3 + $0x170] sm:$0xff] %vm9592, %v9574
        %9640 = vst.msk [vmem:[#allocation3 + $0x178] sm:$0xff] %vm9592, %v9575
        %9641 = vst.msk [vmem:[#allocation3 + $0x180] sm:$0xff] %vm9592, %v9576
        %9642 = vst.msk [vmem:[#allocation3 + $0x188] sm:$0xff] %vm9592, %v9577
        %9643 = vst.msk [vmem:[#allocation3 + $0x190] sm:$0xff] %vm9592, %v9578
        %9644 = vst.msk [vmem:[#allocation3 + $0x198] sm:$0xff] %vm9592, %v9579
        %9645 = vst.msk [vmem:[#allocation3 + $0x1a0] sm:$0xff] %vm9592, %v9580
        %9646 = vst.msk [vmem:[#allocation3 + $0x1a8] sm:$0xff] %vm9592, %v9581
        %9647 = vst.msk [vmem:[#allocation3 + $0x1b0] sm:$0xff] %vm9592, %v9582
        %9648 = vst.msk [vmem:[#allocation3 + $0x1b8] sm:$0xff] %vm9592, %v9583
        %9649 = vst.msk [vmem:[#allocation3 + $0x1c0] sm:$0xff] %vm9592, %v9584
        %9650 = vst.msk [vmem:[#allocation3 + $0x1c8] sm:$0xff] %vm9592, %v9585
        %9651 = vst.msk [vmem:[#allocation3 + $0x1d0] sm:$0xff] %vm9592, %v9586
        %9652 = vst.msk [vmem:[#allocation3 + $0x1d8] sm:$0xff] %vm9592, %v9587
        %9653 = vst.msk [vmem:[#allocation3 + $0x1e0] sm:$0xff] %vm9592, %v9588
        %9654 = vst.msk [vmem:[#allocation3 + $0x1e8] sm:$0xff] %vm9592, %v9589
        %9655 = vst.msk [vmem:[#allocation3 + $0x1f0] sm:$0xff] %vm9592, %v9590
        %9656 = vst.msk [vmem:[#allocation3 + $0x1f8] sm:$0xff] %vm9592, %v9591
        %p9657 = scmp.eq.s32.totalorder %s28, 5
        // Predicated region
        $region89: #{multimodal_forward.1} parent=63 // pred_check
          %p9658 = pneg %p9657
        $region90: #{multimodal_forward.1} parent=63 // pred_check_branch
          %9660 = sbr.rel (%p9658) target = $region92
        $region91: #{multimodal_forward.1} parent=63 // pred_region
          %v9661 = vld [vmem:[#allocation3] sm:$0xff]
          %v9662 = vld [vmem:[#allocation3 + $0x8] sm:$0xff]
          %v9663 = vld [vmem:[#allocation3 + $0x10] sm:$0xff]
          %v9664 = vld [vmem:[#allocation3 + $0x18] sm:$0xff]
          %v9665 = vld [vmem:[#allocation3 + $0x20] sm:$0xff]
          %v9666 = vld [vmem:[#allocation3 + $0x28] sm:$0xff]
          %v9667 = vld [vmem:[#allocation3 + $0x30] sm:$0xff]
          %v9668 = vld [vmem:[#allocation3 + $0x38] sm:$0xff]
          %v9669 = vld [vmem:[#allocation3 + $0x40] sm:$0xff]
          %v9670 = vld [vmem:[#allocation3 + $0x48] sm:$0xff]
          %v9671 = vld [vmem:[#allocation3 + $0x50] sm:$0xff]
          %v9672 = vld [vmem:[#allocation3 + $0x58] sm:$0xff]
          %v9673 = vld [vmem:[#allocation3 + $0x60] sm:$0xff]
          %v9674 = vld [vmem:[#allocation3 + $0x68] sm:$0xff]
          %v9675 = vld [vmem:[#allocation3 + $0x70] sm:$0xff]
          %v9676 = vld [vmem:[#allocation3 + $0x78] sm:$0xff]
          %v9677 = vld [vmem:[#allocation3 + $0x80] sm:$0xff]
          %v9678 = vld [vmem:[#allocation3 + $0x88] sm:$0xff]
          %v9679 = vld [vmem:[#allocation3 + $0x90] sm:$0xff]
          %v9680 = vld [vmem:[#allocation3 + $0x98] sm:$0xff]
          %v9681 = vld [vmem:[#allocation3 + $0xa0] sm:$0xff]
          %v9682 = vld [vmem:[#allocation3 + $0xa8] sm:$0xff]
          %v9683 = vld [vmem:[#allocation3 + $0xb0] sm:$0xff]
          %v9684 = vld [vmem:[#allocation3 + $0xb8] sm:$0xff]
          %v9685 = vld [vmem:[#allocation3 + $0xc0] sm:$0xff]
          %v9686 = vld [vmem:[#allocation3 + $0xc8] sm:$0xff]
          %v9687 = vld [vmem:[#allocation3 + $0xd0] sm:$0xff]
          %v9688 = vld [vmem:[#allocation3 + $0xd8] sm:$0xff]
          %v9689 = vld [vmem:[#allocation3 + $0xe0] sm:$0xff]
          %v9690 = vld [vmem:[#allocation3 + $0xe8] sm:$0xff]
          %v9691 = vld [vmem:[#allocation3 + $0xf0] sm:$0xff]
          %v9692 = vld [vmem:[#allocation3 + $0xf8] sm:$0xff]
          %v9693 = vld [vmem:[#allocation3 + $0x100] sm:$0xff]
          %v9694 = vld [vmem:[#allocation3 + $0x108] sm:$0xff]
          %v9695 = vld [vmem:[#allocation3 + $0x110] sm:$0xff]
          %v9696 = vld [vmem:[#allocation3 + $0x118] sm:$0xff]
          %v9697 = vld [vmem:[#allocation3 + $0x120] sm:$0xff]
          %v9698 = vld [vmem:[#allocation3 + $0x128] sm:$0xff]
          %v9699 = vld [vmem:[#allocation3 + $0x130] sm:$0xff]
          %v9700 = vld [vmem:[#allocation3 + $0x138] sm:$0xff]
          %v9701 = vld [vmem:[#allocation3 + $0x140] sm:$0xff]
          %v9702 = vld [vmem:[#allocation3 + $0x148] sm:$0xff]
          %v9703 = vld [vmem:[#allocation3 + $0x150] sm:$0xff]
          %v9704 = vld [vmem:[#allocation3 + $0x158] sm:$0xff]
          %v9705 = vld [vmem:[#allocation3 + $0x160] sm:$0xff]
          %v9706 = vld [vmem:[#allocation3 + $0x168] sm:$0xff]
          %v9707 = vld [vmem:[#allocation3 + $0x170] sm:$0xff]
          %v9708 = vld [vmem:[#allocation3 + $0x178] sm:$0xff]
          %v9709 = vld [vmem:[#allocation3 + $0x180] sm:$0xff]
          %v9710 = vld [vmem:[#allocation3 + $0x188] sm:$0xff]
          %v9711 = vld [vmem:[#allocation3 + $0x190] sm:$0xff]
          %v9712 = vld [vmem:[#allocation3 + $0x198] sm:$0xff]
          %v9713 = vld [vmem:[#allocation3 + $0x1a0] sm:$0xff]
          %v9714 = vld [vmem:[#allocation3 + $0x1a8] sm:$0xff]
          %v9715 = vld [vmem:[#allocation3 + $0x1b0] sm:$0xff]
          %v9716 = vld [vmem:[#allocation3 + $0x1b8] sm:$0xff]
          %v9717 = vld [vmem:[#allocation3 + $0x1c0] sm:$0xff]
          %v9718 = vld [vmem:[#allocation3 + $0x1c8] sm:$0xff]
          %v9719 = vld [vmem:[#allocation3 + $0x1d0] sm:$0xff]
          %v9720 = vld [vmem:[#allocation3 + $0x1d8] sm:$0xff]
          %v9721 = vld [vmem:[#allocation3 + $0x1e0] sm:$0xff]
          %v9722 = vld [vmem:[#allocation3 + $0x1e8] sm:$0xff]
          %v9723 = vld [vmem:[#allocation3 + $0x1f0] sm:$0xff]
          %v9724 = vld [vmem:[#allocation3 + $0x1f8] sm:$0xff]
          %v9725 = vld [vmem:[%s6] sm:$0xff]
          %v9726 = vld [vmem:[%s6 + $0x8] sm:$0xff]
          %v9727 = vld [vmem:[%s6 + $0x10] sm:$0xff]
          %v9728 = vld [vmem:[%s6 + $0x18] sm:$0xff]
          %v9729 = vld [vmem:[%s6 + $0x20] sm:$0xff]
          %v9730 = vld [vmem:[%s6 + $0x28] sm:$0xff]
          %v9731 = vld [vmem:[%s6 + $0x30] sm:$0xff]
          %v9732 = vld [vmem:[%s6 + $0x38] sm:$0xff]
          %v9733 = vld [vmem:[%s6 + $0x40] sm:$0xff]
          %v9734 = vld [vmem:[%s6 + $0x48] sm:$0xff]
          %v9735 = vld [vmem:[%s6 + $0x50] sm:$0xff]
          %v9736 = vld [vmem:[%s6 + $0x58] sm:$0xff]
          %v9737 = vld [vmem:[%s6 + $0x60] sm:$0xff]
          %v9738 = vld [vmem:[%s6 + $0x68] sm:$0xff]
          %v9739 = vld [vmem:[%s6 + $0x70] sm:$0xff]
          %v9740 = vld [vmem:[%s6 + $0x78] sm:$0xff]
          %v9741 = vld [vmem:[%s6 + $0x80] sm:$0xff]
          %v9742 = vld [vmem:[%s6 + $0x88] sm:$0xff]
          %v9743 = vld [vmem:[%s6 + $0x90] sm:$0xff]
          %v9744 = vld [vmem:[%s6 + $0x98] sm:$0xff]
          %v9745 = vld [vmem:[%s6 + $0xa0] sm:$0xff]
          %v9746 = vld [vmem:[%s6 + $0xa8] sm:$0xff]
          %v9747 = vld [vmem:[%s6 + $0xb0] sm:$0xff]
          %v9748 = vld [vmem:[%s6 + $0xb8] sm:$0xff]
          %v9749 = vld [vmem:[%s6 + $0xc0] sm:$0xff]
          %v9750 = vld [vmem:[%s6 + $0xc8] sm:$0xff]
          %v9751 = vld [vmem:[%s6 + $0xd0] sm:$0xff]
          %v9752 = vld [vmem:[%s6 + $0xd8] sm:$0xff]
          %v9753 = vld [vmem:[%s6 + $0xe0] sm:$0xff]
          %v9754 = vld [vmem:[%s6 + $0xe8] sm:$0xff]
          %v9755 = vld [vmem:[%s6 + $0xf0] sm:$0xff]
          %v9756 = vld [vmem:[%s6 + $0xf8] sm:$0xff]
          %v9757 = vld [vmem:[%s6 + $0x100] sm:$0xff]
          %v9758 = vld [vmem:[%s6 + $0x108] sm:$0xff]
          %v9759 = vld [vmem:[%s6 + $0x110] sm:$0xff]
          %v9760 = vld [vmem:[%s6 + $0x118] sm:$0xff]
          %v9761 = vld [vmem:[%s6 + $0x120] sm:$0xff]
          %v9762 = vld [vmem:[%s6 + $0x128] sm:$0xff]
          %v9763 = vld [vmem:[%s6 + $0x130] sm:$0xff]
          %v9764 = vld [vmem:[%s6 + $0x138] sm:$0xff]
          %v9765 = vld [vmem:[%s6 + $0x140] sm:$0xff]
          %v9766 = vld [vmem:[%s6 + $0x148] sm:$0xff]
          %v9767 = vld [vmem:[%s6 + $0x150] sm:$0xff]
          %v9768 = vld [vmem:[%s6 + $0x158] sm:$0xff]
          %v9769 = vld [vmem:[%s6 + $0x160] sm:$0xff]
          %v9770 = vld [vmem:[%s6 + $0x168] sm:$0xff]
          %v9771 = vld [vmem:[%s6 + $0x170] sm:$0xff]
          %v9772 = vld [vmem:[%s6 + $0x178] sm:$0xff]
          %v9773 = vld [vmem:[%s6 + $0x180] sm:$0xff]
          %v9774 = vld [vmem:[%s6 + $0x188] sm:$0xff]
          %v9775 = vld [vmem:[%s6 + $0x190] sm:$0xff]
          %v9776 = vld [vmem:[%s6 + $0x198] sm:$0xff]
          %v9777 = vld [vmem:[%s6 + $0x1a0] sm:$0xff]
          %v9778 = vld [vmem:[%s6 + $0x1a8] sm:$0xff]
          %v9779 = vld [vmem:[%s6 + $0x1b0] sm:$0xff]
          %v9780 = vld [vmem:[%s6 + $0x1b8] sm:$0xff]
          %v9781 = vld [vmem:[%s6 + $0x1c0] sm:$0xff]
          %v9782 = vld [vmem:[%s6 + $0x1c8] sm:$0xff]
          %v9783 = vld [vmem:[%s6 + $0x1d0] sm:$0xff]
          %v9784 = vld [vmem:[%s6 + $0x1d8] sm:$0xff]
          %v9785 = vld [vmem:[%s6 + $0x1e0] sm:$0xff]
          %v9786 = vld [vmem:[%s6 + $0x1e8] sm:$0xff]
          %v9787 = vld [vmem:[%s6 + $0x1f0] sm:$0xff]
          %v9788 = vld [vmem:[%s6 + $0x1f8] sm:$0xff]
          %9790 = vset.pattern.permute.xlu0 0
          %9791 = vperm.xlu0 %9790, %v9725
          %v9792 = vpop.permute.xlu0 %9791
          %9795 = vset.pattern.permute.xlu0 0
          %9796 = vperm.xlu0 %9795, %v9726
          %v9797 = vpop.permute.xlu0 %9796
          %9800 = vset.pattern.permute.xlu0 0
          %9801 = vperm.xlu0 %9800, %v9727
          %v9802 = vpop.permute.xlu0 %9801
          %9805 = vset.pattern.permute.xlu0 0
          %9806 = vperm.xlu0 %9805, %v9728
          %v9807 = vpop.permute.xlu0 %9806
          %9810 = vset.pattern.permute.xlu0 0
          %9811 = vperm.xlu0 %9810, %v9729
          %v9812 = vpop.permute.xlu0 %9811
          %9815 = vset.pattern.permute.xlu0 0
          %9816 = vperm.xlu0 %9815, %v9730
          %v9817 = vpop.permute.xlu0 %9816
          %9820 = vset.pattern.permute.xlu0 0
          %9821 = vperm.xlu0 %9820, %v9731
          %v9822 = vpop.permute.xlu0 %9821
          %9825 = vset.pattern.permute.xlu0 0
          %9826 = vperm.xlu0 %9825, %v9732
          %v9827 = vpop.permute.xlu0 %9826
          %9830 = vset.pattern.permute.xlu0 0
          %9831 = vperm.xlu0 %9830, %v9733
          %v9832 = vpop.permute.xlu0 %9831
          %9835 = vset.pattern.permute.xlu0 0
          %9836 = vperm.xlu0 %9835, %v9734
          %v9837 = vpop.permute.xlu0 %9836
          %9840 = vset.pattern.permute.xlu0 0
          %9841 = vperm.xlu0 %9840, %v9735
          %v9842 = vpop.permute.xlu0 %9841
          %9845 = vset.pattern.permute.xlu0 0
          %9846 = vperm.xlu0 %9845, %v9736
          %v9847 = vpop.permute.xlu0 %9846
          %9850 = vset.pattern.permute.xlu0 0
          %9851 = vperm.xlu0 %9850, %v9737
          %v9852 = vpop.permute.xlu0 %9851
          %9855 = vset.pattern.permute.xlu0 0
          %9856 = vperm.xlu0 %9855, %v9738
          %v9857 = vpop.permute.xlu0 %9856
          %9860 = vset.pattern.permute.xlu0 0
          %9861 = vperm.xlu0 %9860, %v9739
          %v9862 = vpop.permute.xlu0 %9861
          %9865 = vset.pattern.permute.xlu0 0
          %9866 = vperm.xlu0 %9865, %v9740
          %v9867 = vpop.permute.xlu0 %9866
          %9870 = vset.pattern.permute.xlu0 0
          %9871 = vperm.xlu0 %9870, %v9741
          %v9872 = vpop.permute.xlu0 %9871
          %9875 = vset.pattern.permute.xlu0 0
          %9876 = vperm.xlu0 %9875, %v9742
          %v9877 = vpop.permute.xlu0 %9876
          %9880 = vset.pattern.permute.xlu0 0
          %9881 = vperm.xlu0 %9880, %v9743
          %v9882 = vpop.permute.xlu0 %9881
          %9885 = vset.pattern.permute.xlu0 0
          %9886 = vperm.xlu0 %9885, %v9744
          %v9887 = vpop.permute.xlu0 %9886
          %9890 = vset.pattern.permute.xlu0 0
          %9891 = vperm.xlu0 %9890, %v9745
          %v9892 = vpop.permute.xlu0 %9891
          %9895 = vset.pattern.permute.xlu0 0
          %9896 = vperm.xlu0 %9895, %v9746
          %v9897 = vpop.permute.xlu0 %9896
          %9900 = vset.pattern.permute.xlu0 0
          %9901 = vperm.xlu0 %9900, %v9747
          %v9902 = vpop.permute.xlu0 %9901
          %9905 = vset.pattern.permute.xlu0 0
          %9906 = vperm.xlu0 %9905, %v9748
          %v9907 = vpop.permute.xlu0 %9906
          %9910 = vset.pattern.permute.xlu0 0
          %9911 = vperm.xlu0 %9910, %v9749
          %v9912 = vpop.permute.xlu0 %9911
          %9915 = vset.pattern.permute.xlu0 0
          %9916 = vperm.xlu0 %9915, %v9750
          %v9917 = vpop.permute.xlu0 %9916
          %9920 = vset.pattern.permute.xlu0 0
          %9921 = vperm.xlu0 %9920, %v9751
          %v9922 = vpop.permute.xlu0 %9921
          %9925 = vset.pattern.permute.xlu0 0
          %9926 = vperm.xlu0 %9925, %v9752
          %v9927 = vpop.permute.xlu0 %9926
          %9930 = vset.pattern.permute.xlu0 0
          %9931 = vperm.xlu0 %9930, %v9753
          %v9932 = vpop.permute.xlu0 %9931
          %9935 = vset.pattern.permute.xlu0 0
          %9936 = vperm.xlu0 %9935, %v9754
          %v9937 = vpop.permute.xlu0 %9936
          %9940 = vset.pattern.permute.xlu0 0
          %9941 = vperm.xlu0 %9940, %v9755
          %v9942 = vpop.permute.xlu0 %9941
          %9945 = vset.pattern.permute.xlu0 0
          %9946 = vperm.xlu0 %9945, %v9756
          %v9947 = vpop.permute.xlu0 %9946
          %9950 = vset.pattern.permute.xlu0 0
          %9951 = vperm.xlu0 %9950, %v9757
          %v9952 = vpop.permute.xlu0 %9951
          %9955 = vset.pattern.permute.xlu0 0
          %9956 = vperm.xlu0 %9955, %v9758
          %v9957 = vpop.permute.xlu0 %9956
          %9960 = vset.pattern.permute.xlu0 0
          %9961 = vperm.xlu0 %9960, %v9759
          %v9962 = vpop.permute.xlu0 %9961
          %9965 = vset.pattern.permute.xlu0 0
          %9966 = vperm.xlu0 %9965, %v9760
          %v9967 = vpop.permute.xlu0 %9966
          %9970 = vset.pattern.permute.xlu0 0
          %9971 = vperm.xlu0 %9970, %v9761
          %v9972 = vpop.permute.xlu0 %9971
          %9975 = vset.pattern.permute.xlu0 0
          %9976 = vperm.xlu0 %9975, %v9762
          %v9977 = vpop.permute.xlu0 %9976
          %9980 = vset.pattern.permute.xlu0 0
          %9981 = vperm.xlu0 %9980, %v9763
          %v9982 = vpop.permute.xlu0 %9981
          %9985 = vset.pattern.permute.xlu0 0
          %9986 = vperm.xlu0 %9985, %v9764
          %v9987 = vpop.permute.xlu0 %9986
          %9990 = vset.pattern.permute.xlu0 0
          %9991 = vperm.xlu0 %9990, %v9765
          %v9992 = vpop.permute.xlu0 %9991
          %9995 = vset.pattern.permute.xlu0 0
          %9996 = vperm.xlu0 %9995, %v9766
          %v9997 = vpop.permute.xlu0 %9996
          %10000 = vset.pattern.permute.xlu0 0
          %10001 = vperm.xlu0 %10000, %v9767
          %v10002 = vpop.permute.xlu0 %10001
          %10005 = vset.pattern.permute.xlu0 0
          %10006 = vperm.xlu0 %10005, %v9768
          %v10007 = vpop.permute.xlu0 %10006
          %10010 = vset.pattern.permute.xlu0 0
          %10011 = vperm.xlu0 %10010, %v9769
          %v10012 = vpop.permute.xlu0 %10011
          %10015 = vset.pattern.permute.xlu0 0
          %10016 = vperm.xlu0 %10015, %v9770
          %v10017 = vpop.permute.xlu0 %10016
          %10020 = vset.pattern.permute.xlu0 0
          %10021 = vperm.xlu0 %10020, %v9771
          %v10022 = vpop.permute.xlu0 %10021
          %10025 = vset.pattern.permute.xlu0 0
          %10026 = vperm.xlu0 %10025, %v9772
          %v10027 = vpop.permute.xlu0 %10026
          %10030 = vset.pattern.permute.xlu0 0
          %10031 = vperm.xlu0 %10030, %v9773
          %v10032 = vpop.permute.xlu0 %10031
          %10035 = vset.pattern.permute.xlu0 0
          %10036 = vperm.xlu0 %10035, %v9774
          %v10037 = vpop.permute.xlu0 %10036
          %10040 = vset.pattern.permute.xlu0 0
          %10041 = vperm.xlu0 %10040, %v9775
          %v10042 = vpop.permute.xlu0 %10041
          %10045 = vset.pattern.permute.xlu0 0
          %10046 = vperm.xlu0 %10045, %v9776
          %v10047 = vpop.permute.xlu0 %10046
          %10050 = vset.pattern.permute.xlu0 0
          %10051 = vperm.xlu0 %10050, %v9777
          %v10052 = vpop.permute.xlu0 %10051
          %10055 = vset.pattern.permute.xlu0 0
          %10056 = vperm.xlu0 %10055, %v9778
          %v10057 = vpop.permute.xlu0 %10056
          %10060 = vset.pattern.permute.xlu0 0
          %10061 = vperm.xlu0 %10060, %v9779
          %v10062 = vpop.permute.xlu0 %10061
          %10065 = vset.pattern.permute.xlu0 0
          %10066 = vperm.xlu0 %10065, %v9780
          %v10067 = vpop.permute.xlu0 %10066
          %10070 = vset.pattern.permute.xlu0 0
          %10071 = vperm.xlu0 %10070, %v9781
          %v10072 = vpop.permute.xlu0 %10071
          %10075 = vset.pattern.permute.xlu0 0
          %10076 = vperm.xlu0 %10075, %v9782
          %v10077 = vpop.permute.xlu0 %10076
          %10080 = vset.pattern.permute.xlu0 0
          %10081 = vperm.xlu0 %10080, %v9783
          %v10082 = vpop.permute.xlu0 %10081
          %10085 = vset.pattern.permute.xlu0 0
          %10086 = vperm.xlu0 %10085, %v9784
          %v10087 = vpop.permute.xlu0 %10086
          %10090 = vset.pattern.permute.xlu0 0
          %10091 = vperm.xlu0 %10090, %v9785
          %v10092 = vpop.permute.xlu0 %10091
          %10095 = vset.pattern.permute.xlu0 0
          %10096 = vperm.xlu0 %10095, %v9786
          %v10097 = vpop.permute.xlu0 %10096
          %10100 = vset.pattern.permute.xlu0 0
          %10101 = vperm.xlu0 %10100, %v9787
          %v10102 = vpop.permute.xlu0 %10101
          %10105 = vset.pattern.permute.xlu0 0
          %10106 = vperm.xlu0 %10105, %v9788
          %v10107 = vpop.permute.xlu0 %10106
          %v10109 = vadd.f32 %v9661, %v9792
          %v10110 = vadd.f32 %v9662, %v9797
          %v10111 = vadd.f32 %v9663, %v9802
          %v10112 = vadd.f32 %v9664, %v9807
          %v10113 = vadd.f32 %v9665, %v9812
          %v10114 = vadd.f32 %v9666, %v9817
          %v10115 = vadd.f32 %v9667, %v9822
          %v10116 = vadd.f32 %v9668, %v9827
          %v10117 = vadd.f32 %v9669, %v9832
          %v10118 = vadd.f32 %v9670, %v9837
          %v10119 = vadd.f32 %v9671, %v9842
          %v10120 = vadd.f32 %v9672, %v9847
          %v10121 = vadd.f32 %v9673, %v9852
          %v10122 = vadd.f32 %v9674, %v9857
          %v10123 = vadd.f32 %v9675, %v9862
          %v10124 = vadd.f32 %v9676, %v9867
          %v10125 = vadd.f32 %v9677, %v9872
          %v10126 = vadd.f32 %v9678, %v9877
          %v10127 = vadd.f32 %v9679, %v9882
          %v10128 = vadd.f32 %v9680, %v9887
          %v10129 = vadd.f32 %v9681, %v9892
          %v10130 = vadd.f32 %v9682, %v9897
          %v10131 = vadd.f32 %v9683, %v9902
          %v10132 = vadd.f32 %v9684, %v9907
          %v10133 = vadd.f32 %v9685, %v9912
          %v10134 = vadd.f32 %v9686, %v9917
          %v10135 = vadd.f32 %v9687, %v9922
          %v10136 = vadd.f32 %v9688, %v9927
          %v10137 = vadd.f32 %v9689, %v9932
          %v10138 = vadd.f32 %v9690, %v9937
          %v10139 = vadd.f32 %v9691, %v9942
          %v10140 = vadd.f32 %v9692, %v9947
          %v10141 = vadd.f32 %v9693, %v9952
          %v10142 = vadd.f32 %v9694, %v9957
          %v10143 = vadd.f32 %v9695, %v9962
          %v10144 = vadd.f32 %v9696, %v9967
          %v10145 = vadd.f32 %v9697, %v9972
          %v10146 = vadd.f32 %v9698, %v9977
          %v10147 = vadd.f32 %v9699, %v9982
          %v10148 = vadd.f32 %v9700, %v9987
          %v10149 = vadd.f32 %v9701, %v9992
          %v10150 = vadd.f32 %v9702, %v9997
          %v10151 = vadd.f32 %v9703, %v10002
          %v10152 = vadd.f32 %v9704, %v10007
          %v10153 = vadd.f32 %v9705, %v10012
          %v10154 = vadd.f32 %v9706, %v10017
          %v10155 = vadd.f32 %v9707, %v10022
          %v10156 = vadd.f32 %v9708, %v10027
          %v10157 = vadd.f32 %v9709, %v10032
          %v10158 = vadd.f32 %v9710, %v10037
          %v10159 = vadd.f32 %v9711, %v10042
          %v10160 = vadd.f32 %v9712, %v10047
          %v10161 = vadd.f32 %v9713, %v10052
          %v10162 = vadd.f32 %v9714, %v10057
          %v10163 = vadd.f32 %v9715, %v10062
          %v10164 = vadd.f32 %v9716, %v10067
          %v10165 = vadd.f32 %v9717, %v10072
          %v10166 = vadd.f32 %v9718, %v10077
          %v10167 = vadd.f32 %v9719, %v10082
          %v10168 = vadd.f32 %v9720, %v10087
          %v10169 = vadd.f32 %v9721, %v10092
          %v10170 = vadd.f32 %v9722, %v10097
          %v10171 = vadd.f32 %v9723, %v10102
          %v10172 = vadd.f32 %v9724, %v10107
          %v10173 = vmax.f32 %v10109, 0.0
          %v10174 = vmax.f32 %v10110, 0.0
          %v10175 = vmax.f32 %v10111, 0.0
          %v10176 = vmax.f32 %v10112, 0.0
          %v10177 = vmax.f32 %v10113, 0.0
          %v10178 = vmax.f32 %v10114, 0.0
          %v10179 = vmax.f32 %v10115, 0.0
          %v10180 = vmax.f32 %v10116, 0.0
          %v10181 = vmax.f32 %v10117, 0.0
          %v10182 = vmax.f32 %v10118, 0.0
          %v10183 = vmax.f32 %v10119, 0.0
          %v10184 = vmax.f32 %v10120, 0.0
          %v10185 = vmax.f32 %v10121, 0.0
          %v10186 = vmax.f32 %v10122, 0.0
          %v10187 = vmax.f32 %v10123, 0.0
          %v10188 = vmax.f32 %v10124, 0.0
          %v10189 = vmax.f32 %v10125, 0.0
          %v10190 = vmax.f32 %v10126, 0.0
          %v10191 = vmax.f32 %v10127, 0.0
          %v10192 = vmax.f32 %v10128, 0.0
          %v10193 = vmax.f32 %v10129, 0.0
          %v10194 = vmax.f32 %v10130, 0.0
          %v10195 = vmax.f32 %v10131, 0.0
          %v10196 = vmax.f32 %v10132, 0.0
          %v10197 = vmax.f32 %v10133, 0.0
          %v10198 = vmax.f32 %v10134, 0.0
          %v10199 = vmax.f32 %v10135, 0.0
          %v10200 = vmax.f32 %v10136, 0.0
          %v10201 = vmax.f32 %v10137, 0.0
          %v10202 = vmax.f32 %v10138, 0.0
          %v10203 = vmax.f32 %v10139, 0.0
          %v10204 = vmax.f32 %v10140, 0.0
          %v10205 = vmax.f32 %v10141, 0.0
          %v10206 = vmax.f32 %v10142, 0.0
          %v10207 = vmax.f32 %v10143, 0.0
          %v10208 = vmax.f32 %v10144, 0.0
          %v10209 = vmax.f32 %v10145, 0.0
          %v10210 = vmax.f32 %v10146, 0.0
          %v10211 = vmax.f32 %v10147, 0.0
          %v10212 = vmax.f32 %v10148, 0.0
          %v10213 = vmax.f32 %v10149, 0.0
          %v10214 = vmax.f32 %v10150, 0.0
          %v10215 = vmax.f32 %v10151, 0.0
          %v10216 = vmax.f32 %v10152, 0.0
          %v10217 = vmax.f32 %v10153, 0.0
          %v10218 = vmax.f32 %v10154, 0.0
          %v10219 = vmax.f32 %v10155, 0.0
          %v10220 = vmax.f32 %v10156, 0.0
          %v10221 = vmax.f32 %v10157, 0.0
          %v10222 = vmax.f32 %v10158, 0.0
          %v10223 = vmax.f32 %v10159, 0.0
          %v10224 = vmax.f32 %v10160, 0.0
          %v10225 = vmax.f32 %v10161, 0.0
          %v10226 = vmax.f32 %v10162, 0.0
          %v10227 = vmax.f32 %v10163, 0.0
          %v10228 = vmax.f32 %v10164, 0.0
          %v10229 = vmax.f32 %v10165, 0.0
          %v10230 = vmax.f32 %v10166, 0.0
          %v10231 = vmax.f32 %v10167, 0.0
          %v10232 = vmax.f32 %v10168, 0.0
          %v10233 = vmax.f32 %v10169, 0.0
          %v10234 = vmax.f32 %v10170, 0.0
          %v10235 = vmax.f32 %v10171, 0.0
          %v10236 = vmax.f32 %v10172, 0.0
          %v10237 = vld [vmem:[#allocation10] sm:$0xff]
          %v10238 = vld [vmem:[#allocation10 + $0x8] sm:$0xff]
          %v10239 = vld [vmem:[#allocation10 + $0x10] sm:$0xff]
          %v10240 = vld [vmem:[#allocation10 + $0x18] sm:$0xff]
          %v10241 = vld [vmem:[#allocation10 + $0x20] sm:$0xff]
          %v10242 = vld [vmem:[#allocation10 + $0x28] sm:$0xff]
          %v10243 = vld [vmem:[#allocation10 + $0x30] sm:$0xff]
          %v10244 = vld [vmem:[#allocation10 + $0x38] sm:$0xff]
          %v10245 = vld [vmem:[#allocation10 + $0x40] sm:$0xff]
          %v10246 = vld [vmem:[#allocation10 + $0x48] sm:$0xff]
          %v10247 = vld [vmem:[#allocation10 + $0x50] sm:$0xff]
          %v10248 = vld [vmem:[#allocation10 + $0x58] sm:$0xff]
          %v10249 = vld [vmem:[#allocation10 + $0x60] sm:$0xff]
          %v10250 = vld [vmem:[#allocation10 + $0x68] sm:$0xff]
          %v10251 = vld [vmem:[#allocation10 + $0x70] sm:$0xff]
          %v10252 = vld [vmem:[#allocation10 + $0x78] sm:$0xff]
          %v10253 = vld [vmem:[#allocation10 + $0x80] sm:$0xff]
          %v10254 = vld [vmem:[#allocation10 + $0x88] sm:$0xff]
          %v10255 = vld [vmem:[#allocation10 + $0x90] sm:$0xff]
          %v10256 = vld [vmem:[#allocation10 + $0x98] sm:$0xff]
          %v10257 = vld [vmem:[#allocation10 + $0xa0] sm:$0xff]
          %v10258 = vld [vmem:[#allocation10 + $0xa8] sm:$0xff]
          %v10259 = vld [vmem:[#allocation10 + $0xb0] sm:$0xff]
          %v10260 = vld [vmem:[#allocation10 + $0xb8] sm:$0xff]
          %v10261 = vld [vmem:[#allocation10 + $0xc0] sm:$0xff]
          %v10262 = vld [vmem:[#allocation10 + $0xc8] sm:$0xff]
          %v10263 = vld [vmem:[#allocation10 + $0xd0] sm:$0xff]
          %v10264 = vld [vmem:[#allocation10 + $0xd8] sm:$0xff]
          %v10265 = vld [vmem:[#allocation10 + $0xe0] sm:$0xff]
          %v10266 = vld [vmem:[#allocation10 + $0xe8] sm:$0xff]
          %v10267 = vld [vmem:[#allocation10 + $0xf0] sm:$0xff]
          %v10268 = vld [vmem:[#allocation10 + $0xf8] sm:$0xff]
          %v10269 = vld [vmem:[#allocation10 + $0x100] sm:$0xff]
          %v10270 = vld [vmem:[#allocation10 + $0x108] sm:$0xff]
          %v10271 = vld [vmem:[#allocation10 + $0x110] sm:$0xff]
          %v10272 = vld [vmem:[#allocation10 + $0x118] sm:$0xff]
          %v10273 = vld [vmem:[#allocation10 + $0x120] sm:$0xff]
          %v10274 = vld [vmem:[#allocation10 + $0x128] sm:$0xff]
          %v10275 = vld [vmem:[#allocation10 + $0x130] sm:$0xff]
          %v10276 = vld [vmem:[#allocation10 + $0x138] sm:$0xff]
          %v10277 = vld [vmem:[#allocation10 + $0x140] sm:$0xff]
          %v10278 = vld [vmem:[#allocation10 + $0x148] sm:$0xff]
          %v10279 = vld [vmem:[#allocation10 + $0x150] sm:$0xff]
          %v10280 = vld [vmem:[#allocation10 + $0x158] sm:$0xff]
          %v10281 = vld [vmem:[#allocation10 + $0x160] sm:$0xff]
          %v10282 = vld [vmem:[#allocation10 + $0x168] sm:$0xff]
          %v10283 = vld [vmem:[#allocation10 + $0x170] sm:$0xff]
          %v10284 = vld [vmem:[#allocation10 + $0x178] sm:$0xff]
          %v10285 = vld [vmem:[#allocation10 + $0x180] sm:$0xff]
          %v10286 = vld [vmem:[#allocation10 + $0x188] sm:$0xff]
          %v10287 = vld [vmem:[#allocation10 + $0x190] sm:$0xff]
          %v10288 = vld [vmem:[#allocation10 + $0x198] sm:$0xff]
          %v10289 = vld [vmem:[#allocation10 + $0x1a0] sm:$0xff]
          %v10290 = vld [vmem:[#allocation10 + $0x1a8] sm:$0xff]
          %v10291 = vld [vmem:[#allocation10 + $0x1b0] sm:$0xff]
          %v10292 = vld [vmem:[#allocation10 + $0x1b8] sm:$0xff]
          %v10293 = vld [vmem:[#allocation10 + $0x1c0] sm:$0xff]
          %v10294 = vld [vmem:[#allocation10 + $0x1c8] sm:$0xff]
          %v10295 = vld [vmem:[#allocation10 + $0x1d0] sm:$0xff]
          %v10296 = vld [vmem:[#allocation10 + $0x1d8] sm:$0xff]
          %v10297 = vld [vmem:[#allocation10 + $0x1e0] sm:$0xff]
          %v10298 = vld [vmem:[#allocation10 + $0x1e8] sm:$0xff]
          %v10299 = vld [vmem:[#allocation10 + $0x1f0] sm:$0xff]
          %v10300 = vld [vmem:[#allocation10 + $0x1f8] sm:$0xff]
          %v10301 = vpack.c.bf16 %v10174, %v10173
          %v10302 = vpack.c.bf16 %v10176, %v10175
          %v10303 = vpack.c.bf16 %v10178, %v10177
          %v10304 = vpack.c.bf16 %v10180, %v10179
          %v10305 = vpack.c.bf16 %v10182, %v10181
          %v10306 = vpack.c.bf16 %v10184, %v10183
          %v10307 = vpack.c.bf16 %v10186, %v10185
          %v10308 = vpack.c.bf16 %v10188, %v10187
          %v10309 = vpack.c.bf16 %v10190, %v10189
          %v10310 = vpack.c.bf16 %v10192, %v10191
          %v10311 = vpack.c.bf16 %v10194, %v10193
          %v10312 = vpack.c.bf16 %v10196, %v10195
          %v10313 = vpack.c.bf16 %v10198, %v10197
          %v10314 = vpack.c.bf16 %v10200, %v10199
          %v10315 = vpack.c.bf16 %v10202, %v10201
          %v10316 = vpack.c.bf16 %v10204, %v10203
          %v10317 = vpack.c.bf16 %v10206, %v10205
          %v10318 = vpack.c.bf16 %v10208, %v10207
          %v10319 = vpack.c.bf16 %v10210, %v10209
          %v10320 = vpack.c.bf16 %v10212, %v10211
          %v10321 = vpack.c.bf16 %v10214, %v10213
          %v10322 = vpack.c.bf16 %v10216, %v10215
          %v10323 = vpack.c.bf16 %v10218, %v10217
          %v10324 = vpack.c.bf16 %v10220, %v10219
          %v10325 = vpack.c.bf16 %v10222, %v10221
          %v10326 = vpack.c.bf16 %v10224, %v10223
          %v10327 = vpack.c.bf16 %v10226, %v10225
          %v10328 = vpack.c.bf16 %v10228, %v10227
          %v10329 = vpack.c.bf16 %v10230, %v10229
          %v10330 = vpack.c.bf16 %v10232, %v10231
          %v10331 = vpack.c.bf16 %v10234, %v10233
          %v10332 = vpack.c.bf16 %v10236, %v10235
          %v10333 = vld [vmem:[%s8] sm:$0xff]
          %v10334 = vld [vmem:[%s8 + $0x8] sm:$0xff]
          %v10335 = vld [vmem:[%s8 + $0x10] sm:$0xff]
          %v10336 = vld [vmem:[%s8 + $0x18] sm:$0xff]
          %v10337 = vld [vmem:[%s8 + $0x20] sm:$0xff]
          %v10338 = vld [vmem:[%s8 + $0x28] sm:$0xff]
          %v10339 = vld [vmem:[%s8 + $0x30] sm:$0xff]
          %v10340 = vld [vmem:[%s8 + $0x38] sm:$0xff]
          %v10341 = vld [vmem:[%s8 + $0x40] sm:$0xff]
          %v10342 = vld [vmem:[%s8 + $0x48] sm:$0xff]
          %v10343 = vld [vmem:[%s8 + $0x50] sm:$0xff]
          %v10344 = vld [vmem:[%s8 + $0x58] sm:$0xff]
          %v10345 = vld [vmem:[%s8 + $0x60] sm:$0xff]
          %v10346 = vld [vmem:[%s8 + $0x68] sm:$0xff]
          %v10347 = vld [vmem:[%s8 + $0x70] sm:$0xff]
          %v10348 = vld [vmem:[%s8 + $0x78] sm:$0xff]
          %v10349 = vld [vmem:[%s8 + $0x80] sm:$0xff]
          %v10350 = vld [vmem:[%s8 + $0x88] sm:$0xff]
          %v10351 = vld [vmem:[%s8 + $0x90] sm:$0xff]
          %v10352 = vld [vmem:[%s8 + $0x98] sm:$0xff]
          %v10353 = vld [vmem:[%s8 + $0xa0] sm:$0xff]
          %v10354 = vld [vmem:[%s8 + $0xa8] sm:$0xff]
          %v10355 = vld [vmem:[%s8 + $0xb0] sm:$0xff]
          %v10356 = vld [vmem:[%s8 + $0xb8] sm:$0xff]
          %v10357 = vld [vmem:[%s8 + $0xc0] sm:$0xff]
          %v10358 = vld [vmem:[%s8 + $0xc8] sm:$0xff]
          %v10359 = vld [vmem:[%s8 + $0xd0] sm:$0xff]
          %v10360 = vld [vmem:[%s8 + $0xd8] sm:$0xff]
          %v10361 = vld [vmem:[%s8 + $0xe0] sm:$0xff]
          %v10362 = vld [vmem:[%s8 + $0xe8] sm:$0xff]
          %v10363 = vld [vmem:[%s8 + $0xf0] sm:$0xff]
          %v10364 = vld [vmem:[%s8 + $0xf8] sm:$0xff]
          %10366 = vset.pattern.permute.xlu0 0
          %10367 = vperm.xlu0 %10366, %v10333
          %v10368 = vpop.permute.xlu0 %10367
          %10371 = vset.pattern.permute.xlu0 0
          %10372 = vperm.xlu0 %10371, %v10334
          %v10373 = vpop.permute.xlu0 %10372
          %10376 = vset.pattern.permute.xlu0 0
          %10377 = vperm.xlu0 %10376, %v10335
          %v10378 = vpop.permute.xlu0 %10377
          %10381 = vset.pattern.permute.xlu0 0
          %10382 = vperm.xlu0 %10381, %v10336
          %v10383 = vpop.permute.xlu0 %10382
          %10386 = vset.pattern.permute.xlu0 0
          %10387 = vperm.xlu0 %10386, %v10337
          %v10388 = vpop.permute.xlu0 %10387
          %10391 = vset.pattern.permute.xlu0 0
          %10392 = vperm.xlu0 %10391, %v10338
          %v10393 = vpop.permute.xlu0 %10392
          %10396 = vset.pattern.permute.xlu0 0
          %10397 = vperm.xlu0 %10396, %v10339
          %v10398 = vpop.permute.xlu0 %10397
          %10401 = vset.pattern.permute.xlu0 0
          %10402 = vperm.xlu0 %10401, %v10340
          %v10403 = vpop.permute.xlu0 %10402
          %10406 = vset.pattern.permute.xlu0 0
          %10407 = vperm.xlu0 %10406, %v10341
          %v10408 = vpop.permute.xlu0 %10407
          %10411 = vset.pattern.permute.xlu0 0
          %10412 = vperm.xlu0 %10411, %v10342
          %v10413 = vpop.permute.xlu0 %10412
          %10416 = vset.pattern.permute.xlu0 0
          %10417 = vperm.xlu0 %10416, %v10343
          %v10418 = vpop.permute.xlu0 %10417
          %10421 = vset.pattern.permute.xlu0 0
          %10422 = vperm.xlu0 %10421, %v10344
          %v10423 = vpop.permute.xlu0 %10422
          %10426 = vset.pattern.permute.xlu0 0
          %10427 = vperm.xlu0 %10426, %v10345
          %v10428 = vpop.permute.xlu0 %10427
          %10431 = vset.pattern.permute.xlu0 0
          %10432 = vperm.xlu0 %10431, %v10346
          %v10433 = vpop.permute.xlu0 %10432
          %10436 = vset.pattern.permute.xlu0 0
          %10437 = vperm.xlu0 %10436, %v10347
          %v10438 = vpop.permute.xlu0 %10437
          %10441 = vset.pattern.permute.xlu0 0
          %10442 = vperm.xlu0 %10441, %v10348
          %v10443 = vpop.permute.xlu0 %10442
          %10446 = vset.pattern.permute.xlu0 0
          %10447 = vperm.xlu0 %10446, %v10349
          %v10448 = vpop.permute.xlu0 %10447
          %10451 = vset.pattern.permute.xlu0 0
          %10452 = vperm.xlu0 %10451, %v10350
          %v10453 = vpop.permute.xlu0 %10452
          %10456 = vset.pattern.permute.xlu0 0
          %10457 = vperm.xlu0 %10456, %v10351
          %v10458 = vpop.permute.xlu0 %10457
          %10461 = vset.pattern.permute.xlu0 0
          %10462 = vperm.xlu0 %10461, %v10352
          %v10463 = vpop.permute.xlu0 %10462
          %10466 = vset.pattern.permute.xlu0 0
          %10467 = vperm.xlu0 %10466, %v10353
          %v10468 = vpop.permute.xlu0 %10467
          %10471 = vset.pattern.permute.xlu0 0
          %10472 = vperm.xlu0 %10471, %v10354
          %v10473 = vpop.permute.xlu0 %10472
          %10476 = vset.pattern.permute.xlu0 0
          %10477 = vperm.xlu0 %10476, %v10355
          %v10478 = vpop.permute.xlu0 %10477
          %10481 = vset.pattern.permute.xlu0 0
          %10482 = vperm.xlu0 %10481, %v10356
          %v10483 = vpop.permute.xlu0 %10482
          %10486 = vset.pattern.permute.xlu0 0
          %10487 = vperm.xlu0 %10486, %v10357
          %v10488 = vpop.permute.xlu0 %10487
          %10491 = vset.pattern.permute.xlu0 0
          %10492 = vperm.xlu0 %10491, %v10358
          %v10493 = vpop.permute.xlu0 %10492
          %10496 = vset.pattern.permute.xlu0 0
          %10497 = vperm.xlu0 %10496, %v10359
          %v10498 = vpop.permute.xlu0 %10497
          %10501 = vset.pattern.permute.xlu0 0
          %10502 = vperm.xlu0 %10501, %v10360
          %v10503 = vpop.permute.xlu0 %10502
          %10506 = vset.pattern.permute.xlu0 0
          %10507 = vperm.xlu0 %10506, %v10361
          %v10508 = vpop.permute.xlu0 %10507
          %10511 = vset.pattern.permute.xlu0 0
          %10512 = vperm.xlu0 %10511, %v10362
          %v10513 = vpop.permute.xlu0 %10512
          %10516 = vset.pattern.permute.xlu0 0
          %10517 = vperm.xlu0 %10516, %v10363
          %v10518 = vpop.permute.xlu0 %10517
          %10521 = vset.pattern.permute.xlu0 0
          %10522 = vperm.xlu0 %10521, %v10364
          %v10523 = vpop.permute.xlu0 %10522
          %v10589 = vunpack.c.l.b16 %v10237
          %v10590 = vunpack.c.h.b16 %v10237
          %v10591 = vunpack.c.l.b16 %v10238
          %v10592 = vunpack.c.h.b16 %v10238
          %v10593 = vunpack.c.l.b16 %v10239
          %v10594 = vunpack.c.h.b16 %v10239
          %v10595 = vunpack.c.l.b16 %v10240
          %v10596 = vunpack.c.h.b16 %v10240
          %v10597 = vunpack.c.l.b16 %v10241
          %v10598 = vunpack.c.h.b16 %v10241
          %v10599 = vunpack.c.l.b16 %v10242
          %v10600 = vunpack.c.h.b16 %v10242
          %v10601 = vunpack.c.l.b16 %v10243
          %v10602 = vunpack.c.h.b16 %v10243
          %v10603 = vunpack.c.l.b16 %v10244
          %v10604 = vunpack.c.h.b16 %v10244
          %v10605 = vunpack.c.l.b16 %v10245
          %v10606 = vunpack.c.h.b16 %v10245
          %v10607 = vunpack.c.l.b16 %v10246
          %v10608 = vunpack.c.h.b16 %v10246
          %v10609 = vunpack.c.l.b16 %v10247
          %v10610 = vunpack.c.h.b16 %v10247
          %v10611 = vunpack.c.l.b16 %v10248
          %v10612 = vunpack.c.h.b16 %v10248
          %v10613 = vunpack.c.l.b16 %v10249
          %v10614 = vunpack.c.h.b16 %v10249
          %v10615 = vunpack.c.l.b16 %v10250
          %v10616 = vunpack.c.h.b16 %v10250
          %v10617 = vunpack.c.l.b16 %v10251
          %v10618 = vunpack.c.h.b16 %v10251
          %v10619 = vunpack.c.l.b16 %v10252
          %v10620 = vunpack.c.h.b16 %v10252
          %v10621 = vunpack.c.l.b16 %v10253
          %v10622 = vunpack.c.h.b16 %v10253
          %v10623 = vunpack.c.l.b16 %v10254
          %v10624 = vunpack.c.h.b16 %v10254
          %v10625 = vunpack.c.l.b16 %v10255
          %v10626 = vunpack.c.h.b16 %v10255
          %v10627 = vunpack.c.l.b16 %v10256
          %v10628 = vunpack.c.h.b16 %v10256
          %v10629 = vunpack.c.l.b16 %v10257
          %v10630 = vunpack.c.h.b16 %v10257
          %v10631 = vunpack.c.l.b16 %v10258
          %v10632 = vunpack.c.h.b16 %v10258
          %v10633 = vunpack.c.l.b16 %v10259
          %v10634 = vunpack.c.h.b16 %v10259
          %v10635 = vunpack.c.l.b16 %v10260
          %v10636 = vunpack.c.h.b16 %v10260
          %v10637 = vunpack.c.l.b16 %v10261
          %v10638 = vunpack.c.h.b16 %v10261
          %v10639 = vunpack.c.l.b16 %v10262
          %v10640 = vunpack.c.h.b16 %v10262
          %v10641 = vunpack.c.l.b16 %v10263
          %v10642 = vunpack.c.h.b16 %v10263
          %v10643 = vunpack.c.l.b16 %v10264
          %v10644 = vunpack.c.h.b16 %v10264
          %v10645 = vunpack.c.l.b16 %v10265
          %v10646 = vunpack.c.h.b16 %v10265
          %v10647 = vunpack.c.l.b16 %v10266
          %v10648 = vunpack.c.h.b16 %v10266
          %v10649 = vunpack.c.l.b16 %v10267
          %v10650 = vunpack.c.h.b16 %v10267
          %v10651 = vunpack.c.l.b16 %v10268
          %v10652 = vunpack.c.h.b16 %v10268
          %v10653 = vunpack.c.l.b16 %v10269
          %v10654 = vunpack.c.h.b16 %v10269
          %v10655 = vunpack.c.l.b16 %v10270
          %v10656 = vunpack.c.h.b16 %v10270
          %v10657 = vunpack.c.l.b16 %v10271
          %v10658 = vunpack.c.h.b16 %v10271
          %v10659 = vunpack.c.l.b16 %v10272
          %v10660 = vunpack.c.h.b16 %v10272
          %v10661 = vunpack.c.l.b16 %v10273
          %v10662 = vunpack.c.h.b16 %v10273
          %v10663 = vunpack.c.l.b16 %v10274
          %v10664 = vunpack.c.h.b16 %v10274
          %v10665 = vunpack.c.l.b16 %v10275
          %v10666 = vunpack.c.h.b16 %v10275
          %v10667 = vunpack.c.l.b16 %v10276
          %v10668 = vunpack.c.h.b16 %v10276
          %v10669 = vunpack.c.l.b16 %v10277
          %v10670 = vunpack.c.h.b16 %v10277
          %v10671 = vunpack.c.l.b16 %v10278
          %v10672 = vunpack.c.h.b16 %v10278
          %v10673 = vunpack.c.l.b16 %v10279
          %v10674 = vunpack.c.h.b16 %v10279
          %v10675 = vunpack.c.l.b16 %v10280
          %v10676 = vunpack.c.h.b16 %v10280
          %v10677 = vunpack.c.l.b16 %v10281
          %v10678 = vunpack.c.h.b16 %v10281
          %v10679 = vunpack.c.l.b16 %v10282
          %v10680 = vunpack.c.h.b16 %v10282
          %v10681 = vunpack.c.l.b16 %v10283
          %v10682 = vunpack.c.h.b16 %v10283
          %v10683 = vunpack.c.l.b16 %v10284
          %v10684 = vunpack.c.h.b16 %v10284
          %v10685 = vunpack.c.l.b16 %v10285
          %v10686 = vunpack.c.h.b16 %v10285
          %v10687 = vunpack.c.l.b16 %v10286
          %v10688 = vunpack.c.h.b16 %v10286
          %v10689 = vunpack.c.l.b16 %v10287
          %v10690 = vunpack.c.h.b16 %v10287
          %v10691 = vunpack.c.l.b16 %v10288
          %v10692 = vunpack.c.h.b16 %v10288
          %v10693 = vunpack.c.l.b16 %v10289
          %v10694 = vunpack.c.h.b16 %v10289
          %v10695 = vunpack.c.l.b16 %v10290
          %v10696 = vunpack.c.h.b16 %v10290
          %v10697 = vunpack.c.l.b16 %v10291
          %v10698 = vunpack.c.h.b16 %v10291
          %v10699 = vunpack.c.l.b16 %v10292
          %v10700 = vunpack.c.h.b16 %v10292
          %v10701 = vunpack.c.l.b16 %v10293
          %v10702 = vunpack.c.h.b16 %v10293
          %v10703 = vunpack.c.l.b16 %v10294
          %v10704 = vunpack.c.h.b16 %v10294
          %v10705 = vunpack.c.l.b16 %v10295
          %v10706 = vunpack.c.h.b16 %v10295
          %v10707 = vunpack.c.l.b16 %v10296
          %v10708 = vunpack.c.h.b16 %v10296
          %v10709 = vunpack.c.l.b16 %v10297
          %v10710 = vunpack.c.h.b16 %v10297
          %v10711 = vunpack.c.l.b16 %v10298
          %v10712 = vunpack.c.h.b16 %v10298
          %v10713 = vunpack.c.l.b16 %v10299
          %v10714 = vunpack.c.h.b16 %v10299
          %v10715 = vunpack.c.l.b16 %v10300
          %v10716 = vunpack.c.h.b16 %v10300
          %v10717 = vpack.c.b16 %v10593, %v10589
          %v10718 = vpack.c.b16 %v10594, %v10590
          %v10719 = vpack.c.b16 %v10595, %v10591
          %v10720 = vpack.c.b16 %v10596, %v10592
          %v10721 = vpack.c.b16 %v10601, %v10597
          %v10722 = vpack.c.b16 %v10602, %v10598
          %v10723 = vpack.c.b16 %v10603, %v10599
          %v10724 = vpack.c.b16 %v10604, %v10600
          %v10725 = vpack.c.b16 %v10609, %v10605
          %v10726 = vpack.c.b16 %v10610, %v10606
          %v10727 = vpack.c.b16 %v10611, %v10607
          %v10728 = vpack.c.b16 %v10612, %v10608
          %v10729 = vpack.c.b16 %v10617, %v10613
          %v10730 = vpack.c.b16 %v10618, %v10614
          %v10731 = vpack.c.b16 %v10619, %v10615
          %v10732 = vpack.c.b16 %v10620, %v10616
          %v10733 = vpack.c.b16 %v10625, %v10621
          %v10734 = vpack.c.b16 %v10626, %v10622
          %v10735 = vpack.c.b16 %v10627, %v10623
          %v10736 = vpack.c.b16 %v10628, %v10624
          %v10737 = vpack.c.b16 %v10633, %v10629
          %v10738 = vpack.c.b16 %v10634, %v10630
          %v10739 = vpack.c.b16 %v10635, %v10631
          %v10740 = vpack.c.b16 %v10636, %v10632
          %v10741 = vpack.c.b16 %v10641, %v10637
          %v10742 = vpack.c.b16 %v10642, %v10638
          %v10743 = vpack.c.b16 %v10643, %v10639
          %v10744 = vpack.c.b16 %v10644, %v10640
          %v10745 = vpack.c.b16 %v10649, %v10645
          %v10746 = vpack.c.b16 %v10650, %v10646
          %v10747 = vpack.c.b16 %v10651, %v10647
          %v10748 = vpack.c.b16 %v10652, %v10648
          %v10749 = vpack.c.b16 %v10657, %v10653
          %v10750 = vpack.c.b16 %v10658, %v10654
          %v10751 = vpack.c.b16 %v10659, %v10655
          %v10752 = vpack.c.b16 %v10660, %v10656
          %v10753 = vpack.c.b16 %v10665, %v10661
          %v10754 = vpack.c.b16 %v10666, %v10662
          %v10755 = vpack.c.b16 %v10667, %v10663
          %v10756 = vpack.c.b16 %v10668, %v10664
          %v10757 = vpack.c.b16 %v10673, %v10669
          %v10758 = vpack.c.b16 %v10674, %v10670
          %v10759 = vpack.c.b16 %v10675, %v10671
          %v10760 = vpack.c.b16 %v10676, %v10672
          %v10761 = vpack.c.b16 %v10681, %v10677
          %v10762 = vpack.c.b16 %v10682, %v10678
          %v10763 = vpack.c.b16 %v10683, %v10679
          %v10764 = vpack.c.b16 %v10684, %v10680
          %v10765 = vpack.c.b16 %v10689, %v10685
          %v10766 = vpack.c.b16 %v10690, %v10686
          %v10767 = vpack.c.b16 %v10691, %v10687
          %v10768 = vpack.c.b16 %v10692, %v10688
          %v10769 = vpack.c.b16 %v10697, %v10693
          %v10770 = vpack.c.b16 %v10698, %v10694
          %v10771 = vpack.c.b16 %v10699, %v10695
          %v10772 = vpack.c.b16 %v10700, %v10696
          %v10773 = vpack.c.b16 %v10705, %v10701
          %v10774 = vpack.c.b16 %v10706, %v10702
          %v10775 = vpack.c.b16 %v10707, %v10703
          %v10776 = vpack.c.b16 %v10708, %v10704
          %v10777 = vpack.c.b16 %v10713, %v10709
          %v10778 = vpack.c.b16 %v10714, %v10710
          %v10779 = vpack.c.b16 %v10715, %v10711
          %v10780 = vpack.c.b16 %v10716, %v10712
          %10845 = vmatprep.subr.bf16.mxu0 0
          %10846 = vmatpush1.bf16.msra.mxu0 %v10301
          %10847 = vmatprep.subr.bf16.mxu0 0
          %10848 = vmatpush1.bf16.msra.mxu0 %v10302
          %10849 = vmatprep.subr.bf16.mxu0 0
          %10850 = vmatpush1.bf16.msra.mxu0 %v10303
          %10851 = vmatprep.subr.bf16.mxu0 0
          %10852 = vmatpush1.bf16.msra.mxu0 %v10304
          %10853 = vmatprep.subr.bf16.mxu0 0
          %10854 = vmatpush1.bf16.msra.mxu0 %v10305
          %10855 = vmatprep.subr.bf16.mxu0 0
          %10856 = vmatpush1.bf16.msra.mxu0 %v10306
          %10857 = vmatprep.subr.bf16.mxu0 0
          %10858 = vmatpush1.bf16.msra.mxu0 %v10307
          %10859 = vmatprep.subr.bf16.mxu0 0
          %10860 = vmatpush1.bf16.msra.mxu0 %v10308
          %10861 = vmatprep.subr.bf16.mxu0 0
          %10862 = vmatpush1.bf16.msra.mxu0 %v10309
          %10863 = vmatprep.subr.bf16.mxu0 0
          %10864 = vmatpush1.bf16.msra.mxu0 %v10310
          %10865 = vmatprep.subr.bf16.mxu0 0
          %10866 = vmatpush1.bf16.msra.mxu0 %v10311
          %10867 = vmatprep.subr.bf16.mxu0 0
          %10868 = vmatpush1.bf16.msra.mxu0 %v10312
          %10869 = vmatprep.subr.bf16.mxu0 0
          %10870 = vmatpush1.bf16.msra.mxu0 %v10313
          %10871 = vmatprep.subr.bf16.mxu0 0
          %10872 = vmatpush1.bf16.msra.mxu0 %v10314
          %10873 = vmatprep.subr.bf16.mxu0 0
          %10874 = vmatpush1.bf16.msra.mxu0 %v10315
          %10875 = vmatprep.subr.bf16.mxu0 0
          %10876 = vmatpush1.bf16.msra.mxu0 %v10316
          %10877 = vmatprep.mubr.bf16.mxu0 %v10718
          %10878 = vmatmul.mubr.bf16.gmra.mrb[0].mxu0 %v10717
          %v10879 = vpop.f32.mrb[0].mxu0
          %v10880 = vadd.f32 %v10368, %v10879
          %v10881 = vpop.f32.mrb[0].mxu0
          %v10882 = vpop.f32.mrb[0].mxu0
          %v10883 = vadd.f32 %v10373, %v10882
          %v10884 = vpop.f32.mrb[0].mxu0
          %10885 = vmatprep.mubr.bf16.mxu0 %v10722
          %10886 = vmatmul.mubr.bf16.gmra.mrb[0].mxu0 %v10721
          %v10887 = vpop.f32.mrb[0].mxu0
          %v10888 = vadd.f32 %v10378, %v10887
          %v10889 = vpop.f32.mrb[0].mxu0
          %v10890 = vpop.f32.mrb[0].mxu0
          %v10891 = vadd.f32 %v10383, %v10890
          %v10892 = vpop.f32.mrb[0].mxu0
          %10893 = vmatprep.mubr.bf16.mxu0 %v10726
          %10894 = vmatmul.mubr.bf16.gmra.mrb[0].mxu0 %v10725
          %v10895 = vpop.f32.mrb[0].mxu0
          %v10896 = vadd.f32 %v10388, %v10895
          %v10897 = vpop.f32.mrb[0].mxu0
          %v10898 = vpop.f32.mrb[0].mxu0
          %v10899 = vadd.f32 %v10393, %v10898
          %v10900 = vpop.f32.mrb[0].mxu0
          %10901 = vmatprep.mubr.bf16.mxu0 %v10730
          %10902 = vmatmul.mubr.bf16.gmra.mrb[0].mxu0 %v10729
          %v10903 = vpop.f32.mrb[0].mxu0
          %v10904 = vadd.f32 %v10398, %v10903
          %v10905 = vpop.f32.mrb[0].mxu0
          %v10906 = vpop.f32.mrb[0].mxu0
          %v10907 = vadd.f32 %v10403, %v10906
          %v10908 = vpop.f32.mrb[0].mxu0
          %10909 = vmatprep.mubr.bf16.mxu0 %v10734
          %10910 = vmatmul.mubr.bf16.gmra.mrb[0].mxu0 %v10733
          %v10911 = vpop.f32.mrb[0].mxu0
          %v10912 = vadd.f32 %v10408, %v10911
          %v10913 = vpop.f32.mrb[0].mxu0
          %v10914 = vpop.f32.mrb[0].mxu0
          %v10915 = vadd.f32 %v10413, %v10914
          %v10916 = vpop.f32.mrb[0].mxu0
          %10917 = vmatprep.mubr.bf16.mxu0 %v10738
          %10918 = vmatmul.mubr.bf16.gmra.mrb[0].mxu0 %v10737
          %v10919 = vpop.f32.mrb[0].mxu0
          %v10920 = vadd.f32 %v10418, %v10919
          %v10921 = vpop.f32.mrb[0].mxu0
          %v10922 = vpop.f32.mrb[0].mxu0
          %v10923 = vadd.f32 %v10423, %v10922
          %v10924 = vpop.f32.mrb[0].mxu0
          %10925 = vmatprep.mubr.bf16.mxu0 %v10742
          %10926 = vmatmul.mubr.bf16.gmra.mrb[0].mxu0 %v10741
          %v10927 = vpop.f32.mrb[0].mxu0
          %v10928 = vadd.f32 %v10428, %v10927
          %v10929 = vpop.f32.mrb[0].mxu0
          %v10930 = vpop.f32.mrb[0].mxu0
          %v10931 = vadd.f32 %v10433, %v10930
          %v10932 = vpop.f32.mrb[0].mxu0
          %10933 = vmatprep.mubr.bf16.mxu0 %v10746
          %10934 = vmatmul.mubr.bf16.gmra.mrb[0].mxu0 %v10745
          %v10935 = vpop.f32.mrb[0].mxu0
          %v10936 = vadd.f32 %v10438, %v10935
          %v10937 = vpop.f32.mrb[0].mxu0
          %v10938 = vpop.f32.mrb[0].mxu0
          %v10939 = vadd.f32 %v10443, %v10938
          %v10940 = vpop.f32.mrb[0].mxu0
          %10941 = vmatprep.mubr.bf16.mxu0 %v10750
          %10942 = vmatmul.mubr.bf16.gmra.mrb[0].mxu0 %v10749
          %v10943 = vpop.f32.mrb[0].mxu0
          %v10944 = vadd.f32 %v10448, %v10943
          %v10945 = vpop.f32.mrb[0].mxu0
          %v10946 = vpop.f32.mrb[0].mxu0
          %v10947 = vadd.f32 %v10453, %v10946
          %v10948 = vpop.f32.mrb[0].mxu0
          %10949 = vmatprep.mubr.bf16.mxu0 %v10754
          %10950 = vmatmul.mubr.bf16.gmra.mrb[0].mxu0 %v10753
          %v10951 = vpop.f32.mrb[0].mxu0
          %v10952 = vadd.f32 %v10458, %v10951
          %v10953 = vpop.f32.mrb[0].mxu0
          %v10954 = vpop.f32.mrb[0].mxu0
          %v10955 = vadd.f32 %v10463, %v10954
          %v10956 = vpop.f32.mrb[0].mxu0
          %10957 = vmatprep.mubr.bf16.mxu0 %v10758
          %10958 = vmatmul.mubr.bf16.gmra.mrb[0].mxu0 %v10757
          %v10959 = vpop.f32.mrb[0].mxu0
          %v10960 = vadd.f32 %v10468, %v10959
          %v10961 = vpop.f32.mrb[0].mxu0
          %v10962 = vpop.f32.mrb[0].mxu0
          %v10963 = vadd.f32 %v10473, %v10962
          %v10964 = vpop.f32.mrb[0].mxu0
          %10965 = vmatprep.mubr.bf16.mxu0 %v10762
          %10966 = vmatmul.mubr.bf16.gmra.mrb[0].mxu0 %v10761
          %v10967 = vpop.f32.mrb[0].mxu0
          %v10968 = vadd.f32 %v10478, %v10967
          %v10969 = vpop.f32.mrb[0].mxu0
          %v10970 = vpop.f32.mrb[0].mxu0
          %v10971 = vadd.f32 %v10483, %v10970
          %v10972 = vpop.f32.mrb[0].mxu0
          %10973 = vmatprep.mubr.bf16.mxu0 %v10766
          %10974 = vmatmul.mubr.bf16.gmra.mrb[0].mxu0 %v10765
          %v10975 = vpop.f32.mrb[0].mxu0
          %v10976 = vadd.f32 %v10488, %v10975
          %v10977 = vpop.f32.mrb[0].mxu0
          %v10978 = vpop.f32.mrb[0].mxu0
          %v10979 = vadd.f32 %v10493, %v10978
          %v10980 = vpop.f32.mrb[0].mxu0
          %10981 = vmatprep.mubr.bf16.mxu0 %v10770
          %10982 = vmatmul.mubr.bf16.gmra.mrb[0].mxu0 %v10769
          %v10983 = vpop.f32.mrb[0].mxu0
          %v10984 = vadd.f32 %v10498, %v10983
          %v10985 = vpop.f32.mrb[0].mxu0
          %v10986 = vpop.f32.mrb[0].mxu0
          %v10987 = vadd.f32 %v10503, %v10986
          %v10988 = vpop.f32.mrb[0].mxu0
          %10989 = vmatprep.mubr.bf16.mxu0 %v10774
          %10990 = vmatmul.mubr.bf16.gmra.mrb[0].mxu0 %v10773
          %v10991 = vpop.f32.mrb[0].mxu0
          %v10992 = vadd.f32 %v10508, %v10991
          %v10993 = vpop.f32.mrb[0].mxu0
          %v10994 = vpop.f32.mrb[0].mxu0
          %v10995 = vadd.f32 %v10513, %v10994
          %v10996 = vpop.f32.mrb[0].mxu0
          %10997 = vmatprep.mubr.bf16.mxu0 %v10778
          %10998 = vmatmul.mubr.bf16.gmra.mrb[0].mxu0 %v10777
          %v10999 = vpop.f32.mrb[0].mxu0
          %v11000 = vadd.f32 %v10518, %v10999
          %v11001 = vpop.f32.mrb[0].mxu0
          %v11002 = vpop.f32.mrb[0].mxu0
          %v11003 = vadd.f32 %v10523, %v11002
          %v11004 = vpop.f32.mrb[0].mxu0
          %11005 = vdwg.mxu0
          %11006 = vmatprep.subr.bf16.mxu0 0
          %11007 = vmatpush1.bf16.msra.mxu0 %v10317
          %11008 = vmatprep.subr.bf16.mxu0 0
          %11009 = vmatpush1.bf16.msra.mxu0 %v10318
          %11010 = vmatprep.subr.bf16.mxu0 0
          %11011 = vmatpush1.bf16.msra.mxu0 %v10319
          %11012 = vmatprep.subr.bf16.mxu0 0
          %11013 = vmatpush1.bf16.msra.mxu0 %v10320
          %11014 = vmatprep.subr.bf16.mxu0 0
          %11015 = vmatpush1.bf16.msra.mxu0 %v10321
          %11016 = vmatprep.subr.bf16.mxu0 0
          %11017 = vmatpush1.bf16.msra.mxu0 %v10322
          %11018 = vmatprep.subr.bf16.mxu0 0
          %11019 = vmatpush1.bf16.msra.mxu0 %v10323
          %11020 = vmatprep.subr.bf16.mxu0 0
          %11021 = vmatpush1.bf16.msra.mxu0 %v10324
          %11022 = vmatprep.subr.bf16.mxu0 0
          %11023 = vmatpush1.bf16.msra.mxu0 %v10325
          %11024 = vmatprep.subr.bf16.mxu0 0
          %11025 = vmatpush1.bf16.msra.mxu0 %v10326
          %11026 = vmatprep.subr.bf16.mxu0 0
          %11027 = vmatpush1.bf16.msra.mxu0 %v10327
          %11028 = vmatprep.subr.bf16.mxu0 0
          %11029 = vmatpush1.bf16.msra.mxu0 %v10328
          %11030 = vmatprep.subr.bf16.mxu0 0
          %11031 = vmatpush1.bf16.msra.mxu0 %v10329
          %11032 = vmatprep.subr.bf16.mxu0 0
          %11033 = vmatpush1.bf16.msra.mxu0 %v10330
          %11034 = vmatprep.subr.bf16.mxu0 0
          %11035 = vmatpush1.bf16.msra.mxu0 %v10331
          %11036 = vmatprep.subr.bf16.mxu0 0
          %11037 = vmatpush1.bf16.msra.mxu0 %v10332
          %11038 = vmatprep.mubr.bf16.mxu0 %v10720
          %11039 = vmatmul.mubr.bf16.gmra.mrb[0].mxu0 %v10719
          %v11040 = vpop.f32.mrb[0].mxu0
          %v11041 = vadd.f32 %v10880, %v11040
          %v11042 = vpop.f32.mrb[0].mxu0
          %v11043 = vpop.f32.mrb[0].mxu0
          %v11044 = vadd.f32 %v10883, %v11043
          %v11045 = vpop.f32.mrb[0].mxu0
          %11046 = vmatprep.mubr.bf16.mxu0 %v10724
          %11047 = vmatmul.mubr.bf16.gmra.mrb[0].mxu0 %v10723
          %v11048 = vpop.f32.mrb[0].mxu0
          %v11049 = vadd.f32 %v10888, %v11048
          %v11050 = vpop.f32.mrb[0].mxu0
          %v11051 = vpop.f32.mrb[0].mxu0
          %v11052 = vadd.f32 %v10891, %v11051
          %v11053 = vpop.f32.mrb[0].mxu0
          %11054 = vmatprep.mubr.bf16.mxu0 %v10728
          %11055 = vmatmul.mubr.bf16.gmra.mrb[0].mxu0 %v10727
          %v11056 = vpop.f32.mrb[0].mxu0
          %v11057 = vadd.f32 %v10896, %v11056
          %v11058 = vpop.f32.mrb[0].mxu0
          %v11059 = vpop.f32.mrb[0].mxu0
          %v11060 = vadd.f32 %v10899, %v11059
          %v11061 = vpop.f32.mrb[0].mxu0
          %11062 = vmatprep.mubr.bf16.mxu0 %v10732
          %11063 = vmatmul.mubr.bf16.gmra.mrb[0].mxu0 %v10731
          %v11064 = vpop.f32.mrb[0].mxu0
          %v11065 = vadd.f32 %v10904, %v11064
          %v11066 = vpop.f32.mrb[0].mxu0
          %v11067 = vpop.f32.mrb[0].mxu0
          %v11068 = vadd.f32 %v10907, %v11067
          %v11069 = vpop.f32.mrb[0].mxu0
          %11070 = vmatprep.mubr.bf16.mxu0 %v10736
          %11071 = vmatmul.mubr.bf16.gmra.mrb[0].mxu0 %v10735
          %v11072 = vpop.f32.mrb[0].mxu0
          %v11073 = vadd.f32 %v10912, %v11072
          %v11074 = vpop.f32.mrb[0].mxu0
          %v11075 = vpop.f32.mrb[0].mxu0
          %v11076 = vadd.f32 %v10915, %v11075
          %v11077 = vpop.f32.mrb[0].mxu0
          %11078 = vmatprep.mubr.bf16.mxu0 %v10740
          %11079 = vmatmul.mubr.bf16.gmra.mrb[0].mxu0 %v10739
          %v11080 = vpop.f32.mrb[0].mxu0
          %v11081 = vadd.f32 %v10920, %v11080
          %v11082 = vpop.f32.mrb[0].mxu0
          %v11083 = vpop.f32.mrb[0].mxu0
          %v11084 = vadd.f32 %v10923, %v11083
          %v11085 = vpop.f32.mrb[0].mxu0
          %11086 = vmatprep.mubr.bf16.mxu0 %v10744
          %11087 = vmatmul.mubr.bf16.gmra.mrb[0].mxu0 %v10743
          %v11088 = vpop.f32.mrb[0].mxu0
          %v11089 = vadd.f32 %v10928, %v11088
          %v11090 = vpop.f32.mrb[0].mxu0
          %v11091 = vpop.f32.mrb[0].mxu0
          %v11092 = vadd.f32 %v10931, %v11091
          %v11093 = vpop.f32.mrb[0].mxu0
          %11094 = vmatprep.mubr.bf16.mxu0 %v10748
          %11095 = vmatmul.mubr.bf16.gmra.mrb[0].mxu0 %v10747
          %v11096 = vpop.f32.mrb[0].mxu0
          %v11097 = vadd.f32 %v10936, %v11096
          %v11098 = vpop.f32.mrb[0].mxu0
          %v11099 = vpop.f32.mrb[0].mxu0
          %v11100 = vadd.f32 %v10939, %v11099
          %v11101 = vpop.f32.mrb[0].mxu0
          %11102 = vmatprep.mubr.bf16.mxu0 %v10752
          %11103 = vmatmul.mubr.bf16.gmra.mrb[0].mxu0 %v10751
          %v11104 = vpop.f32.mrb[0].mxu0
          %v11105 = vadd.f32 %v10944, %v11104
          %v11106 = vpop.f32.mrb[0].mxu0
          %v11107 = vpop.f32.mrb[0].mxu0
          %v11108 = vadd.f32 %v10947, %v11107
          %v11109 = vpop.f32.mrb[0].mxu0
          %11110 = vmatprep.mubr.bf16.mxu0 %v10756
          %11111 = vmatmul.mubr.bf16.gmra.mrb[0].mxu0 %v10755
          %v11112 = vpop.f32.mrb[0].mxu0
          %v11113 = vadd.f32 %v10952, %v11112
          %v11114 = vpop.f32.mrb[0].mxu0
          %v11115 = vpop.f32.mrb[0].mxu0
          %v11116 = vadd.f32 %v10955, %v11115
          %v11117 = vpop.f32.mrb[0].mxu0
          %11118 = vmatprep.mubr.bf16.mxu0 %v10760
          %11119 = vmatmul.mubr.bf16.gmra.mrb[0].mxu0 %v10759
          %v11120 = vpop.f32.mrb[0].mxu0
          %v11121 = vadd.f32 %v10960, %v11120
          %v11122 = vpop.f32.mrb[0].mxu0
          %v11123 = vpop.f32.mrb[0].mxu0
          %v11124 = vadd.f32 %v10963, %v11123
          %v11125 = vpop.f32.mrb[0].mxu0
          %11126 = vmatprep.mubr.bf16.mxu0 %v10764
          %11127 = vmatmul.mubr.bf16.gmra.mrb[0].mxu0 %v10763
          %v11128 = vpop.f32.mrb[0].mxu0
          %v11129 = vadd.f32 %v10968, %v11128
          %v11130 = vpop.f32.mrb[0].mxu0
          %v11131 = vpop.f32.mrb[0].mxu0
          %v11132 = vadd.f32 %v10971, %v11131
          %v11133 = vpop.f32.mrb[0].mxu0
          %11134 = vmatprep.mubr.bf16.mxu0 %v10768
          %11135 = vmatmul.mubr.bf16.gmra.mrb[0].mxu0 %v10767
          %v11136 = vpop.f32.mrb[0].mxu0
          %v11137 = vadd.f32 %v10976, %v11136
          %v11138 = vpop.f32.mrb[0].mxu0
          %v11139 = vpop.f32.mrb[0].mxu0
          %v11140 = vadd.f32 %v10979, %v11139
          %v11141 = vpop.f32.mrb[0].mxu0
          %11142 = vmatprep.mubr.bf16.mxu0 %v10772
          %11143 = vmatmul.mubr.bf16.gmra.mrb[0].mxu0 %v10771
          %v11144 = vpop.f32.mrb[0].mxu0
          %v11145 = vadd.f32 %v10984, %v11144
          %v11146 = vpop.f32.mrb[0].mxu0
          %v11147 = vpop.f32.mrb[0].mxu0
          %v11148 = vadd.f32 %v10987, %v11147
          %v11149 = vpop.f32.mrb[0].mxu0
          %11150 = vmatprep.mubr.bf16.mxu0 %v10776
          %11151 = vmatmul.mubr.bf16.gmra.mrb[0].mxu0 %v10775
          %v11152 = vpop.f32.mrb[0].mxu0
          %v11153 = vadd.f32 %v10992, %v11152
          %v11154 = vpop.f32.mrb[0].mxu0
          %v11155 = vpop.f32.mrb[0].mxu0
          %v11156 = vadd.f32 %v10995, %v11155
          %v11157 = vpop.f32.mrb[0].mxu0
          %11158 = vmatprep.mubr.bf16.mxu0 %v10780
          %11159 = vmatmul.mubr.bf16.gmra.mrb[0].mxu0 %v10779
          %v11160 = vpop.f32.mrb[0].mxu0
          %v11161 = vadd.f32 %v11000, %v11160
          %v11162 = vpop.f32.mrb[0].mxu0
          %v11163 = vpop.f32.mrb[0].mxu0
          %v11164 = vadd.f32 %v11003, %v11163
          %v11165 = vpop.f32.mrb[0].mxu0
          %11166 = vdwg.mxu0
          %v11167 = vmax.f32 %v11041, 0.0
          %v11168 = vmax.f32 %v11044, 0.0
          %v11169 = vmax.f32 %v11049, 0.0
          %v11170 = vmax.f32 %v11052, 0.0
          %v11171 = vmax.f32 %v11057, 0.0
          %v11172 = vmax.f32 %v11060, 0.0
          %v11173 = vmax.f32 %v11065, 0.0
          %v11174 = vmax.f32 %v11068, 0.0
          %v11175 = vmax.f32 %v11073, 0.0
          %v11176 = vmax.f32 %v11076, 0.0
          %v11177 = vmax.f32 %v11081, 0.0
          %v11178 = vmax.f32 %v11084, 0.0
          %v11179 = vmax.f32 %v11089, 0.0
          %v11180 = vmax.f32 %v11092, 0.0
          %v11181 = vmax.f32 %v11097, 0.0
          %v11182 = vmax.f32 %v11100, 0.0
          %v11183 = vmax.f32 %v11105, 0.0
          %v11184 = vmax.f32 %v11108, 0.0
          %v11185 = vmax.f32 %v11113, 0.0
          %v11186 = vmax.f32 %v11116, 0.0
          %v11187 = vmax.f32 %v11121, 0.0
          %v11188 = vmax.f32 %v11124, 0.0
          %v11189 = vmax.f32 %v11129, 0.0
          %v11190 = vmax.f32 %v11132, 0.0
          %v11191 = vmax.f32 %v11137, 0.0
          %v11192 = vmax.f32 %v11140, 0.0
          %v11193 = vmax.f32 %v11145, 0.0
          %v11194 = vmax.f32 %v11148, 0.0
          %v11195 = vmax.f32 %v11153, 0.0
          %v11196 = vmax.f32 %v11156, 0.0
          %v11197 = vmax.f32 %v11161, 0.0
          %v11198 = vmax.f32 %v11164, 0.0
          %v11199 = vld [vmem:[%s9] sm:$0xff]
          %v11200 = vld [vmem:[%s9 + $0x8] sm:$0xff]
          %v11201 = vld [vmem:[%s9 + $0x10] sm:$0xff]
          %v11202 = vld [vmem:[%s9 + $0x18] sm:$0xff]
          %v11203 = vld [vmem:[%s9 + $0x20] sm:$0xff]
          %v11204 = vld [vmem:[%s9 + $0x28] sm:$0xff]
          %v11205 = vld [vmem:[%s9 + $0x30] sm:$0xff]
          %v11206 = vld [vmem:[%s9 + $0x38] sm:$0xff]
          %v11207 = vld [vmem:[%s9 + $0x40] sm:$0xff]
          %v11208 = vld [vmem:[%s9 + $0x48] sm:$0xff]
          %v11209 = vld [vmem:[%s9 + $0x50] sm:$0xff]
          %v11210 = vld [vmem:[%s9 + $0x58] sm:$0xff]
          %v11211 = vld [vmem:[%s9 + $0x60] sm:$0xff]
          %v11212 = vld [vmem:[%s9 + $0x68] sm:$0xff]
          %v11213 = vld [vmem:[%s9 + $0x70] sm:$0xff]
          %v11214 = vld [vmem:[%s9 + $0x78] sm:$0xff]
          %v11215 = vld [vmem:[%s9 + $0x80] sm:$0xff]
          %v11216 = vld [vmem:[%s9 + $0x88] sm:$0xff]
          %v11217 = vld [vmem:[%s9 + $0x90] sm:$0xff]
          %v11218 = vld [vmem:[%s9 + $0x98] sm:$0xff]
          %v11219 = vld [vmem:[%s9 + $0xa0] sm:$0xff]
          %v11220 = vld [vmem:[%s9 + $0xa8] sm:$0xff]
          %v11221 = vld [vmem:[%s9 + $0xb0] sm:$0xff]
          %v11222 = vld [vmem:[%s9 + $0xb8] sm:$0xff]
          %v11223 = vld [vmem:[%s9 + $0xc0] sm:$0xff]
          %v11224 = vld [vmem:[%s9 + $0xc8] sm:$0xff]
          %v11225 = vld [vmem:[%s9 + $0xd0] sm:$0xff]
          %v11226 = vld [vmem:[%s9 + $0xd8] sm:$0xff]
          %v11227 = vld [vmem:[%s9 + $0xe0] sm:$0xff]
          %v11228 = vld [vmem:[%s9 + $0xe8] sm:$0xff]
          %v11229 = vld [vmem:[%s9 + $0xf0] sm:$0xff]
          %v11230 = vld [vmem:[%s9 + $0xf8] sm:$0xff]
          %v11231 = vld [vmem:[#allocation12] sm:$0x1]
          %v11233 = vlaneseq
          %v11234 = vshrl.u32 %v11233, 7
          %v11235 = vsub.s32 0, %v11234
          %v11236 = vrot.slane %v11231, %v11235
          %11238 = vxpose.xlu0.b32.start [1/16] %v11167, 128
          %11239 = vxpose.xlu0.b32.cont [2/16] %v11168, 128
          %11240 = vxpose.xlu0.b32.cont [3/16] %v11169, 128
          %11241 = vxpose.xlu0.b32.cont [4/16] %v11170, 128
          %11242 = vxpose.xlu0.b32.cont [5/16] %v11171, 128
          %11243 = vxpose.xlu0.b32.cont [6/16] %v11172, 128
          %11244 = vxpose.xlu0.b32.cont [7/16] %v11173, 128
          %11245 = vxpose.xlu0.b32.cont [8/16] %v11174, 128
          %11246 = vxpose.xlu0.b32.cont [9/16] %v11175, 128
          %11247 = vxpose.xlu0.b32.cont [10/16] %v11176, 128
          %11248 = vxpose.xlu0.b32.cont [11/16] %v11177, 128
          %11249 = vxpose.xlu0.b32.cont [12/16] %v11178, 128
          %11250 = vxpose.xlu0.b32.cont [13/16] %v11179, 128
          %11251 = vxpose.xlu0.b32.cont [14/16] %v11180, 128
          %11252 = vxpose.xlu0.b32.cont [15/16] %v11181, 128
          %11253 = vxpose.xlu0.b32.end [16/16] %v11182, 128
          %v11254 = vpop.trf.xlu0
          %v11255 = vpop.trf.xlu0
          %v11256 = vpop.trf.xlu0
          %v11257 = vpop.trf.xlu0
          %v11258 = vpop.trf.xlu0
          %v11259 = vpop.trf.xlu0
          %v11260 = vpop.trf.xlu0
          %v11261 = vpop.trf.xlu0
          %v11262 = vpop.trf.xlu0
          %v11263 = vpop.trf.xlu0
          %v11264 = vpop.trf.xlu0
          %v11265 = vpop.trf.xlu0
          %v11266 = vpop.trf.xlu0
          %v11267 = vpop.trf.xlu0
          %v11268 = vpop.trf.xlu0
          %v11269 = vpop.trf.xlu0
          %11270 = vxpose.xlu0.b32.start [1/16] %v11183, 128
          %11271 = vxpose.xlu0.b32.cont [2/16] %v11184, 128
          %11272 = vxpose.xlu0.b32.cont [3/16] %v11185, 128
          %11273 = vxpose.xlu0.b32.cont [4/16] %v11186, 128
          %11274 = vxpose.xlu0.b32.cont [5/16] %v11187, 128
          %11275 = vxpose.xlu0.b32.cont [6/16] %v11188, 128
          %11276 = vxpose.xlu0.b32.cont [7/16] %v11189, 128
          %11277 = vxpose.xlu0.b32.cont [8/16] %v11190, 128
          %11278 = vxpose.xlu0.b32.cont [9/16] %v11191, 128
          %11279 = vxpose.xlu0.b32.cont [10/16] %v11192, 128
          %11280 = vxpose.xlu0.b32.cont [11/16] %v11193, 128
          %11281 = vxpose.xlu0.b32.cont [12/16] %v11194, 128
          %11282 = vxpose.xlu0.b32.cont [13/16] %v11195, 128
          %11283 = vxpose.xlu0.b32.cont [14/16] %v11196, 128
          %11284 = vxpose.xlu0.b32.cont [15/16] %v11197, 128
          %11285 = vxpose.xlu0.b32.end [16/16] %v11198, 128
          %v11286 = vpop.trf.xlu0
          %v11287 = vpop.trf.xlu0
          %v11288 = vpop.trf.xlu0
          %v11289 = vpop.trf.xlu0
          %v11290 = vpop.trf.xlu0
          %v11291 = vpop.trf.xlu0
          %v11292 = vpop.trf.xlu0
          %v11293 = vpop.trf.xlu0
          %v11294 = vpop.trf.xlu0
          %v11295 = vpop.trf.xlu0
          %v11296 = vpop.trf.xlu0
          %v11297 = vpop.trf.xlu0
          %v11298 = vpop.trf.xlu0
          %v11299 = vpop.trf.xlu0
          %v11300 = vpop.trf.xlu0
          %v11301 = vpop.trf.xlu0
          %11302 = vmatprep.subr.mxu0 0.0
          %11303 = vmatpush1.msra.mxu0 %v11199
          %11304 = vmatprep.subr.mxu0 0.0
          %11305 = vmatpush1.msra.mxu0 %v11200
          %11306 = vmatprep.subr.mxu0 0.0
          %11307 = vmatpush1.msra.mxu0 %v11201
          %11308 = vmatprep.subr.mxu0 0.0
          %11309 = vmatpush1.msra.mxu0 %v11202
          %11310 = vmatprep.subr.mxu0 0.0
          %11311 = vmatpush1.msra.mxu0 %v11203
          %11312 = vmatprep.subr.mxu0 0.0
          %11313 = vmatpush1.msra.mxu0 %v11204
          %11314 = vmatprep.subr.mxu0 0.0
          %11315 = vmatpush1.msra.mxu0 %v11205
          %11316 = vmatprep.subr.mxu0 0.0
          %11317 = vmatpush1.msra.mxu0 %v11206
          %11318 = vmatprep.subr.mxu0 0.0
          %11319 = vmatpush1.msra.mxu0 %v11207
          %11320 = vmatprep.subr.mxu0 0.0
          %11321 = vmatpush1.msra.mxu0 %v11208
          %11322 = vmatprep.subr.mxu0 0.0
          %11323 = vmatpush1.msra.mxu0 %v11209
          %11324 = vmatprep.subr.mxu0 0.0
          %11325 = vmatpush1.msra.mxu0 %v11210
          %11326 = vmatprep.subr.mxu0 0.0
          %11327 = vmatpush1.msra.mxu0 %v11211
          %11328 = vmatprep.subr.mxu0 0.0
          %11329 = vmatpush1.msra.mxu0 %v11212
          %11330 = vmatprep.subr.mxu0 0.0
          %11331 = vmatpush1.msra.mxu0 %v11213
          %11332 = vmatprep.subr.mxu0 0.0
          %11333 = vmatpush1.msra.mxu0 %v11214
          %11334 = vmatprep.subr.mxu0 0.0
          %11335 = vmatpush1.msra.mxu0 %v11215
          %11336 = vmatprep.subr.mxu0 0.0
          %11337 = vmatpush1.msra.mxu0 %v11216
          %11338 = vmatprep.subr.mxu0 0.0
          %11339 = vmatpush1.msra.mxu0 %v11217
          %11340 = vmatprep.subr.mxu0 0.0
          %11341 = vmatpush1.msra.mxu0 %v11218
          %11342 = vmatprep.subr.mxu0 0.0
          %11343 = vmatpush1.msra.mxu0 %v11219
          %11344 = vmatprep.subr.mxu0 0.0
          %11345 = vmatpush1.msra.mxu0 %v11220
          %11346 = vmatprep.subr.mxu0 0.0
          %11347 = vmatpush1.msra.mxu0 %v11221
          %11348 = vmatprep.subr.mxu0 0.0
          %11349 = vmatpush1.msra.mxu0 %v11222
          %11350 = vmatprep.subr.mxu0 0.0
          %11351 = vmatpush1.msra.mxu0 %v11223
          %11352 = vmatprep.subr.mxu0 0.0
          %11353 = vmatpush1.msra.mxu0 %v11224
          %11354 = vmatprep.subr.mxu0 0.0
          %11355 = vmatpush1.msra.mxu0 %v11225
          %11356 = vmatprep.subr.mxu0 0.0
          %11357 = vmatpush1.msra.mxu0 %v11226
          %11358 = vmatprep.subr.mxu0 0.0
          %11359 = vmatpush1.msra.mxu0 %v11227
          %11360 = vmatprep.subr.mxu0 0.0
          %11361 = vmatpush1.msra.mxu0 %v11228
          %11362 = vmatprep.subr.mxu0 0.0
          %11363 = vmatpush1.msra.mxu0 %v11229
          %11364 = vmatprep.subr.mxu0 0.0
          %11365 = vmatpush1.msra.mxu0 %v11230
          %11366 = vmatprep.mubr.f32.mxu0 %v11286
          %11367 = vmatmul.mubr.f32.gmra.mrb[0].mxu0 %v11254
          %v11368 = vpop.f32.mrb[0].mxu0
          %v11369 = vadd.f32 %v11236, %v11368
          %v11370 = vpop.f32.mrb[0].mxu0
          %11371 = vdwg.mxu0
          %vm11372 = vcmask 74752
          %11373 = vst.msk [vmem:[#allocation13] sm:$0x3] %vm11372, %v11369
        $region92: #{multimodal_forward.1} parent=63 // pred_fallthru
          _
        // Predicated region
        $region93: #{multimodal_forward.1} parent=63 // pred_check
          %p11374 = pneg %p282
        $region94: #{multimodal_forward.1} parent=63 // pred_check_branch
          %11376 = sbr.rel (%p11374) target = $region96
        $region95: #{multimodal_forward.1} parent=63 // pred_region
          %s11378 = ssub.s32 32, 32
          %11379 = vsyncadd [#allocation6], %s11378
          %s11381 = sshll.u32 [#allocation13], 4
          %s11382 = int_to_ptr.vmem [resolvable:$true] %s11381
          %11384 = dma.vmem_to_hbm [thread:$0]  %s11382, 32, %s11, [#allocation6]
        $region96: #{multimodal_forward.1} parent=63 // pred_fallthru
          _
        // Predicated region
        $region97: #{multimodal_forward.1} parent=63 // pred_check
          %p11385 = pneg %p282
        $region98: #{multimodal_forward.1} parent=63 // pred_check_branch
          %11387 = sbr.rel (%p11385) target = $region100
        $region99: #{multimodal_forward.1} parent=63 // pred_region
          %11388 = dma.done [#allocation6], 32
        $region100: #{multimodal_forward.1} parent=63 // pred_fallthru
          _
      $region64: #{multimodal_forward.1} parent=5 // pred_fallthru
        _
      %p11389 = scmp.le.s32.totalorder 2, %s23
      // Predicated region
      $region101: #{multimodal_forward.1} parent=5 // pred_check
        %p11390 = pneg %p11389
      $region102: #{multimodal_forward.1} parent=5 // pred_check_branch
        %11392 = sbr.rel (%p11390) target = $region104
      $region103: #{multimodal_forward.1} parent=5 // pred_region
        %s11393 = ssub.s32 %s23, 2
      $region104: #{multimodal_forward.1} parent=5 // pred_fallthru
        _
    $region6: #{multimodal_forward.1} parent=1 // loop_footer
      %s27 = sadd.s32 1, %s23
    $region7: #{multimodal_forward.1} parent=1 // loop_footer_branch
      %22 = sbr.rel target = $region3
    $region8: #{multimodal_forward.1} parent=1 // loop_exit
      _
    %11394 = vsyncpa [#allocation5], 1
    %s11395 = scalar_lea.sflag [#allocation5], 1
    %11396 = vsyncpa %s11395, 1
    %11397 = vsyncpa [#allocation8], 1
    %s11398 = scalar_lea.sflag [#allocation8], 1
    %11399 = vsyncpa %s11398, 1
    %11400 = vsyncpa [#allocation11], 1
    %11401 = vsyncpa [#allocation6], 1
    %s11402 = scalar_lea.sflag [#allocation6], 1
    %11403 = vsyncpa %s11402, 1

</llo_original>
